<compile_context>
chip_gen: v5e
topology: v5e:2x2
jax: 0.10.0
libtpu: 0.0.40
codegen_flags: <defaults>
</compile_context>

<pallas_src>
import functools

import jax
import jax.numpy as jnp
from jax import lax
from jax.experimental import pallas as pl
from jax.experimental.pallas import tpu as pltpu


# ---------------------------------------------------------------------------
# Fused Conv2d(k=2,s=1) + BatchNorm2d + ReLU + MaxPool2d(2,2) kernel
# ---------------------------------------------------------------------------
def _conv_block_kernel(x_ref, w_ref, s_ref, b_ref, o_ref, row_f32, *, hp, wp, cin):
    """One batch element per grid step.

    x_ref : (H, W, Cin)    bf16  full input image (batch dim squeezed)
    w_ref : (4*Cin, Cout)  bf16  im2col weights, row = kw*(2*Cin) + kh*Cin + ci
    s_ref : (1, Cout)      f32   folded BN scale  (gamma / sqrt(var+eps))
    b_ref : (1, Cout)      f32   folded BN bias   ((conv_b - mean)*scale + beta)
    o_ref : (Hp, Wp, Cout) bf16  pooled output
    row_f32: (2*Wp, Cout)  f32   VMEM scratch (one conv-row-pair after row max)
    """
    we = 2 * wp  # conv columns actually consumed by the floor-mode pool

    # Loop-invariant operands: read once, reuse across all pooled rows.
    scale = s_ref[...]                                   # (1, Cout) f32
    bias = b_ref[...]                                    # (1, Cout) f32
    w_bf16 = w_ref[...]                                  # (4*Cin, Cout) bf16
    wf = w_bf16.astype(jnp.float32) if cin == 1 else None

    def body(pr, carry):
        r = 2 * pr
        a = x_ref[r]        # (W, Cin) input row r     (kh=0 of conv row 2pr)
        b = x_ref[r + 1]    # (W, Cin) input row r + 1 (kh=1 / kh=0)
        c = x_ref[r + 2]    # (W, Cin) input row r + 2 (kh=1 of conv row 2pr+1)

        if cin == 1:
            # First layer: K = 4*Cin = 4 would waste the MXU; do the 4-tap conv
            # as lane-broadcast FMAs on the VPU, entirely in f32.
            a32 = a.astype(jnp.float32)
            b32 = b.astype(jnp.float32)
            c32 = c.astype(jnp.float32)

            def conv_row(top, bot):
                return (top[0:we] * wf[0:1] + top[1:1 + we] * wf[2:3]
                        + bot[0:we] * wf[1:2] + bot[1:1 + we] * wf[3:4])

            y_top = conv_row(a32, b32) * scale + bias
            y_bot = conv_row(b32, c32) * scale + bias
        else:
            # In-register im2col for the two conv rows feeding pooled row `pr`,
            # then MXU matmul with bf16 inputs / f32 accumulation.
            ab = jnp.concatenate([a, b], axis=-1)             # (W, 2*Cin)
            bc = jnp.concatenate([b, c], axis=-1)
            p_top = jnp.concatenate([ab[0:we], ab[1:1 + we]], axis=-1)  # (We, 4*Cin)
            p_bot = jnp.concatenate([bc[0:we], bc[1:1 + we]], axis=-1)
            y_top = jnp.dot(p_top, w_bf16,
                            preferred_element_type=jnp.float32) * scale + bias
            y_bot = jnp.dot(p_bot, w_bf16,
                            preferred_element_type=jnp.float32) * scale + bias

        # Vertical half of the 2x2 max-pool (BN applied before the max because
        # gamma may be negative; ReLU is monotonic so it is applied once at the
        # end and commutes with both maxes).
        row_f32[...] = jnp.maximum(y_top, y_bot)
        pooled = jnp.maximum(row_f32[pl.ds(0, wp, stride=2)],
                             row_f32[pl.ds(1, wp, stride=2)])
        pooled = jnp.maximum(pooled, 0.0)
        o_ref[pr] = pooled.astype(o_ref.dtype)
        return carry

    # Late layers have hp in {3, 7}: unroll so the scheduler sees the whole loop.
    lax.fori_loop(0, hp, body, 0, unroll=(hp <= 8))


def conv_block(x, w, b, gamma, beta, mean, var, eps=1e-5):
    """x: (N, H, W, Cin) bf16 NHWC. Returns pooled (N, Hp, Wp, Cout) bf16."""
    n, h, w_dim, cin = x.shape
    cout = w.shape[0]
    hp, wp = (h - 1) // 2, (w_dim - 1) // 2

    # im2col weight layout: row index = kw*(2*Cin) + kh*Cin + ci.
    wm = jnp.transpose(w, (3, 2, 1, 0)).reshape(4 * cin, cout).astype(jnp.bfloat16)
    scale = gamma / jnp.sqrt(var + eps)
    bias = (b - mean) * scale + beta
    scale2 = scale.reshape(1, cout).astype(jnp.float32)
    bias2 = bias.reshape(1, cout).astype(jnp.float32)

    kernel = functools.partial(_conv_block_kernel, hp=hp, wp=wp, cin=cin)
    return pl.pallas_call(
        kernel,
        out_shape=jax.ShapeDtypeStruct((n, hp, wp, cout), jnp.bfloat16),
        grid_spec=pltpu.PrefetchScalarGridSpec(
            num_scalar_prefetch=0,
            grid=(n,),
            in_specs=[
                pl.BlockSpec((None, h, w_dim, cin), lambda i: (i, 0, 0, 0)),
                pl.BlockSpec((4 * cin, cout), lambda i: (0, 0)),
                pl.BlockSpec((1, cout), lambda i: (0, 0)),
                pl.BlockSpec((1, cout), lambda i: (0, 0)),
            ],
            out_specs=pl.BlockSpec((None, hp, wp, cout), lambda i: (i, 0, 0, 0)),
            scratch_shapes=[pltpu.VMEM((2 * wp, cout), jnp.float32)],
        ),
        compiler_params=pltpu.CompilerParams(
            dimension_semantics=("parallel",),
            vmem_limit_bytes=32 * 1024 * 1024,
        ),
    )(x, wm, scale2, bias2)


# ---------------------------------------------------------------------------
# Fused head: Linear -> Linear + BN1d + ReLU -> (Dropout eval) -> Linear -> LogSoftmax
# ---------------------------------------------------------------------------
def _head_kernel(x_ref, w1_ref, b1_ref, w2_ref, s2_ref, t2_ref, w3_ref, b3_ref, o_ref):
    # Linear(1152 -> 512)
    h1 = jnp.dot(x_ref[...], w1_ref[...], preferred_element_type=jnp.float32) + b1_ref[...]
    # Linear(512 -> 256) with folded BatchNorm1d, then ReLU
    h2 = jnp.dot(h1.astype(jnp.bfloat16), w2_ref[...], preferred_element_type=jnp.float32)
    h2 = jnp.maximum(h2 * s2_ref[...] + t2_ref[...], 0.0)
    # Dropout2d(0.2): identity in eval mode.
    # Linear(256 -> 3) + LogSoftmax(dim=1)
    logits = jnp.dot(h2.astype(jnp.bfloat16), w3_ref[...],
                     preferred_element_type=jnp.float32) + b3_ref[...]
    z = logits - jnp.max(logits, axis=-1, keepdims=True)
    z = z - jnp.log(jnp.sum(jnp.exp(z), axis=-1, keepdims=True))
    o_ref[...] = z.astype(o_ref.dtype)


def head(feats, w1, b1, w2, s2, t2, w3, b3):
    n = feats.shape[0]

    def full(shape):
        return pl.BlockSpec(shape, lambda i, _n=len(shape): (0,) * _n)

    return pl.pallas_call(
        _head_kernel,
        out_shape=jax.ShapeDtypeStruct((n, 3), jnp.float32),
        grid_spec=pltpu.PrefetchScalarGridSpec(
            num_scalar_prefetch=0,
            grid=(1,),
            in_specs=[full(feats.shape), full(w1.shape), full(b1.shape),
                      full(w2.shape), full(s2.shape), full(t2.shape),
                      full(w3.shape), full(b3.shape)],
            out_specs=full((n, 3)),
        ),
        compiler_params=pltpu.CompilerParams(dimension_semantics=("arbitrary",)),
    )(feats, w1, b1, w2, s2, t2, w3, b3)


# ---------------------------------------------------------------------------
# Model: parameters + forward
# ---------------------------------------------------------------------------
_CONV_SPECS = [(1, 64), (64, 64), (64, 128), (128, 128), (128, 128)]


def init_params(key):
    keys = iter(jax.random.split(key, 40))
    params = {"conv": []}
    for cin, cout in _CONV_SPECS:
        params["conv"].append(
            dict(
                w=jax.random.normal(next(keys), (cout, cin, 2, 2), jnp.float32) * 0.05,
                b=jax.random.normal(next(keys), (cout,), jnp.float32) * 0.05,
                gamma=1.0 + 0.1 * jax.random.normal(next(keys), (cout,), jnp.float32),
                beta=0.1 * jax.random.normal(next(keys), (cout,), jnp.float32),
                mean=jnp.zeros((cout,), jnp.float32),   # BN running stats (fresh init)
                var=jnp.ones((cout,), jnp.float32),
            )
        )
    params["lin1"] = dict(
        w=jax.random.normal(next(keys), (512, 1152), jnp.float32) * 0.02,
        b=jax.random.normal(next(keys), (512,), jnp.float32) * 0.02,
    )
    params["lin2"] = dict(
        w=jax.random.normal(next(keys), (256, 512), jnp.float32) * 0.02,
        b=jax.random.normal(next(keys), (256,), jnp.float32) * 0.02,
    )
    params["bn1d"] = dict(
        gamma=1.0 + 0.1 * jax.random.normal(next(keys), (256,), jnp.float32),
        beta=0.1 * jax.random.normal(next(keys), (256,), jnp.float32),
        mean=jnp.zeros((256,), jnp.float32),
        var=jnp.ones((256,), jnp.float32),
    )
    params["lin3"] = dict(
        w=jax.random.normal(next(keys), (3, 256), jnp.float32) * 0.02,
        b=jax.random.normal(next(keys), (3,), jnp.float32) * 0.02,
    )
    return params


def cnn_forward(x_nchw, params):
    # NCHW -> NHWC, bf16 activations (f32 accumulation / epilogue in-kernel).
    x = jnp.transpose(x_nchw, (0, 2, 3, 1)).astype(jnp.bfloat16)
    for p in params["conv"]:
        x = conv_block(x, p["w"], p["b"], p["gamma"], p["beta"], p["mean"], p["var"])

    n, hh, ww, cc = x.shape             # (N, 3, 3, 128)
    feats = x.reshape(n, hh * ww * cc)  # NHWC flatten; lin1 rows reordered to match

    l1, l2, l3, bn = params["lin1"], params["lin2"], params["lin3"], params["bn1d"]

    # Reorder lin1 rows from PyTorch NCHW-flatten order (c*9 + h*3 + w) to the
    # NHWC-flatten order (h*ww*cc + w*cc + c) used above.
    w1 = jnp.transpose(l1["w"].reshape(512, cc, hh, ww), (2, 3, 1, 0))
    w1 = w1.reshape(hh * ww * cc, 512).astype(jnp.bfloat16)
    b1 = l1["b"].reshape(1, 512).astype(jnp.float32)

    s2 = bn["gamma"] / jnp.sqrt(bn["var"] + 1e-5)
    t2 = ((l2["b"] - bn["mean"]) * s2 + bn["beta"]).reshape(1, 256).astype(jnp.float32)
    w2 = l2["w"].T.astype(jnp.bfloat16)
    s2 = s2.reshape(1, 256).astype(jnp.float32)

    w3 = l3["w"].T.astype(jnp.bfloat16)
    b3 = l3["b"].reshape(1, 3).astype(jnp.float32)

    return head(feats, w1, b1, w2, s2, t2, w3, b3)


if __name__ == "__main__":
    key = jax.random.PRNGKey(0)
    pkey, xkey = jax.random.split(key)
    params = init_params(pkey)
    # Input 128x128 is required so the final flatten is 128*3*3 = 1152
    # (matching nn.Linear(in_features=1152, ...)); batch kept small.
    x = jax.random.normal(xkey, (2, 1, 128, 128), jnp.float32)

    fwd = jax.jit(cnn_forward)
    out = fwd(x, params)
    jax.block_until_ready(out)

    assert out.shape == (2, 3), out.shape
    # LogSoftmax rows must exponentiate-sum to ~1
    assert bool(jnp.all(jnp.abs(jnp.sum(jnp.exp(out), axis=1) - 1.0) < 1e-4))
    print("KERNEL_OK")
</pallas_src>

<mosaic_0001>
module attributes {stable_mosaic.version = 11 : i64} {
  func.func @_conv_block_kernel(%arg0: i32, %arg1: memref<1x128x128x1xbf16, #tpu.memory_space<vmem>>, %arg2: memref<4x64xbf16, #tpu.memory_space<vmem>>, %arg3: memref<1x64xf32, #tpu.memory_space<vmem>>, %arg4: memref<1x64xf32, #tpu.memory_space<vmem>>, %arg5: memref<1x63x63x64xbf16, #tpu.memory_space<vmem>>, %arg6: memref<126x64xf32, #tpu.memory_space<vmem>>) attributes {dimension_semantics = [#tpu.dimension_semantics<parallel>], iteration_bounds = array<i64: 2>, scalar_prefetch = 0 : i64, scratch_operands = 1 : i64, tpu.core_type = #tpu.core_type<tc>, window_params = [{transform_indices = @transform_0, window_bounds = array<i64: 1, 128, 128, 1>}, {pipeline_mode = #tpu.pipeline_mode<synchronous>, transform_indices = @transform_1, window_bounds = array<i64: 4, 64>}, {pipeline_mode = #tpu.pipeline_mode<synchronous>, transform_indices = @transform_2, window_bounds = array<i64: 1, 64>}, {pipeline_mode = #tpu.pipeline_mode<synchronous>, transform_indices = @transform_3, window_bounds = array<i64: 1, 64>}, {transform_indices = @transform_4, window_bounds = array<i64: 1, 63, 63, 64>}]} {
    %c0 = arith.constant 0 : index
    %c0_0 = arith.constant 0 : index
    %0 = vector.load %arg3[%c0, %c0_0] : memref<1x64xf32, #tpu.memory_space<vmem>>, vector<1x64xf32>
    %c0_1 = arith.constant 0 : index
    %c0_2 = arith.constant 0 : index
    %1 = vector.load %arg4[%c0_1, %c0_2] : memref<1x64xf32, #tpu.memory_space<vmem>>, vector<1x64xf32>
    %c0_3 = arith.constant 0 : index
    %c0_4 = arith.constant 0 : index
    %2 = vector.load %arg2[%c0_3, %c0_4] : memref<4x64xbf16, #tpu.memory_space<vmem>>, vector<4x64xbf16>
    %3 = arith.extf %2 : vector<4x64xbf16> to vector<4x64xf32>
    %c0_i32 = arith.constant 0 : i32
    %c63_i32 = arith.constant 63 : i32
    %4 = arith.addi %c0_i32, %c63_i32 : i32
    %c1_i32 = arith.constant 1 : i32
    scf.for %arg7 = %c0_i32 to %4 step %c1_i32  : i32 {
      %c2_i32 = arith.constant 2 : i32
      %5 = arith.muli %c2_i32, %arg7 : i32
      %c0_6 = arith.constant 0 : index
      %6 = arith.index_cast %5 : i32 to index
      %c0_7 = arith.constant 0 : index
      %c0_8 = arith.constant 0 : index
      %7 = vector.load %arg1[%c0_6, %6, %c0_7, %c0_8] : memref<1x128x128x1xbf16, #tpu.memory_space<vmem>>, vector<1x1x128x1xbf16>
      %8 = vector.shape_cast %7 : vector<1x1x128x1xbf16> to vector<128x1xbf16>
      %c1_i32_9 = arith.constant 1 : i32
      %9 = arith.addi %5, %c1_i32_9 : i32
      %c0_10 = arith.constant 0 : index
      %10 = arith.index_cast %9 : i32 to index
      %c0_11 = arith.constant 0 : index
      %c0_12 = arith.constant 0 : index
      %11 = vector.load %arg1[%c0_10, %10, %c0_11, %c0_12] : memref<1x128x128x1xbf16, #tpu.memory_space<vmem>>, vector<1x1x128x1xbf16>
      %12 = vector.shape_cast %11 : vector<1x1x128x1xbf16> to vector<128x1xbf16>
      %c2_i32_13 = arith.constant 2 : i32
      %13 = arith.addi %5, %c2_i32_13 : i32
      %c0_14 = arith.constant 0 : index
      %14 = arith.index_cast %13 : i32 to index
      %c0_15 = arith.constant 0 : index
      %c0_16 = arith.constant 0 : index
      %15 = vector.load %arg1[%c0_14, %14, %c0_15, %c0_16] : memref<1x128x128x1xbf16, #tpu.memory_space<vmem>>, vector<1x1x128x1xbf16>
      %16 = vector.shape_cast %15 : vector<1x1x128x1xbf16> to vector<128x1xbf16>
      %17 = arith.extf %8 : vector<128x1xbf16> to vector<128x1xf32>
      %18 = arith.extf %12 : vector<128x1xbf16> to vector<128x1xf32>
      %19 = arith.extf %16 : vector<128x1xbf16> to vector<128x1xf32>
      %20 = vector.extract_strided_slice %17 {offsets = [0, 0], sizes = [126, 1], strides = [1, 1]} : vector<128x1xf32> to vector<126x1xf32>
      %21 = vector.extract_strided_slice %3 {offsets = [0, 0], sizes = [1, 64], strides = [1, 1]} : vector<4x64xf32> to vector<1x64xf32>
      %22 = vector.broadcast %20 : vector<126x1xf32> to vector<126x64xf32>
      %23 = vector.broadcast %21 : vector<1x64xf32> to vector<126x64xf32>
      %24 = arith.mulf %22, %23 : vector<126x64xf32>
      %25 = vector.extract_strided_slice %17 {offsets = [1, 0], sizes = [126, 1], strides = [1, 1]} : vector<128x1xf32> to vector<126x1xf32>
      %26 = vector.extract_strided_slice %3 {offsets = [2, 0], sizes = [1, 64], strides = [1, 1]} : vector<4x64xf32> to vector<1x64xf32>
      %27 = vector.broadcast %25 : vector<126x1xf32> to vector<126x64xf32>
      %28 = vector.broadcast %26 : vector<1x64xf32> to vector<126x64xf32>
      %29 = arith.mulf %27, %28 : vector<126x64xf32>
      %30 = arith.addf %24, %29 : vector<126x64xf32>
      %31 = vector.extract_strided_slice %18 {offsets = [0, 0], sizes = [126, 1], strides = [1, 1]} : vector<128x1xf32> to vector<126x1xf32>
      %32 = vector.extract_strided_slice %3 {offsets = [1, 0], sizes = [1, 64], strides = [1, 1]} : vector<4x64xf32> to vector<1x64xf32>
      %33 = vector.broadcast %31 : vector<126x1xf32> to vector<126x64xf32>
      %34 = vector.broadcast %32 : vector<1x64xf32> to vector<126x64xf32>
      %35 = arith.mulf %33, %34 : vector<126x64xf32>
      %36 = arith.addf %30, %35 : vector<126x64xf32>
      %37 = vector.extract_strided_slice %18 {offsets = [1, 0], sizes = [126, 1], strides = [1, 1]} : vector<128x1xf32> to vector<126x1xf32>
      %38 = vector.extract_strided_slice %3 {offsets = [3, 0], sizes = [1, 64], strides = [1, 1]} : vector<4x64xf32> to vector<1x64xf32>
      %39 = vector.broadcast %37 : vector<126x1xf32> to vector<126x64xf32>
      %40 = vector.broadcast %38 : vector<1x64xf32> to vector<126x64xf32>
      %41 = arith.mulf %39, %40 : vector<126x64xf32>
      %42 = arith.addf %36, %41 : vector<126x64xf32>
      %43 = vector.broadcast %0 : vector<1x64xf32> to vector<126x64xf32>
      %44 = arith.mulf %42, %43 : vector<126x64xf32>
      %45 = vector.broadcast %1 : vector<1x64xf32> to vector<126x64xf32>
      %46 = arith.addf %44, %45 : vector<126x64xf32>
      %47 = vector.extract_strided_slice %18 {offsets = [0, 0], sizes = [126, 1], strides = [1, 1]} : vector<128x1xf32> to vector<126x1xf32>
      %48 = vector.extract_strided_slice %3 {offsets = [0, 0], sizes = [1, 64], strides = [1, 1]} : vector<4x64xf32> to vector<1x64xf32>
      %49 = vector.broadcast %47 : vector<126x1xf32> to vector<126x64xf32>
      %50 = vector.broadcast %48 : vector<1x64xf32> to vector<126x64xf32>
      %51 = arith.mulf %49, %50 : vector<126x64xf32>
      %52 = vector.extract_strided_slice %18 {offsets = [1, 0], sizes = [126, 1], strides = [1, 1]} : vector<128x1xf32> to vector<126x1xf32>
      %53 = vector.extract_strided_slice %3 {offsets = [2, 0], sizes = [1, 64], strides = [1, 1]} : vector<4x64xf32> to vector<1x64xf32>
      %54 = vector.broadcast %52 : vector<126x1xf32> to vector<126x64xf32>
      %55 = vector.broadcast %53 : vector<1x64xf32> to vector<126x64xf32>
      %56 = arith.mulf %54, %55 : vector<126x64xf32>
      %57 = arith.addf %51, %56 : vector<126x64xf32>
      %58 = vector.extract_strided_slice %19 {offsets = [0, 0], sizes = [126, 1], strides = [1, 1]} : vector<128x1xf32> to vector<126x1xf32>
      %59 = vector.extract_strided_slice %3 {offsets = [1, 0], sizes = [1, 64], strides = [1, 1]} : vector<4x64xf32> to vector<1x64xf32>
      %60 = vector.broadcast %58 : vector<126x1xf32> to vector<126x64xf32>
      %61 = vector.broadcast %59 : vector<1x64xf32> to vector<126x64xf32>
      %62 = arith.mulf %60, %61 : vector<126x64xf32>
      %63 = arith.addf %57, %62 : vector<126x64xf32>
      %64 = vector.extract_strided_slice %19 {offsets = [1, 0], sizes = [126, 1], strides = [1, 1]} : vector<128x1xf32> to vector<126x1xf32>
      %65 = vector.extract_strided_slice %3 {offsets = [3, 0], sizes = [1, 64], strides = [1, 1]} : vector<4x64xf32> to vector<1x64xf32>
      %66 = vector.broadcast %64 : vector<126x1xf32> to vector<126x64xf32>
      %67 = vector.broadcast %65 : vector<1x64xf32> to vector<126x64xf32>
      %68 = arith.mulf %66, %67 : vector<126x64xf32>
      %69 = arith.addf %63, %68 : vector<126x64xf32>
      %70 = vector.broadcast %0 : vector<1x64xf32> to vector<126x64xf32>
      %71 = arith.mulf %69, %70 : vector<126x64xf32>
      %72 = vector.broadcast %1 : vector<1x64xf32> to vector<126x64xf32>
      %73 = arith.addf %71, %72 : vector<126x64xf32>
      %74 = arith.maximumf %46, %73 : vector<126x64xf32>
      %c0_17 = arith.constant 0 : index
      %c0_18 = arith.constant 0 : index
      %75 = vector.load %arg6[%c0_17, %c0_18] : memref<126x64xf32, #tpu.memory_space<vmem>>, vector<126x64xf32>
      tpu.vector_store %arg6[%c0_17, %c0_18], %74 {strides = array<i32>} : memref<126x64xf32, #tpu.memory_space<vmem>>, vector<126x64xf32>,
      %c0_19 = arith.constant 0 : index
      %c0_20 = arith.constant 0 : index
      %76 = tpu.strided_load %arg6[%c0_19, %c0_20] {strides = array<i32: 2, 1>} : memref<126x64xf32, #tpu.memory_space<vmem>>, vector<63x64xf32>
      %c1 = arith.constant 1 : index
      %c0_21 = arith.constant 0 : index
      %77 = tpu.strided_load %arg6[%c1, %c0_21] {strides = array<i32: 2, 1>} : memref<126x64xf32, #tpu.memory_space<vmem>>, vector<63x64xf32>
      %78 = arith.maximumf %76, %77 : vector<63x64xf32>
      %cst = arith.constant 0.000000e+00 : f32
      %79 = vector.broadcast %cst : f32 to vector<63x64xf32>
      %80 = arith.maximumf %78, %79 : vector<63x64xf32>
      %81 = arith.truncf %80 : vector<63x64xf32> to vector<63x64xbf16>
      %c0_22 = arith.constant 0 : index
      %82 = arith.index_cast %arg7 : i32 to index
      %c0_23 = arith.constant 0 : index
      %c0_24 = arith.constant 0 : index
      %83 = vector.load %arg5[%c0_22, %82, %c0_23, %c0_24] : memref<1x63x63x64xbf16, #tpu.memory_space<vmem>>, vector<1x1x63x64xbf16>
      %84 = vector.shape_cast %83 : vector<1x1x63x64xbf16> to vector<63x64xbf16>
      %85 = vector.shape_cast %81 : vector<63x64xbf16> to vector<1x1x63x64xbf16>
      tpu.vector_store %arg5[%c0_22, %82, %c0_23, %c0_24], %85 {strides = array<i32>} : memref<1x63x63x64xbf16, #tpu.memory_space<vmem>>, vector<1x1x63x64xbf16>,
    }
    %c63_i32_5 = arith.constant 63 : i32
    return
  }
  func.func @transform_0(%arg0: i32) -> (i32, i32, i32, i32) {
    %c0_i32 = arith.constant 0 : i32
    %c0_i32_0 = arith.constant 0 : i32
    %c0_i32_1 = arith.constant 0 : i32
    %c0_i32_2 = arith.constant 0 : i32
    return %arg0, %c0_i32, %c0_i32_0, %c0_i32_1 : i32, i32, i32, i32
  }
  func.func @transform_1(%arg0: i32) -> (i32, i32) {
    %c0_i32 = arith.constant 0 : i32
    %c0_i32_0 = arith.constant 0 : i32
    %c0_i32_1 = arith.constant 0 : i32
    return %c0_i32, %c0_i32_0 : i32, i32
  }
  func.func @transform_2(%arg0: i32) -> (i32, i32) {
    %c0_i32 = arith.constant 0 : i32
    %c0_i32_0 = arith.constant 0 : i32
    %c0_i32_1 = arith.constant 0 : i32
    return %c0_i32, %c0_i32_0 : i32, i32
  }
  func.func @transform_3(%arg0: i32) -> (i32, i32) {
    %c0_i32 = arith.constant 0 : i32
    %c0_i32_0 = arith.constant 0 : i32
    %c0_i32_1 = arith.constant 0 : i32
    return %c0_i32, %c0_i32_0 : i32, i32
  }
  func.func @transform_4(%arg0: i32) -> (i32, i32, i32, i32) {
    %c0_i32 = arith.constant 0 : i32
    %c0_i32_0 = arith.constant 0 : i32
    %c0_i32_1 = arith.constant 0 : i32
    %c0_i32_2 = arith.constant 0 : i32
    return %arg0, %c0_i32, %c0_i32_0, %c0_i32_1 : i32, i32, i32, i32
  }
}

module attributes {stable_mosaic.version = 11 : i64} {
  func.func @_conv_block_kernel(%arg0: i32, %arg1: memref<1x31x31x64xbf16, #tpu.memory_space<vmem>>, %arg2: memref<256x128xbf16, #tpu.memory_space<vmem>>, %arg3: memref<1x128xf32, #tpu.memory_space<vmem>>, %arg4: memref<1x128xf32, #tpu.memory_space<vmem>>, %arg5: memref<1x15x15x128xbf16, #tpu.memory_space<vmem>>, %arg6: memref<30x128xf32, #tpu.memory_space<vmem>>) attributes {dimension_semantics = [#tpu.dimension_semantics<parallel>], iteration_bounds = array<i64: 2>, scalar_prefetch = 0 : i64, scratch_operands = 1 : i64, tpu.core_type = #tpu.core_type<tc>, window_params = [{transform_indices = @transform_0, window_bounds = array<i64: 1, 31, 31, 64>}, {pipeline_mode = #tpu.pipeline_mode<synchronous>, transform_indices = @transform_1, window_bounds = array<i64: 256, 128>}, {pipeline_mode = #tpu.pipeline_mode<synchronous>, transform_indices = @transform_2, window_bounds = array<i64: 1, 128>}, {pipeline_mode = #tpu.pipeline_mode<synchronous>, transform_indices = @transform_3, window_bounds = array<i64: 1, 128>}, {transform_indices = @transform_4, window_bounds = array<i64: 1, 15, 15, 128>}]} {
    %c0 = arith.constant 0 : index
    %c0_0 = arith.constant 0 : index
    %0 = vector.load %arg3[%c0, %c0_0] : memref<1x128xf32, #tpu.memory_space<vmem>>, vector<1x128xf32>
    %c0_1 = arith.constant 0 : index
    %c0_2 = arith.constant 0 : index
    %1 = vector.load %arg4[%c0_1, %c0_2] : memref<1x128xf32, #tpu.memory_space<vmem>>, vector<1x128xf32>
    %c0_3 = arith.constant 0 : index
    %c0_4 = arith.constant 0 : index
    %2 = vector.load %arg2[%c0_3, %c0_4] : memref<256x128xbf16, #tpu.memory_space<vmem>>, vector<256x128xbf16>
    %c0_i32 = arith.constant 0 : i32
    %c15_i32 = arith.constant 15 : i32
    %3 = arith.addi %c0_i32, %c15_i32 : i32
    %c1_i32 = arith.constant 1 : i32
    scf.for %arg7 = %c0_i32 to %3 step %c1_i32  : i32 {
      %c2_i32 = arith.constant 2 : i32
      %4 = arith.muli %c2_i32, %arg7 : i32
      %c0_6 = arith.constant 0 : index
      %5 = arith.index_cast %4 : i32 to index
      %c0_7 = arith.constant 0 : index
      %c0_8 = arith.constant 0 : index
      %6 = vector.load %arg1[%c0_6, %5, %c0_7, %c0_8] : memref<1x31x31x64xbf16, #tpu.memory_space<vmem>>, vector<1x1x31x64xbf16>
      %7 = vector.shape_cast %6 : vector<1x1x31x64xbf16> to vector<31x64xbf16>
      %c1_i32_9 = arith.constant 1 : i32
      %8 = arith.addi %4, %c1_i32_9 : i32
      %c0_10 = arith.constant 0 : index
      %9 = arith.index_cast %8 : i32 to index
      %c0_11 = arith.constant 0 : index
      %c0_12 = arith.constant 0 : index
      %10 = vector.load %arg1[%c0_10, %9, %c0_11, %c0_12] : memref<1x31x31x64xbf16, #tpu.memory_space<vmem>>, vector<1x1x31x64xbf16>
      %11 = vector.shape_cast %10 : vector<1x1x31x64xbf16> to vector<31x64xbf16>
      %c2_i32_13 = arith.constant 2 : i32
      %12 = arith.addi %4, %c2_i32_13 : i32
      %c0_14 = arith.constant 0 : index
      %13 = arith.index_cast %12 : i32 to index
      %c0_15 = arith.constant 0 : index
      %c0_16 = arith.constant 0 : index
      %14 = vector.load %arg1[%c0_14, %13, %c0_15, %c0_16] : memref<1x31x31x64xbf16, #tpu.memory_space<vmem>>, vector<1x1x31x64xbf16>
      %15 = vector.shape_cast %14 : vector<1x1x31x64xbf16> to vector<31x64xbf16>
      %16 = tpu.concatenate %7, %11 in 1 : vector<31x64xbf16>, vector<31x64xbf16> -> vector<31x128xbf16>
      %17 = tpu.concatenate %11, %15 in 1 : vector<31x64xbf16>, vector<31x64xbf16> -> vector<31x128xbf16>
      %18 = vector.extract_strided_slice %16 {offsets = [0, 0], sizes = [30, 128], strides = [1, 1]} : vector<31x128xbf16> to vector<30x128xbf16>
      %19 = vector.extract_strided_slice %16 {offsets = [1, 0], sizes = [30, 128], strides = [1, 1]} : vector<31x128xbf16> to vector<30x128xbf16>
      %20 = tpu.concatenate %18, %19 in 1 : vector<30x128xbf16>, vector<30x128xbf16> -> vector<30x256xbf16>
      %21 = vector.extract_strided_slice %17 {offsets = [0, 0], sizes = [30, 128], strides = [1, 1]} : vector<31x128xbf16> to vector<30x128xbf16>
      %22 = vector.extract_strided_slice %17 {offsets = [1, 0], sizes = [30, 128], strides = [1, 1]} : vector<31x128xbf16> to vector<30x128xbf16>
      %23 = tpu.concatenate %21, %22 in 1 : vector<30x128xbf16>, vector<30x128xbf16> -> vector<30x256xbf16>
      %cst = arith.constant dense<0.000000e+00> : vector<30x128xf32>
      %24 = tpu.matmul %20, %2, %cst {dimension_numbers = #tpu.dot_dimension_numbers<[1], [0], [0], [1], [0, 0, 1, 1], [], []>} : vector<30x256xbf16>, vector<256x128xbf16>, vector<30x128xf32> -> vector<30x128xf32>
      %25 = vector.broadcast %0 : vector<1x128xf32> to vector<30x128xf32>
      %26 = arith.mulf %24, %25 : vector<30x128xf32>
      %27 = vector.broadcast %1 : vector<1x128xf32> to vector<30x128xf32>
      %28 = arith.addf %26, %27 : vector<30x128xf32>
      %cst_17 = arith.constant dense<0.000000e+00> : vector<30x128xf32>
      %29 = tpu.matmul %23, %2, %cst_17 {dimension_numbers = #tpu.dot_dimension_numbers<[1], [0], [0], [1], [0, 0, 1, 1], [], []>} : vector<30x256xbf16>, vector<256x128xbf16>, vector<30x128xf32> -> vector<30x128xf32>
      %30 = vector.broadcast %0 : vector<1x128xf32> to vector<30x128xf32>
      %31 = arith.mulf %29, %30 : vector<30x128xf32>
      %32 = vector.broadcast %1 : vector<1x128xf32> to vector<30x128xf32>
      %33 = arith.addf %31, %32 : vector<30x128xf32>
      %34 = arith.maximumf %28, %33 : vector<30x128xf32>
      %c0_18 = arith.constant 0 : index
      %c0_19 = arith.constant 0 : index
      %35 = vector.load %arg6[%c0_18, %c0_19] : memref<30x128xf32, #tpu.memory_space<vmem>>, vector<30x128xf32>
      tpu.vector_store %arg6[%c0_18, %c0_19], %34 {strides = array<i32>} : memref<30x128xf32, #tpu.memory_space<vmem>>, vector<30x128xf32>,
      %c0_20 = arith.constant 0 : index
      %c0_21 = arith.constant 0 : index
      %36 = tpu.strided_load %arg6[%c0_20, %c0_21] {strides = array<i32: 2, 1>} : memref<30x128xf32, #tpu.memory_space<vmem>>, vector<15x128xf32>
      %c1 = arith.constant 1 : index
      %c0_22 = arith.constant 0 : index
      %37 = tpu.strided_load %arg6[%c1, %c0_22] {strides = array<i32: 2, 1>} : memref<30x128xf32, #tpu.memory_space<vmem>>, vector<15x128xf32>
      %38 = arith.maximumf %36, %37 : vector<15x128xf32>
      %cst_23 = arith.constant 0.000000e+00 : f32
      %39 = vector.broadcast %cst_23 : f32 to vector<15x128xf32>
      %40 = arith.maximumf %38, %39 : vector<15x128xf32>
      %41 = arith.truncf %40 : vector<15x128xf32> to vector<15x128xbf16>
      %c0_24 = arith.constant 0 : index
      %42 = arith.index_cast %arg7 : i32 to index
      %c0_25 = arith.constant 0 : index
      %c0_26 = arith.constant 0 : index
      %43 = vector.load %arg5[%c0_24, %42, %c0_25, %c0_26] : memref<1x15x15x128xbf16, #tpu.memory_space<vmem>>, vector<1x1x15x128xbf16>
      %44 = vector.shape_cast %43 : vector<1x1x15x128xbf16> to vector<15x128xbf16>
      %45 = vector.shape_cast %41 : vector<15x128xbf16> to vector<1x1x15x128xbf16>
      tpu.vector_store %arg5[%c0_24, %42, %c0_25, %c0_26], %45 {strides = array<i32>} : memref<1x15x15x128xbf16, #tpu.memory_space<vmem>>, vector<1x1x15x128xbf16>,
    }
    %c15_i32_5 = arith.constant 15 : i32
    return
  }
  func.func @transform_0(%arg0: i32) -> (i32, i32, i32, i32) {
    %c0_i32 = arith.constant 0 : i32
    %c0_i32_0 = arith.constant 0 : i32
    %c0_i32_1 = arith.constant 0 : i32
    %c0_i32_2 = arith.constant 0 : i32
    return %arg0, %c0_i32, %c0_i32_0, %c0_i32_1 : i32, i32, i32, i32
  }
  func.func @transform_1(%arg0: i32) -> (i32, i32) {
    %c0_i32 = arith.constant 0 : i32
    %c0_i32_0 = arith.constant 0 : i32
    %c0_i32_1 = arith.constant 0 : i32
    return %c0_i32, %c0_i32_0 : i32, i32
  }
  func.func @transform_2(%arg0: i32) -> (i32, i32) {
    %c0_i32 = arith.constant 0 : i32
    %c0_i32_0 = arith.constant 0 : i32
    %c0_i32_1 = arith.constant 0 : i32
    return %c0_i32, %c0_i32_0 : i32, i32
  }
  func.func @transform_3(%arg0: i32) -> (i32, i32) {
    %c0_i32 = arith.constant 0 : i32
    %c0_i32_0 = arith.constant 0 : i32
    %c0_i32_1 = arith.constant 0 : i32
    return %c0_i32, %c0_i32_0 : i32, i32
  }
  func.func @transform_4(%arg0: i32) -> (i32, i32, i32, i32) {
    %c0_i32 = arith.constant 0 : i32
    %c0_i32_0 = arith.constant 0 : i32
    %c0_i32_1 = arith.constant 0 : i32
    %c0_i32_2 = arith.constant 0 : i32
    return %arg0, %c0_i32, %c0_i32_0, %c0_i32_1 : i32, i32, i32, i32
  }
}

module attributes {stable_mosaic.version = 11 : i64} {
  func.func @_conv_block_kernel(%arg0: i32, %arg1: memref<1x63x63x64xbf16, #tpu.memory_space<vmem>>, %arg2: memref<256x64xbf16, #tpu.memory_space<vmem>>, %arg3: memref<1x64xf32, #tpu.memory_space<vmem>>, %arg4: memref<1x64xf32, #tpu.memory_space<vmem>>, %arg5: memref<1x31x31x64xbf16, #tpu.memory_space<vmem>>, %arg6: memref<62x64xf32, #tpu.memory_space<vmem>>) attributes {dimension_semantics = [#tpu.dimension_semantics<parallel>], iteration_bounds = array<i64: 2>, scalar_prefetch = 0 : i64, scratch_operands = 1 : i64, tpu.core_type = #tpu.core_type<tc>, window_params = [{transform_indices = @transform_0, window_bounds = array<i64: 1, 63, 63, 64>}, {pipeline_mode = #tpu.pipeline_mode<synchronous>, transform_indices = @transform_1, window_bounds = array<i64: 256, 64>}, {pipeline_mode = #tpu.pipeline_mode<synchronous>, transform_indices = @transform_2, window_bounds = array<i64: 1, 64>}, {pipeline_mode = #tpu.pipeline_mode<synchronous>, transform_indices = @transform_3, window_bounds = array<i64: 1, 64>}, {transform_indices = @transform_4, window_bounds = array<i64: 1, 31, 31, 64>}]} {
    %c0 = arith.constant 0 : index
    %c0_0 = arith.constant 0 : index
    %0 = vector.load %arg3[%c0, %c0_0] : memref<1x64xf32, #tpu.memory_space<vmem>>, vector<1x64xf32>
    %c0_1 = arith.constant 0 : index
    %c0_2 = arith.constant 0 : index
    %1 = vector.load %arg4[%c0_1, %c0_2] : memref<1x64xf32, #tpu.memory_space<vmem>>, vector<1x64xf32>
    %c0_3 = arith.constant 0 : index
    %c0_4 = arith.constant 0 : index
    %2 = vector.load %arg2[%c0_3, %c0_4] : memref<256x64xbf16, #tpu.memory_space<vmem>>, vector<256x64xbf16>
    %c0_i32 = arith.constant 0 : i32
    %c31_i32 = arith.constant 31 : i32
    %3 = arith.addi %c0_i32, %c31_i32 : i32
    %c1_i32 = arith.constant 1 : i32
    scf.for %arg7 = %c0_i32 to %3 step %c1_i32  : i32 {
      %c2_i32 = arith.constant 2 : i32
      %4 = arith.muli %c2_i32, %arg7 : i32
      %c0_6 = arith.constant 0 : index
      %5 = arith.index_cast %4 : i32 to index
      %c0_7 = arith.constant 0 : index
      %c0_8 = arith.constant 0 : index
      %6 = vector.load %arg1[%c0_6, %5, %c0_7, %c0_8] : memref<1x63x63x64xbf16, #tpu.memory_space<vmem>>, vector<1x1x63x64xbf16>
      %7 = vector.shape_cast %6 : vector<1x1x63x64xbf16> to vector<63x64xbf16>
      %c1_i32_9 = arith.constant 1 : i32
      %8 = arith.addi %4, %c1_i32_9 : i32
      %c0_10 = arith.constant 0 : index
      %9 = arith.index_cast %8 : i32 to index
      %c0_11 = arith.constant 0 : index
      %c0_12 = arith.constant 0 : index
      %10 = vector.load %arg1[%c0_10, %9, %c0_11, %c0_12] : memref<1x63x63x64xbf16, #tpu.memory_space<vmem>>, vector<1x1x63x64xbf16>
      %11 = vector.shape_cast %10 : vector<1x1x63x64xbf16> to vector<63x64xbf16>
      %c2_i32_13 = arith.constant 2 : i32
      %12 = arith.addi %4, %c2_i32_13 : i32
      %c0_14 = arith.constant 0 : index
      %13 = arith.index_cast %12 : i32 to index
      %c0_15 = arith.constant 0 : index
      %c0_16 = arith.constant 0 : index
      %14 = vector.load %arg1[%c0_14, %13, %c0_15, %c0_16] : memref<1x63x63x64xbf16, #tpu.memory_space<vmem>>, vector<1x1x63x64xbf16>
      %15 = vector.shape_cast %14 : vector<1x1x63x64xbf16> to vector<63x64xbf16>
      %16 = tpu.concatenate %7, %11 in 1 : vector<63x64xbf16>, vector<63x64xbf16> -> vector<63x128xbf16>
      %17 = tpu.concatenate %11, %15 in 1 : vector<63x64xbf16>, vector<63x64xbf16> -> vector<63x128xbf16>
      %18 = vector.extract_strided_slice %16 {offsets = [0, 0], sizes = [62, 128], strides = [1, 1]} : vector<63x128xbf16> to vector<62x128xbf16>
      %19 = vector.extract_strided_slice %16 {offsets = [1, 0], sizes = [62, 128], strides = [1, 1]} : vector<63x128xbf16> to vector<62x128xbf16>
      %20 = tpu.concatenate %18, %19 in 1 : vector<62x128xbf16>, vector<62x128xbf16> -> vector<62x256xbf16>
      %21 = vector.extract_strided_slice %17 {offsets = [0, 0], sizes = [62, 128], strides = [1, 1]} : vector<63x128xbf16> to vector<62x128xbf16>
      %22 = vector.extract_strided_slice %17 {offsets = [1, 0], sizes = [62, 128], strides = [1, 1]} : vector<63x128xbf16> to vector<62x128xbf16>
      %23 = tpu.concatenate %21, %22 in 1 : vector<62x128xbf16>, vector<62x128xbf16> -> vector<62x256xbf16>
      %cst = arith.constant dense<0.000000e+00> : vector<62x64xf32>
      %24 = tpu.matmul %20, %2, %cst {dimension_numbers = #tpu.dot_dimension_numbers<[1], [0], [0], [1], [0, 0, 1, 1], [], []>} : vector<62x256xbf16>, vector<256x64xbf16>, vector<62x64xf32> -> vector<62x64xf32>
      %25 = vector.broadcast %0 : vector<1x64xf32> to vector<62x64xf32>
      %26 = arith.mulf %24, %25 : vector<62x64xf32>
      %27 = vector.broadcast %1 : vector<1x64xf32> to vector<62x64xf32>
      %28 = arith.addf %26, %27 : vector<62x64xf32>
      %cst_17 = arith.constant dense<0.000000e+00> : vector<62x64xf32>
      %29 = tpu.matmul %23, %2, %cst_17 {dimension_numbers = #tpu.dot_dimension_numbers<[1], [0], [0], [1], [0, 0, 1, 1], [], []>} : vector<62x256xbf16>, vector<256x64xbf16>, vector<62x64xf32> -> vector<62x64xf32>
      %30 = vector.broadcast %0 : vector<1x64xf32> to vector<62x64xf32>
      %31 = arith.mulf %29, %30 : vector<62x64xf32>
      %32 = vector.broadcast %1 : vector<1x64xf32> to vector<62x64xf32>
      %33 = arith.addf %31, %32 : vector<62x64xf32>
      %34 = arith.maximumf %28, %33 : vector<62x64xf32>
      %c0_18 = arith.constant 0 : index
      %c0_19 = arith.constant 0 : index
      %35 = vector.load %arg6[%c0_18, %c0_19] : memref<62x64xf32, #tpu.memory_space<vmem>>, vector<62x64xf32>
      tpu.vector_store %arg6[%c0_18, %c0_19], %34 {strides = array<i32>} : memref<62x64xf32, #tpu.memory_space<vmem>>, vector<62x64xf32>,
      %c0_20 = arith.constant 0 : index
      %c0_21 = arith.constant 0 : index
      %36 = tpu.strided_load %arg6[%c0_20, %c0_21] {strides = array<i32: 2, 1>} : memref<62x64xf32, #tpu.memory_space<vmem>>, vector<31x64xf32>
      %c1 = arith.constant 1 : index
      %c0_22 = arith.constant 0 : index
      %37 = tpu.strided_load %arg6[%c1, %c0_22] {strides = array<i32: 2, 1>} : memref<62x64xf32, #tpu.memory_space<vmem>>, vector<31x64xf32>
      %38 = arith.maximumf %36, %37 : vector<31x64xf32>
      %cst_23 = arith.constant 0.000000e+00 : f32
      %39 = vector.broadcast %cst_23 : f32 to vector<31x64xf32>
      %40 = arith.maximumf %38, %39 : vector<31x64xf32>
      %41 = arith.truncf %40 : vector<31x64xf32> to vector<31x64xbf16>
      %c0_24 = arith.constant 0 : index
      %42 = arith.index_cast %arg7 : i32 to index
      %c0_25 = arith.constant 0 : index
      %c0_26 = arith.constant 0 : index
      %43 = vector.load %arg5[%c0_24, %42, %c0_25, %c0_26] : memref<1x31x31x64xbf16, #tpu.memory_space<vmem>>, vector<1x1x31x64xbf16>
      %44 = vector.shape_cast %43 : vector<1x1x31x64xbf16> to vector<31x64xbf16>
      %45 = vector.shape_cast %41 : vector<31x64xbf16> to vector<1x1x31x64xbf16>
      tpu.vector_store %arg5[%c0_24, %42, %c0_25, %c0_26], %45 {strides = array<i32>} : memref<1x31x31x64xbf16, #tpu.memory_space<vmem>>, vector<1x1x31x64xbf16>,
    }
    %c31_i32_5 = arith.constant 31 : i32
    return
  }
  func.func @transform_0(%arg0: i32) -> (i32, i32, i32, i32) {
    %c0_i32 = arith.constant 0 : i32
    %c0_i32_0 = arith.constant 0 : i32
    %c0_i32_1 = arith.constant 0 : i32
    %c0_i32_2 = arith.constant 0 : i32
    return %arg0, %c0_i32, %c0_i32_0, %c0_i32_1 : i32, i32, i32, i32
  }
  func.func @transform_1(%arg0: i32) -> (i32, i32) {
    %c0_i32 = arith.constant 0 : i32
    %c0_i32_0 = arith.constant 0 : i32
    %c0_i32_1 = arith.constant 0 : i32
    return %c0_i32, %c0_i32_0 : i32, i32
  }
  func.func @transform_2(%arg0: i32) -> (i32, i32) {
    %c0_i32 = arith.constant 0 : i32
    %c0_i32_0 = arith.constant 0 : i32
    %c0_i32_1 = arith.constant 0 : i32
    return %c0_i32, %c0_i32_0 : i32, i32
  }
  func.func @transform_3(%arg0: i32) -> (i32, i32) {
    %c0_i32 = arith.constant 0 : i32
    %c0_i32_0 = arith.constant 0 : i32
    %c0_i32_1 = arith.constant 0 : i32
    return %c0_i32, %c0_i32_0 : i32, i32
  }
  func.func @transform_4(%arg0: i32) -> (i32, i32, i32, i32) {
    %c0_i32 = arith.constant 0 : i32
    %c0_i32_0 = arith.constant 0 : i32
    %c0_i32_1 = arith.constant 0 : i32
    %c0_i32_2 = arith.constant 0 : i32
    return %arg0, %c0_i32, %c0_i32_0, %c0_i32_1 : i32, i32, i32, i32
  }
}

module attributes {stable_mosaic.version = 11 : i64} {
  func.func @_conv_block_kernel(%arg0: i32, %arg1: memref<1x15x15x128xbf16, #tpu.memory_space<vmem>>, %arg2: memref<512x128xbf16, #tpu.memory_space<vmem>>, %arg3: memref<1x128xf32, #tpu.memory_space<vmem>>, %arg4: memref<1x128xf32, #tpu.memory_space<vmem>>, %arg5: memref<1x7x7x128xbf16, #tpu.memory_space<vmem>>, %arg6: memref<14x128xf32, #tpu.memory_space<vmem>>) attributes {dimension_semantics = [#tpu.dimension_semantics<parallel>], iteration_bounds = array<i64: 2>, scalar_prefetch = 0 : i64, scratch_operands = 1 : i64, tpu.core_type = #tpu.core_type<tc>, window_params = [{transform_indices = @transform_0, window_bounds = array<i64: 1, 15, 15, 128>}, {pipeline_mode = #tpu.pipeline_mode<synchronous>, transform_indices = @transform_1, window_bounds = array<i64: 512, 128>}, {pipeline_mode = #tpu.pipeline_mode<synchronous>, transform_indices = @transform_2, window_bounds = array<i64: 1, 128>}, {pipeline_mode = #tpu.pipeline_mode<synchronous>, transform_indices = @transform_3, window_bounds = array<i64: 1, 128>}, {transform_indices = @transform_4, window_bounds = array<i64: 1, 7, 7, 128>}]} {
    %c0 = arith.constant 0 : index
    %c0_0 = arith.constant 0 : index
    %0 = vector.load %arg3[%c0, %c0_0] : memref<1x128xf32, #tpu.memory_space<vmem>>, vector<1x128xf32>
    %c0_1 = arith.constant 0 : index
    %c0_2 = arith.constant 0 : index
    %1 = vector.load %arg4[%c0_1, %c0_2] : memref<1x128xf32, #tpu.memory_space<vmem>>, vector<1x128xf32>
    %c0_3 = arith.constant 0 : index
    %c0_4 = arith.constant 0 : index
    %2 = vector.load %arg2[%c0_3, %c0_4] : memref<512x128xbf16, #tpu.memory_space<vmem>>, vector<512x128xbf16>
    %c0_i32 = arith.constant 0 : i32
    %c2_i32 = arith.constant 2 : i32
    %3 = arith.muli %c2_i32, %c0_i32 : i32
    %c0_5 = arith.constant 0 : index
    %4 = arith.index_cast %3 : i32 to index
    %c0_6 = arith.constant 0 : index
    %c0_7 = arith.constant 0 : index
    %5 = vector.load %arg1[%c0_5, %4, %c0_6, %c0_7] : memref<1x15x15x128xbf16, #tpu.memory_space<vmem>>, vector<1x1x15x128xbf16>
    %6 = vector.shape_cast %5 : vector<1x1x15x128xbf16> to vector<15x128xbf16>
    %c1_i32 = arith.constant 1 : i32
    %7 = arith.addi %3, %c1_i32 : i32
    %c0_8 = arith.constant 0 : index
    %8 = arith.index_cast %7 : i32 to index
    %c0_9 = arith.constant 0 : index
    %c0_10 = arith.constant 0 : index
    %9 = vector.load %arg1[%c0_8, %8, %c0_9, %c0_10] : memref<1x15x15x128xbf16, #tpu.memory_space<vmem>>, vector<1x1x15x128xbf16>
    %10 = vector.shape_cast %9 : vector<1x1x15x128xbf16> to vector<15x128xbf16>
    %c2_i32_11 = arith.constant 2 : i32
    %11 = arith.addi %3, %c2_i32_11 : i32
    %c0_12 = arith.constant 0 : index
    %12 = arith.index_cast %11 : i32 to index
    %c0_13 = arith.constant 0 : index
    %c0_14 = arith.constant 0 : index
    %13 = vector.load %arg1[%c0_12, %12, %c0_13, %c0_14] : memref<1x15x15x128xbf16, #tpu.memory_space<vmem>>, vector<1x1x15x128xbf16>
    %14 = vector.shape_cast %13 : vector<1x1x15x128xbf16> to vector<15x128xbf16>
    %15 = tpu.concatenate %6, %10 in 1 : vector<15x128xbf16>, vector<15x128xbf16> -> vector<15x256xbf16>
    %16 = tpu.concatenate %10, %14 in 1 : vector<15x128xbf16>, vector<15x128xbf16> -> vector<15x256xbf16>
    %17 = vector.extract_strided_slice %15 {offsets = [0, 0], sizes = [14, 256], strides = [1, 1]} : vector<15x256xbf16> to vector<14x256xbf16>
    %18 = vector.extract_strided_slice %15 {offsets = [1, 0], sizes = [14, 256], strides = [1, 1]} : vector<15x256xbf16> to vector<14x256xbf16>
    %19 = tpu.concatenate %17, %18 in 1 : vector<14x256xbf16>, vector<14x256xbf16> -> vector<14x512xbf16>
    %20 = vector.extract_strided_slice %16 {offsets = [0, 0], sizes = [14, 256], strides = [1, 1]} : vector<15x256xbf16> to vector<14x256xbf16>
    %21 = vector.extract_strided_slice %16 {offsets = [1, 0], sizes = [14, 256], strides = [1, 1]} : vector<15x256xbf16> to vector<14x256xbf16>
    %22 = tpu.concatenate %20, %21 in 1 : vector<14x256xbf16>, vector<14x256xbf16> -> vector<14x512xbf16>
    %cst = arith.constant dense<0.000000e+00> : vector<14x128xf32>
    %23 = tpu.matmul %19, %2, %cst {dimension_numbers = #tpu.dot_dimension_numbers<[1], [0], [0], [1], [0, 0, 1, 1], [], []>} : vector<14x512xbf16>, vector<512x128xbf16>, vector<14x128xf32> -> vector<14x128xf32>
    %24 = vector.broadcast %0 : vector<1x128xf32> to vector<14x128xf32>
    %25 = arith.mulf %23, %24 : vector<14x128xf32>
    %26 = vector.broadcast %1 : vector<1x128xf32> to vector<14x128xf32>
    %27 = arith.addf %25, %26 : vector<14x128xf32>
    %cst_15 = arith.constant dense<0.000000e+00> : vector<14x128xf32>
    %28 = tpu.matmul %22, %2, %cst_15 {dimension_numbers = #tpu.dot_dimension_numbers<[1], [0], [0], [1], [0, 0, 1, 1], [], []>} : vector<14x512xbf16>, vector<512x128xbf16>, vector<14x128xf32> -> vector<14x128xf32>
    %29 = vector.broadcast %0 : vector<1x128xf32> to vector<14x128xf32>
    %30 = arith.mulf %28, %29 : vector<14x128xf32>
    %31 = vector.broadcast %1 : vector<1x128xf32> to vector<14x128xf32>
    %32 = arith.addf %30, %31 : vector<14x128xf32>
    %33 = arith.maximumf %27, %32 : vector<14x128xf32>
    %c0_16 = arith.constant 0 : index
    %c0_17 = arith.constant 0 : index
    %34 = vector.load %arg6[%c0_16, %c0_17] : memref<14x128xf32, #tpu.memory_space<vmem>>, vector<14x128xf32>
    tpu.vector_store %arg6[%c0_16, %c0_17], %33 {strides = array<i32>} : memref<14x128xf32, #tpu.memory_space<vmem>>, vector<14x128xf32>,
    %c0_18 = arith.constant 0 : index
    %c0_19 = arith.constant 0 : index
    %35 = tpu.strided_load %arg6[%c0_18, %c0_19] {strides = array<i32: 2, 1>} : memref<14x128xf32, #tpu.memory_space<vmem>>, vector<7x128xf32>
    %c1 = arith.constant 1 : index
    %c0_20 = arith.constant 0 : index
    %36 = tpu.strided_load %arg6[%c1, %c0_20] {strides = array<i32: 2, 1>} : memref<14x128xf32, #tpu.memory_space<vmem>>, vector<7x128xf32>
    %37 = arith.maximumf %35, %36 : vector<7x128xf32>
    %cst_21 = arith.constant 0.000000e+00 : f32
    %38 = vector.broadcast %cst_21 : f32 to vector<7x128xf32>
    %39 = arith.maximumf %37, %38 : vector<7x128xf32>
    %40 = arith.truncf %39 : vector<7x128xf32> to vector<7x128xbf16>
    %c0_22 = arith.constant 0 : index
    %41 = arith.index_cast %c0_i32 : i32 to index
    %c0_23 = arith.constant 0 : index
    %c0_24 = arith.constant 0 : index
    %42 = vector.load %arg5[%c0_22, %41, %c0_23, %c0_24] : memref<1x7x7x128xbf16, #tpu.memory_space<vmem>>, vector<1x1x7x128xbf16>
    %43 = vector.shape_cast %42 : vector<1x1x7x128xbf16> to vector<7x128xbf16>
    %44 = vector.shape_cast %40 : vector<7x128xbf16> to vector<1x1x7x128xbf16>
    tpu.vector_store %arg5[%c0_22, %41, %c0_23, %c0_24], %44 {strides = array<i32>} : memref<1x7x7x128xbf16, #tpu.memory_space<vmem>>, vector<1x1x7x128xbf16>,
    %c1_i32_25 = arith.constant 1 : i32
    %c2_i32_26 = arith.constant 2 : i32
    %45 = arith.muli %c2_i32_26, %c1_i32_25 : i32
    %c0_27 = arith.constant 0 : index
    %46 = arith.index_cast %45 : i32 to index
    %c0_28 = arith.constant 0 : index
    %c0_29 = arith.constant 0 : index
    %47 = vector.load %arg1[%c0_27, %46, %c0_28, %c0_29] : memref<1x15x15x128xbf16, #tpu.memory_space<vmem>>, vector<1x1x15x128xbf16>
    %48 = vector.shape_cast %47 : vector<1x1x15x128xbf16> to vector<15x128xbf16>
    %c1_i32_30 = arith.constant 1 : i32
    %49 = arith.addi %45, %c1_i32_30 : i32
    %c0_31 = arith.constant 0 : index
    %50 = arith.index_cast %49 : i32 to index
    %c0_32 = arith.constant 0 : index
    %c0_33 = arith.constant 0 : index
    %51 = vector.load %arg1[%c0_31, %50, %c0_32, %c0_33] : memref<1x15x15x128xbf16, #tpu.memory_space<vmem>>, vector<1x1x15x128xbf16>
    %52 = vector.shape_cast %51 : vector<1x1x15x128xbf16> to vector<15x128xbf16>
    %c2_i32_34 = arith.constant 2 : i32
    %53 = arith.addi %45, %c2_i32_34 : i32
    %c0_35 = arith.constant 0 : index
    %54 = arith.index_cast %53 : i32 to index
    %c0_36 = arith.constant 0 : index
    %c0_37 = arith.constant 0 : index
    %55 = vector.load %arg1[%c0_35, %54, %c0_36, %c0_37] : memref<1x15x15x128xbf16, #tpu.memory_space<vmem>>, vector<1x1x15x128xbf16>
    %56 = vector.shape_cast %55 : vector<1x1x15x128xbf16> to vector<15x128xbf16>
    %57 = tpu.concatenate %48, %52 in 1 : vector<15x128xbf16>, vector<15x128xbf16> -> vector<15x256xbf16>
    %58 = tpu.concatenate %52, %56 in 1 : vector<15x128xbf16>, vector<15x128xbf16> -> vector<15x256xbf16>
    %59 = vector.extract_strided_slice %57 {offsets = [0, 0], sizes = [14, 256], strides = [1, 1]} : vector<15x256xbf16> to vector<14x256xbf16>
    %60 = vector.extract_strided_slice %57 {offsets = [1, 0], sizes = [14, 256], strides = [1, 1]} : vector<15x256xbf16> to vector<14x256xbf16>
    %61 = tpu.concatenate %59, %60 in 1 : vector<14x256xbf16>, vector<14x256xbf16> -> vector<14x512xbf16>
    %62 = vector.extract_strided_slice %58 {offsets = [0, 0], sizes = [14, 256], strides = [1, 1]} : vector<15x256xbf16> to vector<14x256xbf16>
    %63 = vector.extract_strided_slice %58 {offsets = [1, 0], sizes = [14, 256], strides = [1, 1]} : vector<15x256xbf16> to vector<14x256xbf16>
    %64 = tpu.concatenate %62, %63 in 1 : vector<14x256xbf16>, vector<14x256xbf16> -> vector<14x512xbf16>
    %cst_38 = arith.constant dense<0.000000e+00> : vector<14x128xf32>
    %65 = tpu.matmul %61, %2, %cst_38 {dimension_numbers = #tpu.dot_dimension_numbers<[1], [0], [0], [1], [0, 0, 1, 1], [], []>} : vector<14x512xbf16>, vector<512x128xbf16>, vector<14x128xf32> -> vector<14x128xf32>
    %66 = vector.broadcast %0 : vector<1x128xf32> to vector<14x128xf32>
    %67 = arith.mulf %65, %66 : vector<14x128xf32>
    %68 = vector.broadcast %1 : vector<1x128xf32> to vector<14x128xf32>
    %69 = arith.addf %67, %68 : vector<14x128xf32>
    %cst_39 = arith.constant dense<0.000000e+00> : vector<14x128xf32>
    %70 = tpu.matmul %64, %2, %cst_39 {dimension_numbers = #tpu.dot_dimension_numbers<[1], [0], [0], [1], [0, 0, 1, 1], [], []>} : vector<14x512xbf16>, vector<512x128xbf16>, vector<14x128xf32> -> vector<14x128xf32>
    %71 = vector.broadcast %0 : vector<1x128xf32> to vector<14x128xf32>
    %72 = arith.mulf %70, %71 : vector<14x128xf32>
    %73 = vector.broadcast %1 : vector<1x128xf32> to vector<14x128xf32>
    %74 = arith.addf %72, %73 : vector<14x128xf32>
    %75 = arith.maximumf %69, %74 : vector<14x128xf32>
    %c0_40 = arith.constant 0 : index
    %c0_41 = arith.constant 0 : index
    %76 = vector.load %arg6[%c0_40, %c0_41] : memref<14x128xf32, #tpu.memory_space<vmem>>, vector<14x128xf32>
    tpu.vector_store %arg6[%c0_40, %c0_41], %75 {strides = array<i32>} : memref<14x128xf32, #tpu.memory_space<vmem>>, vector<14x128xf32>,
    %c0_42 = arith.constant 0 : index
    %c0_43 = arith.constant 0 : index
    %77 = tpu.strided_load %arg6[%c0_42, %c0_43] {strides = array<i32: 2, 1>} : memref<14x128xf32, #tpu.memory_space<vmem>>, vector<7x128xf32>
    %c1_44 = arith.constant 1 : index
    %c0_45 = arith.constant 0 : index
    %78 = tpu.strided_load %arg6[%c1_44, %c0_45] {strides = array<i32: 2, 1>} : memref<14x128xf32, #tpu.memory_space<vmem>>, vector<7x128xf32>
    %79 = arith.maximumf %77, %78 : vector<7x128xf32>
    %cst_46 = arith.constant 0.000000e+00 : f32
    %80 = vector.broadcast %cst_46 : f32 to vector<7x128xf32>
    %81 = arith.maximumf %79, %80 : vector<7x128xf32>
    %82 = arith.truncf %81 : vector<7x128xf32> to vector<7x128xbf16>
    %c0_47 = arith.constant 0 : index
    %83 = arith.index_cast %c1_i32_25 : i32 to index
    %c0_48 = arith.constant 0 : index
    %c0_49 = arith.constant 0 : index
    %84 = vector.load %arg5[%c0_47, %83, %c0_48, %c0_49] : memref<1x7x7x128xbf16, #tpu.memory_space<vmem>>, vector<1x1x7x128xbf16>
    %85 = vector.shape_cast %84 : vector<1x1x7x128xbf16> to vector<7x128xbf16>
    %86 = vector.shape_cast %82 : vector<7x128xbf16> to vector<1x1x7x128xbf16>
    tpu.vector_store %arg5[%c0_47, %83, %c0_48, %c0_49], %86 {strides = array<i32>} : memref<1x7x7x128xbf16, #tpu.memory_space<vmem>>, vector<1x1x7x128xbf16>,
    %c2_i32_50 = arith.constant 2 : i32
    %c2_i32_51 = arith.constant 2 : i32
    %87 = arith.muli %c2_i32_51, %c2_i32_50 : i32
    %c0_52 = arith.constant 0 : index
    %88 = arith.index_cast %87 : i32 to index
    %c0_53 = arith.constant 0 : index
    %c0_54 = arith.constant 0 : index
    %89 = vector.load %arg1[%c0_52, %88, %c0_53, %c0_54] : memref<1x15x15x128xbf16, #tpu.memory_space<vmem>>, vector<1x1x15x128xbf16>
    %90 = vector.shape_cast %89 : vector<1x1x15x128xbf16> to vector<15x128xbf16>
    %c1_i32_55 = arith.constant 1 : i32
    %91 = arith.addi %87, %c1_i32_55 : i32
    %c0_56 = arith.constant 0 : index
    %92 = arith.index_cast %91 : i32 to index
    %c0_57 = arith.constant 0 : index
    %c0_58 = arith.constant 0 : index
    %93 = vector.load %arg1[%c0_56, %92, %c0_57, %c0_58] : memref<1x15x15x128xbf16, #tpu.memory_space<vmem>>, vector<1x1x15x128xbf16>
    %94 = vector.shape_cast %93 : vector<1x1x15x128xbf16> to vector<15x128xbf16>
    %c2_i32_59 = arith.constant 2 : i32
    %95 = arith.addi %87, %c2_i32_59 : i32
    %c0_60 = arith.constant 0 : index
    %96 = arith.index_cast %95 : i32 to index
    %c0_61 = arith.constant 0 : index
    %c0_62 = arith.constant 0 : index
    %97 = vector.load %arg1[%c0_60, %96, %c0_61, %c0_62] : memref<1x15x15x128xbf16, #tpu.memory_space<vmem>>, vector<1x1x15x128xbf16>
    %98 = vector.shape_cast %97 : vector<1x1x15x128xbf16> to vector<15x128xbf16>
    %99 = tpu.concatenate %90, %94 in 1 : vector<15x128xbf16>, vector<15x128xbf16> -> vector<15x256xbf16>
    %100 = tpu.concatenate %94, %98 in 1 : vector<15x128xbf16>, vector<15x128xbf16> -> vector<15x256xbf16>
    %101 = vector.extract_strided_slice %99 {offsets = [0, 0], sizes = [14, 256], strides = [1, 1]} : vector<15x256xbf16> to vector<14x256xbf16>
    %102 = vector.extract_strided_slice %99 {offsets = [1, 0], sizes = [14, 256], strides = [1, 1]} : vector<15x256xbf16> to vector<14x256xbf16>
    %103 = tpu.concatenate %101, %102 in 1 : vector<14x256xbf16>, vector<14x256xbf16> -> vector<14x512xbf16>
    %104 = vector.extract_strided_slice %100 {offsets = [0, 0], sizes = [14, 256], strides = [1, 1]} : vector<15x256xbf16> to vector<14x256xbf16>
    %105 = vector.extract_strided_slice %100 {offsets = [1, 0], sizes = [14, 256], strides = [1, 1]} : vector<15x256xbf16> to vector<14x256xbf16>
    %106 = tpu.concatenate %104, %105 in 1 : vector<14x256xbf16>, vector<14x256xbf16> -> vector<14x512xbf16>
    %cst_63 = arith.constant dense<0.000000e+00> : vector<14x128xf32>
    %107 = tpu.matmul %103, %2, %cst_63 {dimension_numbers = #tpu.dot_dimension_numbers<[1], [0], [0], [1], [0, 0, 1, 1], [], []>} : vector<14x512xbf16>, vector<512x128xbf16>, vector<14x128xf32> -> vector<14x128xf32>
    %108 = vector.broadcast %0 : vector<1x128xf32> to vector<14x128xf32>
    %109 = arith.mulf %107, %108 : vector<14x128xf32>
    %110 = vector.broadcast %1 : vector<1x128xf32> to vector<14x128xf32>
    %111 = arith.addf %109, %110 : vector<14x128xf32>
    %cst_64 = arith.constant dense<0.000000e+00> : vector<14x128xf32>
    %112 = tpu.matmul %106, %2, %cst_64 {dimension_numbers = #tpu.dot_dimension_numbers<[1], [0], [0], [1], [0, 0, 1, 1], [], []>} : vector<14x512xbf16>, vector<512x128xbf16>, vector<14x128xf32> -> vector<14x128xf32>
    %113 = vector.broadcast %0 : vector<1x128xf32> to vector<14x128xf32>
    %114 = arith.mulf %112, %113 : vector<14x128xf32>
    %115 = vector.broadcast %1 : vector<1x128xf32> to vector<14x128xf32>
    %116 = arith.addf %114, %115 : vector<14x128xf32>
    %117 = arith.maximumf %111, %116 : vector<14x128xf32>
    %c0_65 = arith.constant 0 : index
    %c0_66 = arith.constant 0 : index
    %118 = vector.load %arg6[%c0_65, %c0_66] : memref<14x128xf32, #tpu.memory_space<vmem>>, vector<14x128xf32>
    tpu.vector_store %arg6[%c0_65, %c0_66], %117 {strides = array<i32>} : memref<14x128xf32, #tpu.memory_space<vmem>>, vector<14x128xf32>,
    %c0_67 = arith.constant 0 : index
    %c0_68 = arith.constant 0 : index
    %119 = tpu.strided_load %arg6[%c0_67, %c0_68] {strides = array<i32: 2, 1>} : memref<14x128xf32, #tpu.memory_space<vmem>>, vector<7x128xf32>
    %c1_69 = arith.constant 1 : index
    %c0_70 = arith.constant 0 : index
    %120 = tpu.strided_load %arg6[%c1_69, %c0_70] {strides = array<i32: 2, 1>} : memref<14x128xf32, #tpu.memory_space<vmem>>, vector<7x128xf32>
    %121 = arith.maximumf %119, %120 : vector<7x128xf32>
    %cst_71 = arith.constant 0.000000e+00 : f32
    %122 = vector.broadcast %cst_71 : f32 to vector<7x128xf32>
    %123 = arith.maximumf %121, %122 : vector<7x128xf32>
    %124 = arith.truncf %123 : vector<7x128xf32> to vector<7x128xbf16>
    %c0_72 = arith.constant 0 : index
    %125 = arith.index_cast %c2_i32_50 : i32 to index
    %c0_73 = arith.constant 0 : index
    %c0_74 = arith.constant 0 : index
    %126 = vector.load %arg5[%c0_72, %125, %c0_73, %c0_74] : memref<1x7x7x128xbf16, #tpu.memory_space<vmem>>, vector<1x1x7x128xbf16>
    %127 = vector.shape_cast %126 : vector<1x1x7x128xbf16> to vector<7x128xbf16>
    %128 = vector.shape_cast %124 : vector<7x128xbf16> to vector<1x1x7x128xbf16>
    tpu.vector_store %arg5[%c0_72, %125, %c0_73, %c0_74], %128 {strides = array<i32>} : memref<1x7x7x128xbf16, #tpu.memory_space<vmem>>, vector<1x1x7x128xbf16>,
    %c3_i32 = arith.constant 3 : i32
    %c2_i32_75 = arith.constant 2 : i32
    %129 = arith.muli %c2_i32_75, %c3_i32 : i32
    %c0_76 = arith.constant 0 : index
    %130 = arith.index_cast %129 : i32 to index
    %c0_77 = arith.constant 0 : index
    %c0_78 = arith.constant 0 : index
    %131 = vector.load %arg1[%c0_76, %130, %c0_77, %c0_78] : memref<1x15x15x128xbf16, #tpu.memory_space<vmem>>, vector<1x1x15x128xbf16>
    %132 = vector.shape_cast %131 : vector<1x1x15x128xbf16> to vector<15x128xbf16>
    %c1_i32_79 = arith.constant 1 : i32
    %133 = arith.addi %129, %c1_i32_79 : i32
    %c0_80 = arith.constant 0 : index
    %134 = arith.index_cast %133 : i32 to index
    %c0_81 = arith.constant 0 : index
    %c0_82 = arith.constant 0 : index
    %135 = vector.load %arg1[%c0_80, %134, %c0_81, %c0_82] : memref<1x15x15x128xbf16, #tpu.memory_space<vmem>>, vector<1x1x15x128xbf16>
    %136 = vector.shape_cast %135 : vector<1x1x15x128xbf16> to vector<15x128xbf16>
    %c2_i32_83 = arith.constant 2 : i32
    %137 = arith.addi %129, %c2_i32_83 : i32
    %c0_84 = arith.constant 0 : index
    %138 = arith.index_cast %137 : i32 to index
    %c0_85 = arith.constant 0 : index
    %c0_86 = arith.constant 0 : index
    %139 = vector.load %arg1[%c0_84, %138, %c0_85, %c0_86] : memref<1x15x15x128xbf16, #tpu.memory_space<vmem>>, vector<1x1x15x128xbf16>
    %140 = vector.shape_cast %139 : vector<1x1x15x128xbf16> to vector<15x128xbf16>
    %141 = tpu.concatenate %132, %136 in 1 : vector<15x128xbf16>, vector<15x128xbf16> -> vector<15x256xbf16>
    %142 = tpu.concatenate %136, %140 in 1 : vector<15x128xbf16>, vector<15x128xbf16> -> vector<15x256xbf16>
    %143 = vector.extract_strided_slice %141 {offsets = [0, 0], sizes = [14, 256], strides = [1, 1]} : vector<15x256xbf16> to vector<14x256xbf16>
    %144 = vector.extract_strided_slice %141 {offsets = [1, 0], sizes = [14, 256], strides = [1, 1]} : vector<15x256xbf16> to vector<14x256xbf16>
    %145 = tpu.concatenate %143, %144 in 1 : vector<14x256xbf16>, vector<14x256xbf16> -> vector<14x512xbf16>
    %146 = vector.extract_strided_slice %142 {offsets = [0, 0], sizes = [14, 256], strides = [1, 1]} : vector<15x256xbf16> to vector<14x256xbf16>
    %147 = vector.extract_strided_slice %142 {offsets = [1, 0], sizes = [14, 256], strides = [1, 1]} : vector<15x256xbf16> to vector<14x256xbf16>
    %148 = tpu.concatenate %146, %147 in 1 : vector<14x256xbf16>, vector<14x256xbf16> -> vector<14x512xbf16>
    %cst_87 = arith.constant dense<0.000000e+00> : vector<14x128xf32>
    %149 = tpu.matmul %145, %2, %cst_87 {dimension_numbers = #tpu.dot_dimension_numbers<[1], [0], [0], [1], [0, 0, 1, 1], [], []>} : vector<14x512xbf16>, vector<512x128xbf16>, vector<14x128xf32> -> vector<14x128xf32>
    %150 = vector.broadcast %0 : vector<1x128xf32> to vector<14x128xf32>
    %151 = arith.mulf %149, %150 : vector<14x128xf32>
    %152 = vector.broadcast %1 : vector<1x128xf32> to vector<14x128xf32>
    %153 = arith.addf %151, %152 : vector<14x128xf32>
    %cst_88 = arith.constant dense<0.000000e+00> : vector<14x128xf32>
    %154 = tpu.matmul %148, %2, %cst_88 {dimension_numbers = #tpu.dot_dimension_numbers<[1], [0], [0], [1], [0, 0, 1, 1], [], []>} : vector<14x512xbf16>, vector<512x128xbf16>, vector<14x128xf32> -> vector<14x128xf32>
    %155 = vector.broadcast %0 : vector<1x128xf32> to vector<14x128xf32>
    %156 = arith.mulf %154, %155 : vector<14x128xf32>
    %157 = vector.broadcast %1 : vector<1x128xf32> to vector<14x128xf32>
    %158 = arith.addf %156, %157 : vector<14x128xf32>
    %159 = arith.maximumf %153, %158 : vector<14x128xf32>
    %c0_89 = arith.constant 0 : index
    %c0_90 = arith.constant 0 : index
    %160 = vector.load %arg6[%c0_89, %c0_90] : memref<14x128xf32, #tpu.memory_space<vmem>>, vector<14x128xf32>
    tpu.vector_store %arg6[%c0_89, %c0_90], %159 {strides = array<i32>} : memref<14x128xf32, #tpu.memory_space<vmem>>, vector<14x128xf32>,
    %c0_91 = arith.constant 0 : index
    %c0_92 = arith.constant 0 : index
    %161 = tpu.strided_load %arg6[%c0_91, %c0_92] {strides = array<i32: 2, 1>} : memref<14x128xf32, #tpu.memory_space<vmem>>, vector<7x128xf32>
    %c1_93 = arith.constant 1 : index
    %c0_94 = arith.constant 0 : index
    %162 = tpu.strided_load %arg6[%c1_93, %c0_94] {strides = array<i32: 2, 1>} : memref<14x128xf32, #tpu.memory_space<vmem>>, vector<7x128xf32>
    %163 = arith.maximumf %161, %162 : vector<7x128xf32>
    %cst_95 = arith.constant 0.000000e+00 : f32
    %164 = vector.broadcast %cst_95 : f32 to vector<7x128xf32>
    %165 = arith.maximumf %163, %164 : vector<7x128xf32>
    %166 = arith.truncf %165 : vector<7x128xf32> to vector<7x128xbf16>
    %c0_96 = arith.constant 0 : index
    %167 = arith.index_cast %c3_i32 : i32 to index
    %c0_97 = arith.constant 0 : index
    %c0_98 = arith.constant 0 : index
    %168 = vector.load %arg5[%c0_96, %167, %c0_97, %c0_98] : memref<1x7x7x128xbf16, #tpu.memory_space<vmem>>, vector<1x1x7x128xbf16>
    %169 = vector.shape_cast %168 : vector<1x1x7x128xbf16> to vector<7x128xbf16>
    %170 = vector.shape_cast %166 : vector<7x128xbf16> to vector<1x1x7x128xbf16>
    tpu.vector_store %arg5[%c0_96, %167, %c0_97, %c0_98], %170 {strides = array<i32>} : memref<1x7x7x128xbf16, #tpu.memory_space<vmem>>, vector<1x1x7x128xbf16>,
    %c4_i32 = arith.constant 4 : i32
    %c2_i32_99 = arith.constant 2 : i32
    %171 = arith.muli %c2_i32_99, %c4_i32 : i32
    %c0_100 = arith.constant 0 : index
    %172 = arith.index_cast %171 : i32 to index
    %c0_101 = arith.constant 0 : index
    %c0_102 = arith.constant 0 : index
    %173 = vector.load %arg1[%c0_100, %172, %c0_101, %c0_102] : memref<1x15x15x128xbf16, #tpu.memory_space<vmem>>, vector<1x1x15x128xbf16>
    %174 = vector.shape_cast %173 : vector<1x1x15x128xbf16> to vector<15x128xbf16>
    %c1_i32_103 = arith.constant 1 : i32
    %175 = arith.addi %171, %c1_i32_103 : i32
    %c0_104 = arith.constant 0 : index
    %176 = arith.index_cast %175 : i32 to index
    %c0_105 = arith.constant 0 : index
    %c0_106 = arith.constant 0 : index
    %177 = vector.load %arg1[%c0_104, %176, %c0_105, %c0_106] : memref<1x15x15x128xbf16, #tpu.memory_space<vmem>>, vector<1x1x15x128xbf16>
    %178 = vector.shape_cast %177 : vector<1x1x15x128xbf16> to vector<15x128xbf16>
    %c2_i32_107 = arith.constant 2 : i32
    %179 = arith.addi %171, %c2_i32_107 : i32
    %c0_108 = arith.constant 0 : index
    %180 = arith.index_cast %179 : i32 to index
    %c0_109 = arith.constant 0 : index
    %c0_110 = arith.constant 0 : index
    %181 = vector.load %arg1[%c0_108, %180, %c0_109, %c0_110] : memref<1x15x15x128xbf16, #tpu.memory_space<vmem>>, vector<1x1x15x128xbf16>
    %182 = vector.shape_cast %181 : vector<1x1x15x128xbf16> to vector<15x128xbf16>
    %183 = tpu.concatenate %174, %178 in 1 : vector<15x128xbf16>, vector<15x128xbf16> -> vector<15x256xbf16>
    %184 = tpu.concatenate %178, %182 in 1 : vector<15x128xbf16>, vector<15x128xbf16> -> vector<15x256xbf16>
    %185 = vector.extract_strided_slice %183 {offsets = [0, 0], sizes = [14, 256], strides = [1, 1]} : vector<15x256xbf16> to vector<14x256xbf16>
    %186 = vector.extract_strided_slice %183 {offsets = [1, 0], sizes = [14, 256], strides = [1, 1]} : vector<15x256xbf16> to vector<14x256xbf16>
    %187 = tpu.concatenate %185, %186 in 1 : vector<14x256xbf16>, vector<14x256xbf16> -> vector<14x512xbf16>
    %188 = vector.extract_strided_slice %184 {offsets = [0, 0], sizes = [14, 256], strides = [1, 1]} : vector<15x256xbf16> to vector<14x256xbf16>
    %189 = vector.extract_strided_slice %184 {offsets = [1, 0], sizes = [14, 256], strides = [1, 1]} : vector<15x256xbf16> to vector<14x256xbf16>
    %190 = tpu.concatenate %188, %189 in 1 : vector<14x256xbf16>, vector<14x256xbf16> -> vector<14x512xbf16>
    %cst_111 = arith.constant dense<0.000000e+00> : vector<14x128xf32>
    %191 = tpu.matmul %187, %2, %cst_111 {dimension_numbers = #tpu.dot_dimension_numbers<[1], [0], [0], [1], [0, 0, 1, 1], [], []>} : vector<14x512xbf16>, vector<512x128xbf16>, vector<14x128xf32> -> vector<14x128xf32>
    %192 = vector.broadcast %0 : vector<1x128xf32> to vector<14x128xf32>
    %193 = arith.mulf %191, %192 : vector<14x128xf32>
    %194 = vector.broadcast %1 : vector<1x128xf32> to vector<14x128xf32>
    %195 = arith.addf %193, %194 : vector<14x128xf32>
    %cst_112 = arith.constant dense<0.000000e+00> : vector<14x128xf32>
    %196 = tpu.matmul %190, %2, %cst_112 {dimension_numbers = #tpu.dot_dimension_numbers<[1], [0], [0], [1], [0, 0, 1, 1], [], []>} : vector<14x512xbf16>, vector<512x128xbf16>, vector<14x128xf32> -> vector<14x128xf32>
    %197 = vector.broadcast %0 : vector<1x128xf32> to vector<14x128xf32>
    %198 = arith.mulf %196, %197 : vector<14x128xf32>
    %199 = vector.broadcast %1 : vector<1x128xf32> to vector<14x128xf32>
    %200 = arith.addf %198, %199 : vector<14x128xf32>
    %201 = arith.maximumf %195, %200 : vector<14x128xf32>
    %c0_113 = arith.constant 0 : index
    %c0_114 = arith.constant 0 : index
    %202 = vector.load %arg6[%c0_113, %c0_114] : memref<14x128xf32, #tpu.memory_space<vmem>>, vector<14x128xf32>
    tpu.vector_store %arg6[%c0_113, %c0_114], %201 {strides = array<i32>} : memref<14x128xf32, #tpu.memory_space<vmem>>, vector<14x128xf32>,
    %c0_115 = arith.constant 0 : index
    %c0_116 = arith.constant 0 : index
    %203 = tpu.strided_load %arg6[%c0_115, %c0_116] {strides = array<i32: 2, 1>} : memref<14x128xf32, #tpu.memory_space<vmem>>, vector<7x128xf32>
    %c1_117 = arith.constant 1 : index
    %c0_118 = arith.constant 0 : index
    %204 = tpu.strided_load %arg6[%c1_117, %c0_118] {strides = array<i32: 2, 1>} : memref<14x128xf32, #tpu.memory_space<vmem>>, vector<7x128xf32>
    %205 = arith.maximumf %203, %204 : vector<7x128xf32>
    %cst_119 = arith.constant 0.000000e+00 : f32
    %206 = vector.broadcast %cst_119 : f32 to vector<7x128xf32>
    %207 = arith.maximumf %205, %206 : vector<7x128xf32>
    %208 = arith.truncf %207 : vector<7x128xf32> to vector<7x128xbf16>
    %c0_120 = arith.constant 0 : index
    %209 = arith.index_cast %c4_i32 : i32 to index
    %c0_121 = arith.constant 0 : index
    %c0_122 = arith.constant 0 : index
    %210 = vector.load %arg5[%c0_120, %209, %c0_121, %c0_122] : memref<1x7x7x128xbf16, #tpu.memory_space<vmem>>, vector<1x1x7x128xbf16>
    %211 = vector.shape_cast %210 : vector<1x1x7x128xbf16> to vector<7x128xbf16>
    %212 = vector.shape_cast %208 : vector<7x128xbf16> to vector<1x1x7x128xbf16>
    tpu.vector_store %arg5[%c0_120, %209, %c0_121, %c0_122], %212 {strides = array<i32>} : memref<1x7x7x128xbf16, #tpu.memory_space<vmem>>, vector<1x1x7x128xbf16>,
    %c5_i32 = arith.constant 5 : i32
    %c2_i32_123 = arith.constant 2 : i32
    %213 = arith.muli %c2_i32_123, %c5_i32 : i32
    %c0_124 = arith.constant 0 : index
    %214 = arith.index_cast %213 : i32 to index
    %c0_125 = arith.constant 0 : index
    %c0_126 = arith.constant 0 : index
    %215 = vector.load %arg1[%c0_124, %214, %c0_125, %c0_126] : memref<1x15x15x128xbf16, #tpu.memory_space<vmem>>, vector<1x1x15x128xbf16>
    %216 = vector.shape_cast %215 : vector<1x1x15x128xbf16> to vector<15x128xbf16>
    %c1_i32_127 = arith.constant 1 : i32
    %217 = arith.addi %213, %c1_i32_127 : i32
    %c0_128 = arith.constant 0 : index
    %218 = arith.index_cast %217 : i32 to index
    %c0_129 = arith.constant 0 : index
    %c0_130 = arith.constant 0 : index
    %219 = vector.load %arg1[%c0_128, %218, %c0_129, %c0_130] : memref<1x15x15x128xbf16, #tpu.memory_space<vmem>>, vector<1x1x15x128xbf16>
    %220 = vector.shape_cast %219 : vector<1x1x15x128xbf16> to vector<15x128xbf16>
    %c2_i32_131 = arith.constant 2 : i32
    %221 = arith.addi %213, %c2_i32_131 : i32
    %c0_132 = arith.constant 0 : index
    %222 = arith.index_cast %221 : i32 to index
    %c0_133 = arith.constant 0 : index
    %c0_134 = arith.constant 0 : index
    %223 = vector.load %arg1[%c0_132, %222, %c0_133, %c0_134] : memref<1x15x15x128xbf16, #tpu.memory_space<vmem>>, vector<1x1x15x128xbf16>
    %224 = vector.shape_cast %223 : vector<1x1x15x128xbf16> to vector<15x128xbf16>
    %225 = tpu.concatenate %216, %220 in 1 : vector<15x128xbf16>, vector<15x128xbf16> -> vector<15x256xbf16>
    %226 = tpu.concatenate %220, %224 in 1 : vector<15x128xbf16>, vector<15x128xbf16> -> vector<15x256xbf16>
    %227 = vector.extract_strided_slice %225 {offsets = [0, 0], sizes = [14, 256], strides = [1, 1]} : vector<15x256xbf16> to vector<14x256xbf16>
    %228 = vector.extract_strided_slice %225 {offsets = [1, 0], sizes = [14, 256], strides = [1, 1]} : vector<15x256xbf16> to vector<14x256xbf16>
    %229 = tpu.concatenate %227, %228 in 1 : vector<14x256xbf16>, vector<14x256xbf16> -> vector<14x512xbf16>
    %230 = vector.extract_strided_slice %226 {offsets = [0, 0], sizes = [14, 256], strides = [1, 1]} : vector<15x256xbf16> to vector<14x256xbf16>
    %231 = vector.extract_strided_slice %226 {offsets = [1, 0], sizes = [14, 256], strides = [1, 1]} : vector<15x256xbf16> to vector<14x256xbf16>
    %232 = tpu.concatenate %230, %231 in 1 : vector<14x256xbf16>, vector<14x256xbf16> -> vector<14x512xbf16>
    %cst_135 = arith.constant dense<0.000000e+00> : vector<14x128xf32>
    %233 = tpu.matmul %229, %2, %cst_135 {dimension_numbers = #tpu.dot_dimension_numbers<[1], [0], [0], [1], [0, 0, 1, 1], [], []>} : vector<14x512xbf16>, vector<512x128xbf16>, vector<14x128xf32> -> vector<14x128xf32>
    %234 = vector.broadcast %0 : vector<1x128xf32> to vector<14x128xf32>
    %235 = arith.mulf %233, %234 : vector<14x128xf32>
    %236 = vector.broadcast %1 : vector<1x128xf32> to vector<14x128xf32>
    %237 = arith.addf %235, %236 : vector<14x128xf32>
    %cst_136 = arith.constant dense<0.000000e+00> : vector<14x128xf32>
    %238 = tpu.matmul %232, %2, %cst_136 {dimension_numbers = #tpu.dot_dimension_numbers<[1], [0], [0], [1], [0, 0, 1, 1], [], []>} : vector<14x512xbf16>, vector<512x128xbf16>, vector<14x128xf32> -> vector<14x128xf32>
    %239 = vector.broadcast %0 : vector<1x128xf32> to vector<14x128xf32>
    %240 = arith.mulf %238, %239 : vector<14x128xf32>
    %241 = vector.broadcast %1 : vector<1x128xf32> to vector<14x128xf32>
    %242 = arith.addf %240, %241 : vector<14x128xf32>
    %243 = arith.maximumf %237, %242 : vector<14x128xf32>
    %c0_137 = arith.constant 0 : index
    %c0_138 = arith.constant 0 : index
    %244 = vector.load %arg6[%c0_137, %c0_138] : memref<14x128xf32, #tpu.memory_space<vmem>>, vector<14x128xf32>
    tpu.vector_store %arg6[%c0_137, %c0_138], %243 {strides = array<i32>} : memref<14x128xf32, #tpu.memory_space<vmem>>, vector<14x128xf32>,
    %c0_139 = arith.constant 0 : index
    %c0_140 = arith.constant 0 : index
    %245 = tpu.strided_load %arg6[%c0_139, %c0_140] {strides = array<i32: 2, 1>} : memref<14x128xf32, #tpu.memory_space<vmem>>, vector<7x128xf32>
    %c1_141 = arith.constant 1 : index
    %c0_142 = arith.constant 0 : index
    %246 = tpu.strided_load %arg6[%c1_141, %c0_142] {strides = array<i32: 2, 1>} : memref<14x128xf32, #tpu.memory_space<vmem>>, vector<7x128xf32>
    %247 = arith.maximumf %245, %246 : vector<7x128xf32>
    %cst_143 = arith.constant 0.000000e+00 : f32
    %248 = vector.broadcast %cst_143 : f32 to vector<7x128xf32>
    %249 = arith.maximumf %247, %248 : vector<7x128xf32>
    %250 = arith.truncf %249 : vector<7x128xf32> to vector<7x128xbf16>
    %c0_144 = arith.constant 0 : index
    %251 = arith.index_cast %c5_i32 : i32 to index
    %c0_145 = arith.constant 0 : index
    %c0_146 = arith.constant 0 : index
    %252 = vector.load %arg5[%c0_144, %251, %c0_145, %c0_146] : memref<1x7x7x128xbf16, #tpu.memory_space<vmem>>, vector<1x1x7x128xbf16>
    %253 = vector.shape_cast %252 : vector<1x1x7x128xbf16> to vector<7x128xbf16>
    %254 = vector.shape_cast %250 : vector<7x128xbf16> to vector<1x1x7x128xbf16>
    tpu.vector_store %arg5[%c0_144, %251, %c0_145, %c0_146], %254 {strides = array<i32>} : memref<1x7x7x128xbf16, #tpu.memory_space<vmem>>, vector<1x1x7x128xbf16>,
    %c6_i32 = arith.constant 6 : i32
    %c2_i32_147 = arith.constant 2 : i32
    %255 = arith.muli %c2_i32_147, %c6_i32 : i32
    %c0_148 = arith.constant 0 : index
    %256 = arith.index_cast %255 : i32 to index
    %c0_149 = arith.constant 0 : index
    %c0_150 = arith.constant 0 : index
    %257 = vector.load %arg1[%c0_148, %256, %c0_149, %c0_150] : memref<1x15x15x128xbf16, #tpu.memory_space<vmem>>, vector<1x1x15x128xbf16>
    %258 = vector.shape_cast %257 : vector<1x1x15x128xbf16> to vector<15x128xbf16>
    %c1_i32_151 = arith.constant 1 : i32
    %259 = arith.addi %255, %c1_i32_151 : i32
    %c0_152 = arith.constant 0 : index
    %260 = arith.index_cast %259 : i32 to index
    %c0_153 = arith.constant 0 : index
    %c0_154 = arith.constant 0 : index
    %261 = vector.load %arg1[%c0_152, %260, %c0_153, %c0_154] : memref<1x15x15x128xbf16, #tpu.memory_space<vmem>>, vector<1x1x15x128xbf16>
    %262 = vector.shape_cast %261 : vector<1x1x15x128xbf16> to vector<15x128xbf16>
    %c2_i32_155 = arith.constant 2 : i32
    %263 = arith.addi %255, %c2_i32_155 : i32
    %c0_156 = arith.constant 0 : index
    %264 = arith.index_cast %263 : i32 to index
    %c0_157 = arith.constant 0 : index
    %c0_158 = arith.constant 0 : index
    %265 = vector.load %arg1[%c0_156, %264, %c0_157, %c0_158] : memref<1x15x15x128xbf16, #tpu.memory_space<vmem>>, vector<1x1x15x128xbf16>
    %266 = vector.shape_cast %265 : vector<1x1x15x128xbf16> to vector<15x128xbf16>
    %267 = tpu.concatenate %258, %262 in 1 : vector<15x128xbf16>, vector<15x128xbf16> -> vector<15x256xbf16>
    %268 = tpu.concatenate %262, %266 in 1 : vector<15x128xbf16>, vector<15x128xbf16> -> vector<15x256xbf16>
    %269 = vector.extract_strided_slice %267 {offsets = [0, 0], sizes = [14, 256], strides = [1, 1]} : vector<15x256xbf16> to vector<14x256xbf16>
    %270 = vector.extract_strided_slice %267 {offsets = [1, 0], sizes = [14, 256], strides = [1, 1]} : vector<15x256xbf16> to vector<14x256xbf16>
    %271 = tpu.concatenate %269, %270 in 1 : vector<14x256xbf16>, vector<14x256xbf16> -> vector<14x512xbf16>
    %272 = vector.extract_strided_slice %268 {offsets = [0, 0], sizes = [14, 256], strides = [1, 1]} : vector<15x256xbf16> to vector<14x256xbf16>
    %273 = vector.extract_strided_slice %268 {offsets = [1, 0], sizes = [14, 256], strides = [1, 1]} : vector<15x256xbf16> to vector<14x256xbf16>
    %274 = tpu.concatenate %272, %273 in 1 : vector<14x256xbf16>, vector<14x256xbf16> -> vector<14x512xbf16>
    %cst_159 = arith.constant dense<0.000000e+00> : vector<14x128xf32>
    %275 = tpu.matmul %271, %2, %cst_159 {dimension_numbers = #tpu.dot_dimension_numbers<[1], [0], [0], [1], [0, 0, 1, 1], [], []>} : vector<14x512xbf16>, vector<512x128xbf16>, vector<14x128xf32> -> vector<14x128xf32>
    %276 = vector.broadcast %0 : vector<1x128xf32> to vector<14x128xf32>
    %277 = arith.mulf %275, %276 : vector<14x128xf32>
    %278 = vector.broadcast %1 : vector<1x128xf32> to vector<14x128xf32>
    %279 = arith.addf %277, %278 : vector<14x128xf32>
    %cst_160 = arith.constant dense<0.000000e+00> : vector<14x128xf32>
    %280 = tpu.matmul %274, %2, %cst_160 {dimension_numbers = #tpu.dot_dimension_numbers<[1], [0], [0], [1], [0, 0, 1, 1], [], []>} : vector<14x512xbf16>, vector<512x128xbf16>, vector<14x128xf32> -> vector<14x128xf32>
    %281 = vector.broadcast %0 : vector<1x128xf32> to vector<14x128xf32>
    %282 = arith.mulf %280, %281 : vector<14x128xf32>
    %283 = vector.broadcast %1 : vector<1x128xf32> to vector<14x128xf32>
    %284 = arith.addf %282, %283 : vector<14x128xf32>
    %285 = arith.maximumf %279, %284 : vector<14x128xf32>
    %c0_161 = arith.constant 0 : index
    %c0_162 = arith.constant 0 : index
    %286 = vector.load %arg6[%c0_161, %c0_162] : memref<14x128xf32, #tpu.memory_space<vmem>>, vector<14x128xf32>
    tpu.vector_store %arg6[%c0_161, %c0_162], %285 {strides = array<i32>} : memref<14x128xf32, #tpu.memory_space<vmem>>, vector<14x128xf32>,
    %c0_163 = arith.constant 0 : index
    %c0_164 = arith.constant 0 : index
    %287 = tpu.strided_load %arg6[%c0_163, %c0_164] {strides = array<i32: 2, 1>} : memref<14x128xf32, #tpu.memory_space<vmem>>, vector<7x128xf32>
    %c1_165 = arith.constant 1 : index
    %c0_166 = arith.constant 0 : index
    %288 = tpu.strided_load %arg6[%c1_165, %c0_166] {strides = array<i32: 2, 1>} : memref<14x128xf32, #tpu.memory_space<vmem>>, vector<7x128xf32>
    %289 = arith.maximumf %287, %288 : vector<7x128xf32>
    %cst_167 = arith.constant 0.000000e+00 : f32
    %290 = vector.broadcast %cst_167 : f32 to vector<7x128xf32>
    %291 = arith.maximumf %289, %290 : vector<7x128xf32>
    %292 = arith.truncf %291 : vector<7x128xf32> to vector<7x128xbf16>
    %c0_168 = arith.constant 0 : index
    %293 = arith.index_cast %c6_i32 : i32 to index
    %c0_169 = arith.constant 0 : index
    %c0_170 = arith.constant 0 : index
    %294 = vector.load %arg5[%c0_168, %293, %c0_169, %c0_170] : memref<1x7x7x128xbf16, #tpu.memory_space<vmem>>, vector<1x1x7x128xbf16>
    %295 = vector.shape_cast %294 : vector<1x1x7x128xbf16> to vector<7x128xbf16>
    %296 = vector.shape_cast %292 : vector<7x128xbf16> to vector<1x1x7x128xbf16>
    tpu.vector_store %arg5[%c0_168, %293, %c0_169, %c0_170], %296 {strides = array<i32>} : memref<1x7x7x128xbf16, #tpu.memory_space<vmem>>, vector<1x1x7x128xbf16>,
    %c7_i32 = arith.constant 7 : i32
    return
  }
  func.func @transform_0(%arg0: i32) -> (i32, i32, i32, i32) {
    %c0_i32 = arith.constant 0 : i32
    %c0_i32_0 = arith.constant 0 : i32
    %c0_i32_1 = arith.constant 0 : i32
    %c0_i32_2 = arith.constant 0 : i32
    return %arg0, %c0_i32, %c0_i32_0, %c0_i32_1 : i32, i32, i32, i32
  }
  func.func @transform_1(%arg0: i32) -> (i32, i32) {
    %c0_i32 = arith.constant 0 : i32
    %c0_i32_0 = arith.constant 0 : i32
    %c0_i32_1 = arith.constant 0 : i32
    return %c0_i32, %c0_i32_0 : i32, i32
  }
  func.func @transform_2(%arg0: i32) -> (i32, i32) {
    %c0_i32 = arith.constant 0 : i32
    %c0_i32_0 = arith.constant 0 : i32
    %c0_i32_1 = arith.constant 0 : i32
    return %c0_i32, %c0_i32_0 : i32, i32
  }
  func.func @transform_3(%arg0: i32) -> (i32, i32) {
    %c0_i32 = arith.constant 0 : i32
    %c0_i32_0 = arith.constant 0 : i32
    %c0_i32_1 = arith.constant 0 : i32
    return %c0_i32, %c0_i32_0 : i32, i32
  }
  func.func @transform_4(%arg0: i32) -> (i32, i32, i32, i32) {
    %c0_i32 = arith.constant 0 : i32
    %c0_i32_0 = arith.constant 0 : i32
    %c0_i32_1 = arith.constant 0 : i32
    %c0_i32_2 = arith.constant 0 : i32
    return %arg0, %c0_i32, %c0_i32_0, %c0_i32_1 : i32, i32, i32, i32
  }
}

module attributes {stable_mosaic.version = 11 : i64} {
  func.func @_conv_block_kernel(%arg0: i32, %arg1: memref<1x7x7x128xbf16, #tpu.memory_space<vmem>>, %arg2: memref<512x128xbf16, #tpu.memory_space<vmem>>, %arg3: memref<1x128xf32, #tpu.memory_space<vmem>>, %arg4: memref<1x128xf32, #tpu.memory_space<vmem>>, %arg5: memref<1x3x3x128xbf16, #tpu.memory_space<vmem>>, %arg6: memref<6x128xf32, #tpu.memory_space<vmem>>) attributes {dimension_semantics = [#tpu.dimension_semantics<parallel>], iteration_bounds = array<i64: 2>, scalar_prefetch = 0 : i64, scratch_operands = 1 : i64, tpu.core_type = #tpu.core_type<tc>, window_params = [{transform_indices = @transform_0, window_bounds = array<i64: 1, 7, 7, 128>}, {pipeline_mode = #tpu.pipeline_mode<synchronous>, transform_indices = @transform_1, window_bounds = array<i64: 512, 128>}, {pipeline_mode = #tpu.pipeline_mode<synchronous>, transform_indices = @transform_2, window_bounds = array<i64: 1, 128>}, {pipeline_mode = #tpu.pipeline_mode<synchronous>, transform_indices = @transform_3, window_bounds = array<i64: 1, 128>}, {transform_indices = @transform_4, window_bounds = array<i64: 1, 3, 3, 128>}]} {
    %c0 = arith.constant 0 : index
    %c0_0 = arith.constant 0 : index
    %0 = vector.load %arg3[%c0, %c0_0] : memref<1x128xf32, #tpu.memory_space<vmem>>, vector<1x128xf32>
    %c0_1 = arith.constant 0 : index
    %c0_2 = arith.constant 0 : index
    %1 = vector.load %arg4[%c0_1, %c0_2] : memref<1x128xf32, #tpu.memory_space<vmem>>, vector<1x128xf32>
    %c0_3 = arith.constant 0 : index
    %c0_4 = arith.constant 0 : index
    %2 = vector.load %arg2[%c0_3, %c0_4] : memref<512x128xbf16, #tpu.memory_space<vmem>>, vector<512x128xbf16>
    %c0_i32 = arith.constant 0 : i32
    %c2_i32 = arith.constant 2 : i32
    %3 = arith.muli %c2_i32, %c0_i32 : i32
    %c0_5 = arith.constant 0 : index
    %4 = arith.index_cast %3 : i32 to index
    %c0_6 = arith.constant 0 : index
    %c0_7 = arith.constant 0 : index
    %5 = vector.load %arg1[%c0_5, %4, %c0_6, %c0_7] : memref<1x7x7x128xbf16, #tpu.memory_space<vmem>>, vector<1x1x7x128xbf16>
    %6 = vector.shape_cast %5 : vector<1x1x7x128xbf16> to vector<7x128xbf16>
    %c1_i32 = arith.constant 1 : i32
    %7 = arith.addi %3, %c1_i32 : i32
    %c0_8 = arith.constant 0 : index
    %8 = arith.index_cast %7 : i32 to index
    %c0_9 = arith.constant 0 : index
    %c0_10 = arith.constant 0 : index
    %9 = vector.load %arg1[%c0_8, %8, %c0_9, %c0_10] : memref<1x7x7x128xbf16, #tpu.memory_space<vmem>>, vector<1x1x7x128xbf16>
    %10 = vector.shape_cast %9 : vector<1x1x7x128xbf16> to vector<7x128xbf16>
    %c2_i32_11 = arith.constant 2 : i32
    %11 = arith.addi %3, %c2_i32_11 : i32
    %c0_12 = arith.constant 0 : index
    %12 = arith.index_cast %11 : i32 to index
    %c0_13 = arith.constant 0 : index
    %c0_14 = arith.constant 0 : index
    %13 = vector.load %arg1[%c0_12, %12, %c0_13, %c0_14] : memref<1x7x7x128xbf16, #tpu.memory_space<vmem>>, vector<1x1x7x128xbf16>
    %14 = vector.shape_cast %13 : vector<1x1x7x128xbf16> to vector<7x128xbf16>
    %15 = tpu.concatenate %6, %10 in 1 : vector<7x128xbf16>, vector<7x128xbf16> -> vector<7x256xbf16>
    %16 = tpu.concatenate %10, %14 in 1 : vector<7x128xbf16>, vector<7x128xbf16> -> vector<7x256xbf16>
    %17 = vector.extract_strided_slice %15 {offsets = [0, 0], sizes = [6, 256], strides = [1, 1]} : vector<7x256xbf16> to vector<6x256xbf16>
    %18 = vector.extract_strided_slice %15 {offsets = [1, 0], sizes = [6, 256], strides = [1, 1]} : vector<7x256xbf16> to vector<6x256xbf16>
    %19 = tpu.concatenate %17, %18 in 1 : vector<6x256xbf16>, vector<6x256xbf16> -> vector<6x512xbf16>
    %20 = vector.extract_strided_slice %16 {offsets = [0, 0], sizes = [6, 256], strides = [1, 1]} : vector<7x256xbf16> to vector<6x256xbf16>
    %21 = vector.extract_strided_slice %16 {offsets = [1, 0], sizes = [6, 256], strides = [1, 1]} : vector<7x256xbf16> to vector<6x256xbf16>
    %22 = tpu.concatenate %20, %21 in 1 : vector<6x256xbf16>, vector<6x256xbf16> -> vector<6x512xbf16>
    %cst = arith.constant dense<0.000000e+00> : vector<6x128xf32>
    %23 = tpu.matmul %19, %2, %cst {dimension_numbers = #tpu.dot_dimension_numbers<[1], [0], [0], [1], [0, 0, 1, 1], [], []>} : vector<6x512xbf16>, vector<512x128xbf16>, vector<6x128xf32> -> vector<6x128xf32>
    %24 = vector.broadcast %0 : vector<1x128xf32> to vector<6x128xf32>
    %25 = arith.mulf %23, %24 : vector<6x128xf32>
    %26 = vector.broadcast %1 : vector<1x128xf32> to vector<6x128xf32>
    %27 = arith.addf %25, %26 : vector<6x128xf32>
    %cst_15 = arith.constant dense<0.000000e+00> : vector<6x128xf32>
    %28 = tpu.matmul %22, %2, %cst_15 {dimension_numbers = #tpu.dot_dimension_numbers<[1], [0], [0], [1], [0, 0, 1, 1], [], []>} : vector<6x512xbf16>, vector<512x128xbf16>, vector<6x128xf32> -> vector<6x128xf32>
    %29 = vector.broadcast %0 : vector<1x128xf32> to vector<6x128xf32>
    %30 = arith.mulf %28, %29 : vector<6x128xf32>
    %31 = vector.broadcast %1 : vector<1x128xf32> to vector<6x128xf32>
    %32 = arith.addf %30, %31 : vector<6x128xf32>
    %33 = arith.maximumf %27, %32 : vector<6x128xf32>
    %c0_16 = arith.constant 0 : index
    %c0_17 = arith.constant 0 : index
    %34 = vector.load %arg6[%c0_16, %c0_17] : memref<6x128xf32, #tpu.memory_space<vmem>>, vector<6x128xf32>
    tpu.vector_store %arg6[%c0_16, %c0_17], %33 {strides = array<i32>} : memref<6x128xf32, #tpu.memory_space<vmem>>, vector<6x128xf32>,
    %c0_18 = arith.constant 0 : index
    %c0_19 = arith.constant 0 : index
    %35 = tpu.strided_load %arg6[%c0_18, %c0_19] {strides = array<i32: 2, 1>} : memref<6x128xf32, #tpu.memory_space<vmem>>, vector<3x128xf32>
    %c1 = arith.constant 1 : index
    %c0_20 = arith.constant 0 : index
    %36 = tpu.strided_load %arg6[%c1, %c0_20] {strides = array<i32: 2, 1>} : memref<6x128xf32, #tpu.memory_space<vmem>>, vector<3x128xf32>
    %37 = arith.maximumf %35, %36 : vector<3x128xf32>
    %cst_21 = arith.constant 0.000000e+00 : f32
    %38 = vector.broadcast %cst_21 : f32 to vector<3x128xf32>
    %39 = arith.maximumf %37, %38 : vector<3x128xf32>
    %40 = arith.truncf %39 : vector<3x128xf32> to vector<3x128xbf16>
    %c0_22 = arith.constant 0 : index
    %41 = arith.index_cast %c0_i32 : i32 to index
    %c0_23 = arith.constant 0 : index
    %c0_24 = arith.constant 0 : index
    %42 = vector.load %arg5[%c0_22, %41, %c0_23, %c0_24] : memref<1x3x3x128xbf16, #tpu.memory_space<vmem>>, vector<1x1x3x128xbf16>
    %43 = vector.shape_cast %42 : vector<1x1x3x128xbf16> to vector<3x128xbf16>
    %44 = vector.shape_cast %40 : vector<3x128xbf16> to vector<1x1x3x128xbf16>
    tpu.vector_store %arg5[%c0_22, %41, %c0_23, %c0_24], %44 {strides = array<i32>} : memref<1x3x3x128xbf16, #tpu.memory_space<vmem>>, vector<1x1x3x128xbf16>,
    %c1_i32_25 = arith.constant 1 : i32
    %c2_i32_26 = arith.constant 2 : i32
    %45 = arith.muli %c2_i32_26, %c1_i32_25 : i32
    %c0_27 = arith.constant 0 : index
    %46 = arith.index_cast %45 : i32 to index
    %c0_28 = arith.constant 0 : index
    %c0_29 = arith.constant 0 : index
    %47 = vector.load %arg1[%c0_27, %46, %c0_28, %c0_29] : memref<1x7x7x128xbf16, #tpu.memory_space<vmem>>, vector<1x1x7x128xbf16>
    %48 = vector.shape_cast %47 : vector<1x1x7x128xbf16> to vector<7x128xbf16>
    %c1_i32_30 = arith.constant 1 : i32
    %49 = arith.addi %45, %c1_i32_30 : i32
    %c0_31 = arith.constant 0 : index
    %50 = arith.index_cast %49 : i32 to index
    %c0_32 = arith.constant 0 : index
    %c0_33 = arith.constant 0 : index
    %51 = vector.load %arg1[%c0_31, %50, %c0_32, %c0_33] : memref<1x7x7x128xbf16, #tpu.memory_space<vmem>>, vector<1x1x7x128xbf16>
    %52 = vector.shape_cast %51 : vector<1x1x7x128xbf16> to vector<7x128xbf16>
    %c2_i32_34 = arith.constant 2 : i32
    %53 = arith.addi %45, %c2_i32_34 : i32
    %c0_35 = arith.constant 0 : index
    %54 = arith.index_cast %53 : i32 to index
    %c0_36 = arith.constant 0 : index
    %c0_37 = arith.constant 0 : index
    %55 = vector.load %arg1[%c0_35, %54, %c0_36, %c0_37] : memref<1x7x7x128xbf16, #tpu.memory_space<vmem>>, vector<1x1x7x128xbf16>
    %56 = vector.shape_cast %55 : vector<1x1x7x128xbf16> to vector<7x128xbf16>
    %57 = tpu.concatenate %48, %52 in 1 : vector<7x128xbf16>, vector<7x128xbf16> -> vector<7x256xbf16>
    %58 = tpu.concatenate %52, %56 in 1 : vector<7x128xbf16>, vector<7x128xbf16> -> vector<7x256xbf16>
    %59 = vector.extract_strided_slice %57 {offsets = [0, 0], sizes = [6, 256], strides = [1, 1]} : vector<7x256xbf16> to vector<6x256xbf16>
    %60 = vector.extract_strided_slice %57 {offsets = [1, 0], sizes = [6, 256], strides = [1, 1]} : vector<7x256xbf16> to vector<6x256xbf16>
    %61 = tpu.concatenate %59, %60 in 1 : vector<6x256xbf16>, vector<6x256xbf16> -> vector<6x512xbf16>
    %62 = vector.extract_strided_slice %58 {offsets = [0, 0], sizes = [6, 256], strides = [1, 1]} : vector<7x256xbf16> to vector<6x256xbf16>
    %63 = vector.extract_strided_slice %58 {offsets = [1, 0], sizes = [6, 256], strides = [1, 1]} : vector<7x256xbf16> to vector<6x256xbf16>
    %64 = tpu.concatenate %62, %63 in 1 : vector<6x256xbf16>, vector<6x256xbf16> -> vector<6x512xbf16>
    %cst_38 = arith.constant dense<0.000000e+00> : vector<6x128xf32>
    %65 = tpu.matmul %61, %2, %cst_38 {dimension_numbers = #tpu.dot_dimension_numbers<[1], [0], [0], [1], [0, 0, 1, 1], [], []>} : vector<6x512xbf16>, vector<512x128xbf16>, vector<6x128xf32> -> vector<6x128xf32>
    %66 = vector.broadcast %0 : vector<1x128xf32> to vector<6x128xf32>
    %67 = arith.mulf %65, %66 : vector<6x128xf32>
    %68 = vector.broadcast %1 : vector<1x128xf32> to vector<6x128xf32>
    %69 = arith.addf %67, %68 : vector<6x128xf32>
    %cst_39 = arith.constant dense<0.000000e+00> : vector<6x128xf32>
    %70 = tpu.matmul %64, %2, %cst_39 {dimension_numbers = #tpu.dot_dimension_numbers<[1], [0], [0], [1], [0, 0, 1, 1], [], []>} : vector<6x512xbf16>, vector<512x128xbf16>, vector<6x128xf32> -> vector<6x128xf32>
    %71 = vector.broadcast %0 : vector<1x128xf32> to vector<6x128xf32>
    %72 = arith.mulf %70, %71 : vector<6x128xf32>
    %73 = vector.broadcast %1 : vector<1x128xf32> to vector<6x128xf32>
    %74 = arith.addf %72, %73 : vector<6x128xf32>
    %75 = arith.maximumf %69, %74 : vector<6x128xf32>
    %c0_40 = arith.constant 0 : index
    %c0_41 = arith.constant 0 : index
    %76 = vector.load %arg6[%c0_40, %c0_41] : memref<6x128xf32, #tpu.memory_space<vmem>>, vector<6x128xf32>
    tpu.vector_store %arg6[%c0_40, %c0_41], %75 {strides = array<i32>} : memref<6x128xf32, #tpu.memory_space<vmem>>, vector<6x128xf32>,
    %c0_42 = arith.constant 0 : index
    %c0_43 = arith.constant 0 : index
    %77 = tpu.strided_load %arg6[%c0_42, %c0_43] {strides = array<i32: 2, 1>} : memref<6x128xf32, #tpu.memory_space<vmem>>, vector<3x128xf32>
    %c1_44 = arith.constant 1 : index
    %c0_45 = arith.constant 0 : index
    %78 = tpu.strided_load %arg6[%c1_44, %c0_45] {strides = array<i32: 2, 1>} : memref<6x128xf32, #tpu.memory_space<vmem>>, vector<3x128xf32>
    %79 = arith.maximumf %77, %78 : vector<3x128xf32>
    %cst_46 = arith.constant 0.000000e+00 : f32
    %80 = vector.broadcast %cst_46 : f32 to vector<3x128xf32>
    %81 = arith.maximumf %79, %80 : vector<3x128xf32>
    %82 = arith.truncf %81 : vector<3x128xf32> to vector<3x128xbf16>
    %c0_47 = arith.constant 0 : index
    %83 = arith.index_cast %c1_i32_25 : i32 to index
    %c0_48 = arith.constant 0 : index
    %c0_49 = arith.constant 0 : index
    %84 = vector.load %arg5[%c0_47, %83, %c0_48, %c0_49] : memref<1x3x3x128xbf16, #tpu.memory_space<vmem>>, vector<1x1x3x128xbf16>
    %85 = vector.shape_cast %84 : vector<1x1x3x128xbf16> to vector<3x128xbf16>
    %86 = vector.shape_cast %82 : vector<3x128xbf16> to vector<1x1x3x128xbf16>
    tpu.vector_store %arg5[%c0_47, %83, %c0_48, %c0_49], %86 {strides = array<i32>} : memref<1x3x3x128xbf16, #tpu.memory_space<vmem>>, vector<1x1x3x128xbf16>,
    %c2_i32_50 = arith.constant 2 : i32
    %c2_i32_51 = arith.constant 2 : i32
    %87 = arith.muli %c2_i32_51, %c2_i32_50 : i32
    %c0_52 = arith.constant 0 : index
    %88 = arith.index_cast %87 : i32 to index
    %c0_53 = arith.constant 0 : index
    %c0_54 = arith.constant 0 : index
    %89 = vector.load %arg1[%c0_52, %88, %c0_53, %c0_54] : memref<1x7x7x128xbf16, #tpu.memory_space<vmem>>, vector<1x1x7x128xbf16>
    %90 = vector.shape_cast %89 : vector<1x1x7x128xbf16> to vector<7x128xbf16>
    %c1_i32_55 = arith.constant 1 : i32
    %91 = arith.addi %87, %c1_i32_55 : i32
    %c0_56 = arith.constant 0 : index
    %92 = arith.index_cast %91 : i32 to index
    %c0_57 = arith.constant 0 : index
    %c0_58 = arith.constant 0 : index
    %93 = vector.load %arg1[%c0_56, %92, %c0_57, %c0_58] : memref<1x7x7x128xbf16, #tpu.memory_space<vmem>>, vector<1x1x7x128xbf16>
    %94 = vector.shape_cast %93 : vector<1x1x7x128xbf16> to vector<7x128xbf16>
    %c2_i32_59 = arith.constant 2 : i32
    %95 = arith.addi %87, %c2_i32_59 : i32
    %c0_60 = arith.constant 0 : index
    %96 = arith.index_cast %95 : i32 to index
    %c0_61 = arith.constant 0 : index
    %c0_62 = arith.constant 0 : index
    %97 = vector.load %arg1[%c0_60, %96, %c0_61, %c0_62] : memref<1x7x7x128xbf16, #tpu.memory_space<vmem>>, vector<1x1x7x128xbf16>
    %98 = vector.shape_cast %97 : vector<1x1x7x128xbf16> to vector<7x128xbf16>
    %99 = tpu.concatenate %90, %94 in 1 : vector<7x128xbf16>, vector<7x128xbf16> -> vector<7x256xbf16>
    %100 = tpu.concatenate %94, %98 in 1 : vector<7x128xbf16>, vector<7x128xbf16> -> vector<7x256xbf16>
    %101 = vector.extract_strided_slice %99 {offsets = [0, 0], sizes = [6, 256], strides = [1, 1]} : vector<7x256xbf16> to vector<6x256xbf16>
    %102 = vector.extract_strided_slice %99 {offsets = [1, 0], sizes = [6, 256], strides = [1, 1]} : vector<7x256xbf16> to vector<6x256xbf16>
    %103 = tpu.concatenate %101, %102 in 1 : vector<6x256xbf16>, vector<6x256xbf16> -> vector<6x512xbf16>
    %104 = vector.extract_strided_slice %100 {offsets = [0, 0], sizes = [6, 256], strides = [1, 1]} : vector<7x256xbf16> to vector<6x256xbf16>
    %105 = vector.extract_strided_slice %100 {offsets = [1, 0], sizes = [6, 256], strides = [1, 1]} : vector<7x256xbf16> to vector<6x256xbf16>
    %106 = tpu.concatenate %104, %105 in 1 : vector<6x256xbf16>, vector<6x256xbf16> -> vector<6x512xbf16>
    %cst_63 = arith.constant dense<0.000000e+00> : vector<6x128xf32>
    %107 = tpu.matmul %103, %2, %cst_63 {dimension_numbers = #tpu.dot_dimension_numbers<[1], [0], [0], [1], [0, 0, 1, 1], [], []>} : vector<6x512xbf16>, vector<512x128xbf16>, vector<6x128xf32> -> vector<6x128xf32>
    %108 = vector.broadcast %0 : vector<1x128xf32> to vector<6x128xf32>
    %109 = arith.mulf %107, %108 : vector<6x128xf32>
    %110 = vector.broadcast %1 : vector<1x128xf32> to vector<6x128xf32>
    %111 = arith.addf %109, %110 : vector<6x128xf32>
    %cst_64 = arith.constant dense<0.000000e+00> : vector<6x128xf32>
    %112 = tpu.matmul %106, %2, %cst_64 {dimension_numbers = #tpu.dot_dimension_numbers<[1], [0], [0], [1], [0, 0, 1, 1], [], []>} : vector<6x512xbf16>, vector<512x128xbf16>, vector<6x128xf32> -> vector<6x128xf32>
    %113 = vector.broadcast %0 : vector<1x128xf32> to vector<6x128xf32>
    %114 = arith.mulf %112, %113 : vector<6x128xf32>
    %115 = vector.broadcast %1 : vector<1x128xf32> to vector<6x128xf32>
    %116 = arith.addf %114, %115 : vector<6x128xf32>
    %117 = arith.maximumf %111, %116 : vector<6x128xf32>
    %c0_65 = arith.constant 0 : index
    %c0_66 = arith.constant 0 : index
    %118 = vector.load %arg6[%c0_65, %c0_66] : memref<6x128xf32, #tpu.memory_space<vmem>>, vector<6x128xf32>
    tpu.vector_store %arg6[%c0_65, %c0_66], %117 {strides = array<i32>} : memref<6x128xf32, #tpu.memory_space<vmem>>, vector<6x128xf32>,
    %c0_67 = arith.constant 0 : index
    %c0_68 = arith.constant 0 : index
    %119 = tpu.strided_load %arg6[%c0_67, %c0_68] {strides = array<i32: 2, 1>} : memref<6x128xf32, #tpu.memory_space<vmem>>, vector<3x128xf32>
    %c1_69 = arith.constant 1 : index
    %c0_70 = arith.constant 0 : index
    %120 = tpu.strided_load %arg6[%c1_69, %c0_70] {strides = array<i32: 2, 1>} : memref<6x128xf32, #tpu.memory_space<vmem>>, vector<3x128xf32>
    %121 = arith.maximumf %119, %120 : vector<3x128xf32>
    %cst_71 = arith.constant 0.000000e+00 : f32
    %122 = vector.broadcast %cst_71 : f32 to vector<3x128xf32>
    %123 = arith.maximumf %121, %122 : vector<3x128xf32>
    %124 = arith.truncf %123 : vector<3x128xf32> to vector<3x128xbf16>
    %c0_72 = arith.constant 0 : index
    %125 = arith.index_cast %c2_i32_50 : i32 to index
    %c0_73 = arith.constant 0 : index
    %c0_74 = arith.constant 0 : index
    %126 = vector.load %arg5[%c0_72, %125, %c0_73, %c0_74] : memref<1x3x3x128xbf16, #tpu.memory_space<vmem>>, vector<1x1x3x128xbf16>
    %127 = vector.shape_cast %126 : vector<1x1x3x128xbf16> to vector<3x128xbf16>
    %128 = vector.shape_cast %124 : vector<3x128xbf16> to vector<1x1x3x128xbf16>
    tpu.vector_store %arg5[%c0_72, %125, %c0_73, %c0_74], %128 {strides = array<i32>} : memref<1x3x3x128xbf16, #tpu.memory_space<vmem>>, vector<1x1x3x128xbf16>,
    %c3_i32 = arith.constant 3 : i32
    return
  }
  func.func @transform_0(%arg0: i32) -> (i32, i32, i32, i32) {
    %c0_i32 = arith.constant 0 : i32
    %c0_i32_0 = arith.constant 0 : i32
    %c0_i32_1 = arith.constant 0 : i32
    %c0_i32_2 = arith.constant 0 : i32
    return %arg0, %c0_i32, %c0_i32_0, %c0_i32_1 : i32, i32, i32, i32
  }
  func.func @transform_1(%arg0: i32) -> (i32, i32) {
    %c0_i32 = arith.constant 0 : i32
    %c0_i32_0 = arith.constant 0 : i32
    %c0_i32_1 = arith.constant 0 : i32
    return %c0_i32, %c0_i32_0 : i32, i32
  }
  func.func @transform_2(%arg0: i32) -> (i32, i32) {
    %c0_i32 = arith.constant 0 : i32
    %c0_i32_0 = arith.constant 0 : i32
    %c0_i32_1 = arith.constant 0 : i32
    return %c0_i32, %c0_i32_0 : i32, i32
  }
  func.func @transform_3(%arg0: i32) -> (i32, i32) {
    %c0_i32 = arith.constant 0 : i32
    %c0_i32_0 = arith.constant 0 : i32
    %c0_i32_1 = arith.constant 0 : i32
    return %c0_i32, %c0_i32_0 : i32, i32
  }
  func.func @transform_4(%arg0: i32) -> (i32, i32, i32, i32) {
    %c0_i32 = arith.constant 0 : i32
    %c0_i32_0 = arith.constant 0 : i32
    %c0_i32_1 = arith.constant 0 : i32
    %c0_i32_2 = arith.constant 0 : i32
    return %arg0, %c0_i32, %c0_i32_0, %c0_i32_1 : i32, i32, i32, i32
  }
}

module attributes {stable_mosaic.version = 11 : i64} {
  func.func @_head_kernel(%arg0: i32, %arg1: memref<2x1152xbf16, #tpu.memory_space<vmem>>, %arg2: memref<1152x512xbf16, #tpu.memory_space<vmem>>, %arg3: memref<1x512xf32, #tpu.memory_space<vmem>>, %arg4: memref<512x256xbf16, #tpu.memory_space<vmem>>, %arg5: memref<1x256xf32, #tpu.memory_space<vmem>>, %arg6: memref<1x256xf32, #tpu.memory_space<vmem>>, %arg7: memref<256x3xbf16, #tpu.memory_space<vmem>>, %arg8: memref<1x3xf32, #tpu.memory_space<vmem>>, %arg9: memref<2x3xf32, #tpu.memory_space<vmem>>) attributes {dimension_semantics = [#tpu.dimension_semantics<arbitrary>], iteration_bounds = array<i64: 1>, scalar_prefetch = 0 : i64, scratch_operands = 0 : i64, tpu.core_type = #tpu.core_type<tc>, window_params = [{pipeline_mode = #tpu.pipeline_mode<synchronous>, transform_indices = @transform_0, window_bounds = array<i64: 2, 1152>}, {pipeline_mode = #tpu.pipeline_mode<synchronous>, transform_indices = @transform_1, window_bounds = array<i64: 1152, 512>}, {pipeline_mode = #tpu.pipeline_mode<synchronous>, transform_indices = @transform_2, window_bounds = array<i64: 1, 512>}, {pipeline_mode = #tpu.pipeline_mode<synchronous>, transform_indices = @transform_3, window_bounds = array<i64: 512, 256>}, {pipeline_mode = #tpu.pipeline_mode<synchronous>, transform_indices = @transform_4, window_bounds = array<i64: 1, 256>}, {pipeline_mode = #tpu.pipeline_mode<synchronous>, transform_indices = @transform_5, window_bounds = array<i64: 1, 256>}, {pipeline_mode = #tpu.pipeline_mode<synchronous>, transform_indices = @transform_6, window_bounds = array<i64: 256, 3>}, {pipeline_mode = #tpu.pipeline_mode<synchronous>, transform_indices = @transform_7, window_bounds = array<i64: 1, 3>}, {pipeline_mode = #tpu.pipeline_mode<synchronous>, transform_indices = @transform_8, window_bounds = array<i64: 2, 3>}]} {
    %c0 = arith.constant 0 : index
    %c0_0 = arith.constant 0 : index
    %0 = vector.load %arg1[%c0, %c0_0] : memref<2x1152xbf16, #tpu.memory_space<vmem>>, vector<2x1152xbf16>
    %c0_1 = arith.constant 0 : index
    %c0_2 = arith.constant 0 : index
    %1 = vector.load %arg2[%c0_1, %c0_2] : memref<1152x512xbf16, #tpu.memory_space<vmem>>, vector<1152x512xbf16>
    %cst = arith.constant dense<0.000000e+00> : vector<2x512xf32>
    %2 = tpu.matmul %0, %1, %cst {dimension_numbers = #tpu.dot_dimension_numbers<[1], [0], [0], [1], [0, 0, 1, 1], [], []>} : vector<2x1152xbf16>, vector<1152x512xbf16>, vector<2x512xf32> -> vector<2x512xf32>
    %c0_3 = arith.constant 0 : index
    %c0_4 = arith.constant 0 : index
    %3 = vector.load %arg3[%c0_3, %c0_4] : memref<1x512xf32, #tpu.memory_space<vmem>>, vector<1x512xf32>
    %4 = vector.broadcast %3 : vector<1x512xf32> to vector<2x512xf32>
    %5 = arith.addf %2, %4 : vector<2x512xf32>
    %6 = arith.truncf %5 : vector<2x512xf32> to vector<2x512xbf16>
    %c0_5 = arith.constant 0 : index
    %c0_6 = arith.constant 0 : index
    %7 = vector.load %arg4[%c0_5, %c0_6] : memref<512x256xbf16, #tpu.memory_space<vmem>>, vector<512x256xbf16>
    %cst_7 = arith.constant dense<0.000000e+00> : vector<2x256xf32>
    %8 = tpu.matmul %6, %7, %cst_7 {dimension_numbers = #tpu.dot_dimension_numbers<[1], [0], [0], [1], [0, 0, 1, 1], [], []>} : vector<2x512xbf16>, vector<512x256xbf16>, vector<2x256xf32> -> vector<2x256xf32>
    %c0_8 = arith.constant 0 : index
    %c0_9 = arith.constant 0 : index
    %9 = vector.load %arg5[%c0_8, %c0_9] : memref<1x256xf32, #tpu.memory_space<vmem>>, vector<1x256xf32>
    %10 = vector.broadcast %9 : vector<1x256xf32> to vector<2x256xf32>
    %11 = arith.mulf %8, %10 : vector<2x256xf32>
    %c0_10 = arith.constant 0 : index
    %c0_11 = arith.constant 0 : index
    %12 = vector.load %arg6[%c0_10, %c0_11] : memref<1x256xf32, #tpu.memory_space<vmem>>, vector<1x256xf32>
    %13 = vector.broadcast %12 : vector<1x256xf32> to vector<2x256xf32>
    %14 = arith.addf %11, %13 : vector<2x256xf32>
    %cst_12 = arith.constant 0.000000e+00 : f32
    %15 = vector.broadcast %cst_12 : f32 to vector<2x256xf32>
    %16 = arith.maximumf %14, %15 : vector<2x256xf32>
    %17 = arith.truncf %16 : vector<2x256xf32> to vector<2x256xbf16>
    %c0_13 = arith.constant 0 : index
    %c0_14 = arith.constant 0 : index
    %18 = vector.load %arg7[%c0_13, %c0_14] : memref<256x3xbf16, #tpu.memory_space<vmem>>, vector<256x3xbf16>
    %cst_15 = arith.constant dense<0.000000e+00> : vector<2x3xf32>
    %19 = tpu.matmul %17, %18, %cst_15 {dimension_numbers = #tpu.dot_dimension_numbers<[1], [0], [0], [1], [0, 0, 1, 1], [], []>} : vector<2x256xbf16>, vector<256x3xbf16>, vector<2x3xf32> -> vector<2x3xf32>
    %c0_16 = arith.constant 0 : index
    %c0_17 = arith.constant 0 : index
    %20 = vector.load %arg8[%c0_16, %c0_17] : memref<1x3xf32, #tpu.memory_space<vmem>>, vector<1x3xf32>
    %21 = vector.broadcast %20 : vector<1x3xf32> to vector<2x3xf32>
    %22 = arith.addf %19, %21 : vector<2x3xf32>
    %cst_18 = arith.constant dense<0xFF800000> : vector<2xf32>
    %23 = vector.multi_reduction <maximumf>, %22, %cst_18 [1] : vector<2x3xf32> to vector<2xf32>
    %24 = vector.shape_cast %23 : vector<2xf32> to vector<2x1xf32>
    %25 = vector.broadcast %24 : vector<2x1xf32> to vector<2x3xf32>
    %26 = arith.subf %22, %25 : vector<2x3xf32>
    %27 = math.exp %26 : vector<2x3xf32>
    %cst_19 = arith.constant dense<0.000000e+00> : vector<2xf32>
    %28 = vector.multi_reduction <add>, %27, %cst_19 [1] : vector<2x3xf32> to vector<2xf32>
    %29 = vector.shape_cast %28 : vector<2xf32> to vector<2x1xf32>
    %30 = math.log %29 : vector<2x1xf32>
    %31 = vector.broadcast %30 : vector<2x1xf32> to vector<2x3xf32>
    %32 = arith.subf %26, %31 : vector<2x3xf32>
    %c0_20 = arith.constant 0 : index
    %c0_21 = arith.constant 0 : index
    %33 = vector.load %arg9[%c0_20, %c0_21] : memref<2x3xf32, #tpu.memory_space<vmem>>, vector<2x3xf32>
    tpu.vector_store %arg9[%c0_20, %c0_21], %32 {strides = array<i32>} : memref<2x3xf32, #tpu.memory_space<vmem>>, vector<2x3xf32>,
    return
  }
  func.func @transform_0(%arg0: i32) -> (i32, i32) {
    %c0_i32 = arith.constant 0 : i32
    %c0_i32_0 = arith.constant 0 : i32
    %c0_i32_1 = arith.constant 0 : i32
    return %c0_i32, %c0_i32_0 : i32, i32
  }
  func.func @transform_1(%arg0: i32) -> (i32, i32) {
    %c0_i32 = arith.constant 0 : i32
    %c0_i32_0 = arith.constant 0 : i32
    %c0_i32_1 = arith.constant 0 : i32
    return %c0_i32, %c0_i32_0 : i32, i32
  }
  func.func @transform_2(%arg0: i32) -> (i32, i32) {
    %c0_i32 = arith.constant 0 : i32
    %c0_i32_0 = arith.constant 0 : i32
    %c0_i32_1 = arith.constant 0 : i32
    return %c0_i32, %c0_i32_0 : i32, i32
  }
  func.func @transform_3(%arg0: i32) -> (i32, i32) {
    %c0_i32 = arith.constant 0 : i32
    %c0_i32_0 = arith.constant 0 : i32
    %c0_i32_1 = arith.constant 0 : i32
    return %c0_i32, %c0_i32_0 : i32, i32
  }
  func.func @transform_4(%arg0: i32) -> (i32, i32) {
    %c0_i32 = arith.constant 0 : i32
    %c0_i32_0 = arith.constant 0 : i32
    %c0_i32_1 = arith.constant 0 : i32
    return %c0_i32, %c0_i32_0 : i32, i32
  }
  func.func @transform_5(%arg0: i32) -> (i32, i32) {
    %c0_i32 = arith.constant 0 : i32
    %c0_i32_0 = arith.constant 0 : i32
    %c0_i32_1 = arith.constant 0 : i32
    return %c0_i32, %c0_i32_0 : i32, i32
  }
  func.func @transform_6(%arg0: i32) -> (i32, i32) {
    %c0_i32 = arith.constant 0 : i32
    %c0_i32_0 = arith.constant 0 : i32
    %c0_i32_1 = arith.constant 0 : i32
    return %c0_i32, %c0_i32_0 : i32, i32
  }
  func.func @transform_7(%arg0: i32) -> (i32, i32) {
    %c0_i32 = arith.constant 0 : i32
    %c0_i32_0 = arith.constant 0 : i32
    %c0_i32_1 = arith.constant 0 : i32
    return %c0_i32, %c0_i32_0 : i32, i32
  }
  func.func @transform_8(%arg0: i32) -> (i32, i32) {
    %c0_i32 = arith.constant 0 : i32
    %c0_i32_0 = arith.constant 0 : i32
    %c0_i32_1 = arith.constant 0 : i32
    return %c0_i32, %c0_i32_0 : i32, i32
  }
}

</mosaic_0001>

<llo_original>
// kernel: cnn_forward.8
$region0: #{cnn_forward.8}
  #allocation0 [shape = 'u32[]', space=smem, size = 0x4, offset = 0x4, fixed_abs, tag = 'smem constant byte address 0x4 - core index']
  #allocation1 [shape = 'u32[72,128]{1,0:T(1,128)}', space=vmem, size = 0x9000, scoped, tag = 'internal scratch']
  #allocation2 [shape = 'f32[30,128]{1,0:T(8,128)}', space=vmem, size = 0x4000, scoped, tag = 'scratch operand']
  %s0 = inlined_call_operand.vmem [shape: bf16[2,31,31,64], index: 0, kind: input, shape index: {}]
  %s1 = inlined_call_operand.vmem [shape: bf16[256,128], index: 1, kind: input, shape index: {}]
  %s2 = inlined_call_operand.vmem [shape: f32[1,128], index: 2, kind: input, shape index: {}]
  %s3 = inlined_call_operand.vmem [shape: f32[1,128], index: 3, kind: input, shape index: {}]
  %s4 = inlined_call_operand.vmem [shape: bf16[2,15,15,128], index: 4, kind: output, shape index: {}]
  %s5 = sld [smem:[#allocation0]]
  $region56: #{cnn_forward.8} parent=0
    _
  %s7 = ssub.s32 1, %s5
  %s8 = scalar_select 0, %s7, %s5
  loop: start=0, step=1, limit=4
  $region2: #{cnn_forward.8} parent=0 // loop_pre_header
    _
  $region3: #{cnn_forward.8} parent=0 // loop_header
    %s10 = sphi 0, %s14
    %p11 = scmp.ge.s32.totalorder %s10, 4
    %s20 = sphi 0, %s22
    %s23 = sphi 0, %s20
    %s24 = sphi 0, %s23
    %s40 = sphi 0, %s24
    %s44 = sphi 0, %s44
    %s46 = sphi 0, %s44
    %s47 = sphi 0, %s46
    %s61 = sphi 0, %s47
    %s65 = sphi 0, %s65
    %s67 = sphi 0, %s65
    %s68 = sphi 0, %s67
    %s82 = sphi 0, %s68
    %s86 = sphi 0, %s86
    %s88 = sphi 0, %s86
    %s89 = sphi 0, %s88
    %s103 = sphi 0, %s89
    %s109 = sphi 0, %s111
    %s112 = sphi 0, %s109
    %s113 = sphi 0, %s112
    %s129 = sphi 0, %s113
  $region4: #{cnn_forward.8} parent=0 // loop_header_branch
    %13 = sbr.rel (%p11) target = $region8
  $region5: #{cnn_forward.8} parent=0 // loop_body
    %s15 = ssub.s32 %s10, 1
    %s16 = ssub.s32 %s10, 2
    %s17 = sadd.s32 %s10, 1
    %s18 = ssub.s32 %s10, %s17
    %p19 = scmp.eq.s32.totalorder %s18, 0
    %s21 = sadd.s32 %s20, 1
    %s22 = scalar_select %p19, %s20, %s21
    %p25 = pneg %p19
    %p26 = scmp.eq.s32.totalorder %s10, 1
    %p27 = por %p25, %p26
    %p28 = scmp.ne.s32.totalorder %s20, %s23
    %p29 = scmp.eq.s32.totalorder %s10, 0
    %p30 = por %p28, %p29
    %p31 = scmp.ne.s32.totalorder %s20, %s23
    %p32 = scmp.eq.s32.totalorder %s15, 1
    %p33 = por %p31, %p32
    %p34 = scmp.ne.s32.totalorder %s23, %s24
    %p35 = scmp.eq.s32.totalorder %s15, 0
    %p36 = por %p34, %p35
    %p37 = scmp.ne.s32.totalorder %s23, %s24
    %p38 = scmp.eq.s32.totalorder %s16, 1
    %p39 = por %p37, %p38
    %p41 = scmp.ne.s32.totalorder %s24, %s40
    %p42 = scmp.eq.s32.totalorder %s16, 0
    %p43 = por %p41, %p42
    %s45 = sadd.s32 %s44, 1
    %p48 = scmp.eq.s32.totalorder %s10, 1
    %p49 = scmp.ne.s32.totalorder %s44, %s46
    %p50 = scmp.eq.s32.totalorder %s10, 0
    %p51 = por %p49, %p50
    %p52 = scmp.ne.s32.totalorder %s44, %s46
    %p53 = scmp.eq.s32.totalorder %s15, 1
    %p54 = por %p52, %p53
    %p55 = scmp.ne.s32.totalorder %s46, %s47
    %p56 = scmp.eq.s32.totalorder %s15, 0
    %p57 = por %p55, %p56
    %p58 = scmp.ne.s32.totalorder %s46, %s47
    %p59 = scmp.eq.s32.totalorder %s16, 1
    %p60 = por %p58, %p59
    %p62 = scmp.ne.s32.totalorder %s47, %s61
    %p63 = scmp.eq.s32.totalorder %s16, 0
    %p64 = por %p62, %p63
    %s66 = sadd.s32 %s65, 1
    %p69 = scmp.eq.s32.totalorder %s10, 1
    %p70 = scmp.ne.s32.totalorder %s65, %s67
    %p71 = scmp.eq.s32.totalorder %s10, 0
    %p72 = por %p70, %p71
    %p73 = scmp.ne.s32.totalorder %s65, %s67
    %p74 = scmp.eq.s32.totalorder %s15, 1
    %p75 = por %p73, %p74
    %p76 = scmp.ne.s32.totalorder %s67, %s68
    %p77 = scmp.eq.s32.totalorder %s15, 0
    %p78 = por %p76, %p77
    %p79 = scmp.ne.s32.totalorder %s67, %s68
    %p80 = scmp.eq.s32.totalorder %s16, 1
    %p81 = por %p79, %p80
    %p83 = scmp.ne.s32.totalorder %s68, %s82
    %p84 = scmp.eq.s32.totalorder %s16, 0
    %p85 = por %p83, %p84
    %s87 = sadd.s32 %s86, 1
    %p90 = scmp.eq.s32.totalorder %s10, 1
    %p91 = scmp.ne.s32.totalorder %s86, %s88
    %p92 = scmp.eq.s32.totalorder %s10, 0
    %p93 = por %p91, %p92
    %p94 = scmp.ne.s32.totalorder %s86, %s88
    %p95 = scmp.eq.s32.totalorder %s15, 1
    %p96 = por %p94, %p95
    %p97 = scmp.ne.s32.totalorder %s88, %s89
    %p98 = scmp.eq.s32.totalorder %s15, 0
    %p99 = por %p97, %p98
    %p100 = scmp.ne.s32.totalorder %s88, %s89
    %p101 = scmp.eq.s32.totalorder %s16, 1
    %p102 = por %p100, %p101
    %p104 = scmp.ne.s32.totalorder %s89, %s103
    %p105 = scmp.eq.s32.totalorder %s16, 0
    %p106 = por %p104, %p105
    %s107 = ssub.s32 %s10, %s17
    %p108 = scmp.eq.s32.totalorder %s107, 0
    %s110 = sadd.s32 %s109, 1
    %s111 = scalar_select %p108, %s109, %s110
    %p114 = pneg %p108
    %p115 = scmp.eq.s32.totalorder %s10, 1
    %p116 = por %p114, %p115
    %p117 = scmp.ne.s32.totalorder %s109, %s112
    %p118 = scmp.eq.s32.totalorder %s10, 0
    %p119 = por %p117, %p118
    %p120 = scmp.ne.s32.totalorder %s109, %s112
    %p121 = scmp.eq.s32.totalorder %s15, 1
    %p122 = por %p120, %p121
    %p123 = scmp.ne.s32.totalorder %s112, %s113
    %p124 = scmp.eq.s32.totalorder %s15, 0
    %p125 = por %p123, %p124
    %p126 = scmp.ne.s32.totalorder %s112, %s113
    %p127 = scmp.eq.s32.totalorder %s16, 1
    %p128 = por %p126, %p127
    %p130 = scmp.ne.s32.totalorder %s113, %s129
    %p131 = scmp.eq.s32.totalorder %s16, 0
    %p132 = por %p130, %p131
    %p133 = scmp.le.s32.totalorder 1, %s10
    %p134 = scmp.lt.s32.totalorder %s10, 3
    %p135 = pnand %p133, %p134
    %p136 = pneg %p135
    // Predicated region
    $region9: #{cnn_forward.8} parent=5 // pred_check
      _
    $region10: #{cnn_forward.8} parent=5 // pred_check_branch
      %138 = sbr.rel (%p135) target = $region12
    $region11: #{cnn_forward.8} parent=5 // pred_region
      %s139 = ssub.s32 %s10, 1
      // Predicated region
      $region13: #{cnn_forward.8} parent=11 // pred_check
        %p140 = pneg %p57
      $region14: #{cnn_forward.8} parent=11 // pred_check_branch
        %142 = sbr.rel (%p140) target = $region16
      $region15: #{cnn_forward.8} parent=11 // pred_region
        _
      $region16: #{cnn_forward.8} parent=11 // pred_fallthru
        _
      // Predicated region
      $region17: #{cnn_forward.8} parent=11 // pred_check
        %p143 = pneg %p78
      $region18: #{cnn_forward.8} parent=11 // pred_check_branch
        %145 = sbr.rel (%p143) target = $region20
      $region19: #{cnn_forward.8} parent=11 // pred_region
        _
      $region20: #{cnn_forward.8} parent=11 // pred_fallthru
        _
      // Predicated region
      $region21: #{cnn_forward.8} parent=11 // pred_check
        %p146 = pneg %p99
      $region22: #{cnn_forward.8} parent=11 // pred_check_branch
        %148 = sbr.rel (%p146) target = $region24
      $region23: #{cnn_forward.8} parent=11 // pred_region
        _
      $region24: #{cnn_forward.8} parent=11 // pred_fallthru
        _
    $region12: #{cnn_forward.8} parent=5 // pred_fallthru
      _
    %p149 = scmp.lt.s32.totalorder %s10, 2
    // Predicated region
    $region25: #{cnn_forward.8} parent=5 // pred_check
      %p150 = pneg %p149
    $region26: #{cnn_forward.8} parent=5 // pred_check_branch
      %152 = sbr.rel (%p150) target = $region28
    $region27: #{cnn_forward.8} parent=5 // pred_region
      // Predicated region
      $region29: #{cnn_forward.8} parent=27 // pred_check
        %p153 = pneg %p30
      $region30: #{cnn_forward.8} parent=27 // pred_check_branch
        %155 = sbr.rel (%p153) target = $region32
      $region31: #{cnn_forward.8} parent=27 // pred_region
        %p156 = scmp.lt.s32.totalorder %s10, 1
        %s157 = scalar_select %p156, %s10, 1
        %s158 = smul.addr %s157, 124
        %s159 = smul.addr %s158, 4
        %s160 = scalar_lea.vmem %s0, %s159
      $region32: #{cnn_forward.8} parent=27 // pred_fallthru
        _
    $region28: #{cnn_forward.8} parent=5 // pred_fallthru
      _
    %p161 = scmp.le.s32.totalorder 1, %s10
    %p162 = scmp.lt.s32.totalorder %s10, 3
    %p163 = pnand %p161, %p162
    %p164 = pneg %p163
    // Predicated region
    $region33: #{cnn_forward.8} parent=5 // pred_check
      _
    $region34: #{cnn_forward.8} parent=5 // pred_check_branch
      %166 = sbr.rel (%p163) target = $region36
    $region35: #{cnn_forward.8} parent=5 // pred_region
      %s167 = ssub.s32 %s10, 1
      %p168 = scmp.lt.s32.totalorder %s15, 1
      %s169 = scalar_select %p168, %s15, 1
      %s170 = smul.addr %s169, 124
      %s171 = smul.addr %s170, 4
      %s172 = scalar_lea.vmem %s0, %s171
      %p173 = pneg %p36
      %p174 = pneg %p33
      %p175 = pneg %p57
      %p176 = pneg %p54
      %p177 = pneg %p78
      %p178 = pneg %p75
      %p179 = pneg %p99
      %p180 = pneg %p96
      %p181 = pneg %p125
      %p182 = pneg %p122
      %p183 = scmp.lt.s32.totalorder %s15, 1
      %s184 = scalar_select %p183, %s15, 1
      %s185 = smul.addr %s184, 30
      %s186 = smul.addr %s185, 4
      %s187 = scalar_lea.vmem %s4, %s186
      %p188 = scmp.lt.s32.totalorder %s15, 1
      %s189 = scalar_select %p188, %s15, 1
      %s190 = smul.addr %s189, 124
      %s191 = smul.addr %s190, 4
      %s192 = scalar_lea.vmem %s0, %s191
      %p193 = scmp.lt.s32.totalorder %s15, 1
      %s194 = scalar_select %p193, %s15, 1
      %s195 = smul.addr %s194, 30
      %s196 = smul.addr %s195, 4
      %s197 = scalar_lea.vmem %s4, %s196
      %v198 = vld [vmem:[%s2] sm:$0x1]
      %v199 = vld [vmem:[%s3] sm:$0x1]
      %v200 = vld [vmem:[%s1] sm:$0xf]
      %v201 = vld [vmem:[%s1 + $0x4] sm:$0xf]
      %v202 = vld [vmem:[%s1 + $0x8] sm:$0xf]
      %v203 = vld [vmem:[%s1 + $0xc] sm:$0xf]
      %v204 = vld [vmem:[%s1 + $0x10] sm:$0xf]
      %v205 = vld [vmem:[%s1 + $0x14] sm:$0xf]
      %v206 = vld [vmem:[%s1 + $0x18] sm:$0xf]
      %v207 = vld [vmem:[%s1 + $0x1c] sm:$0xf]
      %v208 = vld [vmem:[%s1 + $0x20] sm:$0xf]
      %v209 = vld [vmem:[%s1 + $0x24] sm:$0xf]
      %v210 = vld [vmem:[%s1 + $0x28] sm:$0xf]
      %v211 = vld [vmem:[%s1 + $0x2c] sm:$0xf]
      %v212 = vld [vmem:[%s1 + $0x30] sm:$0xf]
      %v213 = vld [vmem:[%s1 + $0x34] sm:$0xf]
      %v214 = vld [vmem:[%s1 + $0x38] sm:$0xf]
      %v215 = vld [vmem:[%s1 + $0x3c] sm:$0xf]
      %v216 = vld [vmem:[%s1 + $0x40] sm:$0xf]
      %v217 = vld [vmem:[%s1 + $0x44] sm:$0xf]
      %v218 = vld [vmem:[%s1 + $0x48] sm:$0xf]
      %v219 = vld [vmem:[%s1 + $0x4c] sm:$0xf]
      %v220 = vld [vmem:[%s1 + $0x50] sm:$0xf]
      %v221 = vld [vmem:[%s1 + $0x54] sm:$0xf]
      %v222 = vld [vmem:[%s1 + $0x58] sm:$0xf]
      %v223 = vld [vmem:[%s1 + $0x5c] sm:$0xf]
      %v224 = vld [vmem:[%s1 + $0x60] sm:$0xf]
      %v225 = vld [vmem:[%s1 + $0x64] sm:$0xf]
      %v226 = vld [vmem:[%s1 + $0x68] sm:$0xf]
      %v227 = vld [vmem:[%s1 + $0x6c] sm:$0xf]
      %v228 = vld [vmem:[%s1 + $0x70] sm:$0xf]
      %v229 = vld [vmem:[%s1 + $0x74] sm:$0xf]
      %v230 = vld [vmem:[%s1 + $0x78] sm:$0xf]
      %v231 = vld [vmem:[%s1 + $0x7c] sm:$0xf]
      loop: start=0, step=1, limit=15
      $region37: #{cnn_forward.8} parent=35 // loop_pre_header
        _
      $region38: #{cnn_forward.8} parent=35 // loop_header
        %s233 = sphi 0, %s237
        %p234 = scmp.ge.s32.totalorder %s233, 15
      $region39: #{cnn_forward.8} parent=35 // loop_header_branch
        %236 = sbr.rel (%p234) target = $region43
      $region40: #{cnn_forward.8} parent=35 // loop_body
        %s238 = smul.u32 %s233, 2
        %s239 = smul.u32 %s238, 4
        %s240 = smul.addr %s239, 4
        %s241 = scalar_lea.vmem %s192, %s240
        %v242 = vld [vmem:[%s241] sm:$0xf]
        %v243 = vld [vmem:[%s241 + $0x4] sm:$0xf]
        %v244 = vld [vmem:[%s241 + $0x8] sm:$0xf]
        %v245 = vld [vmem:[%s241 + $0xc] sm:$0xf]
        %s246 = sadd.s32 %s238, 1
        %s247 = smul.u32 %s246, 4
        %s248 = smul.addr %s247, 4
        %s249 = scalar_lea.vmem %s192, %s248
        %v250 = vld [vmem:[%s249] sm:$0xf]
        %v251 = vld [vmem:[%s249 + $0x4] sm:$0xf]
        %v252 = vld [vmem:[%s249 + $0x8] sm:$0xf]
        %v253 = vld [vmem:[%s249 + $0xc] sm:$0xf]
        %s254 = sadd.s32 %s238, 2
        %s255 = smul.u32 %s254, 4
        %s256 = smul.addr %s255, 4
        %s257 = scalar_lea.vmem %s192, %s256
        %v258 = vld [vmem:[%s257] sm:$0xf]
        %v259 = vld [vmem:[%s257 + $0x4] sm:$0xf]
        %v260 = vld [vmem:[%s257 + $0x8] sm:$0xf]
        %v261 = vld [vmem:[%s257 + $0xc] sm:$0xf]
        %v266 = vunpack.c.l.b16 %v242
        %v267 = vunpack.c.l.b16 %v243
        %v268 = vunpack.c.l.b16 %v244
        %v269 = vunpack.c.l.b16 %v245
        %v270 = vpack.c.b16 %v267, %v266
        %v271 = vpack.c.b16 %v269, %v268
        %v276 = vunpack.c.l.b16 %v250
        %v277 = vunpack.c.l.b16 %v251
        %v278 = vunpack.c.l.b16 %v252
        %v279 = vunpack.c.l.b16 %v253
        %v280 = vpack.c.b16 %v277, %v276
        %v281 = vpack.c.b16 %v279, %v278
        %282 = vrot.lane.b32.xlu0 %v280, 64
        %v283 = vpop.permute.xlu0 %282
        %284 = vrot.lane.b32.xlu0 %v281, 64
        %v285 = vpop.permute.xlu0 %284
        %vm286 = vcmask 523264
        %v289 = vsel %vm286, %v270, %v283
        %v293 = vsel %vm286, %v271, %v285
        %v299 = vunpack.c.l.b16 %v258
        %v300 = vunpack.c.l.b16 %v259
        %v301 = vunpack.c.l.b16 %v260
        %v302 = vunpack.c.l.b16 %v261
        %v303 = vpack.c.b16 %v300, %v299
        %v304 = vpack.c.b16 %v302, %v301
        %305 = vrot.lane.b32.xlu0 %v303, 64
        %v306 = vpop.permute.xlu0 %305
        %307 = vrot.lane.b32.xlu0 %v304, 64
        %v308 = vpop.permute.xlu0 %307
        %v311 = vsel %vm286, %v280, %v306
        %v315 = vsel %vm286, %v281, %v308
        %vm317 = vsmask.f32 7424
        %v318 = vshrl.u32 %v289, 16
        %v320 = vshll.u32 %v289, 16
        %v322 = vrot.slane %v320, 1
        %v323 = vor.u32 %v318, %v322
        %v324 = vshll.u32 %v293, 16
        %v326 = vrot.slane %v324, 1
        %v327 = vsel %vm317, %v323, %v326
        %v328 = vshrl.u32 %v293, 16
        %v330 = vor.u32 %v328, %v326
        %v333 = vshrl.u32 %v311, 16
        %v335 = vshll.u32 %v311, 16
        %v337 = vrot.slane %v335, 1
        %v338 = vor.u32 %v333, %v337
        %v339 = vshll.u32 %v315, 16
        %v341 = vrot.slane %v339, 1
        %v342 = vsel %vm317, %v338, %v341
        %v343 = vshrl.u32 %v315, 16
        %v345 = vor.u32 %v343, %v341
        %v380 = vunpack.c.l.b16 %v200
        %v381 = vunpack.c.l.b16 %v201
        %v382 = vunpack.c.l.b16 %v202
        %v383 = vunpack.c.l.b16 %v203
        %v384 = vunpack.c.l.b16 %v204
        %v385 = vunpack.c.l.b16 %v205
        %v386 = vunpack.c.l.b16 %v206
        %v387 = vunpack.c.l.b16 %v207
        %v388 = vunpack.c.l.b16 %v208
        %v389 = vunpack.c.l.b16 %v209
        %v390 = vunpack.c.l.b16 %v210
        %v391 = vunpack.c.l.b16 %v211
        %v392 = vunpack.c.l.b16 %v212
        %v393 = vunpack.c.l.b16 %v213
        %v394 = vunpack.c.l.b16 %v214
        %v395 = vunpack.c.l.b16 %v215
        %v396 = vunpack.c.l.b16 %v216
        %v397 = vunpack.c.l.b16 %v217
        %v398 = vunpack.c.l.b16 %v218
        %v399 = vunpack.c.l.b16 %v219
        %v400 = vunpack.c.l.b16 %v220
        %v401 = vunpack.c.l.b16 %v221
        %v402 = vunpack.c.l.b16 %v222
        %v403 = vunpack.c.l.b16 %v223
        %v404 = vunpack.c.l.b16 %v224
        %v405 = vunpack.c.l.b16 %v225
        %v406 = vunpack.c.l.b16 %v226
        %v407 = vunpack.c.l.b16 %v227
        %v408 = vunpack.c.l.b16 %v228
        %v409 = vunpack.c.l.b16 %v229
        %v410 = vunpack.c.l.b16 %v230
        %v411 = vunpack.c.l.b16 %v231
        %v412 = vpack.c.b16 %v381, %v380
        %v413 = vpack.c.b16 %v383, %v382
        %v414 = vpack.c.b16 %v385, %v384
        %v415 = vpack.c.b16 %v387, %v386
        %v416 = vpack.c.b16 %v389, %v388
        %v417 = vpack.c.b16 %v391, %v390
        %v418 = vpack.c.b16 %v393, %v392
        %v419 = vpack.c.b16 %v395, %v394
        %v420 = vpack.c.b16 %v397, %v396
        %v421 = vpack.c.b16 %v399, %v398
        %v422 = vpack.c.b16 %v401, %v400
        %v423 = vpack.c.b16 %v403, %v402
        %v424 = vpack.c.b16 %v405, %v404
        %v425 = vpack.c.b16 %v407, %v406
        %v426 = vpack.c.b16 %v409, %v408
        %v427 = vpack.c.b16 %v411, %v410
        %444 = vmatpush.bf16.msra.mxu0 %v419
        %445 = vmatpush.bf16.msra.mxu0 %v418
        %446 = vmatpush.bf16.msra.mxu0 %v417
        %447 = vmatpush.bf16.msra.mxu0 %v416
        %448 = vmatpush.bf16.msra.mxu0 %v415
        %449 = vmatpush.bf16.msra.mxu0 %v414
        %450 = vmatpush.bf16.msra.mxu0 %v413
        %451 = vmatpush.bf16.msra.mxu0 %v412
        %452 = vmatmul.bf16.gmra.mxu0 %v289
        %v453 = vpop.f32.mrf.mxu0
        %v454 = vadd.f32 0.0, %v453
        %v455 = vpop.f32.mrf.mxu0
        %v456 = vadd.f32 0.0, %v455
        %457 = vmatmul.bf16.gmra.mxu0 %v293
        %v458 = vpop.f32.mrf.mxu0
        %v459 = vadd.f32 0.0, %v458
        %v460 = vpop.f32.mrf.mxu0
        %v461 = vadd.f32 0.0, %v460
        %462 = vdwg.mxu0
        %463 = vmatpush.bf16.msra.mxu0 %v427
        %464 = vmatpush.bf16.msra.mxu0 %v426
        %465 = vmatpush.bf16.msra.mxu0 %v425
        %466 = vmatpush.bf16.msra.mxu0 %v424
        %467 = vmatpush.bf16.msra.mxu0 %v423
        %468 = vmatpush.bf16.msra.mxu0 %v422
        %469 = vmatpush.bf16.msra.mxu0 %v421
        %470 = vmatpush.bf16.msra.mxu0 %v420
        %471 = vmatmul.bf16.gmra.mxu0 %v327
        %v472 = vpop.f32.mrf.mxu0
        %v473 = vadd.f32 %v454, %v472
        %v474 = vpop.f32.mrf.mxu0
        %v475 = vadd.f32 %v456, %v474
        %476 = vmatmul.bf16.gmra.mxu0 %v330
        %v477 = vpop.f32.mrf.mxu0
        %v478 = vadd.f32 %v459, %v477
        %v479 = vpop.f32.mrf.mxu0
        %v480 = vadd.f32 %v461, %v479
        %481 = vdwg.mxu0
        %v483 = vperm.slane %v198, 0
        %v485 = vmul.f32 %v473, %v483
        %v486 = vmul.f32 %v475, %v483
        %v487 = vmul.f32 %v478, %v483
        %v488 = vmul.f32 %v480, %v483
        %v490 = vperm.slane %v199, 0
        %v492 = vadd.f32 %v485, %v490
        %v493 = vadd.f32 %v486, %v490
        %v494 = vadd.f32 %v487, %v490
        %v495 = vadd.f32 %v488, %v490
        %496 = vmatpush.bf16.msra.mxu0 %v419
        %497 = vmatpush.bf16.msra.mxu0 %v418
        %498 = vmatpush.bf16.msra.mxu0 %v417
        %499 = vmatpush.bf16.msra.mxu0 %v416
        %500 = vmatpush.bf16.msra.mxu0 %v415
        %501 = vmatpush.bf16.msra.mxu0 %v414
        %502 = vmatpush.bf16.msra.mxu0 %v413
        %503 = vmatpush.bf16.msra.mxu0 %v412
        %504 = vmatmul.bf16.gmra.mxu0 %v311
        %v505 = vpop.f32.mrf.mxu0
        %v506 = vadd.f32 0.0, %v505
        %v507 = vpop.f32.mrf.mxu0
        %v508 = vadd.f32 0.0, %v507
        %509 = vmatmul.bf16.gmra.mxu0 %v315
        %v510 = vpop.f32.mrf.mxu0
        %v511 = vadd.f32 0.0, %v510
        %v512 = vpop.f32.mrf.mxu0
        %v513 = vadd.f32 0.0, %v512
        %514 = vdwg.mxu0
        %515 = vmatpush.bf16.msra.mxu0 %v427
        %516 = vmatpush.bf16.msra.mxu0 %v426
        %517 = vmatpush.bf16.msra.mxu0 %v425
        %518 = vmatpush.bf16.msra.mxu0 %v424
        %519 = vmatpush.bf16.msra.mxu0 %v423
        %520 = vmatpush.bf16.msra.mxu0 %v422
        %521 = vmatpush.bf16.msra.mxu0 %v421
        %522 = vmatpush.bf16.msra.mxu0 %v420
        %523 = vmatmul.bf16.gmra.mxu0 %v342
        %v524 = vpop.f32.mrf.mxu0
        %v525 = vadd.f32 %v506, %v524
        %v526 = vpop.f32.mrf.mxu0
        %v527 = vadd.f32 %v508, %v526
        %528 = vmatmul.bf16.gmra.mxu0 %v345
        %v529 = vpop.f32.mrf.mxu0
        %v530 = vadd.f32 %v511, %v529
        %v531 = vpop.f32.mrf.mxu0
        %v532 = vadd.f32 %v513, %v531
        %533 = vdwg.mxu0
        %v534 = vmul.f32 %v525, %v483
        %v535 = vmul.f32 %v527, %v483
        %v536 = vmul.f32 %v530, %v483
        %v537 = vmul.f32 %v532, %v483
        %v538 = vadd.f32 %v534, %v490
        %v539 = vadd.f32 %v535, %v490
        %v540 = vadd.f32 %v536, %v490
        %v541 = vadd.f32 %v537, %v490
        %v542 = vmax.f32 %v492, %v538
        %v543 = vmax.f32 %v493, %v539
        %v544 = vmax.f32 %v494, %v540
        %v545 = vmax.f32 %v495, %v541
        %546 = vst [vmem:[#allocation2] sm:$0xff] %v542
        %547 = vst [vmem:[#allocation2 + $0x8] sm:$0xff] %v543
        %548 = vst [vmem:[#allocation2 + $0x10] sm:$0xff] %v544
        %549 = vst [vmem:[#allocation2 + $0x18] sm:$0x3f] %v545
        %v550 = vld [vmem:[#allocation2] ss:$2 sm:$0xff]
        %s551 = scalar_lea.vmem [#allocation2], 16
        %v552 = vld [vmem:[%s551] ss:$2 sm:$0x7f]
        %s553 = scalar_lea.vmem [#allocation2], 1
        %v554 = vld [vmem:[%s553] ss:$2 sm:$0xff]
        %s555 = scalar_lea.vmem [#allocation2], 17
        %v556 = vld [vmem:[%s555] ss:$2 sm:$0x7f]
        %v557 = vmax.f32 %v550, %v554
        %v558 = vmax.f32 %v552, %v556
        %v559 = vmax.f32 %v557, 0.0
        %v560 = vmax.f32 %v558, 0.0
        %v561 = vpack.c.bf16 %v559, %v559
        %v562 = vpack.c.bf16 %v560, %v560
        %s563 = smul.addr %s238, 4
        %s564 = scalar_lea.vmem %s197, %s563
        %565 = vst [vmem:[%s564] sm:$0xf] %v561
        %vm566 = vcmask 1043456
        %vm567 = vsmask.f32 3328
        %vm568 = vmand %vm566, %vm567
        %v569 = vld [vmem:[%s564 + $0x4] sm:$0xf]
        %v570 = vsel %vm568, %v562, %v569
        %571 = vst [vmem:[%s564 + $0x4] sm:$0xf] %v570
      $region41: #{cnn_forward.8} parent=35 // loop_footer
        %s237 = sadd.s32 1, %s233
      $region42: #{cnn_forward.8} parent=35 // loop_footer_branch
        %232 = sbr.rel target = $region38
      $region43: #{cnn_forward.8} parent=35 // loop_exit
        _
      %p572 = scmp.lt.s32.totalorder %s15, 1
      %s573 = scalar_select %p572, %s15, 1
      %s574 = smul.addr %s573, 30
      %s575 = smul.addr %s574, 4
      %s576 = scalar_lea.vmem %s4, %s575
      // Predicated region
      $region44: #{cnn_forward.8} parent=35 // pred_check
        %p577 = pneg %p122
      $region45: #{cnn_forward.8} parent=35 // pred_check_branch
        %579 = sbr.rel (%p577) target = $region47
      $region46: #{cnn_forward.8} parent=35 // pred_region
        _
      $region47: #{cnn_forward.8} parent=35 // pred_fallthru
        _
    $region36: #{cnn_forward.8} parent=5 // pred_fallthru
      _
    %p580 = scmp.le.s32.totalorder 2, %s10
    // Predicated region
    $region48: #{cnn_forward.8} parent=5 // pred_check
      %p581 = pneg %p580
    $region49: #{cnn_forward.8} parent=5 // pred_check_branch
      %583 = sbr.rel (%p581) target = $region51
    $region50: #{cnn_forward.8} parent=5 // pred_region
      %s584 = ssub.s32 %s10, 2
      // Predicated region
      $region52: #{cnn_forward.8} parent=50 // pred_check
        %p585 = pneg %p128
      $region53: #{cnn_forward.8} parent=50 // pred_check_branch
        %587 = sbr.rel (%p585) target = $region55
      $region54: #{cnn_forward.8} parent=50 // pred_region
        %p588 = scmp.lt.s32.totalorder %s16, 1
        %s589 = scalar_select %p588, %s16, 1
        %s590 = smul.addr %s589, 30
        %s591 = smul.addr %s590, 4
        %s592 = scalar_lea.vmem %s4, %s591
      $region55: #{cnn_forward.8} parent=50 // pred_fallthru
        _
    $region51: #{cnn_forward.8} parent=5 // pred_fallthru
      _
  $region6: #{cnn_forward.8} parent=0 // loop_footer
    %s14 = sadd.s32 1, %s10
  $region7: #{cnn_forward.8} parent=0 // loop_footer_branch
    %9 = sbr.rel target = $region3
  $region8: #{cnn_forward.8} parent=0 // loop_exit
    _

// kernel: cnn_forward.7
$region0: #{cnn_forward.7}
  #allocation0 [shape = 'u32[]', space=smem, size = 0x4, offset = 0x4, fixed_abs, tag = 'smem constant byte address 0x4 - core index']
  #allocation1 [shape = 'u32[72,128]{1,0:T(1,128)}', space=vmem, size = 0x9000, scoped, tag = 'internal scratch']
  #allocation2 [shape = 'f32[62,64]{1,0:T(8,128)}', space=vmem, size = 0x8000, scoped, tag = 'scratch operand']
  %s0 = inlined_call_operand.vmem [shape: bf16[2,63,63,64], index: 0, kind: input, shape index: {}]
  %s1 = inlined_call_operand.vmem [shape: bf16[256,64], index: 1, kind: input, shape index: {}]
  %s2 = inlined_call_operand.vmem [shape: f32[1,64], index: 2, kind: input, shape index: {}]
  %s3 = inlined_call_operand.vmem [shape: f32[1,64], index: 3, kind: input, shape index: {}]
  %s4 = inlined_call_operand.vmem [shape: bf16[2,31,31,64], index: 4, kind: output, shape index: {}]
  %s5 = sld [smem:[#allocation0]]
  $region56: #{cnn_forward.7} parent=0
    _
  %s7 = ssub.s32 1, %s5
  %s8 = scalar_select 0, %s7, %s5
  loop: start=0, step=1, limit=4
  $region2: #{cnn_forward.7} parent=0 // loop_pre_header
    _
  $region3: #{cnn_forward.7} parent=0 // loop_header
    %s10 = sphi 0, %s14
    %p11 = scmp.ge.s32.totalorder %s10, 4
    %s20 = sphi 0, %s22
    %s23 = sphi 0, %s20
    %s24 = sphi 0, %s23
    %s40 = sphi 0, %s24
    %s44 = sphi 0, %s44
    %s46 = sphi 0, %s44
    %s47 = sphi 0, %s46
    %s61 = sphi 0, %s47
    %s65 = sphi 0, %s65
    %s67 = sphi 0, %s65
    %s68 = sphi 0, %s67
    %s82 = sphi 0, %s68
    %s86 = sphi 0, %s86
    %s88 = sphi 0, %s86
    %s89 = sphi 0, %s88
    %s103 = sphi 0, %s89
    %s109 = sphi 0, %s111
    %s112 = sphi 0, %s109
    %s113 = sphi 0, %s112
    %s129 = sphi 0, %s113
  $region4: #{cnn_forward.7} parent=0 // loop_header_branch
    %13 = sbr.rel (%p11) target = $region8
  $region5: #{cnn_forward.7} parent=0 // loop_body
    %s15 = ssub.s32 %s10, 1
    %s16 = ssub.s32 %s10, 2
    %s17 = sadd.s32 %s10, 1
    %s18 = ssub.s32 %s10, %s17
    %p19 = scmp.eq.s32.totalorder %s18, 0
    %s21 = sadd.s32 %s20, 1
    %s22 = scalar_select %p19, %s20, %s21
    %p25 = pneg %p19
    %p26 = scmp.eq.s32.totalorder %s10, 1
    %p27 = por %p25, %p26
    %p28 = scmp.ne.s32.totalorder %s20, %s23
    %p29 = scmp.eq.s32.totalorder %s10, 0
    %p30 = por %p28, %p29
    %p31 = scmp.ne.s32.totalorder %s20, %s23
    %p32 = scmp.eq.s32.totalorder %s15, 1
    %p33 = por %p31, %p32
    %p34 = scmp.ne.s32.totalorder %s23, %s24
    %p35 = scmp.eq.s32.totalorder %s15, 0
    %p36 = por %p34, %p35
    %p37 = scmp.ne.s32.totalorder %s23, %s24
    %p38 = scmp.eq.s32.totalorder %s16, 1
    %p39 = por %p37, %p38
    %p41 = scmp.ne.s32.totalorder %s24, %s40
    %p42 = scmp.eq.s32.totalorder %s16, 0
    %p43 = por %p41, %p42
    %s45 = sadd.s32 %s44, 1
    %p48 = scmp.eq.s32.totalorder %s10, 1
    %p49 = scmp.ne.s32.totalorder %s44, %s46
    %p50 = scmp.eq.s32.totalorder %s10, 0
    %p51 = por %p49, %p50
    %p52 = scmp.ne.s32.totalorder %s44, %s46
    %p53 = scmp.eq.s32.totalorder %s15, 1
    %p54 = por %p52, %p53
    %p55 = scmp.ne.s32.totalorder %s46, %s47
    %p56 = scmp.eq.s32.totalorder %s15, 0
    %p57 = por %p55, %p56
    %p58 = scmp.ne.s32.totalorder %s46, %s47
    %p59 = scmp.eq.s32.totalorder %s16, 1
    %p60 = por %p58, %p59
    %p62 = scmp.ne.s32.totalorder %s47, %s61
    %p63 = scmp.eq.s32.totalorder %s16, 0
    %p64 = por %p62, %p63
    %s66 = sadd.s32 %s65, 1
    %p69 = scmp.eq.s32.totalorder %s10, 1
    %p70 = scmp.ne.s32.totalorder %s65, %s67
    %p71 = scmp.eq.s32.totalorder %s10, 0
    %p72 = por %p70, %p71
    %p73 = scmp.ne.s32.totalorder %s65, %s67
    %p74 = scmp.eq.s32.totalorder %s15, 1
    %p75 = por %p73, %p74
    %p76 = scmp.ne.s32.totalorder %s67, %s68
    %p77 = scmp.eq.s32.totalorder %s15, 0
    %p78 = por %p76, %p77
    %p79 = scmp.ne.s32.totalorder %s67, %s68
    %p80 = scmp.eq.s32.totalorder %s16, 1
    %p81 = por %p79, %p80
    %p83 = scmp.ne.s32.totalorder %s68, %s82
    %p84 = scmp.eq.s32.totalorder %s16, 0
    %p85 = por %p83, %p84
    %s87 = sadd.s32 %s86, 1
    %p90 = scmp.eq.s32.totalorder %s10, 1
    %p91 = scmp.ne.s32.totalorder %s86, %s88
    %p92 = scmp.eq.s32.totalorder %s10, 0
    %p93 = por %p91, %p92
    %p94 = scmp.ne.s32.totalorder %s86, %s88
    %p95 = scmp.eq.s32.totalorder %s15, 1
    %p96 = por %p94, %p95
    %p97 = scmp.ne.s32.totalorder %s88, %s89
    %p98 = scmp.eq.s32.totalorder %s15, 0
    %p99 = por %p97, %p98
    %p100 = scmp.ne.s32.totalorder %s88, %s89
    %p101 = scmp.eq.s32.totalorder %s16, 1
    %p102 = por %p100, %p101
    %p104 = scmp.ne.s32.totalorder %s89, %s103
    %p105 = scmp.eq.s32.totalorder %s16, 0
    %p106 = por %p104, %p105
    %s107 = ssub.s32 %s10, %s17
    %p108 = scmp.eq.s32.totalorder %s107, 0
    %s110 = sadd.s32 %s109, 1
    %s111 = scalar_select %p108, %s109, %s110
    %p114 = pneg %p108
    %p115 = scmp.eq.s32.totalorder %s10, 1
    %p116 = por %p114, %p115
    %p117 = scmp.ne.s32.totalorder %s109, %s112
    %p118 = scmp.eq.s32.totalorder %s10, 0
    %p119 = por %p117, %p118
    %p120 = scmp.ne.s32.totalorder %s109, %s112
    %p121 = scmp.eq.s32.totalorder %s15, 1
    %p122 = por %p120, %p121
    %p123 = scmp.ne.s32.totalorder %s112, %s113
    %p124 = scmp.eq.s32.totalorder %s15, 0
    %p125 = por %p123, %p124
    %p126 = scmp.ne.s32.totalorder %s112, %s113
    %p127 = scmp.eq.s32.totalorder %s16, 1
    %p128 = por %p126, %p127
    %p130 = scmp.ne.s32.totalorder %s113, %s129
    %p131 = scmp.eq.s32.totalorder %s16, 0
    %p132 = por %p130, %p131
    %p133 = scmp.le.s32.totalorder 1, %s10
    %p134 = scmp.lt.s32.totalorder %s10, 3
    %p135 = pnand %p133, %p134
    %p136 = pneg %p135
    // Predicated region
    $region9: #{cnn_forward.7} parent=5 // pred_check
      _
    $region10: #{cnn_forward.7} parent=5 // pred_check_branch
      %138 = sbr.rel (%p135) target = $region12
    $region11: #{cnn_forward.7} parent=5 // pred_region
      %s139 = ssub.s32 %s10, 1
      // Predicated region
      $region13: #{cnn_forward.7} parent=11 // pred_check
        %p140 = pneg %p57
      $region14: #{cnn_forward.7} parent=11 // pred_check_branch
        %142 = sbr.rel (%p140) target = $region16
      $region15: #{cnn_forward.7} parent=11 // pred_region
        _
      $region16: #{cnn_forward.7} parent=11 // pred_fallthru
        _
      // Predicated region
      $region17: #{cnn_forward.7} parent=11 // pred_check
        %p143 = pneg %p78
      $region18: #{cnn_forward.7} parent=11 // pred_check_branch
        %145 = sbr.rel (%p143) target = $region20
      $region19: #{cnn_forward.7} parent=11 // pred_region
        _
      $region20: #{cnn_forward.7} parent=11 // pred_fallthru
        _
      // Predicated region
      $region21: #{cnn_forward.7} parent=11 // pred_check
        %p146 = pneg %p99
      $region22: #{cnn_forward.7} parent=11 // pred_check_branch
        %148 = sbr.rel (%p146) target = $region24
      $region23: #{cnn_forward.7} parent=11 // pred_region
        _
      $region24: #{cnn_forward.7} parent=11 // pred_fallthru
        _
    $region12: #{cnn_forward.7} parent=5 // pred_fallthru
      _
    %p149 = scmp.lt.s32.totalorder %s10, 2
    // Predicated region
    $region25: #{cnn_forward.7} parent=5 // pred_check
      %p150 = pneg %p149
    $region26: #{cnn_forward.7} parent=5 // pred_check_branch
      %152 = sbr.rel (%p150) target = $region28
    $region27: #{cnn_forward.7} parent=5 // pred_region
      // Predicated region
      $region29: #{cnn_forward.7} parent=27 // pred_check
        %p153 = pneg %p30
      $region30: #{cnn_forward.7} parent=27 // pred_check_branch
        %155 = sbr.rel (%p153) target = $region32
      $region31: #{cnn_forward.7} parent=27 // pred_region
        %p156 = scmp.lt.s32.totalorder %s10, 1
        %s157 = scalar_select %p156, %s10, 1
        %s158 = smul.addr %s157, 504
        %s159 = smul.addr %s158, 4
        %s160 = scalar_lea.vmem %s0, %s159
      $region32: #{cnn_forward.7} parent=27 // pred_fallthru
        _
    $region28: #{cnn_forward.7} parent=5 // pred_fallthru
      _
    %p161 = scmp.le.s32.totalorder 1, %s10
    %p162 = scmp.lt.s32.totalorder %s10, 3
    %p163 = pnand %p161, %p162
    %p164 = pneg %p163
    // Predicated region
    $region33: #{cnn_forward.7} parent=5 // pred_check
      _
    $region34: #{cnn_forward.7} parent=5 // pred_check_branch
      %166 = sbr.rel (%p163) target = $region36
    $region35: #{cnn_forward.7} parent=5 // pred_region
      %s167 = ssub.s32 %s10, 1
      %p168 = scmp.lt.s32.totalorder %s15, 1
      %s169 = scalar_select %p168, %s15, 1
      %s170 = smul.addr %s169, 504
      %s171 = smul.addr %s170, 4
      %s172 = scalar_lea.vmem %s0, %s171
      %p173 = pneg %p36
      %p174 = pneg %p33
      %p175 = pneg %p57
      %p176 = pneg %p54
      %p177 = pneg %p78
      %p178 = pneg %p75
      %p179 = pneg %p99
      %p180 = pneg %p96
      %p181 = pneg %p125
      %p182 = pneg %p122
      %p183 = scmp.lt.s32.totalorder %s15, 1
      %s184 = scalar_select %p183, %s15, 1
      %s185 = smul.addr %s184, 124
      %s186 = smul.addr %s185, 4
      %s187 = scalar_lea.vmem %s4, %s186
      %p188 = scmp.lt.s32.totalorder %s15, 1
      %s189 = scalar_select %p188, %s15, 1
      %s190 = smul.addr %s189, 504
      %s191 = smul.addr %s190, 4
      %s192 = scalar_lea.vmem %s0, %s191
      %p193 = scmp.lt.s32.totalorder %s15, 1
      %s194 = scalar_select %p193, %s15, 1
      %s195 = smul.addr %s194, 124
      %s196 = smul.addr %s195, 4
      %s197 = scalar_lea.vmem %s4, %s196
      %v198 = vld [vmem:[%s2] sm:$0x1]
      %v199 = vld [vmem:[%s3] sm:$0x1]
      %v200 = vld [vmem:[%s1] sm:$0xf]
      %v201 = vld [vmem:[%s1 + $0x4] sm:$0xf]
      %v202 = vld [vmem:[%s1 + $0x8] sm:$0xf]
      %v203 = vld [vmem:[%s1 + $0xc] sm:$0xf]
      %v204 = vld [vmem:[%s1 + $0x10] sm:$0xf]
      %v205 = vld [vmem:[%s1 + $0x14] sm:$0xf]
      %v206 = vld [vmem:[%s1 + $0x18] sm:$0xf]
      %v207 = vld [vmem:[%s1 + $0x1c] sm:$0xf]
      %v208 = vld [vmem:[%s1 + $0x20] sm:$0xf]
      %v209 = vld [vmem:[%s1 + $0x24] sm:$0xf]
      %v210 = vld [vmem:[%s1 + $0x28] sm:$0xf]
      %v211 = vld [vmem:[%s1 + $0x2c] sm:$0xf]
      %v212 = vld [vmem:[%s1 + $0x30] sm:$0xf]
      %v213 = vld [vmem:[%s1 + $0x34] sm:$0xf]
      %v214 = vld [vmem:[%s1 + $0x38] sm:$0xf]
      %v215 = vld [vmem:[%s1 + $0x3c] sm:$0xf]
      %v216 = vld [vmem:[%s1 + $0x40] sm:$0xf]
      %v217 = vld [vmem:[%s1 + $0x44] sm:$0xf]
      %v218 = vld [vmem:[%s1 + $0x48] sm:$0xf]
      %v219 = vld [vmem:[%s1 + $0x4c] sm:$0xf]
      %v220 = vld [vmem:[%s1 + $0x50] sm:$0xf]
      %v221 = vld [vmem:[%s1 + $0x54] sm:$0xf]
      %v222 = vld [vmem:[%s1 + $0x58] sm:$0xf]
      %v223 = vld [vmem:[%s1 + $0x5c] sm:$0xf]
      %v224 = vld [vmem:[%s1 + $0x60] sm:$0xf]
      %v225 = vld [vmem:[%s1 + $0x64] sm:$0xf]
      %v226 = vld [vmem:[%s1 + $0x68] sm:$0xf]
      %v227 = vld [vmem:[%s1 + $0x6c] sm:$0xf]
      %v228 = vld [vmem:[%s1 + $0x70] sm:$0xf]
      %v229 = vld [vmem:[%s1 + $0x74] sm:$0xf]
      %v230 = vld [vmem:[%s1 + $0x78] sm:$0xf]
      %v231 = vld [vmem:[%s1 + $0x7c] sm:$0xf]
      loop: start=0, step=1, limit=31
      $region37: #{cnn_forward.7} parent=35 // loop_pre_header
        _
      $region38: #{cnn_forward.7} parent=35 // loop_header
        %s233 = sphi 0, %s237
        %p234 = scmp.ge.s32.totalorder %s233, 31
      $region39: #{cnn_forward.7} parent=35 // loop_header_branch
        %236 = sbr.rel (%p234) target = $region43
      $region40: #{cnn_forward.7} parent=35 // loop_body
        %s238 = smul.u32 %s233, 2
        %s239 = smul.u32 %s238, 8
        %s240 = smul.addr %s239, 4
        %s241 = scalar_lea.vmem %s192, %s240
        %v242 = vld [vmem:[%s241] sm:$0xf]
        %v243 = vld [vmem:[%s241 + $0x4] sm:$0xf]
        %v244 = vld [vmem:[%s241 + $0x8] sm:$0xf]
        %v245 = vld [vmem:[%s241 + $0xc] sm:$0xf]
        %v246 = vld [vmem:[%s241 + $0x10] sm:$0xf]
        %v247 = vld [vmem:[%s241 + $0x14] sm:$0xf]
        %v248 = vld [vmem:[%s241 + $0x18] sm:$0xf]
        %v249 = vld [vmem:[%s241 + $0x1c] sm:$0xf]
        %s250 = sadd.s32 %s238, 1
        %s251 = smul.u32 %s250, 8
        %s252 = smul.addr %s251, 4
        %s253 = scalar_lea.vmem %s192, %s252
        %v254 = vld [vmem:[%s253] sm:$0xf]
        %v255 = vld [vmem:[%s253 + $0x4] sm:$0xf]
        %v256 = vld [vmem:[%s253 + $0x8] sm:$0xf]
        %v257 = vld [vmem:[%s253 + $0xc] sm:$0xf]
        %v258 = vld [vmem:[%s253 + $0x10] sm:$0xf]
        %v259 = vld [vmem:[%s253 + $0x14] sm:$0xf]
        %v260 = vld [vmem:[%s253 + $0x18] sm:$0xf]
        %v261 = vld [vmem:[%s253 + $0x1c] sm:$0xf]
        %s262 = sadd.s32 %s238, 2
        %s263 = smul.u32 %s262, 8
        %s264 = smul.addr %s263, 4
        %s265 = scalar_lea.vmem %s192, %s264
        %v266 = vld [vmem:[%s265] sm:$0xf]
        %v267 = vld [vmem:[%s265 + $0x4] sm:$0xf]
        %v268 = vld [vmem:[%s265 + $0x8] sm:$0xf]
        %v269 = vld [vmem:[%s265 + $0xc] sm:$0xf]
        %v270 = vld [vmem:[%s265 + $0x10] sm:$0xf]
        %v271 = vld [vmem:[%s265 + $0x14] sm:$0xf]
        %v272 = vld [vmem:[%s265 + $0x18] sm:$0xf]
        %v273 = vld [vmem:[%s265 + $0x1c] sm:$0xf]
        %v282 = vunpack.c.l.b16 %v242
        %v283 = vunpack.c.l.b16 %v243
        %v284 = vunpack.c.l.b16 %v244
        %v285 = vunpack.c.l.b16 %v245
        %v286 = vunpack.c.l.b16 %v246
        %v287 = vunpack.c.l.b16 %v247
        %v288 = vunpack.c.l.b16 %v248
        %v289 = vunpack.c.l.b16 %v249
        %v290 = vpack.c.b16 %v283, %v282
        %v291 = vpack.c.b16 %v285, %v284
        %v292 = vpack.c.b16 %v287, %v286
        %v293 = vpack.c.b16 %v289, %v288
        %v302 = vunpack.c.l.b16 %v254
        %v303 = vunpack.c.l.b16 %v255
        %v304 = vunpack.c.l.b16 %v256
        %v305 = vunpack.c.l.b16 %v257
        %v306 = vunpack.c.l.b16 %v258
        %v307 = vunpack.c.l.b16 %v259
        %v308 = vunpack.c.l.b16 %v260
        %v309 = vunpack.c.l.b16 %v261
        %v310 = vpack.c.b16 %v303, %v302
        %v311 = vpack.c.b16 %v305, %v304
        %v312 = vpack.c.b16 %v307, %v306
        %v313 = vpack.c.b16 %v309, %v308
        %314 = vrot.lane.b32.xlu0 %v310, 64
        %v315 = vpop.permute.xlu0 %314
        %316 = vrot.lane.b32.xlu0 %v311, 64
        %v317 = vpop.permute.xlu0 %316
        %318 = vrot.lane.b32.xlu0 %v312, 64
        %v319 = vpop.permute.xlu0 %318
        %320 = vrot.lane.b32.xlu0 %v313, 64
        %v321 = vpop.permute.xlu0 %320
        %vm322 = vcmask 523264
        %v325 = vsel %vm322, %v290, %v315
        %v329 = vsel %vm322, %v291, %v317
        %v333 = vsel %vm322, %v292, %v319
        %v337 = vsel %vm322, %v293, %v321
        %v347 = vunpack.c.l.b16 %v266
        %v348 = vunpack.c.l.b16 %v267
        %v349 = vunpack.c.l.b16 %v268
        %v350 = vunpack.c.l.b16 %v269
        %v351 = vunpack.c.l.b16 %v270
        %v352 = vunpack.c.l.b16 %v271
        %v353 = vunpack.c.l.b16 %v272
        %v354 = vunpack.c.l.b16 %v273
        %v355 = vpack.c.b16 %v348, %v347
        %v356 = vpack.c.b16 %v350, %v349
        %v357 = vpack.c.b16 %v352, %v351
        %v358 = vpack.c.b16 %v354, %v353
        %359 = vrot.lane.b32.xlu0 %v355, 64
        %v360 = vpop.permute.xlu0 %359
        %361 = vrot.lane.b32.xlu0 %v356, 64
        %v362 = vpop.permute.xlu0 %361
        %363 = vrot.lane.b32.xlu0 %v357, 64
        %v364 = vpop.permute.xlu0 %363
        %365 = vrot.lane.b32.xlu0 %v358, 64
        %v366 = vpop.permute.xlu0 %365
        %v369 = vsel %vm322, %v310, %v360
        %v373 = vsel %vm322, %v311, %v362
        %v377 = vsel %vm322, %v312, %v364
        %v381 = vsel %vm322, %v313, %v366
        %vm383 = vsmask.f32 7424
        %v384 = vshrl.u32 %v325, 16
        %v386 = vshll.u32 %v325, 16
        %v388 = vrot.slane %v386, 1
        %v389 = vor.u32 %v384, %v388
        %v390 = vshll.u32 %v329, 16
        %v392 = vrot.slane %v390, 1
        %v393 = vsel %vm383, %v389, %v392
        %v394 = vshrl.u32 %v329, 16
        %v396 = vor.u32 %v394, %v392
        %v397 = vshll.u32 %v333, 16
        %v399 = vrot.slane %v397, 1
        %v400 = vsel %vm383, %v396, %v399
        %v401 = vshrl.u32 %v333, 16
        %v403 = vor.u32 %v401, %v399
        %v404 = vshll.u32 %v337, 16
        %v406 = vrot.slane %v404, 1
        %v407 = vsel %vm383, %v403, %v406
        %v408 = vshrl.u32 %v337, 16
        %v410 = vor.u32 %v408, %v406
        %v415 = vshrl.u32 %v369, 16
        %v417 = vshll.u32 %v369, 16
        %v419 = vrot.slane %v417, 1
        %v420 = vor.u32 %v415, %v419
        %v421 = vshll.u32 %v373, 16
        %v423 = vrot.slane %v421, 1
        %v424 = vsel %vm383, %v420, %v423
        %v425 = vshrl.u32 %v373, 16
        %v427 = vor.u32 %v425, %v423
        %v428 = vshll.u32 %v377, 16
        %v430 = vrot.slane %v428, 1
        %v431 = vsel %vm383, %v427, %v430
        %v432 = vshrl.u32 %v377, 16
        %v434 = vor.u32 %v432, %v430
        %v435 = vshll.u32 %v381, 16
        %v437 = vrot.slane %v435, 1
        %v438 = vsel %vm383, %v434, %v437
        %v439 = vshrl.u32 %v381, 16
        %v441 = vor.u32 %v439, %v437
        %v478 = vunpack.c.l.b16 %v200
        %v479 = vunpack.c.l.b16 %v201
        %v480 = vunpack.c.l.b16 %v202
        %v481 = vunpack.c.l.b16 %v203
        %v482 = vunpack.c.l.b16 %v204
        %v483 = vunpack.c.l.b16 %v205
        %v484 = vunpack.c.l.b16 %v206
        %v485 = vunpack.c.l.b16 %v207
        %v486 = vunpack.c.l.b16 %v208
        %v487 = vunpack.c.l.b16 %v209
        %v488 = vunpack.c.l.b16 %v210
        %v489 = vunpack.c.l.b16 %v211
        %v490 = vunpack.c.l.b16 %v212
        %v491 = vunpack.c.l.b16 %v213
        %v492 = vunpack.c.l.b16 %v214
        %v493 = vunpack.c.l.b16 %v215
        %v494 = vunpack.c.l.b16 %v216
        %v495 = vunpack.c.l.b16 %v217
        %v496 = vunpack.c.l.b16 %v218
        %v497 = vunpack.c.l.b16 %v219
        %v498 = vunpack.c.l.b16 %v220
        %v499 = vunpack.c.l.b16 %v221
        %v500 = vunpack.c.l.b16 %v222
        %v501 = vunpack.c.l.b16 %v223
        %v502 = vunpack.c.l.b16 %v224
        %v503 = vunpack.c.l.b16 %v225
        %v504 = vunpack.c.l.b16 %v226
        %v505 = vunpack.c.l.b16 %v227
        %v506 = vunpack.c.l.b16 %v228
        %v507 = vunpack.c.l.b16 %v229
        %v508 = vunpack.c.l.b16 %v230
        %v509 = vunpack.c.l.b16 %v231
        %v510 = vpack.c.b16 %v479, %v478
        %v511 = vpack.c.b16 %v481, %v480
        %v512 = vpack.c.b16 %v483, %v482
        %v513 = vpack.c.b16 %v485, %v484
        %v514 = vpack.c.b16 %v487, %v486
        %v515 = vpack.c.b16 %v489, %v488
        %v516 = vpack.c.b16 %v491, %v490
        %v517 = vpack.c.b16 %v493, %v492
        %v518 = vpack.c.b16 %v495, %v494
        %v519 = vpack.c.b16 %v497, %v496
        %v520 = vpack.c.b16 %v499, %v498
        %v521 = vpack.c.b16 %v501, %v500
        %v522 = vpack.c.b16 %v503, %v502
        %v523 = vpack.c.b16 %v505, %v504
        %v524 = vpack.c.b16 %v507, %v506
        %v525 = vpack.c.b16 %v509, %v508
        %542 = vmatpush.bf16.msra.mxu0 %v517
        %543 = vmatpush.bf16.msra.mxu0 %v516
        %544 = vmatpush.bf16.msra.mxu0 %v515
        %545 = vmatpush.bf16.msra.mxu0 %v514
        %546 = vmatpush.bf16.msra.mxu0 %v513
        %547 = vmatpush.bf16.msra.mxu0 %v512
        %548 = vmatpush.bf16.msra.mxu0 %v511
        %549 = vmatpush.bf16.msra.mxu0 %v510
        %550 = vmatmul.bf16.gmra.mxu0 %v325
        %v551 = vpop.f32.mrf.mxu0
        %v552 = vadd.f32 0.0, %v551
        %v553 = vpop.f32.mrf.mxu0
        %v554 = vadd.f32 0.0, %v553
        %555 = vmatmul.bf16.gmra.mxu0 %v329
        %v556 = vpop.f32.mrf.mxu0
        %v557 = vadd.f32 0.0, %v556
        %v558 = vpop.f32.mrf.mxu0
        %v559 = vadd.f32 0.0, %v558
        %560 = vmatmul.bf16.gmra.mxu0 %v333
        %v561 = vpop.f32.mrf.mxu0
        %v562 = vadd.f32 0.0, %v561
        %v563 = vpop.f32.mrf.mxu0
        %v564 = vadd.f32 0.0, %v563
        %565 = vmatmul.bf16.gmra.mxu0 %v337
        %v566 = vpop.f32.mrf.mxu0
        %v567 = vadd.f32 0.0, %v566
        %v568 = vpop.f32.mrf.mxu0
        %v569 = vadd.f32 0.0, %v568
        %570 = vdwg.mxu0
        %571 = vmatpush.bf16.msra.mxu0 %v525
        %572 = vmatpush.bf16.msra.mxu0 %v524
        %573 = vmatpush.bf16.msra.mxu0 %v523
        %574 = vmatpush.bf16.msra.mxu0 %v522
        %575 = vmatpush.bf16.msra.mxu0 %v521
        %576 = vmatpush.bf16.msra.mxu0 %v520
        %577 = vmatpush.bf16.msra.mxu0 %v519
        %578 = vmatpush.bf16.msra.mxu0 %v518
        %579 = vmatmul.bf16.gmra.mxu0 %v393
        %v580 = vpop.f32.mrf.mxu0
        %v581 = vadd.f32 %v552, %v580
        %v582 = vpop.f32.mrf.mxu0
        %v583 = vadd.f32 %v554, %v582
        %584 = vmatmul.bf16.gmra.mxu0 %v400
        %v585 = vpop.f32.mrf.mxu0
        %v586 = vadd.f32 %v557, %v585
        %v587 = vpop.f32.mrf.mxu0
        %v588 = vadd.f32 %v559, %v587
        %589 = vmatmul.bf16.gmra.mxu0 %v407
        %v590 = vpop.f32.mrf.mxu0
        %v591 = vadd.f32 %v562, %v590
        %v592 = vpop.f32.mrf.mxu0
        %v593 = vadd.f32 %v564, %v592
        %594 = vmatmul.bf16.gmra.mxu0 %v410
        %v595 = vpop.f32.mrf.mxu0
        %v596 = vadd.f32 %v567, %v595
        %v597 = vpop.f32.mrf.mxu0
        %v598 = vadd.f32 %v569, %v597
        %599 = vdwg.mxu0
        %v601 = vperm.slane %v198, 0
        %v603 = vmul.f32 %v581, %v601
        %v604 = vmul.f32 %v583, %v601
        %v605 = vmul.f32 %v586, %v601
        %v606 = vmul.f32 %v588, %v601
        %v607 = vmul.f32 %v591, %v601
        %v608 = vmul.f32 %v593, %v601
        %v609 = vmul.f32 %v596, %v601
        %v610 = vmul.f32 %v598, %v601
        %v612 = vperm.slane %v199, 0
        %v614 = vadd.f32 %v603, %v612
        %v615 = vadd.f32 %v604, %v612
        %v616 = vadd.f32 %v605, %v612
        %v617 = vadd.f32 %v606, %v612
        %v618 = vadd.f32 %v607, %v612
        %v619 = vadd.f32 %v608, %v612
        %v620 = vadd.f32 %v609, %v612
        %v621 = vadd.f32 %v610, %v612
        %622 = vmatpush.bf16.msra.mxu0 %v517
        %623 = vmatpush.bf16.msra.mxu0 %v516
        %624 = vmatpush.bf16.msra.mxu0 %v515
        %625 = vmatpush.bf16.msra.mxu0 %v514
        %626 = vmatpush.bf16.msra.mxu0 %v513
        %627 = vmatpush.bf16.msra.mxu0 %v512
        %628 = vmatpush.bf16.msra.mxu0 %v511
        %629 = vmatpush.bf16.msra.mxu0 %v510
        %630 = vmatmul.bf16.gmra.mxu0 %v369
        %v631 = vpop.f32.mrf.mxu0
        %v632 = vadd.f32 0.0, %v631
        %v633 = vpop.f32.mrf.mxu0
        %v634 = vadd.f32 0.0, %v633
        %635 = vmatmul.bf16.gmra.mxu0 %v373
        %v636 = vpop.f32.mrf.mxu0
        %v637 = vadd.f32 0.0, %v636
        %v638 = vpop.f32.mrf.mxu0
        %v639 = vadd.f32 0.0, %v638
        %640 = vmatmul.bf16.gmra.mxu0 %v377
        %v641 = vpop.f32.mrf.mxu0
        %v642 = vadd.f32 0.0, %v641
        %v643 = vpop.f32.mrf.mxu0
        %v644 = vadd.f32 0.0, %v643
        %645 = vmatmul.bf16.gmra.mxu0 %v381
        %v646 = vpop.f32.mrf.mxu0
        %v647 = vadd.f32 0.0, %v646
        %v648 = vpop.f32.mrf.mxu0
        %v649 = vadd.f32 0.0, %v648
        %650 = vdwg.mxu0
        %651 = vmatpush.bf16.msra.mxu0 %v525
        %652 = vmatpush.bf16.msra.mxu0 %v524
        %653 = vmatpush.bf16.msra.mxu0 %v523
        %654 = vmatpush.bf16.msra.mxu0 %v522
        %655 = vmatpush.bf16.msra.mxu0 %v521
        %656 = vmatpush.bf16.msra.mxu0 %v520
        %657 = vmatpush.bf16.msra.mxu0 %v519
        %658 = vmatpush.bf16.msra.mxu0 %v518
        %659 = vmatmul.bf16.gmra.mxu0 %v424
        %v660 = vpop.f32.mrf.mxu0
        %v661 = vadd.f32 %v632, %v660
        %v662 = vpop.f32.mrf.mxu0
        %v663 = vadd.f32 %v634, %v662
        %664 = vmatmul.bf16.gmra.mxu0 %v431
        %v665 = vpop.f32.mrf.mxu0
        %v666 = vadd.f32 %v637, %v665
        %v667 = vpop.f32.mrf.mxu0
        %v668 = vadd.f32 %v639, %v667
        %669 = vmatmul.bf16.gmra.mxu0 %v438
        %v670 = vpop.f32.mrf.mxu0
        %v671 = vadd.f32 %v642, %v670
        %v672 = vpop.f32.mrf.mxu0
        %v673 = vadd.f32 %v644, %v672
        %674 = vmatmul.bf16.gmra.mxu0 %v441
        %v675 = vpop.f32.mrf.mxu0
        %v676 = vadd.f32 %v647, %v675
        %v677 = vpop.f32.mrf.mxu0
        %v678 = vadd.f32 %v649, %v677
        %679 = vdwg.mxu0
        %v680 = vmul.f32 %v661, %v601
        %v681 = vmul.f32 %v663, %v601
        %v682 = vmul.f32 %v666, %v601
        %v683 = vmul.f32 %v668, %v601
        %v684 = vmul.f32 %v671, %v601
        %v685 = vmul.f32 %v673, %v601
        %v686 = vmul.f32 %v676, %v601
        %v687 = vmul.f32 %v678, %v601
        %v688 = vadd.f32 %v680, %v612
        %v689 = vadd.f32 %v681, %v612
        %v690 = vadd.f32 %v682, %v612
        %v691 = vadd.f32 %v683, %v612
        %v692 = vadd.f32 %v684, %v612
        %v693 = vadd.f32 %v685, %v612
        %v694 = vadd.f32 %v686, %v612
        %v695 = vadd.f32 %v687, %v612
        %v696 = vmax.f32 %v614, %v688
        %v697 = vmax.f32 %v615, %v689
        %v698 = vmax.f32 %v616, %v690
        %v699 = vmax.f32 %v617, %v691
        %v700 = vmax.f32 %v618, %v692
        %v701 = vmax.f32 %v619, %v693
        %v702 = vmax.f32 %v620, %v694
        %v703 = vmax.f32 %v621, %v695
        %704 = vst.msk [vmem:[#allocation2] sm:$0xff] %vm322, %v696
        %705 = vst.msk [vmem:[#allocation2 + $0x8] sm:$0xff] %vm322, %v697
        %706 = vst.msk [vmem:[#allocation2 + $0x10] sm:$0xff] %vm322, %v698
        %707 = vst.msk [vmem:[#allocation2 + $0x18] sm:$0xff] %vm322, %v699
        %708 = vst.msk [vmem:[#allocation2 + $0x20] sm:$0xff] %vm322, %v700
        %709 = vst.msk [vmem:[#allocation2 + $0x28] sm:$0xff] %vm322, %v701
        %710 = vst.msk [vmem:[#allocation2 + $0x30] sm:$0xff] %vm322, %v702
        %vm711 = vcmask 521216
        %712 = vst.msk [vmem:[#allocation2 + $0x38] sm:$0x3f] %vm711, %v703
        %v713 = vld [vmem:[#allocation2] ss:$2 sm:$0xff]
        %s714 = scalar_lea.vmem [#allocation2], 16
        %v715 = vld [vmem:[%s714] ss:$2 sm:$0xff]
        %s716 = scalar_lea.vmem [#allocation2], 32
        %v717 = vld [vmem:[%s716] ss:$2 sm:$0xff]
        %s718 = scalar_lea.vmem [#allocation2], 48
        %v719 = vld [vmem:[%s718] ss:$2 sm:$0x7f]
        %s720 = scalar_lea.vmem [#allocation2], 1
        %v721 = vld [vmem:[%s720] ss:$2 sm:$0xff]
        %s722 = scalar_lea.vmem [#allocation2], 17
        %v723 = vld [vmem:[%s722] ss:$2 sm:$0xff]
        %s724 = scalar_lea.vmem [#allocation2], 33
        %v725 = vld [vmem:[%s724] ss:$2 sm:$0xff]
        %s726 = scalar_lea.vmem [#allocation2], 49
        %v727 = vld [vmem:[%s726] ss:$2 sm:$0x7f]
        %v728 = vmax.f32 %v713, %v721
        %v729 = vmax.f32 %v715, %v723
        %v730 = vmax.f32 %v717, %v725
        %v731 = vmax.f32 %v719, %v727
        %v732 = vmax.f32 %v728, 0.0
        %v733 = vmax.f32 %v729, 0.0
        %v734 = vmax.f32 %v730, 0.0
        %v735 = vmax.f32 %v731, 0.0
        %v736 = vpack.c.bf16 %v732, %v732
        %v737 = vpack.c.bf16 %v733, %v733
        %v738 = vpack.c.bf16 %v734, %v734
        %v739 = vpack.c.bf16 %v735, %v735
        %s740 = smul.u32 %s233, 4
        %s741 = smul.addr %s740, 4
        %s742 = scalar_lea.vmem %s197, %s741
        %vm743 = vcmask 519168
        %744 = vst.msk [vmem:[%s742] sm:$0xf] %vm743, %v736
        %745 = vst.msk [vmem:[%s742 + $0x4] sm:$0xf] %vm743, %v737
        %746 = vst.msk [vmem:[%s742 + $0x8] sm:$0xf] %vm743, %v738
        %vm747 = vcmask 519168
        %vm748 = vsmask.f32 3328
        %vm749 = vmand %vm747, %vm748
        %v750 = vld [vmem:[%s742 + $0xc] sm:$0xf]
        %v751 = vsel %vm749, %v739, %v750
        %752 = vst [vmem:[%s742 + $0xc] sm:$0xf] %v751
      $region41: #{cnn_forward.7} parent=35 // loop_footer
        %s237 = sadd.s32 1, %s233
      $region42: #{cnn_forward.7} parent=35 // loop_footer_branch
        %232 = sbr.rel target = $region38
      $region43: #{cnn_forward.7} parent=35 // loop_exit
        _
      %p753 = scmp.lt.s32.totalorder %s15, 1
      %s754 = scalar_select %p753, %s15, 1
      %s755 = smul.addr %s754, 124
      %s756 = smul.addr %s755, 4
      %s757 = scalar_lea.vmem %s4, %s756
      // Predicated region
      $region44: #{cnn_forward.7} parent=35 // pred_check
        %p758 = pneg %p122
      $region45: #{cnn_forward.7} parent=35 // pred_check_branch
        %760 = sbr.rel (%p758) target = $region47
      $region46: #{cnn_forward.7} parent=35 // pred_region
        _
      $region47: #{cnn_forward.7} parent=35 // pred_fallthru
        _
    $region36: #{cnn_forward.7} parent=5 // pred_fallthru
      _
    %p761 = scmp.le.s32.totalorder 2, %s10
    // Predicated region
    $region48: #{cnn_forward.7} parent=5 // pred_check
      %p762 = pneg %p761
    $region49: #{cnn_forward.7} parent=5 // pred_check_branch
      %764 = sbr.rel (%p762) target = $region51
    $region50: #{cnn_forward.7} parent=5 // pred_region
      %s765 = ssub.s32 %s10, 2
      // Predicated region
      $region52: #{cnn_forward.7} parent=50 // pred_check
        %p766 = pneg %p128
      $region53: #{cnn_forward.7} parent=50 // pred_check_branch
        %768 = sbr.rel (%p766) target = $region55
      $region54: #{cnn_forward.7} parent=50 // pred_region
        %p769 = scmp.lt.s32.totalorder %s16, 1
        %s770 = scalar_select %p769, %s16, 1
        %s771 = smul.addr %s770, 124
        %s772 = smul.addr %s771, 4
        %s773 = scalar_lea.vmem %s4, %s772
      $region55: #{cnn_forward.7} parent=50 // pred_fallthru
        _
    $region51: #{cnn_forward.7} parent=5 // pred_fallthru
      _
  $region6: #{cnn_forward.7} parent=0 // loop_footer
    %s14 = sadd.s32 1, %s10
  $region7: #{cnn_forward.7} parent=0 // loop_footer_branch
    %9 = sbr.rel target = $region3
  $region8: #{cnn_forward.7} parent=0 // loop_exit
    _

// kernel: cnn_forward.6
$region0: #{cnn_forward.6}
  #allocation0 [shape = 'u32[]', space=smem, size = 0x4, offset = 0x4, fixed_abs, tag = 'smem constant byte address 0x4 - core index']
  #allocation1 [shape = 'u32[72,128]{1,0:T(1,128)}', space=vmem, size = 0x9000, scoped, tag = 'internal scratch']
  #allocation2 [shape = 'f32[126,64]{1,0:T(8,128)}', space=vmem, size = 0x10000, scoped, tag = 'scratch operand']
  %s0 = inlined_call_operand.vmem [shape: bf16[2,128,128,1], index: 0, kind: input, shape index: {}]
  %s1 = inlined_call_operand.vmem [shape: bf16[4,64], index: 1, kind: input, shape index: {}]
  %s2 = inlined_call_operand.vmem [shape: f32[1,64], index: 2, kind: input, shape index: {}]
  %s3 = inlined_call_operand.vmem [shape: f32[1,64], index: 3, kind: input, shape index: {}]
  %s4 = inlined_call_operand.vmem [shape: bf16[2,63,63,64], index: 4, kind: output, shape index: {}]
  %s5 = sld [smem:[#allocation0]]
  $region56: #{cnn_forward.6} parent=0
    _
  %s7 = ssub.s32 1, %s5
  %s8 = scalar_select 0, %s7, %s5
  loop: start=0, step=1, limit=4
  $region2: #{cnn_forward.6} parent=0 // loop_pre_header
    _
  $region3: #{cnn_forward.6} parent=0 // loop_header
    %s10 = sphi 0, %s14
    %p11 = scmp.ge.s32.totalorder %s10, 4
    %s20 = sphi 0, %s22
    %s23 = sphi 0, %s20
    %s24 = sphi 0, %s23
    %s40 = sphi 0, %s24
    %s44 = sphi 0, %s44
    %s46 = sphi 0, %s44
    %s47 = sphi 0, %s46
    %s61 = sphi 0, %s47
    %s65 = sphi 0, %s65
    %s67 = sphi 0, %s65
    %s68 = sphi 0, %s67
    %s82 = sphi 0, %s68
    %s86 = sphi 0, %s86
    %s88 = sphi 0, %s86
    %s89 = sphi 0, %s88
    %s103 = sphi 0, %s89
    %s109 = sphi 0, %s111
    %s112 = sphi 0, %s109
    %s113 = sphi 0, %s112
    %s129 = sphi 0, %s113
  $region4: #{cnn_forward.6} parent=0 // loop_header_branch
    %13 = sbr.rel (%p11) target = $region8
  $region5: #{cnn_forward.6} parent=0 // loop_body
    %s15 = ssub.s32 %s10, 1
    %s16 = ssub.s32 %s10, 2
    %s17 = sadd.s32 %s10, 1
    %s18 = ssub.s32 %s10, %s17
    %p19 = scmp.eq.s32.totalorder %s18, 0
    %s21 = sadd.s32 %s20, 1
    %s22 = scalar_select %p19, %s20, %s21
    %p25 = pneg %p19
    %p26 = scmp.eq.s32.totalorder %s10, 1
    %p27 = por %p25, %p26
    %p28 = scmp.ne.s32.totalorder %s20, %s23
    %p29 = scmp.eq.s32.totalorder %s10, 0
    %p30 = por %p28, %p29
    %p31 = scmp.ne.s32.totalorder %s20, %s23
    %p32 = scmp.eq.s32.totalorder %s15, 1
    %p33 = por %p31, %p32
    %p34 = scmp.ne.s32.totalorder %s23, %s24
    %p35 = scmp.eq.s32.totalorder %s15, 0
    %p36 = por %p34, %p35
    %p37 = scmp.ne.s32.totalorder %s23, %s24
    %p38 = scmp.eq.s32.totalorder %s16, 1
    %p39 = por %p37, %p38
    %p41 = scmp.ne.s32.totalorder %s24, %s40
    %p42 = scmp.eq.s32.totalorder %s16, 0
    %p43 = por %p41, %p42
    %s45 = sadd.s32 %s44, 1
    %p48 = scmp.eq.s32.totalorder %s10, 1
    %p49 = scmp.ne.s32.totalorder %s44, %s46
    %p50 = scmp.eq.s32.totalorder %s10, 0
    %p51 = por %p49, %p50
    %p52 = scmp.ne.s32.totalorder %s44, %s46
    %p53 = scmp.eq.s32.totalorder %s15, 1
    %p54 = por %p52, %p53
    %p55 = scmp.ne.s32.totalorder %s46, %s47
    %p56 = scmp.eq.s32.totalorder %s15, 0
    %p57 = por %p55, %p56
    %p58 = scmp.ne.s32.totalorder %s46, %s47
    %p59 = scmp.eq.s32.totalorder %s16, 1
    %p60 = por %p58, %p59
    %p62 = scmp.ne.s32.totalorder %s47, %s61
    %p63 = scmp.eq.s32.totalorder %s16, 0
    %p64 = por %p62, %p63
    %s66 = sadd.s32 %s65, 1
    %p69 = scmp.eq.s32.totalorder %s10, 1
    %p70 = scmp.ne.s32.totalorder %s65, %s67
    %p71 = scmp.eq.s32.totalorder %s10, 0
    %p72 = por %p70, %p71
    %p73 = scmp.ne.s32.totalorder %s65, %s67
    %p74 = scmp.eq.s32.totalorder %s15, 1
    %p75 = por %p73, %p74
    %p76 = scmp.ne.s32.totalorder %s67, %s68
    %p77 = scmp.eq.s32.totalorder %s15, 0
    %p78 = por %p76, %p77
    %p79 = scmp.ne.s32.totalorder %s67, %s68
    %p80 = scmp.eq.s32.totalorder %s16, 1
    %p81 = por %p79, %p80
    %p83 = scmp.ne.s32.totalorder %s68, %s82
    %p84 = scmp.eq.s32.totalorder %s16, 0
    %p85 = por %p83, %p84
    %s87 = sadd.s32 %s86, 1
    %p90 = scmp.eq.s32.totalorder %s10, 1
    %p91 = scmp.ne.s32.totalorder %s86, %s88
    %p92 = scmp.eq.s32.totalorder %s10, 0
    %p93 = por %p91, %p92
    %p94 = scmp.ne.s32.totalorder %s86, %s88
    %p95 = scmp.eq.s32.totalorder %s15, 1
    %p96 = por %p94, %p95
    %p97 = scmp.ne.s32.totalorder %s88, %s89
    %p98 = scmp.eq.s32.totalorder %s15, 0
    %p99 = por %p97, %p98
    %p100 = scmp.ne.s32.totalorder %s88, %s89
    %p101 = scmp.eq.s32.totalorder %s16, 1
    %p102 = por %p100, %p101
    %p104 = scmp.ne.s32.totalorder %s89, %s103
    %p105 = scmp.eq.s32.totalorder %s16, 0
    %p106 = por %p104, %p105
    %s107 = ssub.s32 %s10, %s17
    %p108 = scmp.eq.s32.totalorder %s107, 0
    %s110 = sadd.s32 %s109, 1
    %s111 = scalar_select %p108, %s109, %s110
    %p114 = pneg %p108
    %p115 = scmp.eq.s32.totalorder %s10, 1
    %p116 = por %p114, %p115
    %p117 = scmp.ne.s32.totalorder %s109, %s112
    %p118 = scmp.eq.s32.totalorder %s10, 0
    %p119 = por %p117, %p118
    %p120 = scmp.ne.s32.totalorder %s109, %s112
    %p121 = scmp.eq.s32.totalorder %s15, 1
    %p122 = por %p120, %p121
    %p123 = scmp.ne.s32.totalorder %s112, %s113
    %p124 = scmp.eq.s32.totalorder %s15, 0
    %p125 = por %p123, %p124
    %p126 = scmp.ne.s32.totalorder %s112, %s113
    %p127 = scmp.eq.s32.totalorder %s16, 1
    %p128 = por %p126, %p127
    %p130 = scmp.ne.s32.totalorder %s113, %s129
    %p131 = scmp.eq.s32.totalorder %s16, 0
    %p132 = por %p130, %p131
    %p133 = scmp.le.s32.totalorder 1, %s10
    %p134 = scmp.lt.s32.totalorder %s10, 3
    %p135 = pnand %p133, %p134
    %p136 = pneg %p135
    // Predicated region
    $region9: #{cnn_forward.6} parent=5 // pred_check
      _
    $region10: #{cnn_forward.6} parent=5 // pred_check_branch
      %138 = sbr.rel (%p135) target = $region12
    $region11: #{cnn_forward.6} parent=5 // pred_region
      %s139 = ssub.s32 %s10, 1
      // Predicated region
      $region13: #{cnn_forward.6} parent=11 // pred_check
        %p140 = pneg %p57
      $region14: #{cnn_forward.6} parent=11 // pred_check_branch
        %142 = sbr.rel (%p140) target = $region16
      $region15: #{cnn_forward.6} parent=11 // pred_region
        _
      $region16: #{cnn_forward.6} parent=11 // pred_fallthru
        _
      // Predicated region
      $region17: #{cnn_forward.6} parent=11 // pred_check
        %p143 = pneg %p78
      $region18: #{cnn_forward.6} parent=11 // pred_check_branch
        %145 = sbr.rel (%p143) target = $region20
      $region19: #{cnn_forward.6} parent=11 // pred_region
        _
      $region20: #{cnn_forward.6} parent=11 // pred_fallthru
        _
      // Predicated region
      $region21: #{cnn_forward.6} parent=11 // pred_check
        %p146 = pneg %p99
      $region22: #{cnn_forward.6} parent=11 // pred_check_branch
        %148 = sbr.rel (%p146) target = $region24
      $region23: #{cnn_forward.6} parent=11 // pred_region
        _
      $region24: #{cnn_forward.6} parent=11 // pred_fallthru
        _
    $region12: #{cnn_forward.6} parent=5 // pred_fallthru
      _
    %p149 = scmp.lt.s32.totalorder %s10, 2
    // Predicated region
    $region25: #{cnn_forward.6} parent=5 // pred_check
      %p150 = pneg %p149
    $region26: #{cnn_forward.6} parent=5 // pred_check_branch
      %152 = sbr.rel (%p150) target = $region28
    $region27: #{cnn_forward.6} parent=5 // pred_region
      // Predicated region
      $region29: #{cnn_forward.6} parent=27 // pred_check
        %p153 = pneg %p30
      $region30: #{cnn_forward.6} parent=27 // pred_check_branch
        %155 = sbr.rel (%p153) target = $region32
      $region31: #{cnn_forward.6} parent=27 // pred_region
        %p156 = scmp.lt.s32.totalorder %s10, 1
        %s157 = scalar_select %p156, %s10, 1
        %s158 = smul.addr %s157, 2048
        %s159 = smul.addr %s158, 4
        %s160 = scalar_lea.vmem %s0, %s159
      $region32: #{cnn_forward.6} parent=27 // pred_fallthru
        _
    $region28: #{cnn_forward.6} parent=5 // pred_fallthru
      _
    %p161 = scmp.le.s32.totalorder 1, %s10
    %p162 = scmp.lt.s32.totalorder %s10, 3
    %p163 = pnand %p161, %p162
    %p164 = pneg %p163
    // Predicated region
    $region33: #{cnn_forward.6} parent=5 // pred_check
      _
    $region34: #{cnn_forward.6} parent=5 // pred_check_branch
      %166 = sbr.rel (%p163) target = $region36
    $region35: #{cnn_forward.6} parent=5 // pred_region
      %s167 = ssub.s32 %s10, 1
      %p168 = scmp.lt.s32.totalorder %s15, 1
      %s169 = scalar_select %p168, %s15, 1
      %s170 = smul.addr %s169, 2048
      %s171 = smul.addr %s170, 4
      %s172 = scalar_lea.vmem %s0, %s171
      %p173 = pneg %p36
      %p174 = pneg %p33
      %p175 = pneg %p57
      %p176 = pneg %p54
      %p177 = pneg %p78
      %p178 = pneg %p75
      %p179 = pneg %p99
      %p180 = pneg %p96
      %p181 = pneg %p125
      %p182 = pneg %p122
      %p183 = scmp.lt.s32.totalorder %s15, 1
      %s184 = scalar_select %p183, %s15, 1
      %s185 = smul.addr %s184, 504
      %s186 = smul.addr %s185, 4
      %s187 = scalar_lea.vmem %s4, %s186
      %p188 = scmp.lt.s32.totalorder %s15, 1
      %s189 = scalar_select %p188, %s15, 1
      %s190 = smul.addr %s189, 2048
      %s191 = smul.addr %s190, 4
      %s192 = scalar_lea.vmem %s0, %s191
      %p193 = scmp.lt.s32.totalorder %s15, 1
      %s194 = scalar_select %p193, %s15, 1
      %s195 = smul.addr %s194, 504
      %s196 = smul.addr %s195, 4
      %s197 = scalar_lea.vmem %s4, %s196
      %v198 = vld [vmem:[%s2] sm:$0x1]
      %v199 = vld [vmem:[%s3] sm:$0x1]
      %v200 = vld [vmem:[%s1] sm:$0x3]
      %v201 = vunpack.c.l.bf16 %v200
      loop: start=0, step=1, limit=63
      $region37: #{cnn_forward.6} parent=35 // loop_pre_header
        _
      $region38: #{cnn_forward.6} parent=35 // loop_header
        %s203 = sphi 0, %s207
        %p204 = scmp.ge.s32.totalorder %s203, 63
      $region39: #{cnn_forward.6} parent=35 // loop_header_branch
        %206 = sbr.rel (%p204) target = $region43
      $region40: #{cnn_forward.6} parent=35 // loop_body
        %s208 = smul.u32 %s203, 2
        %s209 = smul.u32 %s208, 16
        %s210 = smul.addr %s209, 4
        %s211 = scalar_lea.vmem %s192, %s210
        %v212 = vld [vmem:[%s211] sm:$0xf]
        %v213 = vld [vmem:[%s211 + $0x4] sm:$0xf]
        %v214 = vld [vmem:[%s211 + $0x8] sm:$0xf]
        %v215 = vld [vmem:[%s211 + $0xc] sm:$0xf]
        %v216 = vld [vmem:[%s211 + $0x10] sm:$0xf]
        %v217 = vld [vmem:[%s211 + $0x14] sm:$0xf]
        %v218 = vld [vmem:[%s211 + $0x18] sm:$0xf]
        %v219 = vld [vmem:[%s211 + $0x1c] sm:$0xf]
        %v220 = vld [vmem:[%s211 + $0x20] sm:$0xf]
        %v221 = vld [vmem:[%s211 + $0x24] sm:$0xf]
        %v222 = vld [vmem:[%s211 + $0x28] sm:$0xf]
        %v223 = vld [vmem:[%s211 + $0x2c] sm:$0xf]
        %v224 = vld [vmem:[%s211 + $0x30] sm:$0xf]
        %v225 = vld [vmem:[%s211 + $0x34] sm:$0xf]
        %v226 = vld [vmem:[%s211 + $0x38] sm:$0xf]
        %v227 = vld [vmem:[%s211 + $0x3c] sm:$0xf]
        %s228 = sadd.s32 %s208, 1
        %s229 = smul.u32 %s228, 16
        %s230 = smul.addr %s229, 4
        %s231 = scalar_lea.vmem %s192, %s230
        %v232 = vld [vmem:[%s231] sm:$0xf]
        %v233 = vld [vmem:[%s231 + $0x4] sm:$0xf]
        %v234 = vld [vmem:[%s231 + $0x8] sm:$0xf]
        %v235 = vld [vmem:[%s231 + $0xc] sm:$0xf]
        %v236 = vld [vmem:[%s231 + $0x10] sm:$0xf]
        %v237 = vld [vmem:[%s231 + $0x14] sm:$0xf]
        %v238 = vld [vmem:[%s231 + $0x18] sm:$0xf]
        %v239 = vld [vmem:[%s231 + $0x1c] sm:$0xf]
        %v240 = vld [vmem:[%s231 + $0x20] sm:$0xf]
        %v241 = vld [vmem:[%s231 + $0x24] sm:$0xf]
        %v242 = vld [vmem:[%s231 + $0x28] sm:$0xf]
        %v243 = vld [vmem:[%s231 + $0x2c] sm:$0xf]
        %v244 = vld [vmem:[%s231 + $0x30] sm:$0xf]
        %v245 = vld [vmem:[%s231 + $0x34] sm:$0xf]
        %v246 = vld [vmem:[%s231 + $0x38] sm:$0xf]
        %v247 = vld [vmem:[%s231 + $0x3c] sm:$0xf]
        %s248 = sadd.s32 %s208, 2
        %s249 = smul.u32 %s248, 16
        %s250 = smul.addr %s249, 4
        %s251 = scalar_lea.vmem %s192, %s250
        %v252 = vld [vmem:[%s251] sm:$0xf]
        %v253 = vld [vmem:[%s251 + $0x4] sm:$0xf]
        %v254 = vld [vmem:[%s251 + $0x8] sm:$0xf]
        %v255 = vld [vmem:[%s251 + $0xc] sm:$0xf]
        %v256 = vld [vmem:[%s251 + $0x10] sm:$0xf]
        %v257 = vld [vmem:[%s251 + $0x14] sm:$0xf]
        %v258 = vld [vmem:[%s251 + $0x18] sm:$0xf]
        %v259 = vld [vmem:[%s251 + $0x1c] sm:$0xf]
        %v260 = vld [vmem:[%s251 + $0x20] sm:$0xf]
        %v261 = vld [vmem:[%s251 + $0x24] sm:$0xf]
        %v262 = vld [vmem:[%s251 + $0x28] sm:$0xf]
        %v263 = vld [vmem:[%s251 + $0x2c] sm:$0xf]
        %v264 = vld [vmem:[%s251 + $0x30] sm:$0xf]
        %v265 = vld [vmem:[%s251 + $0x34] sm:$0xf]
        %v266 = vld [vmem:[%s251 + $0x38] sm:$0xf]
        %v267 = vld [vmem:[%s251 + $0x3c] sm:$0xf]
        %v268 = vunpack.c.l.bf16 %v212
        %v269 = vunpack.c.l.bf16 %v213
        %v270 = vunpack.c.l.bf16 %v214
        %v271 = vunpack.c.l.bf16 %v215
        %v272 = vunpack.c.l.bf16 %v216
        %v273 = vunpack.c.l.bf16 %v217
        %v274 = vunpack.c.l.bf16 %v218
        %v275 = vunpack.c.l.bf16 %v219
        %v276 = vunpack.c.l.bf16 %v220
        %v277 = vunpack.c.l.bf16 %v221
        %v278 = vunpack.c.l.bf16 %v222
        %v279 = vunpack.c.l.bf16 %v223
        %v280 = vunpack.c.l.bf16 %v224
        %v281 = vunpack.c.l.bf16 %v225
        %v282 = vunpack.c.l.bf16 %v226
        %v283 = vunpack.c.l.bf16 %v227
        %v284 = vunpack.c.l.bf16 %v232
        %v285 = vunpack.c.l.bf16 %v233
        %v286 = vunpack.c.l.bf16 %v234
        %v287 = vunpack.c.l.bf16 %v235
        %v288 = vunpack.c.l.bf16 %v236
        %v289 = vunpack.c.l.bf16 %v237
        %v290 = vunpack.c.l.bf16 %v238
        %v291 = vunpack.c.l.bf16 %v239
        %v292 = vunpack.c.l.bf16 %v240
        %v293 = vunpack.c.l.bf16 %v241
        %v294 = vunpack.c.l.bf16 %v242
        %v295 = vunpack.c.l.bf16 %v243
        %v296 = vunpack.c.l.bf16 %v244
        %v297 = vunpack.c.l.bf16 %v245
        %v298 = vunpack.c.l.bf16 %v246
        %v299 = vunpack.c.l.bf16 %v247
        %v300 = vunpack.c.l.bf16 %v252
        %v301 = vunpack.c.l.bf16 %v253
        %v302 = vunpack.c.l.bf16 %v254
        %v303 = vunpack.c.l.bf16 %v255
        %v304 = vunpack.c.l.bf16 %v256
        %v305 = vunpack.c.l.bf16 %v257
        %v306 = vunpack.c.l.bf16 %v258
        %v307 = vunpack.c.l.bf16 %v259
        %v308 = vunpack.c.l.bf16 %v260
        %v309 = vunpack.c.l.bf16 %v261
        %v310 = vunpack.c.l.bf16 %v262
        %v311 = vunpack.c.l.bf16 %v263
        %v312 = vunpack.c.l.bf16 %v264
        %v313 = vunpack.c.l.bf16 %v265
        %v314 = vunpack.c.l.bf16 %v266
        %v315 = vunpack.c.l.bf16 %v267
        %317 = vset.pattern.permute.xlu0 0
        %318 = vperm.xlu0 %317, %v268
        %v319 = vpop.permute.xlu0 %318
        %322 = vset.pattern.permute.xlu0 0
        %323 = vperm.xlu0 %322, %v269
        %v324 = vpop.permute.xlu0 %323
        %327 = vset.pattern.permute.xlu0 0
        %328 = vperm.xlu0 %327, %v270
        %v329 = vpop.permute.xlu0 %328
        %332 = vset.pattern.permute.xlu0 0
        %333 = vperm.xlu0 %332, %v271
        %v334 = vpop.permute.xlu0 %333
        %337 = vset.pattern.permute.xlu0 0
        %338 = vperm.xlu0 %337, %v272
        %v339 = vpop.permute.xlu0 %338
        %342 = vset.pattern.permute.xlu0 0
        %343 = vperm.xlu0 %342, %v273
        %v344 = vpop.permute.xlu0 %343
        %347 = vset.pattern.permute.xlu0 0
        %348 = vperm.xlu0 %347, %v274
        %v349 = vpop.permute.xlu0 %348
        %352 = vset.pattern.permute.xlu0 0
        %353 = vperm.xlu0 %352, %v275
        %v354 = vpop.permute.xlu0 %353
        %357 = vset.pattern.permute.xlu0 0
        %358 = vperm.xlu0 %357, %v276
        %v359 = vpop.permute.xlu0 %358
        %362 = vset.pattern.permute.xlu0 0
        %363 = vperm.xlu0 %362, %v277
        %v364 = vpop.permute.xlu0 %363
        %367 = vset.pattern.permute.xlu0 0
        %368 = vperm.xlu0 %367, %v278
        %v369 = vpop.permute.xlu0 %368
        %372 = vset.pattern.permute.xlu0 0
        %373 = vperm.xlu0 %372, %v279
        %v374 = vpop.permute.xlu0 %373
        %377 = vset.pattern.permute.xlu0 0
        %378 = vperm.xlu0 %377, %v280
        %v379 = vpop.permute.xlu0 %378
        %382 = vset.pattern.permute.xlu0 0
        %383 = vperm.xlu0 %382, %v281
        %v384 = vpop.permute.xlu0 %383
        %387 = vset.pattern.permute.xlu0 0
        %388 = vperm.xlu0 %387, %v282
        %v389 = vpop.permute.xlu0 %388
        %392 = vset.pattern.permute.xlu0 0
        %393 = vperm.xlu0 %392, %v283
        %v394 = vpop.permute.xlu0 %393
        %v396 = vperm.slane %v201, 0
        %v397 = vmul.f32 %v319, %v396
        %v398 = vmul.f32 %v324, %v396
        %v399 = vmul.f32 %v329, %v396
        %v400 = vmul.f32 %v334, %v396
        %v401 = vmul.f32 %v339, %v396
        %v402 = vmul.f32 %v344, %v396
        %v403 = vmul.f32 %v349, %v396
        %v404 = vmul.f32 %v354, %v396
        %v405 = vmul.f32 %v359, %v396
        %v406 = vmul.f32 %v364, %v396
        %v407 = vmul.f32 %v369, %v396
        %v408 = vmul.f32 %v374, %v396
        %v409 = vmul.f32 %v379, %v396
        %v410 = vmul.f32 %v384, %v396
        %v411 = vmul.f32 %v389, %v396
        %v412 = vmul.f32 %v394, %v396
        %v413 = vperm.slane %v201, 2
        %v414 = vmul.f32 %v319, %v413
        %v415 = vmul.f32 %v324, %v413
        %v416 = vmul.f32 %v329, %v413
        %v417 = vmul.f32 %v334, %v413
        %v418 = vmul.f32 %v339, %v413
        %v419 = vmul.f32 %v344, %v413
        %v420 = vmul.f32 %v349, %v413
        %v421 = vmul.f32 %v354, %v413
        %v422 = vmul.f32 %v359, %v413
        %v423 = vmul.f32 %v364, %v413
        %v424 = vmul.f32 %v369, %v413
        %v425 = vmul.f32 %v374, %v413
        %v426 = vmul.f32 %v379, %v413
        %v427 = vmul.f32 %v384, %v413
        %v428 = vmul.f32 %v389, %v413
        %v429 = vmul.f32 %v394, %v413
        %vm446 = vcmask 1046528
        %v447 = vrot.slane %v414, 1
        %v448 = vrot.slane %v415, 1
        %v449 = vsel %vm446, %v447, %v448
        %v450 = vrot.slane %v416, 1
        %v451 = vsel %vm446, %v448, %v450
        %v452 = vrot.slane %v417, 1
        %v453 = vsel %vm446, %v450, %v452
        %v454 = vrot.slane %v418, 1
        %v455 = vsel %vm446, %v452, %v454
        %v456 = vrot.slane %v419, 1
        %v457 = vsel %vm446, %v454, %v456
        %v458 = vrot.slane %v420, 1
        %v459 = vsel %vm446, %v456, %v458
        %v460 = vrot.slane %v421, 1
        %v461 = vsel %vm446, %v458, %v460
        %v462 = vrot.slane %v422, 1
        %v463 = vsel %vm446, %v460, %v462
        %v464 = vrot.slane %v423, 1
        %v465 = vsel %vm446, %v462, %v464
        %v466 = vrot.slane %v424, 1
        %v467 = vsel %vm446, %v464, %v466
        %v468 = vrot.slane %v425, 1
        %v469 = vsel %vm446, %v466, %v468
        %v470 = vrot.slane %v426, 1
        %v471 = vsel %vm446, %v468, %v470
        %v472 = vrot.slane %v427, 1
        %v473 = vsel %vm446, %v470, %v472
        %v474 = vrot.slane %v428, 1
        %v475 = vsel %vm446, %v472, %v474
        %v476 = vrot.slane %v429, 1
        %v477 = vsel %vm446, %v474, %v476
        %v494 = vadd.f32 %v397, %v449
        %v495 = vadd.f32 %v398, %v451
        %v496 = vadd.f32 %v399, %v453
        %v497 = vadd.f32 %v400, %v455
        %v498 = vadd.f32 %v401, %v457
        %v499 = vadd.f32 %v402, %v459
        %v500 = vadd.f32 %v403, %v461
        %v501 = vadd.f32 %v404, %v463
        %v502 = vadd.f32 %v405, %v465
        %v503 = vadd.f32 %v406, %v467
        %v504 = vadd.f32 %v407, %v469
        %v505 = vadd.f32 %v408, %v471
        %v506 = vadd.f32 %v409, %v473
        %v507 = vadd.f32 %v410, %v475
        %v508 = vadd.f32 %v411, %v477
        %v509 = vadd.f32 %v412, %v476
        %511 = vset.pattern.permute.xlu0 0
        %512 = vperm.xlu0 %511, %v284
        %v513 = vpop.permute.xlu0 %512
        %516 = vset.pattern.permute.xlu0 0
        %517 = vperm.xlu0 %516, %v285
        %v518 = vpop.permute.xlu0 %517
        %521 = vset.pattern.permute.xlu0 0
        %522 = vperm.xlu0 %521, %v286
        %v523 = vpop.permute.xlu0 %522
        %526 = vset.pattern.permute.xlu0 0
        %527 = vperm.xlu0 %526, %v287
        %v528 = vpop.permute.xlu0 %527
        %531 = vset.pattern.permute.xlu0 0
        %532 = vperm.xlu0 %531, %v288
        %v533 = vpop.permute.xlu0 %532
        %536 = vset.pattern.permute.xlu0 0
        %537 = vperm.xlu0 %536, %v289
        %v538 = vpop.permute.xlu0 %537
        %541 = vset.pattern.permute.xlu0 0
        %542 = vperm.xlu0 %541, %v290
        %v543 = vpop.permute.xlu0 %542
        %546 = vset.pattern.permute.xlu0 0
        %547 = vperm.xlu0 %546, %v291
        %v548 = vpop.permute.xlu0 %547
        %551 = vset.pattern.permute.xlu0 0
        %552 = vperm.xlu0 %551, %v292
        %v553 = vpop.permute.xlu0 %552
        %556 = vset.pattern.permute.xlu0 0
        %557 = vperm.xlu0 %556, %v293
        %v558 = vpop.permute.xlu0 %557
        %561 = vset.pattern.permute.xlu0 0
        %562 = vperm.xlu0 %561, %v294
        %v563 = vpop.permute.xlu0 %562
        %566 = vset.pattern.permute.xlu0 0
        %567 = vperm.xlu0 %566, %v295
        %v568 = vpop.permute.xlu0 %567
        %571 = vset.pattern.permute.xlu0 0
        %572 = vperm.xlu0 %571, %v296
        %v573 = vpop.permute.xlu0 %572
        %576 = vset.pattern.permute.xlu0 0
        %577 = vperm.xlu0 %576, %v297
        %v578 = vpop.permute.xlu0 %577
        %581 = vset.pattern.permute.xlu0 0
        %582 = vperm.xlu0 %581, %v298
        %v583 = vpop.permute.xlu0 %582
        %586 = vset.pattern.permute.xlu0 0
        %587 = vperm.xlu0 %586, %v299
        %v588 = vpop.permute.xlu0 %587
        %v590 = vperm.slane %v201, 1
        %v591 = vmul.f32 %v513, %v590
        %v592 = vmul.f32 %v518, %v590
        %v593 = vmul.f32 %v523, %v590
        %v594 = vmul.f32 %v528, %v590
        %v595 = vmul.f32 %v533, %v590
        %v596 = vmul.f32 %v538, %v590
        %v597 = vmul.f32 %v543, %v590
        %v598 = vmul.f32 %v548, %v590
        %v599 = vmul.f32 %v553, %v590
        %v600 = vmul.f32 %v558, %v590
        %v601 = vmul.f32 %v563, %v590
        %v602 = vmul.f32 %v568, %v590
        %v603 = vmul.f32 %v573, %v590
        %v604 = vmul.f32 %v578, %v590
        %v605 = vmul.f32 %v583, %v590
        %v606 = vmul.f32 %v588, %v590
        %v607 = vadd.f32 %v494, %v591
        %v608 = vadd.f32 %v495, %v592
        %v609 = vadd.f32 %v496, %v593
        %v610 = vadd.f32 %v497, %v594
        %v611 = vadd.f32 %v498, %v595
        %v612 = vadd.f32 %v499, %v596
        %v613 = vadd.f32 %v500, %v597
        %v614 = vadd.f32 %v501, %v598
        %v615 = vadd.f32 %v502, %v599
        %v616 = vadd.f32 %v503, %v600
        %v617 = vadd.f32 %v504, %v601
        %v618 = vadd.f32 %v505, %v602
        %v619 = vadd.f32 %v506, %v603
        %v620 = vadd.f32 %v507, %v604
        %v621 = vadd.f32 %v508, %v605
        %v622 = vadd.f32 %v509, %v606
        %v623 = vperm.slane %v201, 3
        %v624 = vmul.f32 %v513, %v623
        %v625 = vmul.f32 %v518, %v623
        %v626 = vmul.f32 %v523, %v623
        %v627 = vmul.f32 %v528, %v623
        %v628 = vmul.f32 %v533, %v623
        %v629 = vmul.f32 %v538, %v623
        %v630 = vmul.f32 %v543, %v623
        %v631 = vmul.f32 %v548, %v623
        %v632 = vmul.f32 %v553, %v623
        %v633 = vmul.f32 %v558, %v623
        %v634 = vmul.f32 %v563, %v623
        %v635 = vmul.f32 %v568, %v623
        %v636 = vmul.f32 %v573, %v623
        %v637 = vmul.f32 %v578, %v623
        %v638 = vmul.f32 %v583, %v623
        %v639 = vmul.f32 %v588, %v623
        %v656 = vrot.slane %v624, 1
        %v657 = vrot.slane %v625, 1
        %v658 = vsel %vm446, %v656, %v657
        %v659 = vrot.slane %v626, 1
        %v660 = vsel %vm446, %v657, %v659
        %v661 = vrot.slane %v627, 1
        %v662 = vsel %vm446, %v659, %v661
        %v663 = vrot.slane %v628, 1
        %v664 = vsel %vm446, %v661, %v663
        %v665 = vrot.slane %v629, 1
        %v666 = vsel %vm446, %v663, %v665
        %v667 = vrot.slane %v630, 1
        %v668 = vsel %vm446, %v665, %v667
        %v669 = vrot.slane %v631, 1
        %v670 = vsel %vm446, %v667, %v669
        %v671 = vrot.slane %v632, 1
        %v672 = vsel %vm446, %v669, %v671
        %v673 = vrot.slane %v633, 1
        %v674 = vsel %vm446, %v671, %v673
        %v675 = vrot.slane %v634, 1
        %v676 = vsel %vm446, %v673, %v675
        %v677 = vrot.slane %v635, 1
        %v678 = vsel %vm446, %v675, %v677
        %v679 = vrot.slane %v636, 1
        %v680 = vsel %vm446, %v677, %v679
        %v681 = vrot.slane %v637, 1
        %v682 = vsel %vm446, %v679, %v681
        %v683 = vrot.slane %v638, 1
        %v684 = vsel %vm446, %v681, %v683
        %v685 = vrot.slane %v639, 1
        %v686 = vsel %vm446, %v683, %v685
        %v703 = vadd.f32 %v607, %v658
        %v704 = vadd.f32 %v608, %v660
        %v705 = vadd.f32 %v609, %v662
        %v706 = vadd.f32 %v610, %v664
        %v707 = vadd.f32 %v611, %v666
        %v708 = vadd.f32 %v612, %v668
        %v709 = vadd.f32 %v613, %v670
        %v710 = vadd.f32 %v614, %v672
        %v711 = vadd.f32 %v615, %v674
        %v712 = vadd.f32 %v616, %v676
        %v713 = vadd.f32 %v617, %v678
        %v714 = vadd.f32 %v618, %v680
        %v715 = vadd.f32 %v619, %v682
        %v716 = vadd.f32 %v620, %v684
        %v717 = vadd.f32 %v621, %v686
        %v718 = vadd.f32 %v622, %v685
        %v720 = vperm.slane %v198, 0
        %v722 = vmul.f32 %v703, %v720
        %v723 = vmul.f32 %v704, %v720
        %v724 = vmul.f32 %v705, %v720
        %v725 = vmul.f32 %v706, %v720
        %v726 = vmul.f32 %v707, %v720
        %v727 = vmul.f32 %v708, %v720
        %v728 = vmul.f32 %v709, %v720
        %v729 = vmul.f32 %v710, %v720
        %v730 = vmul.f32 %v711, %v720
        %v731 = vmul.f32 %v712, %v720
        %v732 = vmul.f32 %v713, %v720
        %v733 = vmul.f32 %v714, %v720
        %v734 = vmul.f32 %v715, %v720
        %v735 = vmul.f32 %v716, %v720
        %v736 = vmul.f32 %v717, %v720
        %v737 = vmul.f32 %v718, %v720
        %v739 = vperm.slane %v199, 0
        %v741 = vadd.f32 %v722, %v739
        %v742 = vadd.f32 %v723, %v739
        %v743 = vadd.f32 %v724, %v739
        %v744 = vadd.f32 %v725, %v739
        %v745 = vadd.f32 %v726, %v739
        %v746 = vadd.f32 %v727, %v739
        %v747 = vadd.f32 %v728, %v739
        %v748 = vadd.f32 %v729, %v739
        %v749 = vadd.f32 %v730, %v739
        %v750 = vadd.f32 %v731, %v739
        %v751 = vadd.f32 %v732, %v739
        %v752 = vadd.f32 %v733, %v739
        %v753 = vadd.f32 %v734, %v739
        %v754 = vadd.f32 %v735, %v739
        %v755 = vadd.f32 %v736, %v739
        %v756 = vadd.f32 %v737, %v739
        %v757 = vmul.f32 %v513, %v396
        %v758 = vmul.f32 %v518, %v396
        %v759 = vmul.f32 %v523, %v396
        %v760 = vmul.f32 %v528, %v396
        %v761 = vmul.f32 %v533, %v396
        %v762 = vmul.f32 %v538, %v396
        %v763 = vmul.f32 %v543, %v396
        %v764 = vmul.f32 %v548, %v396
        %v765 = vmul.f32 %v553, %v396
        %v766 = vmul.f32 %v558, %v396
        %v767 = vmul.f32 %v563, %v396
        %v768 = vmul.f32 %v568, %v396
        %v769 = vmul.f32 %v573, %v396
        %v770 = vmul.f32 %v578, %v396
        %v771 = vmul.f32 %v583, %v396
        %v772 = vmul.f32 %v588, %v396
        %v773 = vmul.f32 %v513, %v413
        %v774 = vmul.f32 %v518, %v413
        %v775 = vmul.f32 %v523, %v413
        %v776 = vmul.f32 %v528, %v413
        %v777 = vmul.f32 %v533, %v413
        %v778 = vmul.f32 %v538, %v413
        %v779 = vmul.f32 %v543, %v413
        %v780 = vmul.f32 %v548, %v413
        %v781 = vmul.f32 %v553, %v413
        %v782 = vmul.f32 %v558, %v413
        %v783 = vmul.f32 %v563, %v413
        %v784 = vmul.f32 %v568, %v413
        %v785 = vmul.f32 %v573, %v413
        %v786 = vmul.f32 %v578, %v413
        %v787 = vmul.f32 %v583, %v413
        %v788 = vmul.f32 %v588, %v413
        %v805 = vrot.slane %v773, 1
        %v806 = vrot.slane %v774, 1
        %v807 = vsel %vm446, %v805, %v806
        %v808 = vrot.slane %v775, 1
        %v809 = vsel %vm446, %v806, %v808
        %v810 = vrot.slane %v776, 1
        %v811 = vsel %vm446, %v808, %v810
        %v812 = vrot.slane %v777, 1
        %v813 = vsel %vm446, %v810, %v812
        %v814 = vrot.slane %v778, 1
        %v815 = vsel %vm446, %v812, %v814
        %v816 = vrot.slane %v779, 1
        %v817 = vsel %vm446, %v814, %v816
        %v818 = vrot.slane %v780, 1
        %v819 = vsel %vm446, %v816, %v818
        %v820 = vrot.slane %v781, 1
        %v821 = vsel %vm446, %v818, %v820
        %v822 = vrot.slane %v782, 1
        %v823 = vsel %vm446, %v820, %v822
        %v824 = vrot.slane %v783, 1
        %v825 = vsel %vm446, %v822, %v824
        %v826 = vrot.slane %v784, 1
        %v827 = vsel %vm446, %v824, %v826
        %v828 = vrot.slane %v785, 1
        %v829 = vsel %vm446, %v826, %v828
        %v830 = vrot.slane %v786, 1
        %v831 = vsel %vm446, %v828, %v830
        %v832 = vrot.slane %v787, 1
        %v833 = vsel %vm446, %v830, %v832
        %v834 = vrot.slane %v788, 1
        %v835 = vsel %vm446, %v832, %v834
        %v852 = vadd.f32 %v757, %v807
        %v853 = vadd.f32 %v758, %v809
        %v854 = vadd.f32 %v759, %v811
        %v855 = vadd.f32 %v760, %v813
        %v856 = vadd.f32 %v761, %v815
        %v857 = vadd.f32 %v762, %v817
        %v858 = vadd.f32 %v763, %v819
        %v859 = vadd.f32 %v764, %v821
        %v860 = vadd.f32 %v765, %v823
        %v861 = vadd.f32 %v766, %v825
        %v862 = vadd.f32 %v767, %v827
        %v863 = vadd.f32 %v768, %v829
        %v864 = vadd.f32 %v769, %v831
        %v865 = vadd.f32 %v770, %v833
        %v866 = vadd.f32 %v771, %v835
        %v867 = vadd.f32 %v772, %v834
        %869 = vset.pattern.permute.xlu0 0
        %870 = vperm.xlu0 %869, %v300
        %v871 = vpop.permute.xlu0 %870
        %874 = vset.pattern.permute.xlu0 0
        %875 = vperm.xlu0 %874, %v301
        %v876 = vpop.permute.xlu0 %875
        %879 = vset.pattern.permute.xlu0 0
        %880 = vperm.xlu0 %879, %v302
        %v881 = vpop.permute.xlu0 %880
        %884 = vset.pattern.permute.xlu0 0
        %885 = vperm.xlu0 %884, %v303
        %v886 = vpop.permute.xlu0 %885
        %889 = vset.pattern.permute.xlu0 0
        %890 = vperm.xlu0 %889, %v304
        %v891 = vpop.permute.xlu0 %890
        %894 = vset.pattern.permute.xlu0 0
        %895 = vperm.xlu0 %894, %v305
        %v896 = vpop.permute.xlu0 %895
        %899 = vset.pattern.permute.xlu0 0
        %900 = vperm.xlu0 %899, %v306
        %v901 = vpop.permute.xlu0 %900
        %904 = vset.pattern.permute.xlu0 0
        %905 = vperm.xlu0 %904, %v307
        %v906 = vpop.permute.xlu0 %905
        %909 = vset.pattern.permute.xlu0 0
        %910 = vperm.xlu0 %909, %v308
        %v911 = vpop.permute.xlu0 %910
        %914 = vset.pattern.permute.xlu0 0
        %915 = vperm.xlu0 %914, %v309
        %v916 = vpop.permute.xlu0 %915
        %919 = vset.pattern.permute.xlu0 0
        %920 = vperm.xlu0 %919, %v310
        %v921 = vpop.permute.xlu0 %920
        %924 = vset.pattern.permute.xlu0 0
        %925 = vperm.xlu0 %924, %v311
        %v926 = vpop.permute.xlu0 %925
        %929 = vset.pattern.permute.xlu0 0
        %930 = vperm.xlu0 %929, %v312
        %v931 = vpop.permute.xlu0 %930
        %934 = vset.pattern.permute.xlu0 0
        %935 = vperm.xlu0 %934, %v313
        %v936 = vpop.permute.xlu0 %935
        %939 = vset.pattern.permute.xlu0 0
        %940 = vperm.xlu0 %939, %v314
        %v941 = vpop.permute.xlu0 %940
        %944 = vset.pattern.permute.xlu0 0
        %945 = vperm.xlu0 %944, %v315
        %v946 = vpop.permute.xlu0 %945
        %v948 = vmul.f32 %v871, %v590
        %v949 = vmul.f32 %v876, %v590
        %v950 = vmul.f32 %v881, %v590
        %v951 = vmul.f32 %v886, %v590
        %v952 = vmul.f32 %v891, %v590
        %v953 = vmul.f32 %v896, %v590
        %v954 = vmul.f32 %v901, %v590
        %v955 = vmul.f32 %v906, %v590
        %v956 = vmul.f32 %v911, %v590
        %v957 = vmul.f32 %v916, %v590
        %v958 = vmul.f32 %v921, %v590
        %v959 = vmul.f32 %v926, %v590
        %v960 = vmul.f32 %v931, %v590
        %v961 = vmul.f32 %v936, %v590
        %v962 = vmul.f32 %v941, %v590
        %v963 = vmul.f32 %v946, %v590
        %v964 = vadd.f32 %v852, %v948
        %v965 = vadd.f32 %v853, %v949
        %v966 = vadd.f32 %v854, %v950
        %v967 = vadd.f32 %v855, %v951
        %v968 = vadd.f32 %v856, %v952
        %v969 = vadd.f32 %v857, %v953
        %v970 = vadd.f32 %v858, %v954
        %v971 = vadd.f32 %v859, %v955
        %v972 = vadd.f32 %v860, %v956
        %v973 = vadd.f32 %v861, %v957
        %v974 = vadd.f32 %v862, %v958
        %v975 = vadd.f32 %v863, %v959
        %v976 = vadd.f32 %v864, %v960
        %v977 = vadd.f32 %v865, %v961
        %v978 = vadd.f32 %v866, %v962
        %v979 = vadd.f32 %v867, %v963
        %v980 = vmul.f32 %v871, %v623
        %v981 = vmul.f32 %v876, %v623
        %v982 = vmul.f32 %v881, %v623
        %v983 = vmul.f32 %v886, %v623
        %v984 = vmul.f32 %v891, %v623
        %v985 = vmul.f32 %v896, %v623
        %v986 = vmul.f32 %v901, %v623
        %v987 = vmul.f32 %v906, %v623
        %v988 = vmul.f32 %v911, %v623
        %v989 = vmul.f32 %v916, %v623
        %v990 = vmul.f32 %v921, %v623
        %v991 = vmul.f32 %v926, %v623
        %v992 = vmul.f32 %v931, %v623
        %v993 = vmul.f32 %v936, %v623
        %v994 = vmul.f32 %v941, %v623
        %v995 = vmul.f32 %v946, %v623
        %v1012 = vrot.slane %v980, 1
        %v1013 = vrot.slane %v981, 1
        %v1014 = vsel %vm446, %v1012, %v1013
        %v1015 = vrot.slane %v982, 1
        %v1016 = vsel %vm446, %v1013, %v1015
        %v1017 = vrot.slane %v983, 1
        %v1018 = vsel %vm446, %v1015, %v1017
        %v1019 = vrot.slane %v984, 1
        %v1020 = vsel %vm446, %v1017, %v1019
        %v1021 = vrot.slane %v985, 1
        %v1022 = vsel %vm446, %v1019, %v1021
        %v1023 = vrot.slane %v986, 1
        %v1024 = vsel %vm446, %v1021, %v1023
        %v1025 = vrot.slane %v987, 1
        %v1026 = vsel %vm446, %v1023, %v1025
        %v1027 = vrot.slane %v988, 1
        %v1028 = vsel %vm446, %v1025, %v1027
        %v1029 = vrot.slane %v989, 1
        %v1030 = vsel %vm446, %v1027, %v1029
        %v1031 = vrot.slane %v990, 1
        %v1032 = vsel %vm446, %v1029, %v1031
        %v1033 = vrot.slane %v991, 1
        %v1034 = vsel %vm446, %v1031, %v1033
        %v1035 = vrot.slane %v992, 1
        %v1036 = vsel %vm446, %v1033, %v1035
        %v1037 = vrot.slane %v993, 1
        %v1038 = vsel %vm446, %v1035, %v1037
        %v1039 = vrot.slane %v994, 1
        %v1040 = vsel %vm446, %v1037, %v1039
        %v1041 = vrot.slane %v995, 1
        %v1042 = vsel %vm446, %v1039, %v1041
        %v1059 = vadd.f32 %v964, %v1014
        %v1060 = vadd.f32 %v965, %v1016
        %v1061 = vadd.f32 %v966, %v1018
        %v1062 = vadd.f32 %v967, %v1020
        %v1063 = vadd.f32 %v968, %v1022
        %v1064 = vadd.f32 %v969, %v1024
        %v1065 = vadd.f32 %v970, %v1026
        %v1066 = vadd.f32 %v971, %v1028
        %v1067 = vadd.f32 %v972, %v1030
        %v1068 = vadd.f32 %v973, %v1032
        %v1069 = vadd.f32 %v974, %v1034
        %v1070 = vadd.f32 %v975, %v1036
        %v1071 = vadd.f32 %v976, %v1038
        %v1072 = vadd.f32 %v977, %v1040
        %v1073 = vadd.f32 %v978, %v1042
        %v1074 = vadd.f32 %v979, %v1041
        %v1075 = vmul.f32 %v1059, %v720
        %v1076 = vmul.f32 %v1060, %v720
        %v1077 = vmul.f32 %v1061, %v720
        %v1078 = vmul.f32 %v1062, %v720
        %v1079 = vmul.f32 %v1063, %v720
        %v1080 = vmul.f32 %v1064, %v720
        %v1081 = vmul.f32 %v1065, %v720
        %v1082 = vmul.f32 %v1066, %v720
        %v1083 = vmul.f32 %v1067, %v720
        %v1084 = vmul.f32 %v1068, %v720
        %v1085 = vmul.f32 %v1069, %v720
        %v1086 = vmul.f32 %v1070, %v720
        %v1087 = vmul.f32 %v1071, %v720
        %v1088 = vmul.f32 %v1072, %v720
        %v1089 = vmul.f32 %v1073, %v720
        %v1090 = vmul.f32 %v1074, %v720
        %v1091 = vadd.f32 %v1075, %v739
        %v1092 = vadd.f32 %v1076, %v739
        %v1093 = vadd.f32 %v1077, %v739
        %v1094 = vadd.f32 %v1078, %v739
        %v1095 = vadd.f32 %v1079, %v739
        %v1096 = vadd.f32 %v1080, %v739
        %v1097 = vadd.f32 %v1081, %v739
        %v1098 = vadd.f32 %v1082, %v739
        %v1099 = vadd.f32 %v1083, %v739
        %v1100 = vadd.f32 %v1084, %v739
        %v1101 = vadd.f32 %v1085, %v739
        %v1102 = vadd.f32 %v1086, %v739
        %v1103 = vadd.f32 %v1087, %v739
        %v1104 = vadd.f32 %v1088, %v739
        %v1105 = vadd.f32 %v1089, %v739
        %v1106 = vadd.f32 %v1090, %v739
        %v1107 = vmax.f32 %v741, %v1091
        %v1108 = vmax.f32 %v742, %v1092
        %v1109 = vmax.f32 %v743, %v1093
        %v1110 = vmax.f32 %v744, %v1094
        %v1111 = vmax.f32 %v745, %v1095
        %v1112 = vmax.f32 %v746, %v1096
        %v1113 = vmax.f32 %v747, %v1097
        %v1114 = vmax.f32 %v748, %v1098
        %v1115 = vmax.f32 %v749, %v1099
        %v1116 = vmax.f32 %v750, %v1100
        %v1117 = vmax.f32 %v751, %v1101
        %v1118 = vmax.f32 %v752, %v1102
        %v1119 = vmax.f32 %v753, %v1103
        %v1120 = vmax.f32 %v754, %v1104
        %v1121 = vmax.f32 %v755, %v1105
        %v1122 = vmax.f32 %v756, %v1106
        %vm1123 = vcmask 523264
        %1124 = vst.msk [vmem:[#allocation2] sm:$0xff] %vm1123, %v1107
        %1125 = vst.msk [vmem:[#allocation2 + $0x8] sm:$0xff] %vm1123, %v1108
        %1126 = vst.msk [vmem:[#allocation2 + $0x10] sm:$0xff] %vm1123, %v1109
        %1127 = vst.msk [vmem:[#allocation2 + $0x18] sm:$0xff] %vm1123, %v1110
        %1128 = vst.msk [vmem:[#allocation2 + $0x20] sm:$0xff] %vm1123, %v1111
        %1129 = vst.msk [vmem:[#allocation2 + $0x28] sm:$0xff] %vm1123, %v1112
        %1130 = vst.msk [vmem:[#allocation2 + $0x30] sm:$0xff] %vm1123, %v1113
        %1131 = vst.msk [vmem:[#allocation2 + $0x38] sm:$0xff] %vm1123, %v1114
        %1132 = vst.msk [vmem:[#allocation2 + $0x40] sm:$0xff] %vm1123, %v1115
        %1133 = vst.msk [vmem:[#allocation2 + $0x48] sm:$0xff] %vm1123, %v1116
        %1134 = vst.msk [vmem:[#allocation2 + $0x50] sm:$0xff] %vm1123, %v1117
        %1135 = vst.msk [vmem:[#allocation2 + $0x58] sm:$0xff] %vm1123, %v1118
        %1136 = vst.msk [vmem:[#allocation2 + $0x60] sm:$0xff] %vm1123, %v1119
        %1137 = vst.msk [vmem:[#allocation2 + $0x68] sm:$0xff] %vm1123, %v1120
        %1138 = vst.msk [vmem:[#allocation2 + $0x70] sm:$0xff] %vm1123, %v1121
        %vm1139 = vcmask 521216
        %1140 = vst.msk [vmem:[#allocation2 + $0x78] sm:$0x3f] %vm1139, %v1122
        %v1141 = vld [vmem:[#allocation2] ss:$2 sm:$0xff]
        %s1142 = scalar_lea.vmem [#allocation2], 16
        %v1143 = vld [vmem:[%s1142] ss:$2 sm:$0xff]
        %s1144 = scalar_lea.vmem [#allocation2], 32
        %v1145 = vld [vmem:[%s1144] ss:$2 sm:$0xff]
        %s1146 = scalar_lea.vmem [#allocation2], 48
        %v1147 = vld [vmem:[%s1146] ss:$2 sm:$0xff]
        %s1148 = scalar_lea.vmem [#allocation2], 64
        %v1149 = vld [vmem:[%s1148] ss:$2 sm:$0xff]
        %s1150 = scalar_lea.vmem [#allocation2], 80
        %v1151 = vld [vmem:[%s1150] ss:$2 sm:$0xff]
        %s1152 = scalar_lea.vmem [#allocation2], 96
        %v1153 = vld [vmem:[%s1152] ss:$2 sm:$0xff]
        %s1154 = scalar_lea.vmem [#allocation2], 112
        %v1155 = vld [vmem:[%s1154] ss:$2 sm:$0x7f]
        %s1156 = scalar_lea.vmem [#allocation2], 1
        %v1157 = vld [vmem:[%s1156] ss:$2 sm:$0xff]
        %s1158 = scalar_lea.vmem [#allocation2], 17
        %v1159 = vld [vmem:[%s1158] ss:$2 sm:$0xff]
        %s1160 = scalar_lea.vmem [#allocation2], 33
        %v1161 = vld [vmem:[%s1160] ss:$2 sm:$0xff]
        %s1162 = scalar_lea.vmem [#allocation2], 49
        %v1163 = vld [vmem:[%s1162] ss:$2 sm:$0xff]
        %s1164 = scalar_lea.vmem [#allocation2], 65
        %v1165 = vld [vmem:[%s1164] ss:$2 sm:$0xff]
        %s1166 = scalar_lea.vmem [#allocation2], 81
        %v1167 = vld [vmem:[%s1166] ss:$2 sm:$0xff]
        %s1168 = scalar_lea.vmem [#allocation2], 97
        %v1169 = vld [vmem:[%s1168] ss:$2 sm:$0xff]
        %s1170 = scalar_lea.vmem [#allocation2], 113
        %v1171 = vld [vmem:[%s1170] ss:$2 sm:$0x7f]
        %v1172 = vmax.f32 %v1141, %v1157
        %v1173 = vmax.f32 %v1143, %v1159
        %v1174 = vmax.f32 %v1145, %v1161
        %v1175 = vmax.f32 %v1147, %v1163
        %v1176 = vmax.f32 %v1149, %v1165
        %v1177 = vmax.f32 %v1151, %v1167
        %v1178 = vmax.f32 %v1153, %v1169
        %v1179 = vmax.f32 %v1155, %v1171
        %v1180 = vmax.f32 %v1172, 0.0
        %v1181 = vmax.f32 %v1173, 0.0
        %v1182 = vmax.f32 %v1174, 0.0
        %v1183 = vmax.f32 %v1175, 0.0
        %v1184 = vmax.f32 %v1176, 0.0
        %v1185 = vmax.f32 %v1177, 0.0
        %v1186 = vmax.f32 %v1178, 0.0
        %v1187 = vmax.f32 %v1179, 0.0
        %v1188 = vpack.c.bf16 %v1180, %v1180
        %v1189 = vpack.c.bf16 %v1181, %v1181
        %v1190 = vpack.c.bf16 %v1182, %v1182
        %v1191 = vpack.c.bf16 %v1183, %v1183
        %v1192 = vpack.c.bf16 %v1184, %v1184
        %v1193 = vpack.c.bf16 %v1185, %v1185
        %v1194 = vpack.c.bf16 %v1186, %v1186
        %v1195 = vpack.c.bf16 %v1187, %v1187
        %s1196 = smul.u32 %s203, 8
        %s1197 = smul.addr %s1196, 4
        %s1198 = scalar_lea.vmem %s197, %s1197
        %vm1199 = vcmask 519168
        %1200 = vst.msk [vmem:[%s1198] sm:$0xf] %vm1199, %v1188
        %1201 = vst.msk [vmem:[%s1198 + $0x4] sm:$0xf] %vm1199, %v1189
        %1202 = vst.msk [vmem:[%s1198 + $0x8] sm:$0xf] %vm1199, %v1190
        %1203 = vst.msk [vmem:[%s1198 + $0xc] sm:$0xf] %vm1199, %v1191
        %1204 = vst.msk [vmem:[%s1198 + $0x10] sm:$0xf] %vm1199, %v1192
        %1205 = vst.msk [vmem:[%s1198 + $0x14] sm:$0xf] %vm1199, %v1193
        %1206 = vst.msk [vmem:[%s1198 + $0x18] sm:$0xf] %vm1199, %v1194
        %vm1207 = vcmask 519168
        %vm1208 = vsmask.f32 3328
        %vm1209 = vmand %vm1207, %vm1208
        %v1210 = vld [vmem:[%s1198 + $0x1c] sm:$0xf]
        %v1211 = vsel %vm1209, %v1195, %v1210
        %1212 = vst [vmem:[%s1198 + $0x1c] sm:$0xf] %v1211
      $region41: #{cnn_forward.6} parent=35 // loop_footer
        %s207 = sadd.s32 1, %s203
      $region42: #{cnn_forward.6} parent=35 // loop_footer_branch
        %202 = sbr.rel target = $region38
      $region43: #{cnn_forward.6} parent=35 // loop_exit
        _
      %p1213 = scmp.lt.s32.totalorder %s15, 1
      %s1214 = scalar_select %p1213, %s15, 1
      %s1215 = smul.addr %s1214, 504
      %s1216 = smul.addr %s1215, 4
      %s1217 = scalar_lea.vmem %s4, %s1216
      // Predicated region
      $region44: #{cnn_forward.6} parent=35 // pred_check
        %p1218 = pneg %p122
      $region45: #{cnn_forward.6} parent=35 // pred_check_branch
        %1220 = sbr.rel (%p1218) target = $region47
      $region46: #{cnn_forward.6} parent=35 // pred_region
        _
      $region47: #{cnn_forward.6} parent=35 // pred_fallthru
        _
    $region36: #{cnn_forward.6} parent=5 // pred_fallthru
      _
    %p1221 = scmp.le.s32.totalorder 2, %s10
    // Predicated region
    $region48: #{cnn_forward.6} parent=5 // pred_check
      %p1222 = pneg %p1221
    $region49: #{cnn_forward.6} parent=5 // pred_check_branch
      %1224 = sbr.rel (%p1222) target = $region51
    $region50: #{cnn_forward.6} parent=5 // pred_region
      %s1225 = ssub.s32 %s10, 2
      // Predicated region
      $region52: #{cnn_forward.6} parent=50 // pred_check
        %p1226 = pneg %p128
      $region53: #{cnn_forward.6} parent=50 // pred_check_branch
        %1228 = sbr.rel (%p1226) target = $region55
      $region54: #{cnn_forward.6} parent=50 // pred_region
        %p1229 = scmp.lt.s32.totalorder %s16, 1
        %s1230 = scalar_select %p1229, %s16, 1
        %s1231 = smul.addr %s1230, 504
        %s1232 = smul.addr %s1231, 4
        %s1233 = scalar_lea.vmem %s4, %s1232
      $region55: #{cnn_forward.6} parent=50 // pred_fallthru
        _
    $region51: #{cnn_forward.6} parent=5 // pred_fallthru
      _
  $region6: #{cnn_forward.6} parent=0 // loop_footer
    %s14 = sadd.s32 1, %s10
  $region7: #{cnn_forward.6} parent=0 // loop_footer_branch
    %9 = sbr.rel target = $region3
  $region8: #{cnn_forward.6} parent=0 // loop_exit
    _

// kernel: cnn_forward.10
$region0: #{cnn_forward.10}
  #allocation0 [shape = 'u32[]', space=smem, size = 0x4, offset = 0x4, fixed_abs, tag = 'smem constant byte address 0x4 - core index']
  #allocation1 [shape = 'u32[72,128]{1,0:T(1,128)}', space=vmem, size = 0x9000, scoped, tag = 'internal scratch']
  #allocation2 [shape = 'f32[6,128]{1,0:T(8,128)}', space=vmem, size = 0x1000, scoped, tag = 'scratch operand']
  %s0 = inlined_call_operand.vmem [shape: bf16[2,7,7,128], index: 0, kind: input, shape index: {}]
  %s1 = inlined_call_operand.vmem [shape: bf16[512,128], index: 1, kind: input, shape index: {}]
  %s2 = inlined_call_operand.vmem [shape: f32[1,128], index: 2, kind: input, shape index: {}]
  %s3 = inlined_call_operand.vmem [shape: f32[1,128], index: 3, kind: input, shape index: {}]
  %s4 = inlined_call_operand.vmem [shape: bf16[2,3,3,128], index: 4, kind: output, shape index: {}]
  %s5 = sld [smem:[#allocation0]]
  $region49: #{cnn_forward.10} parent=0
    _
  %s7 = ssub.s32 1, %s5
  %s8 = scalar_select 0, %s7, %s5
  loop: start=0, step=1, limit=4
  $region2: #{cnn_forward.10} parent=0 // loop_pre_header
    _
  $region3: #{cnn_forward.10} parent=0 // loop_header
    %s10 = sphi 0, %s14
    %p11 = scmp.ge.s32.totalorder %s10, 4
    %s20 = sphi 0, %s22
    %s23 = sphi 0, %s20
    %s24 = sphi 0, %s23
    %s40 = sphi 0, %s24
    %s44 = sphi 0, %s44
    %s46 = sphi 0, %s44
    %s47 = sphi 0, %s46
    %s61 = sphi 0, %s47
    %s65 = sphi 0, %s65
    %s67 = sphi 0, %s65
    %s68 = sphi 0, %s67
    %s82 = sphi 0, %s68
    %s86 = sphi 0, %s86
    %s88 = sphi 0, %s86
    %s89 = sphi 0, %s88
    %s103 = sphi 0, %s89
    %s109 = sphi 0, %s111
    %s112 = sphi 0, %s109
    %s113 = sphi 0, %s112
    %s129 = sphi 0, %s113
  $region4: #{cnn_forward.10} parent=0 // loop_header_branch
    %13 = sbr.rel (%p11) target = $region8
  $region5: #{cnn_forward.10} parent=0 // loop_body
    %s15 = ssub.s32 %s10, 1
    %s16 = ssub.s32 %s10, 2
    %s17 = sadd.s32 %s10, 1
    %s18 = ssub.s32 %s10, %s17
    %p19 = scmp.eq.s32.totalorder %s18, 0
    %s21 = sadd.s32 %s20, 1
    %s22 = scalar_select %p19, %s20, %s21
    %p25 = pneg %p19
    %p26 = scmp.eq.s32.totalorder %s10, 1
    %p27 = por %p25, %p26
    %p28 = scmp.ne.s32.totalorder %s20, %s23
    %p29 = scmp.eq.s32.totalorder %s10, 0
    %p30 = por %p28, %p29
    %p31 = scmp.ne.s32.totalorder %s20, %s23
    %p32 = scmp.eq.s32.totalorder %s15, 1
    %p33 = por %p31, %p32
    %p34 = scmp.ne.s32.totalorder %s23, %s24
    %p35 = scmp.eq.s32.totalorder %s15, 0
    %p36 = por %p34, %p35
    %p37 = scmp.ne.s32.totalorder %s23, %s24
    %p38 = scmp.eq.s32.totalorder %s16, 1
    %p39 = por %p37, %p38
    %p41 = scmp.ne.s32.totalorder %s24, %s40
    %p42 = scmp.eq.s32.totalorder %s16, 0
    %p43 = por %p41, %p42
    %s45 = sadd.s32 %s44, 1
    %p48 = scmp.eq.s32.totalorder %s10, 1
    %p49 = scmp.ne.s32.totalorder %s44, %s46
    %p50 = scmp.eq.s32.totalorder %s10, 0
    %p51 = por %p49, %p50
    %p52 = scmp.ne.s32.totalorder %s44, %s46
    %p53 = scmp.eq.s32.totalorder %s15, 1
    %p54 = por %p52, %p53
    %p55 = scmp.ne.s32.totalorder %s46, %s47
    %p56 = scmp.eq.s32.totalorder %s15, 0
    %p57 = por %p55, %p56
    %p58 = scmp.ne.s32.totalorder %s46, %s47
    %p59 = scmp.eq.s32.totalorder %s16, 1
    %p60 = por %p58, %p59
    %p62 = scmp.ne.s32.totalorder %s47, %s61
    %p63 = scmp.eq.s32.totalorder %s16, 0
    %p64 = por %p62, %p63
    %s66 = sadd.s32 %s65, 1
    %p69 = scmp.eq.s32.totalorder %s10, 1
    %p70 = scmp.ne.s32.totalorder %s65, %s67
    %p71 = scmp.eq.s32.totalorder %s10, 0
    %p72 = por %p70, %p71
    %p73 = scmp.ne.s32.totalorder %s65, %s67
    %p74 = scmp.eq.s32.totalorder %s15, 1
    %p75 = por %p73, %p74
    %p76 = scmp.ne.s32.totalorder %s67, %s68
    %p77 = scmp.eq.s32.totalorder %s15, 0
    %p78 = por %p76, %p77
    %p79 = scmp.ne.s32.totalorder %s67, %s68
    %p80 = scmp.eq.s32.totalorder %s16, 1
    %p81 = por %p79, %p80
    %p83 = scmp.ne.s32.totalorder %s68, %s82
    %p84 = scmp.eq.s32.totalorder %s16, 0
    %p85 = por %p83, %p84
    %s87 = sadd.s32 %s86, 1
    %p90 = scmp.eq.s32.totalorder %s10, 1
    %p91 = scmp.ne.s32.totalorder %s86, %s88
    %p92 = scmp.eq.s32.totalorder %s10, 0
    %p93 = por %p91, %p92
    %p94 = scmp.ne.s32.totalorder %s86, %s88
    %p95 = scmp.eq.s32.totalorder %s15, 1
    %p96 = por %p94, %p95
    %p97 = scmp.ne.s32.totalorder %s88, %s89
    %p98 = scmp.eq.s32.totalorder %s15, 0
    %p99 = por %p97, %p98
    %p100 = scmp.ne.s32.totalorder %s88, %s89
    %p101 = scmp.eq.s32.totalorder %s16, 1
    %p102 = por %p100, %p101
    %p104 = scmp.ne.s32.totalorder %s89, %s103
    %p105 = scmp.eq.s32.totalorder %s16, 0
    %p106 = por %p104, %p105
    %s107 = ssub.s32 %s10, %s17
    %p108 = scmp.eq.s32.totalorder %s107, 0
    %s110 = sadd.s32 %s109, 1
    %s111 = scalar_select %p108, %s109, %s110
    %p114 = pneg %p108
    %p115 = scmp.eq.s32.totalorder %s10, 1
    %p116 = por %p114, %p115
    %p117 = scmp.ne.s32.totalorder %s109, %s112
    %p118 = scmp.eq.s32.totalorder %s10, 0
    %p119 = por %p117, %p118
    %p120 = scmp.ne.s32.totalorder %s109, %s112
    %p121 = scmp.eq.s32.totalorder %s15, 1
    %p122 = por %p120, %p121
    %p123 = scmp.ne.s32.totalorder %s112, %s113
    %p124 = scmp.eq.s32.totalorder %s15, 0
    %p125 = por %p123, %p124
    %p126 = scmp.ne.s32.totalorder %s112, %s113
    %p127 = scmp.eq.s32.totalorder %s16, 1
    %p128 = por %p126, %p127
    %p130 = scmp.ne.s32.totalorder %s113, %s129
    %p131 = scmp.eq.s32.totalorder %s16, 0
    %p132 = por %p130, %p131
    %p133 = scmp.le.s32.totalorder 1, %s10
    %p134 = scmp.lt.s32.totalorder %s10, 3
    %p135 = pnand %p133, %p134
    %p136 = pneg %p135
    // Predicated region
    $region9: #{cnn_forward.10} parent=5 // pred_check
      _
    $region10: #{cnn_forward.10} parent=5 // pred_check_branch
      %138 = sbr.rel (%p135) target = $region12
    $region11: #{cnn_forward.10} parent=5 // pred_region
      %s139 = ssub.s32 %s10, 1
      // Predicated region
      $region13: #{cnn_forward.10} parent=11 // pred_check
        %p140 = pneg %p57
      $region14: #{cnn_forward.10} parent=11 // pred_check_branch
        %142 = sbr.rel (%p140) target = $region16
      $region15: #{cnn_forward.10} parent=11 // pred_region
        _
      $region16: #{cnn_forward.10} parent=11 // pred_fallthru
        _
      // Predicated region
      $region17: #{cnn_forward.10} parent=11 // pred_check
        %p143 = pneg %p78
      $region18: #{cnn_forward.10} parent=11 // pred_check_branch
        %145 = sbr.rel (%p143) target = $region20
      $region19: #{cnn_forward.10} parent=11 // pred_region
        _
      $region20: #{cnn_forward.10} parent=11 // pred_fallthru
        _
      // Predicated region
      $region21: #{cnn_forward.10} parent=11 // pred_check
        %p146 = pneg %p99
      $region22: #{cnn_forward.10} parent=11 // pred_check_branch
        %148 = sbr.rel (%p146) target = $region24
      $region23: #{cnn_forward.10} parent=11 // pred_region
        _
      $region24: #{cnn_forward.10} parent=11 // pred_fallthru
        _
    $region12: #{cnn_forward.10} parent=5 // pred_fallthru
      _
    %p149 = scmp.lt.s32.totalorder %s10, 2
    // Predicated region
    $region25: #{cnn_forward.10} parent=5 // pred_check
      %p150 = pneg %p149
    $region26: #{cnn_forward.10} parent=5 // pred_check_branch
      %152 = sbr.rel (%p150) target = $region28
    $region27: #{cnn_forward.10} parent=5 // pred_region
      // Predicated region
      $region29: #{cnn_forward.10} parent=27 // pred_check
        %p153 = pneg %p30
      $region30: #{cnn_forward.10} parent=27 // pred_check_branch
        %155 = sbr.rel (%p153) target = $region32
      $region31: #{cnn_forward.10} parent=27 // pred_region
        %p156 = scmp.lt.s32.totalorder %s10, 1
        %s157 = scalar_select %p156, %s10, 1
        %s158 = smul.addr %s157, 7
        %s159 = smul.addr %s158, 4
        %s160 = scalar_lea.vmem %s0, %s159
      $region32: #{cnn_forward.10} parent=27 // pred_fallthru
        _
    $region28: #{cnn_forward.10} parent=5 // pred_fallthru
      _
    %p161 = scmp.le.s32.totalorder 1, %s10
    %p162 = scmp.lt.s32.totalorder %s10, 3
    %p163 = pnand %p161, %p162
    %p164 = pneg %p163
    // Predicated region
    $region33: #{cnn_forward.10} parent=5 // pred_check
      _
    $region34: #{cnn_forward.10} parent=5 // pred_check_branch
      %166 = sbr.rel (%p163) target = $region36
    $region35: #{cnn_forward.10} parent=5 // pred_region
      %s167 = ssub.s32 %s10, 1
      %p168 = scmp.lt.s32.totalorder %s15, 1
      %s169 = scalar_select %p168, %s15, 1
      %s170 = smul.addr %s169, 7
      %s171 = smul.addr %s170, 4
      %s172 = scalar_lea.vmem %s0, %s171
      %p173 = pneg %p36
      %p174 = pneg %p33
      %p175 = pneg %p57
      %p176 = pneg %p54
      %p177 = pneg %p78
      %p178 = pneg %p75
      %p179 = pneg %p99
      %p180 = pneg %p96
      %p181 = pneg %p125
      %p182 = pneg %p122
      %p183 = scmp.lt.s32.totalorder %s15, 1
      %s184 = scalar_select %p183, %s15, 1
      %s185 = smul.addr %s184, 3
      %s186 = smul.addr %s185, 2
      %s187 = scalar_lea.vmem %s4, %s186
      %p188 = scmp.lt.s32.totalorder %s15, 1
      %s189 = scalar_select %p188, %s15, 1
      %s190 = smul.addr %s189, 7
      %s191 = smul.addr %s190, 4
      %s192 = scalar_lea.vmem %s0, %s191
      %p193 = scmp.lt.s32.totalorder %s15, 1
      %s194 = scalar_select %p193, %s15, 1
      %s195 = smul.addr %s194, 3
      %s196 = smul.addr %s195, 2
      %s197 = scalar_lea.vmem %s4, %s196
      %v198 = vld [vmem:[%s2] sm:$0x1]
      %v199 = vld [vmem:[%s3] sm:$0x1]
      %v200 = vld [vmem:[%s1] sm:$0xf]
      %v201 = vld [vmem:[%s1 + $0x4] sm:$0xf]
      %v202 = vld [vmem:[%s1 + $0x8] sm:$0xf]
      %v203 = vld [vmem:[%s1 + $0xc] sm:$0xf]
      %v204 = vld [vmem:[%s1 + $0x10] sm:$0xf]
      %v205 = vld [vmem:[%s1 + $0x14] sm:$0xf]
      %v206 = vld [vmem:[%s1 + $0x18] sm:$0xf]
      %v207 = vld [vmem:[%s1 + $0x1c] sm:$0xf]
      %v208 = vld [vmem:[%s1 + $0x20] sm:$0xf]
      %v209 = vld [vmem:[%s1 + $0x24] sm:$0xf]
      %v210 = vld [vmem:[%s1 + $0x28] sm:$0xf]
      %v211 = vld [vmem:[%s1 + $0x2c] sm:$0xf]
      %v212 = vld [vmem:[%s1 + $0x30] sm:$0xf]
      %v213 = vld [vmem:[%s1 + $0x34] sm:$0xf]
      %v214 = vld [vmem:[%s1 + $0x38] sm:$0xf]
      %v215 = vld [vmem:[%s1 + $0x3c] sm:$0xf]
      %v216 = vld [vmem:[%s1 + $0x40] sm:$0xf]
      %v217 = vld [vmem:[%s1 + $0x44] sm:$0xf]
      %v218 = vld [vmem:[%s1 + $0x48] sm:$0xf]
      %v219 = vld [vmem:[%s1 + $0x4c] sm:$0xf]
      %v220 = vld [vmem:[%s1 + $0x50] sm:$0xf]
      %v221 = vld [vmem:[%s1 + $0x54] sm:$0xf]
      %v222 = vld [vmem:[%s1 + $0x58] sm:$0xf]
      %v223 = vld [vmem:[%s1 + $0x5c] sm:$0xf]
      %v224 = vld [vmem:[%s1 + $0x60] sm:$0xf]
      %v225 = vld [vmem:[%s1 + $0x64] sm:$0xf]
      %v226 = vld [vmem:[%s1 + $0x68] sm:$0xf]
      %v227 = vld [vmem:[%s1 + $0x6c] sm:$0xf]
      %v228 = vld [vmem:[%s1 + $0x70] sm:$0xf]
      %v229 = vld [vmem:[%s1 + $0x74] sm:$0xf]
      %v230 = vld [vmem:[%s1 + $0x78] sm:$0xf]
      %v231 = vld [vmem:[%s1 + $0x7c] sm:$0xf]
      %v232 = vld [vmem:[%s1 + $0x80] sm:$0xf]
      %v233 = vld [vmem:[%s1 + $0x84] sm:$0xf]
      %v234 = vld [vmem:[%s1 + $0x88] sm:$0xf]
      %v235 = vld [vmem:[%s1 + $0x8c] sm:$0xf]
      %v236 = vld [vmem:[%s1 + $0x90] sm:$0xf]
      %v237 = vld [vmem:[%s1 + $0x94] sm:$0xf]
      %v238 = vld [vmem:[%s1 + $0x98] sm:$0xf]
      %v239 = vld [vmem:[%s1 + $0x9c] sm:$0xf]
      %v240 = vld [vmem:[%s1 + $0xa0] sm:$0xf]
      %v241 = vld [vmem:[%s1 + $0xa4] sm:$0xf]
      %v242 = vld [vmem:[%s1 + $0xa8] sm:$0xf]
      %v243 = vld [vmem:[%s1 + $0xac] sm:$0xf]
      %v244 = vld [vmem:[%s1 + $0xb0] sm:$0xf]
      %v245 = vld [vmem:[%s1 + $0xb4] sm:$0xf]
      %v246 = vld [vmem:[%s1 + $0xb8] sm:$0xf]
      %v247 = vld [vmem:[%s1 + $0xbc] sm:$0xf]
      %v248 = vld [vmem:[%s1 + $0xc0] sm:$0xf]
      %v249 = vld [vmem:[%s1 + $0xc4] sm:$0xf]
      %v250 = vld [vmem:[%s1 + $0xc8] sm:$0xf]
      %v251 = vld [vmem:[%s1 + $0xcc] sm:$0xf]
      %v252 = vld [vmem:[%s1 + $0xd0] sm:$0xf]
      %v253 = vld [vmem:[%s1 + $0xd4] sm:$0xf]
      %v254 = vld [vmem:[%s1 + $0xd8] sm:$0xf]
      %v255 = vld [vmem:[%s1 + $0xdc] sm:$0xf]
      %v256 = vld [vmem:[%s1 + $0xe0] sm:$0xf]
      %v257 = vld [vmem:[%s1 + $0xe4] sm:$0xf]
      %v258 = vld [vmem:[%s1 + $0xe8] sm:$0xf]
      %v259 = vld [vmem:[%s1 + $0xec] sm:$0xf]
      %v260 = vld [vmem:[%s1 + $0xf0] sm:$0xf]
      %v261 = vld [vmem:[%s1 + $0xf4] sm:$0xf]
      %v262 = vld [vmem:[%s1 + $0xf8] sm:$0xf]
      %v263 = vld [vmem:[%s1 + $0xfc] sm:$0xf]
      %v264 = vld [vmem:[%s192] sm:$0xf]
      %s265 = scalar_lea.vmem %s192, 4
      %v266 = vld [vmem:[%s265] sm:$0xf]
      %s267 = scalar_lea.vmem %s192, 8
      %v268 = vld [vmem:[%s267] sm:$0xf]
      %v270 = vshrl.u32 %v264, 16
      %v272 = vshll.u32 %v264, 16
      %v274 = vrot.slane %v272, 1
      %v275 = vor.u32 %v270, %v274
      %v277 = vshrl.u32 %v266, 16
      %v279 = vshll.u32 %v266, 16
      %v281 = vrot.slane %v279, 1
      %v282 = vor.u32 %v277, %v281
      %v286 = vshrl.u32 %v268, 16
      %v288 = vshll.u32 %v268, 16
      %v290 = vrot.slane %v288, 1
      %v291 = vor.u32 %v286, %v290
      %v357 = vunpack.c.l.b16 %v200
      %v358 = vunpack.c.l.b16 %v201
      %v359 = vunpack.c.l.b16 %v202
      %v360 = vunpack.c.l.b16 %v203
      %v361 = vunpack.c.l.b16 %v204
      %v362 = vunpack.c.l.b16 %v205
      %v363 = vunpack.c.l.b16 %v206
      %v364 = vunpack.c.l.b16 %v207
      %v365 = vunpack.c.l.b16 %v208
      %v366 = vunpack.c.l.b16 %v209
      %v367 = vunpack.c.l.b16 %v210
      %v368 = vunpack.c.l.b16 %v211
      %v369 = vunpack.c.l.b16 %v212
      %v370 = vunpack.c.l.b16 %v213
      %v371 = vunpack.c.l.b16 %v214
      %v372 = vunpack.c.l.b16 %v215
      %v373 = vunpack.c.l.b16 %v216
      %v374 = vunpack.c.l.b16 %v217
      %v375 = vunpack.c.l.b16 %v218
      %v376 = vunpack.c.l.b16 %v219
      %v377 = vunpack.c.l.b16 %v220
      %v378 = vunpack.c.l.b16 %v221
      %v379 = vunpack.c.l.b16 %v222
      %v380 = vunpack.c.l.b16 %v223
      %v381 = vunpack.c.l.b16 %v224
      %v382 = vunpack.c.l.b16 %v225
      %v383 = vunpack.c.l.b16 %v226
      %v384 = vunpack.c.l.b16 %v227
      %v385 = vunpack.c.l.b16 %v228
      %v386 = vunpack.c.l.b16 %v229
      %v387 = vunpack.c.l.b16 %v230
      %v388 = vunpack.c.l.b16 %v231
      %v389 = vunpack.c.l.b16 %v232
      %v390 = vunpack.c.l.b16 %v233
      %v391 = vunpack.c.l.b16 %v234
      %v392 = vunpack.c.l.b16 %v235
      %v393 = vunpack.c.l.b16 %v236
      %v394 = vunpack.c.l.b16 %v237
      %v395 = vunpack.c.l.b16 %v238
      %v396 = vunpack.c.l.b16 %v239
      %v397 = vunpack.c.l.b16 %v240
      %v398 = vunpack.c.l.b16 %v241
      %v399 = vunpack.c.l.b16 %v242
      %v400 = vunpack.c.l.b16 %v243
      %v401 = vunpack.c.l.b16 %v244
      %v402 = vunpack.c.l.b16 %v245
      %v403 = vunpack.c.l.b16 %v246
      %v404 = vunpack.c.l.b16 %v247
      %v405 = vunpack.c.l.b16 %v248
      %v406 = vunpack.c.l.b16 %v249
      %v407 = vunpack.c.l.b16 %v250
      %v408 = vunpack.c.l.b16 %v251
      %v409 = vunpack.c.l.b16 %v252
      %v410 = vunpack.c.l.b16 %v253
      %v411 = vunpack.c.l.b16 %v254
      %v412 = vunpack.c.l.b16 %v255
      %v413 = vunpack.c.l.b16 %v256
      %v414 = vunpack.c.l.b16 %v257
      %v415 = vunpack.c.l.b16 %v258
      %v416 = vunpack.c.l.b16 %v259
      %v417 = vunpack.c.l.b16 %v260
      %v418 = vunpack.c.l.b16 %v261
      %v419 = vunpack.c.l.b16 %v262
      %v420 = vunpack.c.l.b16 %v263
      %v421 = vpack.c.b16 %v358, %v357
      %v422 = vpack.c.b16 %v360, %v359
      %v423 = vpack.c.b16 %v362, %v361
      %v424 = vpack.c.b16 %v364, %v363
      %v425 = vpack.c.b16 %v366, %v365
      %v426 = vpack.c.b16 %v368, %v367
      %v427 = vpack.c.b16 %v370, %v369
      %v428 = vpack.c.b16 %v372, %v371
      %v429 = vpack.c.b16 %v374, %v373
      %v430 = vpack.c.b16 %v376, %v375
      %v431 = vpack.c.b16 %v378, %v377
      %v432 = vpack.c.b16 %v380, %v379
      %v433 = vpack.c.b16 %v382, %v381
      %v434 = vpack.c.b16 %v384, %v383
      %v435 = vpack.c.b16 %v386, %v385
      %v436 = vpack.c.b16 %v388, %v387
      %v437 = vpack.c.b16 %v390, %v389
      %v438 = vpack.c.b16 %v392, %v391
      %v439 = vpack.c.b16 %v394, %v393
      %v440 = vpack.c.b16 %v396, %v395
      %v441 = vpack.c.b16 %v398, %v397
      %v442 = vpack.c.b16 %v400, %v399
      %v443 = vpack.c.b16 %v402, %v401
      %v444 = vpack.c.b16 %v404, %v403
      %v445 = vpack.c.b16 %v406, %v405
      %v446 = vpack.c.b16 %v408, %v407
      %v447 = vpack.c.b16 %v410, %v409
      %v448 = vpack.c.b16 %v412, %v411
      %v449 = vpack.c.b16 %v414, %v413
      %v450 = vpack.c.b16 %v416, %v415
      %v451 = vpack.c.b16 %v418, %v417
      %v452 = vpack.c.b16 %v420, %v419
      %485 = vmatpush.bf16.msra.mxu0 %v428
      %486 = vmatpush.bf16.msra.mxu0 %v427
      %487 = vmatpush.bf16.msra.mxu0 %v426
      %488 = vmatpush.bf16.msra.mxu0 %v425
      %489 = vmatpush.bf16.msra.mxu0 %v424
      %490 = vmatpush.bf16.msra.mxu0 %v423
      %491 = vmatpush.bf16.msra.mxu0 %v422
      %492 = vmatpush.bf16.msra.mxu0 %v421
      %493 = vmatmul.bf16.gmra.mxu0 %v264
      %v494 = vpop.f32.mrf.mxu0
      %v495 = vadd.f32 0.0, %v494
      %v496 = vpop.f32.mrf.mxu0
      %497 = vdwg.mxu0
      %498 = vmatpush.bf16.msra.mxu0 %v436
      %499 = vmatpush.bf16.msra.mxu0 %v435
      %500 = vmatpush.bf16.msra.mxu0 %v434
      %501 = vmatpush.bf16.msra.mxu0 %v433
      %502 = vmatpush.bf16.msra.mxu0 %v432
      %503 = vmatpush.bf16.msra.mxu0 %v431
      %504 = vmatpush.bf16.msra.mxu0 %v430
      %505 = vmatpush.bf16.msra.mxu0 %v429
      %506 = vmatmul.bf16.gmra.mxu0 %v266
      %v507 = vpop.f32.mrf.mxu0
      %v508 = vadd.f32 %v495, %v507
      %v509 = vpop.f32.mrf.mxu0
      %510 = vdwg.mxu0
      %511 = vmatpush.bf16.msra.mxu0 %v444
      %512 = vmatpush.bf16.msra.mxu0 %v443
      %513 = vmatpush.bf16.msra.mxu0 %v442
      %514 = vmatpush.bf16.msra.mxu0 %v441
      %515 = vmatpush.bf16.msra.mxu0 %v440
      %516 = vmatpush.bf16.msra.mxu0 %v439
      %517 = vmatpush.bf16.msra.mxu0 %v438
      %518 = vmatpush.bf16.msra.mxu0 %v437
      %519 = vmatmul.bf16.gmra.mxu0 %v275
      %v520 = vpop.f32.mrf.mxu0
      %v521 = vadd.f32 %v508, %v520
      %v522 = vpop.f32.mrf.mxu0
      %523 = vdwg.mxu0
      %524 = vmatpush.bf16.msra.mxu0 %v452
      %525 = vmatpush.bf16.msra.mxu0 %v451
      %526 = vmatpush.bf16.msra.mxu0 %v450
      %527 = vmatpush.bf16.msra.mxu0 %v449
      %528 = vmatpush.bf16.msra.mxu0 %v448
      %529 = vmatpush.bf16.msra.mxu0 %v447
      %530 = vmatpush.bf16.msra.mxu0 %v446
      %531 = vmatpush.bf16.msra.mxu0 %v445
      %532 = vmatmul.bf16.gmra.mxu0 %v282
      %v533 = vpop.f32.mrf.mxu0
      %v534 = vadd.f32 %v521, %v533
      %v535 = vpop.f32.mrf.mxu0
      %536 = vdwg.mxu0
      %v538 = vperm.slane %v198, 0
      %v540 = vmul.f32 %v534, %v538
      %v542 = vperm.slane %v199, 0
      %v544 = vadd.f32 %v540, %v542
      %545 = vmatpush.bf16.msra.mxu0 %v428
      %546 = vmatpush.bf16.msra.mxu0 %v427
      %547 = vmatpush.bf16.msra.mxu0 %v426
      %548 = vmatpush.bf16.msra.mxu0 %v425
      %549 = vmatpush.bf16.msra.mxu0 %v424
      %550 = vmatpush.bf16.msra.mxu0 %v423
      %551 = vmatpush.bf16.msra.mxu0 %v422
      %552 = vmatpush.bf16.msra.mxu0 %v421
      %553 = vmatmul.bf16.gmra.mxu0 %v266
      %v554 = vpop.f32.mrf.mxu0
      %v555 = vadd.f32 0.0, %v554
      %v556 = vpop.f32.mrf.mxu0
      %557 = vdwg.mxu0
      %558 = vmatpush.bf16.msra.mxu0 %v436
      %559 = vmatpush.bf16.msra.mxu0 %v435
      %560 = vmatpush.bf16.msra.mxu0 %v434
      %561 = vmatpush.bf16.msra.mxu0 %v433
      %562 = vmatpush.bf16.msra.mxu0 %v432
      %563 = vmatpush.bf16.msra.mxu0 %v431
      %564 = vmatpush.bf16.msra.mxu0 %v430
      %565 = vmatpush.bf16.msra.mxu0 %v429
      %566 = vmatmul.bf16.gmra.mxu0 %v268
      %v567 = vpop.f32.mrf.mxu0
      %v568 = vadd.f32 %v555, %v567
      %v569 = vpop.f32.mrf.mxu0
      %570 = vdwg.mxu0
      %571 = vmatpush.bf16.msra.mxu0 %v444
      %572 = vmatpush.bf16.msra.mxu0 %v443
      %573 = vmatpush.bf16.msra.mxu0 %v442
      %574 = vmatpush.bf16.msra.mxu0 %v441
      %575 = vmatpush.bf16.msra.mxu0 %v440
      %576 = vmatpush.bf16.msra.mxu0 %v439
      %577 = vmatpush.bf16.msra.mxu0 %v438
      %578 = vmatpush.bf16.msra.mxu0 %v437
      %579 = vmatmul.bf16.gmra.mxu0 %v282
      %v580 = vpop.f32.mrf.mxu0
      %v581 = vadd.f32 %v568, %v580
      %v582 = vpop.f32.mrf.mxu0
      %583 = vdwg.mxu0
      %584 = vmatpush.bf16.msra.mxu0 %v452
      %585 = vmatpush.bf16.msra.mxu0 %v451
      %586 = vmatpush.bf16.msra.mxu0 %v450
      %587 = vmatpush.bf16.msra.mxu0 %v449
      %588 = vmatpush.bf16.msra.mxu0 %v448
      %589 = vmatpush.bf16.msra.mxu0 %v447
      %590 = vmatpush.bf16.msra.mxu0 %v446
      %591 = vmatpush.bf16.msra.mxu0 %v445
      %592 = vmatmul.bf16.gmra.mxu0 %v291
      %v593 = vpop.f32.mrf.mxu0
      %v594 = vadd.f32 %v581, %v593
      %v595 = vpop.f32.mrf.mxu0
      %596 = vdwg.mxu0
      %v597 = vmul.f32 %v594, %v538
      %v598 = vadd.f32 %v597, %v542
      %v599 = vmax.f32 %v544, %v598
      %600 = vst [vmem:[#allocation2] sm:$0x3f] %v599
      %v601 = vld [vmem:[#allocation2] ss:$2 sm:$0x7]
      %s602 = scalar_lea.vmem [#allocation2], 1
      %v603 = vld [vmem:[%s602] ss:$2 sm:$0x7]
      %v604 = vmax.f32 %v601, %v603
      %v605 = vmax.f32 %v604, 0.0
      %v606 = vpack.c.bf16 %v605, %v605
      %vm607 = vcmask 1041408
      %vm608 = vsmask.f32 1280
      %vm609 = vmand %vm607, %vm608
      %v610 = vld [vmem:[%s197] sm:$0x3]
      %v611 = vsel %vm609, %v606, %v610
      %612 = vst [vmem:[%s197] sm:$0x3] %v611
      %v613 = vld [vmem:[%s267] sm:$0xf]
      %s614 = scalar_lea.vmem %s192, 12
      %v615 = vld [vmem:[%s614] sm:$0xf]
      %s616 = scalar_lea.vmem %s192, 16
      %v617 = vld [vmem:[%s616] sm:$0xf]
      %v619 = vshrl.u32 %v613, 16
      %v621 = vshll.u32 %v613, 16
      %v623 = vrot.slane %v621, 1
      %v624 = vor.u32 %v619, %v623
      %v626 = vshrl.u32 %v615, 16
      %v628 = vshll.u32 %v615, 16
      %v630 = vrot.slane %v628, 1
      %v631 = vor.u32 %v626, %v630
      %v635 = vshrl.u32 %v617, 16
      %v637 = vshll.u32 %v617, 16
      %v639 = vrot.slane %v637, 1
      %v640 = vor.u32 %v635, %v639
      %642 = vmatpush.bf16.msra.mxu0 %v428
      %643 = vmatpush.bf16.msra.mxu0 %v427
      %644 = vmatpush.bf16.msra.mxu0 %v426
      %645 = vmatpush.bf16.msra.mxu0 %v425
      %646 = vmatpush.bf16.msra.mxu0 %v424
      %647 = vmatpush.bf16.msra.mxu0 %v423
      %648 = vmatpush.bf16.msra.mxu0 %v422
      %649 = vmatpush.bf16.msra.mxu0 %v421
      %650 = vmatmul.bf16.gmra.mxu0 %v613
      %v651 = vpop.f32.mrf.mxu0
      %v652 = vadd.f32 0.0, %v651
      %v653 = vpop.f32.mrf.mxu0
      %654 = vdwg.mxu0
      %655 = vmatpush.bf16.msra.mxu0 %v436
      %656 = vmatpush.bf16.msra.mxu0 %v435
      %657 = vmatpush.bf16.msra.mxu0 %v434
      %658 = vmatpush.bf16.msra.mxu0 %v433
      %659 = vmatpush.bf16.msra.mxu0 %v432
      %660 = vmatpush.bf16.msra.mxu0 %v431
      %661 = vmatpush.bf16.msra.mxu0 %v430
      %662 = vmatpush.bf16.msra.mxu0 %v429
      %663 = vmatmul.bf16.gmra.mxu0 %v615
      %v664 = vpop.f32.mrf.mxu0
      %v665 = vadd.f32 %v652, %v664
      %v666 = vpop.f32.mrf.mxu0
      %667 = vdwg.mxu0
      %668 = vmatpush.bf16.msra.mxu0 %v444
      %669 = vmatpush.bf16.msra.mxu0 %v443
      %670 = vmatpush.bf16.msra.mxu0 %v442
      %671 = vmatpush.bf16.msra.mxu0 %v441
      %672 = vmatpush.bf16.msra.mxu0 %v440
      %673 = vmatpush.bf16.msra.mxu0 %v439
      %674 = vmatpush.bf16.msra.mxu0 %v438
      %675 = vmatpush.bf16.msra.mxu0 %v437
      %676 = vmatmul.bf16.gmra.mxu0 %v624
      %v677 = vpop.f32.mrf.mxu0
      %v678 = vadd.f32 %v665, %v677
      %v679 = vpop.f32.mrf.mxu0
      %680 = vdwg.mxu0
      %681 = vmatpush.bf16.msra.mxu0 %v452
      %682 = vmatpush.bf16.msra.mxu0 %v451
      %683 = vmatpush.bf16.msra.mxu0 %v450
      %684 = vmatpush.bf16.msra.mxu0 %v449
      %685 = vmatpush.bf16.msra.mxu0 %v448
      %686 = vmatpush.bf16.msra.mxu0 %v447
      %687 = vmatpush.bf16.msra.mxu0 %v446
      %688 = vmatpush.bf16.msra.mxu0 %v445
      %689 = vmatmul.bf16.gmra.mxu0 %v631
      %v690 = vpop.f32.mrf.mxu0
      %v691 = vadd.f32 %v678, %v690
      %v692 = vpop.f32.mrf.mxu0
      %693 = vdwg.mxu0
      %v694 = vmul.f32 %v691, %v538
      %v695 = vadd.f32 %v694, %v542
      %696 = vmatpush.bf16.msra.mxu0 %v428
      %697 = vmatpush.bf16.msra.mxu0 %v427
      %698 = vmatpush.bf16.msra.mxu0 %v426
      %699 = vmatpush.bf16.msra.mxu0 %v425
      %700 = vmatpush.bf16.msra.mxu0 %v424
      %701 = vmatpush.bf16.msra.mxu0 %v423
      %702 = vmatpush.bf16.msra.mxu0 %v422
      %703 = vmatpush.bf16.msra.mxu0 %v421
      %704 = vmatmul.bf16.gmra.mxu0 %v615
      %v705 = vpop.f32.mrf.mxu0
      %v706 = vadd.f32 0.0, %v705
      %v707 = vpop.f32.mrf.mxu0
      %708 = vdwg.mxu0
      %709 = vmatpush.bf16.msra.mxu0 %v436
      %710 = vmatpush.bf16.msra.mxu0 %v435
      %711 = vmatpush.bf16.msra.mxu0 %v434
      %712 = vmatpush.bf16.msra.mxu0 %v433
      %713 = vmatpush.bf16.msra.mxu0 %v432
      %714 = vmatpush.bf16.msra.mxu0 %v431
      %715 = vmatpush.bf16.msra.mxu0 %v430
      %716 = vmatpush.bf16.msra.mxu0 %v429
      %717 = vmatmul.bf16.gmra.mxu0 %v617
      %v718 = vpop.f32.mrf.mxu0
      %v719 = vadd.f32 %v706, %v718
      %v720 = vpop.f32.mrf.mxu0
      %721 = vdwg.mxu0
      %722 = vmatpush.bf16.msra.mxu0 %v444
      %723 = vmatpush.bf16.msra.mxu0 %v443
      %724 = vmatpush.bf16.msra.mxu0 %v442
      %725 = vmatpush.bf16.msra.mxu0 %v441
      %726 = vmatpush.bf16.msra.mxu0 %v440
      %727 = vmatpush.bf16.msra.mxu0 %v439
      %728 = vmatpush.bf16.msra.mxu0 %v438
      %729 = vmatpush.bf16.msra.mxu0 %v437
      %730 = vmatmul.bf16.gmra.mxu0 %v631
      %v731 = vpop.f32.mrf.mxu0
      %v732 = vadd.f32 %v719, %v731
      %v733 = vpop.f32.mrf.mxu0
      %734 = vdwg.mxu0
      %735 = vmatpush.bf16.msra.mxu0 %v452
      %736 = vmatpush.bf16.msra.mxu0 %v451
      %737 = vmatpush.bf16.msra.mxu0 %v450
      %738 = vmatpush.bf16.msra.mxu0 %v449
      %739 = vmatpush.bf16.msra.mxu0 %v448
      %740 = vmatpush.bf16.msra.mxu0 %v447
      %741 = vmatpush.bf16.msra.mxu0 %v446
      %742 = vmatpush.bf16.msra.mxu0 %v445
      %743 = vmatmul.bf16.gmra.mxu0 %v640
      %v744 = vpop.f32.mrf.mxu0
      %v745 = vadd.f32 %v732, %v744
      %v746 = vpop.f32.mrf.mxu0
      %747 = vdwg.mxu0
      %v748 = vmul.f32 %v745, %v538
      %v749 = vadd.f32 %v748, %v542
      %v750 = vmax.f32 %v695, %v749
      %751 = vst [vmem:[#allocation2] sm:$0x3f] %v750
      %v752 = vld [vmem:[#allocation2] ss:$2 sm:$0x7]
      %v753 = vld [vmem:[%s602] ss:$2 sm:$0x7]
      %v754 = vmax.f32 %v752, %v753
      %v755 = vmax.f32 %v754, 0.0
      %v756 = vpack.c.bf16 %v755, %v755
      %s757 = scalar_lea.vmem %s197, 2
      %v758 = vld [vmem:[%s757] sm:$0x3]
      %v759 = vsel %vm609, %v756, %v758
      %760 = vst [vmem:[%s757] sm:$0x3] %v759
      %v761 = vld [vmem:[%s616] sm:$0xf]
      %s762 = scalar_lea.vmem %s192, 20
      %v763 = vld [vmem:[%s762] sm:$0xf]
      %s764 = scalar_lea.vmem %s192, 24
      %v765 = vld [vmem:[%s764] sm:$0xf]
      %v767 = vshrl.u32 %v761, 16
      %v769 = vshll.u32 %v761, 16
      %v771 = vrot.slane %v769, 1
      %v772 = vor.u32 %v767, %v771
      %v774 = vshrl.u32 %v763, 16
      %v776 = vshll.u32 %v763, 16
      %v778 = vrot.slane %v776, 1
      %v779 = vor.u32 %v774, %v778
      %v783 = vshrl.u32 %v765, 16
      %v785 = vshll.u32 %v765, 16
      %v787 = vrot.slane %v785, 1
      %v788 = vor.u32 %v783, %v787
      %790 = vmatpush.bf16.msra.mxu0 %v428
      %791 = vmatpush.bf16.msra.mxu0 %v427
      %792 = vmatpush.bf16.msra.mxu0 %v426
      %793 = vmatpush.bf16.msra.mxu0 %v425
      %794 = vmatpush.bf16.msra.mxu0 %v424
      %795 = vmatpush.bf16.msra.mxu0 %v423
      %796 = vmatpush.bf16.msra.mxu0 %v422
      %797 = vmatpush.bf16.msra.mxu0 %v421
      %798 = vmatmul.bf16.gmra.mxu0 %v761
      %v799 = vpop.f32.mrf.mxu0
      %v800 = vadd.f32 0.0, %v799
      %v801 = vpop.f32.mrf.mxu0
      %802 = vdwg.mxu0
      %803 = vmatpush.bf16.msra.mxu0 %v436
      %804 = vmatpush.bf16.msra.mxu0 %v435
      %805 = vmatpush.bf16.msra.mxu0 %v434
      %806 = vmatpush.bf16.msra.mxu0 %v433
      %807 = vmatpush.bf16.msra.mxu0 %v432
      %808 = vmatpush.bf16.msra.mxu0 %v431
      %809 = vmatpush.bf16.msra.mxu0 %v430
      %810 = vmatpush.bf16.msra.mxu0 %v429
      %811 = vmatmul.bf16.gmra.mxu0 %v763
      %v812 = vpop.f32.mrf.mxu0
      %v813 = vadd.f32 %v800, %v812
      %v814 = vpop.f32.mrf.mxu0
      %815 = vdwg.mxu0
      %816 = vmatpush.bf16.msra.mxu0 %v444
      %817 = vmatpush.bf16.msra.mxu0 %v443
      %818 = vmatpush.bf16.msra.mxu0 %v442
      %819 = vmatpush.bf16.msra.mxu0 %v441
      %820 = vmatpush.bf16.msra.mxu0 %v440
      %821 = vmatpush.bf16.msra.mxu0 %v439
      %822 = vmatpush.bf16.msra.mxu0 %v438
      %823 = vmatpush.bf16.msra.mxu0 %v437
      %824 = vmatmul.bf16.gmra.mxu0 %v772
      %v825 = vpop.f32.mrf.mxu0
      %v826 = vadd.f32 %v813, %v825
      %v827 = vpop.f32.mrf.mxu0
      %828 = vdwg.mxu0
      %829 = vmatpush.bf16.msra.mxu0 %v452
      %830 = vmatpush.bf16.msra.mxu0 %v451
      %831 = vmatpush.bf16.msra.mxu0 %v450
      %832 = vmatpush.bf16.msra.mxu0 %v449
      %833 = vmatpush.bf16.msra.mxu0 %v448
      %834 = vmatpush.bf16.msra.mxu0 %v447
      %835 = vmatpush.bf16.msra.mxu0 %v446
      %836 = vmatpush.bf16.msra.mxu0 %v445
      %837 = vmatmul.bf16.gmra.mxu0 %v779
      %v838 = vpop.f32.mrf.mxu0
      %v839 = vadd.f32 %v826, %v838
      %v840 = vpop.f32.mrf.mxu0
      %841 = vdwg.mxu0
      %v842 = vmul.f32 %v839, %v538
      %v843 = vadd.f32 %v842, %v542
      %844 = vmatpush.bf16.msra.mxu0 %v428
      %845 = vmatpush.bf16.msra.mxu0 %v427
      %846 = vmatpush.bf16.msra.mxu0 %v426
      %847 = vmatpush.bf16.msra.mxu0 %v425
      %848 = vmatpush.bf16.msra.mxu0 %v424
      %849 = vmatpush.bf16.msra.mxu0 %v423
      %850 = vmatpush.bf16.msra.mxu0 %v422
      %851 = vmatpush.bf16.msra.mxu0 %v421
      %852 = vmatmul.bf16.gmra.mxu0 %v763
      %v853 = vpop.f32.mrf.mxu0
      %v854 = vadd.f32 0.0, %v853
      %v855 = vpop.f32.mrf.mxu0
      %856 = vdwg.mxu0
      %857 = vmatpush.bf16.msra.mxu0 %v436
      %858 = vmatpush.bf16.msra.mxu0 %v435
      %859 = vmatpush.bf16.msra.mxu0 %v434
      %860 = vmatpush.bf16.msra.mxu0 %v433
      %861 = vmatpush.bf16.msra.mxu0 %v432
      %862 = vmatpush.bf16.msra.mxu0 %v431
      %863 = vmatpush.bf16.msra.mxu0 %v430
      %864 = vmatpush.bf16.msra.mxu0 %v429
      %865 = vmatmul.bf16.gmra.mxu0 %v765
      %v866 = vpop.f32.mrf.mxu0
      %v867 = vadd.f32 %v854, %v866
      %v868 = vpop.f32.mrf.mxu0
      %869 = vdwg.mxu0
      %870 = vmatpush.bf16.msra.mxu0 %v444
      %871 = vmatpush.bf16.msra.mxu0 %v443
      %872 = vmatpush.bf16.msra.mxu0 %v442
      %873 = vmatpush.bf16.msra.mxu0 %v441
      %874 = vmatpush.bf16.msra.mxu0 %v440
      %875 = vmatpush.bf16.msra.mxu0 %v439
      %876 = vmatpush.bf16.msra.mxu0 %v438
      %877 = vmatpush.bf16.msra.mxu0 %v437
      %878 = vmatmul.bf16.gmra.mxu0 %v779
      %v879 = vpop.f32.mrf.mxu0
      %v880 = vadd.f32 %v867, %v879
      %v881 = vpop.f32.mrf.mxu0
      %882 = vdwg.mxu0
      %883 = vmatpush.bf16.msra.mxu0 %v452
      %884 = vmatpush.bf16.msra.mxu0 %v451
      %885 = vmatpush.bf16.msra.mxu0 %v450
      %886 = vmatpush.bf16.msra.mxu0 %v449
      %887 = vmatpush.bf16.msra.mxu0 %v448
      %888 = vmatpush.bf16.msra.mxu0 %v447
      %889 = vmatpush.bf16.msra.mxu0 %v446
      %890 = vmatpush.bf16.msra.mxu0 %v445
      %891 = vmatmul.bf16.gmra.mxu0 %v788
      %v892 = vpop.f32.mrf.mxu0
      %v893 = vadd.f32 %v880, %v892
      %v894 = vpop.f32.mrf.mxu0
      %895 = vdwg.mxu0
      %v896 = vmul.f32 %v893, %v538
      %v897 = vadd.f32 %v896, %v542
      %v898 = vmax.f32 %v843, %v897
      %899 = vst [vmem:[#allocation2] sm:$0x3f] %v898
      %v900 = vld [vmem:[#allocation2] ss:$2 sm:$0x7]
      %v901 = vld [vmem:[%s602] ss:$2 sm:$0x7]
      %v902 = vmax.f32 %v900, %v901
      %v903 = vmax.f32 %v902, 0.0
      %v904 = vpack.c.bf16 %v903, %v903
      %s905 = scalar_lea.vmem %s197, 4
      %v906 = vld [vmem:[%s905] sm:$0x3]
      %v907 = vsel %vm609, %v904, %v906
      %908 = vst [vmem:[%s905] sm:$0x3] %v907
      %p909 = scmp.lt.s32.totalorder %s15, 1
      %s910 = scalar_select %p909, %s15, 1
      %s911 = smul.addr %s910, 3
      %s912 = smul.addr %s911, 2
      %s913 = scalar_lea.vmem %s4, %s912
      // Predicated region
      $region37: #{cnn_forward.10} parent=35 // pred_check
        %p914 = pneg %p122
      $region38: #{cnn_forward.10} parent=35 // pred_check_branch
        %916 = sbr.rel (%p914) target = $region40
      $region39: #{cnn_forward.10} parent=35 // pred_region
        _
      $region40: #{cnn_forward.10} parent=35 // pred_fallthru
        _
    $region36: #{cnn_forward.10} parent=5 // pred_fallthru
      _
    %p917 = scmp.le.s32.totalorder 2, %s10
    // Predicated region
    $region41: #{cnn_forward.10} parent=5 // pred_check
      %p918 = pneg %p917
    $region42: #{cnn_forward.10} parent=5 // pred_check_branch
      %920 = sbr.rel (%p918) target = $region44
    $region43: #{cnn_forward.10} parent=5 // pred_region
      %s921 = ssub.s32 %s10, 2
      // Predicated region
      $region45: #{cnn_forward.10} parent=43 // pred_check
        %p922 = pneg %p128
      $region46: #{cnn_forward.10} parent=43 // pred_check_branch
        %924 = sbr.rel (%p922) target = $region48
      $region47: #{cnn_forward.10} parent=43 // pred_region
        %p925 = scmp.lt.s32.totalorder %s16, 1
        %s926 = scalar_select %p925, %s16, 1
        %s927 = smul.addr %s926, 3
        %s928 = smul.addr %s927, 2
        %s929 = scalar_lea.vmem %s4, %s928
      $region48: #{cnn_forward.10} parent=43 // pred_fallthru
        _
    $region44: #{cnn_forward.10} parent=5 // pred_fallthru
      _
  $region6: #{cnn_forward.10} parent=0 // loop_footer
    %s14 = sadd.s32 1, %s10
  $region7: #{cnn_forward.10} parent=0 // loop_footer_branch
    %9 = sbr.rel target = $region3
  $region8: #{cnn_forward.10} parent=0 // loop_exit
    _

// kernel: cnn_forward.9
$region0: #{cnn_forward.9}
  #allocation0 [shape = 'u32[]', space=smem, size = 0x4, offset = 0x4, fixed_abs, tag = 'smem constant byte address 0x4 - core index']
  #allocation1 [shape = 'u32[72,128]{1,0:T(1,128)}', space=vmem, size = 0x9000, scoped, tag = 'internal scratch']
  #allocation2 [shape = 'f32[14,128]{1,0:T(8,128)}', space=vmem, size = 0x2000, scoped, tag = 'scratch operand']
  %s0 = inlined_call_operand.vmem [shape: bf16[2,15,15,128], index: 0, kind: input, shape index: {}]
  %s1 = inlined_call_operand.vmem [shape: bf16[512,128], index: 1, kind: input, shape index: {}]
  %s2 = inlined_call_operand.vmem [shape: f32[1,128], index: 2, kind: input, shape index: {}]
  %s3 = inlined_call_operand.vmem [shape: f32[1,128], index: 3, kind: input, shape index: {}]
  %s4 = inlined_call_operand.vmem [shape: bf16[2,7,7,128], index: 4, kind: output, shape index: {}]
  %s5 = sld [smem:[#allocation0]]
  $region49: #{cnn_forward.9} parent=0
    _
  %s7 = ssub.s32 1, %s5
  %s8 = scalar_select 0, %s7, %s5
  loop: start=0, step=1, limit=4
  $region2: #{cnn_forward.9} parent=0 // loop_pre_header
    _
  $region3: #{cnn_forward.9} parent=0 // loop_header
    %s10 = sphi 0, %s14
    %p11 = scmp.ge.s32.totalorder %s10, 4
    %s20 = sphi 0, %s22
    %s23 = sphi 0, %s20
    %s24 = sphi 0, %s23
    %s40 = sphi 0, %s24
    %s44 = sphi 0, %s44
    %s46 = sphi 0, %s44
    %s47 = sphi 0, %s46
    %s61 = sphi 0, %s47
    %s65 = sphi 0, %s65
    %s67 = sphi 0, %s65
    %s68 = sphi 0, %s67
    %s82 = sphi 0, %s68
    %s86 = sphi 0, %s86
    %s88 = sphi 0, %s86
    %s89 = sphi 0, %s88
    %s103 = sphi 0, %s89
    %s109 = sphi 0, %s111
    %s112 = sphi 0, %s109
    %s113 = sphi 0, %s112
    %s129 = sphi 0, %s113
  $region4: #{cnn_forward.9} parent=0 // loop_header_branch
    %13 = sbr.rel (%p11) target = $region8
  $region5: #{cnn_forward.9} parent=0 // loop_body
    %s15 = ssub.s32 %s10, 1
    %s16 = ssub.s32 %s10, 2
    %s17 = sadd.s32 %s10, 1
    %s18 = ssub.s32 %s10, %s17
    %p19 = scmp.eq.s32.totalorder %s18, 0
    %s21 = sadd.s32 %s20, 1
    %s22 = scalar_select %p19, %s20, %s21
    %p25 = pneg %p19
    %p26 = scmp.eq.s32.totalorder %s10, 1
    %p27 = por %p25, %p26
    %p28 = scmp.ne.s32.totalorder %s20, %s23
    %p29 = scmp.eq.s32.totalorder %s10, 0
    %p30 = por %p28, %p29
    %p31 = scmp.ne.s32.totalorder %s20, %s23
    %p32 = scmp.eq.s32.totalorder %s15, 1
    %p33 = por %p31, %p32
    %p34 = scmp.ne.s32.totalorder %s23, %s24
    %p35 = scmp.eq.s32.totalorder %s15, 0
    %p36 = por %p34, %p35
    %p37 = scmp.ne.s32.totalorder %s23, %s24
    %p38 = scmp.eq.s32.totalorder %s16, 1
    %p39 = por %p37, %p38
    %p41 = scmp.ne.s32.totalorder %s24, %s40
    %p42 = scmp.eq.s32.totalorder %s16, 0
    %p43 = por %p41, %p42
    %s45 = sadd.s32 %s44, 1
    %p48 = scmp.eq.s32.totalorder %s10, 1
    %p49 = scmp.ne.s32.totalorder %s44, %s46
    %p50 = scmp.eq.s32.totalorder %s10, 0
    %p51 = por %p49, %p50
    %p52 = scmp.ne.s32.totalorder %s44, %s46
    %p53 = scmp.eq.s32.totalorder %s15, 1
    %p54 = por %p52, %p53
    %p55 = scmp.ne.s32.totalorder %s46, %s47
    %p56 = scmp.eq.s32.totalorder %s15, 0
    %p57 = por %p55, %p56
    %p58 = scmp.ne.s32.totalorder %s46, %s47
    %p59 = scmp.eq.s32.totalorder %s16, 1
    %p60 = por %p58, %p59
    %p62 = scmp.ne.s32.totalorder %s47, %s61
    %p63 = scmp.eq.s32.totalorder %s16, 0
    %p64 = por %p62, %p63
    %s66 = sadd.s32 %s65, 1
    %p69 = scmp.eq.s32.totalorder %s10, 1
    %p70 = scmp.ne.s32.totalorder %s65, %s67
    %p71 = scmp.eq.s32.totalorder %s10, 0
    %p72 = por %p70, %p71
    %p73 = scmp.ne.s32.totalorder %s65, %s67
    %p74 = scmp.eq.s32.totalorder %s15, 1
    %p75 = por %p73, %p74
    %p76 = scmp.ne.s32.totalorder %s67, %s68
    %p77 = scmp.eq.s32.totalorder %s15, 0
    %p78 = por %p76, %p77
    %p79 = scmp.ne.s32.totalorder %s67, %s68
    %p80 = scmp.eq.s32.totalorder %s16, 1
    %p81 = por %p79, %p80
    %p83 = scmp.ne.s32.totalorder %s68, %s82
    %p84 = scmp.eq.s32.totalorder %s16, 0
    %p85 = por %p83, %p84
    %s87 = sadd.s32 %s86, 1
    %p90 = scmp.eq.s32.totalorder %s10, 1
    %p91 = scmp.ne.s32.totalorder %s86, %s88
    %p92 = scmp.eq.s32.totalorder %s10, 0
    %p93 = por %p91, %p92
    %p94 = scmp.ne.s32.totalorder %s86, %s88
    %p95 = scmp.eq.s32.totalorder %s15, 1
    %p96 = por %p94, %p95
    %p97 = scmp.ne.s32.totalorder %s88, %s89
    %p98 = scmp.eq.s32.totalorder %s15, 0
    %p99 = por %p97, %p98
    %p100 = scmp.ne.s32.totalorder %s88, %s89
    %p101 = scmp.eq.s32.totalorder %s16, 1
    %p102 = por %p100, %p101
    %p104 = scmp.ne.s32.totalorder %s89, %s103
    %p105 = scmp.eq.s32.totalorder %s16, 0
    %p106 = por %p104, %p105
    %s107 = ssub.s32 %s10, %s17
    %p108 = scmp.eq.s32.totalorder %s107, 0
    %s110 = sadd.s32 %s109, 1
    %s111 = scalar_select %p108, %s109, %s110
    %p114 = pneg %p108
    %p115 = scmp.eq.s32.totalorder %s10, 1
    %p116 = por %p114, %p115
    %p117 = scmp.ne.s32.totalorder %s109, %s112
    %p118 = scmp.eq.s32.totalorder %s10, 0
    %p119 = por %p117, %p118
    %p120 = scmp.ne.s32.totalorder %s109, %s112
    %p121 = scmp.eq.s32.totalorder %s15, 1
    %p122 = por %p120, %p121
    %p123 = scmp.ne.s32.totalorder %s112, %s113
    %p124 = scmp.eq.s32.totalorder %s15, 0
    %p125 = por %p123, %p124
    %p126 = scmp.ne.s32.totalorder %s112, %s113
    %p127 = scmp.eq.s32.totalorder %s16, 1
    %p128 = por %p126, %p127
    %p130 = scmp.ne.s32.totalorder %s113, %s129
    %p131 = scmp.eq.s32.totalorder %s16, 0
    %p132 = por %p130, %p131
    %p133 = scmp.le.s32.totalorder 1, %s10
    %p134 = scmp.lt.s32.totalorder %s10, 3
    %p135 = pnand %p133, %p134
    %p136 = pneg %p135
    // Predicated region
    $region9: #{cnn_forward.9} parent=5 // pred_check
      _
    $region10: #{cnn_forward.9} parent=5 // pred_check_branch
      %138 = sbr.rel (%p135) target = $region12
    $region11: #{cnn_forward.9} parent=5 // pred_region
      %s139 = ssub.s32 %s10, 1
      // Predicated region
      $region13: #{cnn_forward.9} parent=11 // pred_check
        %p140 = pneg %p57
      $region14: #{cnn_forward.9} parent=11 // pred_check_branch
        %142 = sbr.rel (%p140) target = $region16
      $region15: #{cnn_forward.9} parent=11 // pred_region
        _
      $region16: #{cnn_forward.9} parent=11 // pred_fallthru
        _
      // Predicated region
      $region17: #{cnn_forward.9} parent=11 // pred_check
        %p143 = pneg %p78
      $region18: #{cnn_forward.9} parent=11 // pred_check_branch
        %145 = sbr.rel (%p143) target = $region20
      $region19: #{cnn_forward.9} parent=11 // pred_region
        _
      $region20: #{cnn_forward.9} parent=11 // pred_fallthru
        _
      // Predicated region
      $region21: #{cnn_forward.9} parent=11 // pred_check
        %p146 = pneg %p99
      $region22: #{cnn_forward.9} parent=11 // pred_check_branch
        %148 = sbr.rel (%p146) target = $region24
      $region23: #{cnn_forward.9} parent=11 // pred_region
        _
      $region24: #{cnn_forward.9} parent=11 // pred_fallthru
        _
    $region12: #{cnn_forward.9} parent=5 // pred_fallthru
      _
    %p149 = scmp.lt.s32.totalorder %s10, 2
    // Predicated region
    $region25: #{cnn_forward.9} parent=5 // pred_check
      %p150 = pneg %p149
    $region26: #{cnn_forward.9} parent=5 // pred_check_branch
      %152 = sbr.rel (%p150) target = $region28
    $region27: #{cnn_forward.9} parent=5 // pred_region
      // Predicated region
      $region29: #{cnn_forward.9} parent=27 // pred_check
        %p153 = pneg %p30
      $region30: #{cnn_forward.9} parent=27 // pred_check_branch
        %155 = sbr.rel (%p153) target = $region32
      $region31: #{cnn_forward.9} parent=27 // pred_region
        %p156 = scmp.lt.s32.totalorder %s10, 1
        %s157 = scalar_select %p156, %s10, 1
        %s158 = smul.addr %s157, 30
        %s159 = smul.addr %s158, 4
        %s160 = scalar_lea.vmem %s0, %s159
      $region32: #{cnn_forward.9} parent=27 // pred_fallthru
        _
    $region28: #{cnn_forward.9} parent=5 // pred_fallthru
      _
    %p161 = scmp.le.s32.totalorder 1, %s10
    %p162 = scmp.lt.s32.totalorder %s10, 3
    %p163 = pnand %p161, %p162
    %p164 = pneg %p163
    // Predicated region
    $region33: #{cnn_forward.9} parent=5 // pred_check
      _
    $region34: #{cnn_forward.9} parent=5 // pred_check_branch
      %166 = sbr.rel (%p163) target = $region36
    $region35: #{cnn_forward.9} parent=5 // pred_region
      %s167 = ssub.s32 %s10, 1
      %p168 = scmp.lt.s32.totalorder %s15, 1
      %s169 = scalar_select %p168, %s15, 1
      %s170 = smul.addr %s169, 30
      %s171 = smul.addr %s170, 4
      %s172 = scalar_lea.vmem %s0, %s171
      %p173 = pneg %p36
      %p174 = pneg %p33
      %p175 = pneg %p57
      %p176 = pneg %p54
      %p177 = pneg %p78
      %p178 = pneg %p75
      %p179 = pneg %p99
      %p180 = pneg %p96
      %p181 = pneg %p125
      %p182 = pneg %p122
      %p183 = scmp.lt.s32.totalorder %s15, 1
      %s184 = scalar_select %p183, %s15, 1
      %s185 = smul.addr %s184, 7
      %s186 = smul.addr %s185, 4
      %s187 = scalar_lea.vmem %s4, %s186
      %p188 = scmp.lt.s32.totalorder %s15, 1
      %s189 = scalar_select %p188, %s15, 1
      %s190 = smul.addr %s189, 30
      %s191 = smul.addr %s190, 4
      %s192 = scalar_lea.vmem %s0, %s191
      %p193 = scmp.lt.s32.totalorder %s15, 1
      %s194 = scalar_select %p193, %s15, 1
      %s195 = smul.addr %s194, 7
      %s196 = smul.addr %s195, 4
      %s197 = scalar_lea.vmem %s4, %s196
      %v198 = vld [vmem:[%s2] sm:$0x1]
      %v199 = vld [vmem:[%s3] sm:$0x1]
      %v200 = vld [vmem:[%s1] sm:$0xf]
      %v201 = vld [vmem:[%s1 + $0x4] sm:$0xf]
      %v202 = vld [vmem:[%s1 + $0x8] sm:$0xf]
      %v203 = vld [vmem:[%s1 + $0xc] sm:$0xf]
      %v204 = vld [vmem:[%s1 + $0x10] sm:$0xf]
      %v205 = vld [vmem:[%s1 + $0x14] sm:$0xf]
      %v206 = vld [vmem:[%s1 + $0x18] sm:$0xf]
      %v207 = vld [vmem:[%s1 + $0x1c] sm:$0xf]
      %v208 = vld [vmem:[%s1 + $0x20] sm:$0xf]
      %v209 = vld [vmem:[%s1 + $0x24] sm:$0xf]
      %v210 = vld [vmem:[%s1 + $0x28] sm:$0xf]
      %v211 = vld [vmem:[%s1 + $0x2c] sm:$0xf]
      %v212 = vld [vmem:[%s1 + $0x30] sm:$0xf]
      %v213 = vld [vmem:[%s1 + $0x34] sm:$0xf]
      %v214 = vld [vmem:[%s1 + $0x38] sm:$0xf]
      %v215 = vld [vmem:[%s1 + $0x3c] sm:$0xf]
      %v216 = vld [vmem:[%s1 + $0x40] sm:$0xf]
      %v217 = vld [vmem:[%s1 + $0x44] sm:$0xf]
      %v218 = vld [vmem:[%s1 + $0x48] sm:$0xf]
      %v219 = vld [vmem:[%s1 + $0x4c] sm:$0xf]
      %v220 = vld [vmem:[%s1 + $0x50] sm:$0xf]
      %v221 = vld [vmem:[%s1 + $0x54] sm:$0xf]
      %v222 = vld [vmem:[%s1 + $0x58] sm:$0xf]
      %v223 = vld [vmem:[%s1 + $0x5c] sm:$0xf]
      %v224 = vld [vmem:[%s1 + $0x60] sm:$0xf]
      %v225 = vld [vmem:[%s1 + $0x64] sm:$0xf]
      %v226 = vld [vmem:[%s1 + $0x68] sm:$0xf]
      %v227 = vld [vmem:[%s1 + $0x6c] sm:$0xf]
      %v228 = vld [vmem:[%s1 + $0x70] sm:$0xf]
      %v229 = vld [vmem:[%s1 + $0x74] sm:$0xf]
      %v230 = vld [vmem:[%s1 + $0x78] sm:$0xf]
      %v231 = vld [vmem:[%s1 + $0x7c] sm:$0xf]
      %v232 = vld [vmem:[%s1 + $0x80] sm:$0xf]
      %v233 = vld [vmem:[%s1 + $0x84] sm:$0xf]
      %v234 = vld [vmem:[%s1 + $0x88] sm:$0xf]
      %v235 = vld [vmem:[%s1 + $0x8c] sm:$0xf]
      %v236 = vld [vmem:[%s1 + $0x90] sm:$0xf]
      %v237 = vld [vmem:[%s1 + $0x94] sm:$0xf]
      %v238 = vld [vmem:[%s1 + $0x98] sm:$0xf]
      %v239 = vld [vmem:[%s1 + $0x9c] sm:$0xf]
      %v240 = vld [vmem:[%s1 + $0xa0] sm:$0xf]
      %v241 = vld [vmem:[%s1 + $0xa4] sm:$0xf]
      %v242 = vld [vmem:[%s1 + $0xa8] sm:$0xf]
      %v243 = vld [vmem:[%s1 + $0xac] sm:$0xf]
      %v244 = vld [vmem:[%s1 + $0xb0] sm:$0xf]
      %v245 = vld [vmem:[%s1 + $0xb4] sm:$0xf]
      %v246 = vld [vmem:[%s1 + $0xb8] sm:$0xf]
      %v247 = vld [vmem:[%s1 + $0xbc] sm:$0xf]
      %v248 = vld [vmem:[%s1 + $0xc0] sm:$0xf]
      %v249 = vld [vmem:[%s1 + $0xc4] sm:$0xf]
      %v250 = vld [vmem:[%s1 + $0xc8] sm:$0xf]
      %v251 = vld [vmem:[%s1 + $0xcc] sm:$0xf]
      %v252 = vld [vmem:[%s1 + $0xd0] sm:$0xf]
      %v253 = vld [vmem:[%s1 + $0xd4] sm:$0xf]
      %v254 = vld [vmem:[%s1 + $0xd8] sm:$0xf]
      %v255 = vld [vmem:[%s1 + $0xdc] sm:$0xf]
      %v256 = vld [vmem:[%s1 + $0xe0] sm:$0xf]
      %v257 = vld [vmem:[%s1 + $0xe4] sm:$0xf]
      %v258 = vld [vmem:[%s1 + $0xe8] sm:$0xf]
      %v259 = vld [vmem:[%s1 + $0xec] sm:$0xf]
      %v260 = vld [vmem:[%s1 + $0xf0] sm:$0xf]
      %v261 = vld [vmem:[%s1 + $0xf4] sm:$0xf]
      %v262 = vld [vmem:[%s1 + $0xf8] sm:$0xf]
      %v263 = vld [vmem:[%s1 + $0xfc] sm:$0xf]
      %v264 = vld [vmem:[%s192] sm:$0xf]
      %v265 = vld [vmem:[%s192 + $0x4] sm:$0xf]
      %s266 = scalar_lea.vmem %s192, 8
      %v267 = vld [vmem:[%s266] sm:$0xf]
      %v268 = vld [vmem:[%s266 + $0x4] sm:$0xf]
      %s269 = scalar_lea.vmem %s192, 16
      %v270 = vld [vmem:[%s269] sm:$0xf]
      %v271 = vld [vmem:[%s269 + $0x4] sm:$0xf]
      %v274 = vunpack.c.l.b16 %v264
      %v275 = vunpack.c.l.b16 %v265
      %v276 = vpack.c.b16 %v275, %v274
      %v280 = vunpack.c.l.b16 %v267
      %v281 = vunpack.c.l.b16 %v268
      %v282 = vpack.c.b16 %v281, %v280
      %v286 = vunpack.c.l.b16 %v270
      %v287 = vunpack.c.l.b16 %v271
      %v288 = vpack.c.b16 %v287, %v286
      %v291 = vshrl.u32 %v276, 16
      %v293 = vshll.u32 %v276, 16
      %v295 = vrot.slane %v293, 1
      %v296 = vor.u32 %v291, %v295
      %v298 = vshrl.u32 %v282, 16
      %v300 = vshll.u32 %v282, 16
      %v302 = vrot.slane %v300, 1
      %v303 = vor.u32 %v298, %v302
      %v307 = vshrl.u32 %v288, 16
      %v309 = vshll.u32 %v288, 16
      %v311 = vrot.slane %v309, 1
      %v312 = vor.u32 %v307, %v311
      %v378 = vunpack.c.l.b16 %v200
      %v379 = vunpack.c.l.b16 %v201
      %v380 = vunpack.c.l.b16 %v202
      %v381 = vunpack.c.l.b16 %v203
      %v382 = vunpack.c.l.b16 %v204
      %v383 = vunpack.c.l.b16 %v205
      %v384 = vunpack.c.l.b16 %v206
      %v385 = vunpack.c.l.b16 %v207
      %v386 = vunpack.c.l.b16 %v208
      %v387 = vunpack.c.l.b16 %v209
      %v388 = vunpack.c.l.b16 %v210
      %v389 = vunpack.c.l.b16 %v211
      %v390 = vunpack.c.l.b16 %v212
      %v391 = vunpack.c.l.b16 %v213
      %v392 = vunpack.c.l.b16 %v214
      %v393 = vunpack.c.l.b16 %v215
      %v394 = vunpack.c.l.b16 %v216
      %v395 = vunpack.c.l.b16 %v217
      %v396 = vunpack.c.l.b16 %v218
      %v397 = vunpack.c.l.b16 %v219
      %v398 = vunpack.c.l.b16 %v220
      %v399 = vunpack.c.l.b16 %v221
      %v400 = vunpack.c.l.b16 %v222
      %v401 = vunpack.c.l.b16 %v223
      %v402 = vunpack.c.l.b16 %v224
      %v403 = vunpack.c.l.b16 %v225
      %v404 = vunpack.c.l.b16 %v226
      %v405 = vunpack.c.l.b16 %v227
      %v406 = vunpack.c.l.b16 %v228
      %v407 = vunpack.c.l.b16 %v229
      %v408 = vunpack.c.l.b16 %v230
      %v409 = vunpack.c.l.b16 %v231
      %v410 = vunpack.c.l.b16 %v232
      %v411 = vunpack.c.l.b16 %v233
      %v412 = vunpack.c.l.b16 %v234
      %v413 = vunpack.c.l.b16 %v235
      %v414 = vunpack.c.l.b16 %v236
      %v415 = vunpack.c.l.b16 %v237
      %v416 = vunpack.c.l.b16 %v238
      %v417 = vunpack.c.l.b16 %v239
      %v418 = vunpack.c.l.b16 %v240
      %v419 = vunpack.c.l.b16 %v241
      %v420 = vunpack.c.l.b16 %v242
      %v421 = vunpack.c.l.b16 %v243
      %v422 = vunpack.c.l.b16 %v244
      %v423 = vunpack.c.l.b16 %v245
      %v424 = vunpack.c.l.b16 %v246
      %v425 = vunpack.c.l.b16 %v247
      %v426 = vunpack.c.l.b16 %v248
      %v427 = vunpack.c.l.b16 %v249
      %v428 = vunpack.c.l.b16 %v250
      %v429 = vunpack.c.l.b16 %v251
      %v430 = vunpack.c.l.b16 %v252
      %v431 = vunpack.c.l.b16 %v253
      %v432 = vunpack.c.l.b16 %v254
      %v433 = vunpack.c.l.b16 %v255
      %v434 = vunpack.c.l.b16 %v256
      %v435 = vunpack.c.l.b16 %v257
      %v436 = vunpack.c.l.b16 %v258
      %v437 = vunpack.c.l.b16 %v259
      %v438 = vunpack.c.l.b16 %v260
      %v439 = vunpack.c.l.b16 %v261
      %v440 = vunpack.c.l.b16 %v262
      %v441 = vunpack.c.l.b16 %v263
      %v442 = vpack.c.b16 %v379, %v378
      %v443 = vpack.c.b16 %v381, %v380
      %v444 = vpack.c.b16 %v383, %v382
      %v445 = vpack.c.b16 %v385, %v384
      %v446 = vpack.c.b16 %v387, %v386
      %v447 = vpack.c.b16 %v389, %v388
      %v448 = vpack.c.b16 %v391, %v390
      %v449 = vpack.c.b16 %v393, %v392
      %v450 = vpack.c.b16 %v395, %v394
      %v451 = vpack.c.b16 %v397, %v396
      %v452 = vpack.c.b16 %v399, %v398
      %v453 = vpack.c.b16 %v401, %v400
      %v454 = vpack.c.b16 %v403, %v402
      %v455 = vpack.c.b16 %v405, %v404
      %v456 = vpack.c.b16 %v407, %v406
      %v457 = vpack.c.b16 %v409, %v408
      %v458 = vpack.c.b16 %v411, %v410
      %v459 = vpack.c.b16 %v413, %v412
      %v460 = vpack.c.b16 %v415, %v414
      %v461 = vpack.c.b16 %v417, %v416
      %v462 = vpack.c.b16 %v419, %v418
      %v463 = vpack.c.b16 %v421, %v420
      %v464 = vpack.c.b16 %v423, %v422
      %v465 = vpack.c.b16 %v425, %v424
      %v466 = vpack.c.b16 %v427, %v426
      %v467 = vpack.c.b16 %v429, %v428
      %v468 = vpack.c.b16 %v431, %v430
      %v469 = vpack.c.b16 %v433, %v432
      %v470 = vpack.c.b16 %v435, %v434
      %v471 = vpack.c.b16 %v437, %v436
      %v472 = vpack.c.b16 %v439, %v438
      %v473 = vpack.c.b16 %v441, %v440
      %506 = vmatpush.bf16.msra.mxu0 %v449
      %507 = vmatpush.bf16.msra.mxu0 %v448
      %508 = vmatpush.bf16.msra.mxu0 %v447
      %509 = vmatpush.bf16.msra.mxu0 %v446
      %510 = vmatpush.bf16.msra.mxu0 %v445
      %511 = vmatpush.bf16.msra.mxu0 %v444
      %512 = vmatpush.bf16.msra.mxu0 %v443
      %513 = vmatpush.bf16.msra.mxu0 %v442
      %514 = vmatmul.bf16.gmra.mxu0 %v276
      %v515 = vpop.f32.mrf.mxu0
      %v516 = vadd.f32 0.0, %v515
      %v517 = vpop.f32.mrf.mxu0
      %v518 = vadd.f32 0.0, %v517
      %519 = vdwg.mxu0
      %520 = vmatpush.bf16.msra.mxu0 %v457
      %521 = vmatpush.bf16.msra.mxu0 %v456
      %522 = vmatpush.bf16.msra.mxu0 %v455
      %523 = vmatpush.bf16.msra.mxu0 %v454
      %524 = vmatpush.bf16.msra.mxu0 %v453
      %525 = vmatpush.bf16.msra.mxu0 %v452
      %526 = vmatpush.bf16.msra.mxu0 %v451
      %527 = vmatpush.bf16.msra.mxu0 %v450
      %528 = vmatmul.bf16.gmra.mxu0 %v282
      %v529 = vpop.f32.mrf.mxu0
      %v530 = vadd.f32 %v516, %v529
      %v531 = vpop.f32.mrf.mxu0
      %v532 = vadd.f32 %v518, %v531
      %533 = vdwg.mxu0
      %534 = vmatpush.bf16.msra.mxu0 %v465
      %535 = vmatpush.bf16.msra.mxu0 %v464
      %536 = vmatpush.bf16.msra.mxu0 %v463
      %537 = vmatpush.bf16.msra.mxu0 %v462
      %538 = vmatpush.bf16.msra.mxu0 %v461
      %539 = vmatpush.bf16.msra.mxu0 %v460
      %540 = vmatpush.bf16.msra.mxu0 %v459
      %541 = vmatpush.bf16.msra.mxu0 %v458
      %542 = vmatmul.bf16.gmra.mxu0 %v296
      %v543 = vpop.f32.mrf.mxu0
      %v544 = vadd.f32 %v530, %v543
      %v545 = vpop.f32.mrf.mxu0
      %v546 = vadd.f32 %v532, %v545
      %547 = vdwg.mxu0
      %548 = vmatpush.bf16.msra.mxu0 %v473
      %549 = vmatpush.bf16.msra.mxu0 %v472
      %550 = vmatpush.bf16.msra.mxu0 %v471
      %551 = vmatpush.bf16.msra.mxu0 %v470
      %552 = vmatpush.bf16.msra.mxu0 %v469
      %553 = vmatpush.bf16.msra.mxu0 %v468
      %554 = vmatpush.bf16.msra.mxu0 %v467
      %555 = vmatpush.bf16.msra.mxu0 %v466
      %556 = vmatmul.bf16.gmra.mxu0 %v303
      %v557 = vpop.f32.mrf.mxu0
      %v558 = vadd.f32 %v544, %v557
      %v559 = vpop.f32.mrf.mxu0
      %v560 = vadd.f32 %v546, %v559
      %561 = vdwg.mxu0
      %v563 = vperm.slane %v198, 0
      %v565 = vmul.f32 %v558, %v563
      %v566 = vmul.f32 %v560, %v563
      %v568 = vperm.slane %v199, 0
      %v570 = vadd.f32 %v565, %v568
      %v571 = vadd.f32 %v566, %v568
      %572 = vmatpush.bf16.msra.mxu0 %v449
      %573 = vmatpush.bf16.msra.mxu0 %v448
      %574 = vmatpush.bf16.msra.mxu0 %v447
      %575 = vmatpush.bf16.msra.mxu0 %v446
      %576 = vmatpush.bf16.msra.mxu0 %v445
      %577 = vmatpush.bf16.msra.mxu0 %v444
      %578 = vmatpush.bf16.msra.mxu0 %v443
      %579 = vmatpush.bf16.msra.mxu0 %v442
      %580 = vmatmul.bf16.gmra.mxu0 %v282
      %v581 = vpop.f32.mrf.mxu0
      %v582 = vadd.f32 0.0, %v581
      %v583 = vpop.f32.mrf.mxu0
      %v584 = vadd.f32 0.0, %v583
      %585 = vdwg.mxu0
      %586 = vmatpush.bf16.msra.mxu0 %v457
      %587 = vmatpush.bf16.msra.mxu0 %v456
      %588 = vmatpush.bf16.msra.mxu0 %v455
      %589 = vmatpush.bf16.msra.mxu0 %v454
      %590 = vmatpush.bf16.msra.mxu0 %v453
      %591 = vmatpush.bf16.msra.mxu0 %v452
      %592 = vmatpush.bf16.msra.mxu0 %v451
      %593 = vmatpush.bf16.msra.mxu0 %v450
      %594 = vmatmul.bf16.gmra.mxu0 %v288
      %v595 = vpop.f32.mrf.mxu0
      %v596 = vadd.f32 %v582, %v595
      %v597 = vpop.f32.mrf.mxu0
      %v598 = vadd.f32 %v584, %v597
      %599 = vdwg.mxu0
      %600 = vmatpush.bf16.msra.mxu0 %v465
      %601 = vmatpush.bf16.msra.mxu0 %v464
      %602 = vmatpush.bf16.msra.mxu0 %v463
      %603 = vmatpush.bf16.msra.mxu0 %v462
      %604 = vmatpush.bf16.msra.mxu0 %v461
      %605 = vmatpush.bf16.msra.mxu0 %v460
      %606 = vmatpush.bf16.msra.mxu0 %v459
      %607 = vmatpush.bf16.msra.mxu0 %v458
      %608 = vmatmul.bf16.gmra.mxu0 %v303
      %v609 = vpop.f32.mrf.mxu0
      %v610 = vadd.f32 %v596, %v609
      %v611 = vpop.f32.mrf.mxu0
      %v612 = vadd.f32 %v598, %v611
      %613 = vdwg.mxu0
      %614 = vmatpush.bf16.msra.mxu0 %v473
      %615 = vmatpush.bf16.msra.mxu0 %v472
      %616 = vmatpush.bf16.msra.mxu0 %v471
      %617 = vmatpush.bf16.msra.mxu0 %v470
      %618 = vmatpush.bf16.msra.mxu0 %v469
      %619 = vmatpush.bf16.msra.mxu0 %v468
      %620 = vmatpush.bf16.msra.mxu0 %v467
      %621 = vmatpush.bf16.msra.mxu0 %v466
      %622 = vmatmul.bf16.gmra.mxu0 %v312
      %v623 = vpop.f32.mrf.mxu0
      %v624 = vadd.f32 %v610, %v623
      %v625 = vpop.f32.mrf.mxu0
      %v626 = vadd.f32 %v612, %v625
      %627 = vdwg.mxu0
      %v628 = vmul.f32 %v624, %v563
      %v629 = vmul.f32 %v626, %v563
      %v630 = vadd.f32 %v628, %v568
      %v631 = vadd.f32 %v629, %v568
      %v632 = vmax.f32 %v570, %v630
      %v633 = vmax.f32 %v571, %v631
      %634 = vst [vmem:[#allocation2] sm:$0xff] %v632
      %635 = vst [vmem:[#allocation2 + $0x8] sm:$0x3f] %v633
      %v636 = vld [vmem:[#allocation2] ss:$2 sm:$0x7f]
      %s637 = scalar_lea.vmem [#allocation2], 1
      %v638 = vld [vmem:[%s637] ss:$2 sm:$0x7f]
      %v639 = vmax.f32 %v636, %v638
      %v640 = vmax.f32 %v639, 0.0
      %v641 = vpack.c.bf16 %v640, %v640
      %vm642 = vcmask 1043456
      %vm643 = vsmask.f32 3328
      %vm644 = vmand %vm642, %vm643
      %v645 = vld [vmem:[%s197] sm:$0xf]
      %v646 = vsel %vm644, %v641, %v645
      %647 = vst [vmem:[%s197] sm:$0xf] %v646
      %v648 = vld [vmem:[%s269] sm:$0xf]
      %v649 = vld [vmem:[%s269 + $0x4] sm:$0xf]
      %s650 = scalar_lea.vmem %s192, 24
      %v651 = vld [vmem:[%s650] sm:$0xf]
      %v652 = vld [vmem:[%s650 + $0x4] sm:$0xf]
      %s653 = scalar_lea.vmem %s192, 32
      %v654 = vld [vmem:[%s653] sm:$0xf]
      %v655 = vld [vmem:[%s653 + $0x4] sm:$0xf]
      %v658 = vunpack.c.l.b16 %v648
      %v659 = vunpack.c.l.b16 %v649
      %v660 = vpack.c.b16 %v659, %v658
      %v664 = vunpack.c.l.b16 %v651
      %v665 = vunpack.c.l.b16 %v652
      %v666 = vpack.c.b16 %v665, %v664
      %v670 = vunpack.c.l.b16 %v654
      %v671 = vunpack.c.l.b16 %v655
      %v672 = vpack.c.b16 %v671, %v670
      %v675 = vshrl.u32 %v660, 16
      %v677 = vshll.u32 %v660, 16
      %v679 = vrot.slane %v677, 1
      %v680 = vor.u32 %v675, %v679
      %v682 = vshrl.u32 %v666, 16
      %v684 = vshll.u32 %v666, 16
      %v686 = vrot.slane %v684, 1
      %v687 = vor.u32 %v682, %v686
      %v691 = vshrl.u32 %v672, 16
      %v693 = vshll.u32 %v672, 16
      %v695 = vrot.slane %v693, 1
      %v696 = vor.u32 %v691, %v695
      %698 = vmatpush.bf16.msra.mxu0 %v449
      %699 = vmatpush.bf16.msra.mxu0 %v448
      %700 = vmatpush.bf16.msra.mxu0 %v447
      %701 = vmatpush.bf16.msra.mxu0 %v446
      %702 = vmatpush.bf16.msra.mxu0 %v445
      %703 = vmatpush.bf16.msra.mxu0 %v444
      %704 = vmatpush.bf16.msra.mxu0 %v443
      %705 = vmatpush.bf16.msra.mxu0 %v442
      %706 = vmatmul.bf16.gmra.mxu0 %v660
      %v707 = vpop.f32.mrf.mxu0
      %v708 = vadd.f32 0.0, %v707
      %v709 = vpop.f32.mrf.mxu0
      %v710 = vadd.f32 0.0, %v709
      %711 = vdwg.mxu0
      %712 = vmatpush.bf16.msra.mxu0 %v457
      %713 = vmatpush.bf16.msra.mxu0 %v456
      %714 = vmatpush.bf16.msra.mxu0 %v455
      %715 = vmatpush.bf16.msra.mxu0 %v454
      %716 = vmatpush.bf16.msra.mxu0 %v453
      %717 = vmatpush.bf16.msra.mxu0 %v452
      %718 = vmatpush.bf16.msra.mxu0 %v451
      %719 = vmatpush.bf16.msra.mxu0 %v450
      %720 = vmatmul.bf16.gmra.mxu0 %v666
      %v721 = vpop.f32.mrf.mxu0
      %v722 = vadd.f32 %v708, %v721
      %v723 = vpop.f32.mrf.mxu0
      %v724 = vadd.f32 %v710, %v723
      %725 = vdwg.mxu0
      %726 = vmatpush.bf16.msra.mxu0 %v465
      %727 = vmatpush.bf16.msra.mxu0 %v464
      %728 = vmatpush.bf16.msra.mxu0 %v463
      %729 = vmatpush.bf16.msra.mxu0 %v462
      %730 = vmatpush.bf16.msra.mxu0 %v461
      %731 = vmatpush.bf16.msra.mxu0 %v460
      %732 = vmatpush.bf16.msra.mxu0 %v459
      %733 = vmatpush.bf16.msra.mxu0 %v458
      %734 = vmatmul.bf16.gmra.mxu0 %v680
      %v735 = vpop.f32.mrf.mxu0
      %v736 = vadd.f32 %v722, %v735
      %v737 = vpop.f32.mrf.mxu0
      %v738 = vadd.f32 %v724, %v737
      %739 = vdwg.mxu0
      %740 = vmatpush.bf16.msra.mxu0 %v473
      %741 = vmatpush.bf16.msra.mxu0 %v472
      %742 = vmatpush.bf16.msra.mxu0 %v471
      %743 = vmatpush.bf16.msra.mxu0 %v470
      %744 = vmatpush.bf16.msra.mxu0 %v469
      %745 = vmatpush.bf16.msra.mxu0 %v468
      %746 = vmatpush.bf16.msra.mxu0 %v467
      %747 = vmatpush.bf16.msra.mxu0 %v466
      %748 = vmatmul.bf16.gmra.mxu0 %v687
      %v749 = vpop.f32.mrf.mxu0
      %v750 = vadd.f32 %v736, %v749
      %v751 = vpop.f32.mrf.mxu0
      %v752 = vadd.f32 %v738, %v751
      %753 = vdwg.mxu0
      %v754 = vmul.f32 %v750, %v563
      %v755 = vmul.f32 %v752, %v563
      %v756 = vadd.f32 %v754, %v568
      %v757 = vadd.f32 %v755, %v568
      %758 = vmatpush.bf16.msra.mxu0 %v449
      %759 = vmatpush.bf16.msra.mxu0 %v448
      %760 = vmatpush.bf16.msra.mxu0 %v447
      %761 = vmatpush.bf16.msra.mxu0 %v446
      %762 = vmatpush.bf16.msra.mxu0 %v445
      %763 = vmatpush.bf16.msra.mxu0 %v444
      %764 = vmatpush.bf16.msra.mxu0 %v443
      %765 = vmatpush.bf16.msra.mxu0 %v442
      %766 = vmatmul.bf16.gmra.mxu0 %v666
      %v767 = vpop.f32.mrf.mxu0
      %v768 = vadd.f32 0.0, %v767
      %v769 = vpop.f32.mrf.mxu0
      %v770 = vadd.f32 0.0, %v769
      %771 = vdwg.mxu0
      %772 = vmatpush.bf16.msra.mxu0 %v457
      %773 = vmatpush.bf16.msra.mxu0 %v456
      %774 = vmatpush.bf16.msra.mxu0 %v455
      %775 = vmatpush.bf16.msra.mxu0 %v454
      %776 = vmatpush.bf16.msra.mxu0 %v453
      %777 = vmatpush.bf16.msra.mxu0 %v452
      %778 = vmatpush.bf16.msra.mxu0 %v451
      %779 = vmatpush.bf16.msra.mxu0 %v450
      %780 = vmatmul.bf16.gmra.mxu0 %v672
      %v781 = vpop.f32.mrf.mxu0
      %v782 = vadd.f32 %v768, %v781
      %v783 = vpop.f32.mrf.mxu0
      %v784 = vadd.f32 %v770, %v783
      %785 = vdwg.mxu0
      %786 = vmatpush.bf16.msra.mxu0 %v465
      %787 = vmatpush.bf16.msra.mxu0 %v464
      %788 = vmatpush.bf16.msra.mxu0 %v463
      %789 = vmatpush.bf16.msra.mxu0 %v462
      %790 = vmatpush.bf16.msra.mxu0 %v461
      %791 = vmatpush.bf16.msra.mxu0 %v460
      %792 = vmatpush.bf16.msra.mxu0 %v459
      %793 = vmatpush.bf16.msra.mxu0 %v458
      %794 = vmatmul.bf16.gmra.mxu0 %v687
      %v795 = vpop.f32.mrf.mxu0
      %v796 = vadd.f32 %v782, %v795
      %v797 = vpop.f32.mrf.mxu0
      %v798 = vadd.f32 %v784, %v797
      %799 = vdwg.mxu0
      %800 = vmatpush.bf16.msra.mxu0 %v473
      %801 = vmatpush.bf16.msra.mxu0 %v472
      %802 = vmatpush.bf16.msra.mxu0 %v471
      %803 = vmatpush.bf16.msra.mxu0 %v470
      %804 = vmatpush.bf16.msra.mxu0 %v469
      %805 = vmatpush.bf16.msra.mxu0 %v468
      %806 = vmatpush.bf16.msra.mxu0 %v467
      %807 = vmatpush.bf16.msra.mxu0 %v466
      %808 = vmatmul.bf16.gmra.mxu0 %v696
      %v809 = vpop.f32.mrf.mxu0
      %v810 = vadd.f32 %v796, %v809
      %v811 = vpop.f32.mrf.mxu0
      %v812 = vadd.f32 %v798, %v811
      %813 = vdwg.mxu0
      %v814 = vmul.f32 %v810, %v563
      %v815 = vmul.f32 %v812, %v563
      %v816 = vadd.f32 %v814, %v568
      %v817 = vadd.f32 %v815, %v568
      %v818 = vmax.f32 %v756, %v816
      %v819 = vmax.f32 %v757, %v817
      %820 = vst [vmem:[#allocation2] sm:$0xff] %v818
      %821 = vst [vmem:[#allocation2 + $0x8] sm:$0x3f] %v819
      %v822 = vld [vmem:[#allocation2] ss:$2 sm:$0x7f]
      %v823 = vld [vmem:[%s637] ss:$2 sm:$0x7f]
      %v824 = vmax.f32 %v822, %v823
      %v825 = vmax.f32 %v824, 0.0
      %v826 = vpack.c.bf16 %v825, %v825
      %s827 = scalar_lea.vmem %s197, 4
      %v828 = vld [vmem:[%s827] sm:$0xf]
      %v829 = vsel %vm644, %v826, %v828
      %830 = vst [vmem:[%s827] sm:$0xf] %v829
      %v831 = vld [vmem:[%s653] sm:$0xf]
      %v832 = vld [vmem:[%s653 + $0x4] sm:$0xf]
      %s833 = scalar_lea.vmem %s192, 40
      %v834 = vld [vmem:[%s833] sm:$0xf]
      %v835 = vld [vmem:[%s833 + $0x4] sm:$0xf]
      %s836 = scalar_lea.vmem %s192, 48
      %v837 = vld [vmem:[%s836] sm:$0xf]
      %v838 = vld [vmem:[%s836 + $0x4] sm:$0xf]
      %v841 = vunpack.c.l.b16 %v831
      %v842 = vunpack.c.l.b16 %v832
      %v843 = vpack.c.b16 %v842, %v841
      %v847 = vunpack.c.l.b16 %v834
      %v848 = vunpack.c.l.b16 %v835
      %v849 = vpack.c.b16 %v848, %v847
      %v853 = vunpack.c.l.b16 %v837
      %v854 = vunpack.c.l.b16 %v838
      %v855 = vpack.c.b16 %v854, %v853
      %v858 = vshrl.u32 %v843, 16
      %v860 = vshll.u32 %v843, 16
      %v862 = vrot.slane %v860, 1
      %v863 = vor.u32 %v858, %v862
      %v865 = vshrl.u32 %v849, 16
      %v867 = vshll.u32 %v849, 16
      %v869 = vrot.slane %v867, 1
      %v870 = vor.u32 %v865, %v869
      %v874 = vshrl.u32 %v855, 16
      %v876 = vshll.u32 %v855, 16
      %v878 = vrot.slane %v876, 1
      %v879 = vor.u32 %v874, %v878
      %881 = vmatpush.bf16.msra.mxu0 %v449
      %882 = vmatpush.bf16.msra.mxu0 %v448
      %883 = vmatpush.bf16.msra.mxu0 %v447
      %884 = vmatpush.bf16.msra.mxu0 %v446
      %885 = vmatpush.bf16.msra.mxu0 %v445
      %886 = vmatpush.bf16.msra.mxu0 %v444
      %887 = vmatpush.bf16.msra.mxu0 %v443
      %888 = vmatpush.bf16.msra.mxu0 %v442
      %889 = vmatmul.bf16.gmra.mxu0 %v843
      %v890 = vpop.f32.mrf.mxu0
      %v891 = vadd.f32 0.0, %v890
      %v892 = vpop.f32.mrf.mxu0
      %v893 = vadd.f32 0.0, %v892
      %894 = vdwg.mxu0
      %895 = vmatpush.bf16.msra.mxu0 %v457
      %896 = vmatpush.bf16.msra.mxu0 %v456
      %897 = vmatpush.bf16.msra.mxu0 %v455
      %898 = vmatpush.bf16.msra.mxu0 %v454
      %899 = vmatpush.bf16.msra.mxu0 %v453
      %900 = vmatpush.bf16.msra.mxu0 %v452
      %901 = vmatpush.bf16.msra.mxu0 %v451
      %902 = vmatpush.bf16.msra.mxu0 %v450
      %903 = vmatmul.bf16.gmra.mxu0 %v849
      %v904 = vpop.f32.mrf.mxu0
      %v905 = vadd.f32 %v891, %v904
      %v906 = vpop.f32.mrf.mxu0
      %v907 = vadd.f32 %v893, %v906
      %908 = vdwg.mxu0
      %909 = vmatpush.bf16.msra.mxu0 %v465
      %910 = vmatpush.bf16.msra.mxu0 %v464
      %911 = vmatpush.bf16.msra.mxu0 %v463
      %912 = vmatpush.bf16.msra.mxu0 %v462
      %913 = vmatpush.bf16.msra.mxu0 %v461
      %914 = vmatpush.bf16.msra.mxu0 %v460
      %915 = vmatpush.bf16.msra.mxu0 %v459
      %916 = vmatpush.bf16.msra.mxu0 %v458
      %917 = vmatmul.bf16.gmra.mxu0 %v863
      %v918 = vpop.f32.mrf.mxu0
      %v919 = vadd.f32 %v905, %v918
      %v920 = vpop.f32.mrf.mxu0
      %v921 = vadd.f32 %v907, %v920
      %922 = vdwg.mxu0
      %923 = vmatpush.bf16.msra.mxu0 %v473
      %924 = vmatpush.bf16.msra.mxu0 %v472
      %925 = vmatpush.bf16.msra.mxu0 %v471
      %926 = vmatpush.bf16.msra.mxu0 %v470
      %927 = vmatpush.bf16.msra.mxu0 %v469
      %928 = vmatpush.bf16.msra.mxu0 %v468
      %929 = vmatpush.bf16.msra.mxu0 %v467
      %930 = vmatpush.bf16.msra.mxu0 %v466
      %931 = vmatmul.bf16.gmra.mxu0 %v870
      %v932 = vpop.f32.mrf.mxu0
      %v933 = vadd.f32 %v919, %v932
      %v934 = vpop.f32.mrf.mxu0
      %v935 = vadd.f32 %v921, %v934
      %936 = vdwg.mxu0
      %v937 = vmul.f32 %v933, %v563
      %v938 = vmul.f32 %v935, %v563
      %v939 = vadd.f32 %v937, %v568
      %v940 = vadd.f32 %v938, %v568
      %941 = vmatpush.bf16.msra.mxu0 %v449
      %942 = vmatpush.bf16.msra.mxu0 %v448
      %943 = vmatpush.bf16.msra.mxu0 %v447
      %944 = vmatpush.bf16.msra.mxu0 %v446
      %945 = vmatpush.bf16.msra.mxu0 %v445
      %946 = vmatpush.bf16.msra.mxu0 %v444
      %947 = vmatpush.bf16.msra.mxu0 %v443
      %948 = vmatpush.bf16.msra.mxu0 %v442
      %949 = vmatmul.bf16.gmra.mxu0 %v849
      %v950 = vpop.f32.mrf.mxu0
      %v951 = vadd.f32 0.0, %v950
      %v952 = vpop.f32.mrf.mxu0
      %v953 = vadd.f32 0.0, %v952
      %954 = vdwg.mxu0
      %955 = vmatpush.bf16.msra.mxu0 %v457
      %956 = vmatpush.bf16.msra.mxu0 %v456
      %957 = vmatpush.bf16.msra.mxu0 %v455
      %958 = vmatpush.bf16.msra.mxu0 %v454
      %959 = vmatpush.bf16.msra.mxu0 %v453
      %960 = vmatpush.bf16.msra.mxu0 %v452
      %961 = vmatpush.bf16.msra.mxu0 %v451
      %962 = vmatpush.bf16.msra.mxu0 %v450
      %963 = vmatmul.bf16.gmra.mxu0 %v855
      %v964 = vpop.f32.mrf.mxu0
      %v965 = vadd.f32 %v951, %v964
      %v966 = vpop.f32.mrf.mxu0
      %v967 = vadd.f32 %v953, %v966
      %968 = vdwg.mxu0
      %969 = vmatpush.bf16.msra.mxu0 %v465
      %970 = vmatpush.bf16.msra.mxu0 %v464
      %971 = vmatpush.bf16.msra.mxu0 %v463
      %972 = vmatpush.bf16.msra.mxu0 %v462
      %973 = vmatpush.bf16.msra.mxu0 %v461
      %974 = vmatpush.bf16.msra.mxu0 %v460
      %975 = vmatpush.bf16.msra.mxu0 %v459
      %976 = vmatpush.bf16.msra.mxu0 %v458
      %977 = vmatmul.bf16.gmra.mxu0 %v870
      %v978 = vpop.f32.mrf.mxu0
      %v979 = vadd.f32 %v965, %v978
      %v980 = vpop.f32.mrf.mxu0
      %v981 = vadd.f32 %v967, %v980
      %982 = vdwg.mxu0
      %983 = vmatpush.bf16.msra.mxu0 %v473
      %984 = vmatpush.bf16.msra.mxu0 %v472
      %985 = vmatpush.bf16.msra.mxu0 %v471
      %986 = vmatpush.bf16.msra.mxu0 %v470
      %987 = vmatpush.bf16.msra.mxu0 %v469
      %988 = vmatpush.bf16.msra.mxu0 %v468
      %989 = vmatpush.bf16.msra.mxu0 %v467
      %990 = vmatpush.bf16.msra.mxu0 %v466
      %991 = vmatmul.bf16.gmra.mxu0 %v879
      %v992 = vpop.f32.mrf.mxu0
      %v993 = vadd.f32 %v979, %v992
      %v994 = vpop.f32.mrf.mxu0
      %v995 = vadd.f32 %v981, %v994
      %996 = vdwg.mxu0
      %v997 = vmul.f32 %v993, %v563
      %v998 = vmul.f32 %v995, %v563
      %v999 = vadd.f32 %v997, %v568
      %v1000 = vadd.f32 %v998, %v568
      %v1001 = vmax.f32 %v939, %v999
      %v1002 = vmax.f32 %v940, %v1000
      %1003 = vst [vmem:[#allocation2] sm:$0xff] %v1001
      %1004 = vst [vmem:[#allocation2 + $0x8] sm:$0x3f] %v1002
      %v1005 = vld [vmem:[#allocation2] ss:$2 sm:$0x7f]
      %v1006 = vld [vmem:[%s637] ss:$2 sm:$0x7f]
      %v1007 = vmax.f32 %v1005, %v1006
      %v1008 = vmax.f32 %v1007, 0.0
      %v1009 = vpack.c.bf16 %v1008, %v1008
      %s1010 = scalar_lea.vmem %s197, 8
      %v1011 = vld [vmem:[%s1010] sm:$0xf]
      %v1012 = vsel %vm644, %v1009, %v1011
      %1013 = vst [vmem:[%s1010] sm:$0xf] %v1012
      %v1014 = vld [vmem:[%s836] sm:$0xf]
      %v1015 = vld [vmem:[%s836 + $0x4] sm:$0xf]
      %s1016 = scalar_lea.vmem %s192, 56
      %v1017 = vld [vmem:[%s1016] sm:$0xf]
      %v1018 = vld [vmem:[%s1016 + $0x4] sm:$0xf]
      %s1019 = scalar_lea.vmem %s192, 64
      %v1020 = vld [vmem:[%s1019] sm:$0xf]
      %v1021 = vld [vmem:[%s1019 + $0x4] sm:$0xf]
      %v1024 = vunpack.c.l.b16 %v1014
      %v1025 = vunpack.c.l.b16 %v1015
      %v1026 = vpack.c.b16 %v1025, %v1024
      %v1030 = vunpack.c.l.b16 %v1017
      %v1031 = vunpack.c.l.b16 %v1018
      %v1032 = vpack.c.b16 %v1031, %v1030
      %v1036 = vunpack.c.l.b16 %v1020
      %v1037 = vunpack.c.l.b16 %v1021
      %v1038 = vpack.c.b16 %v1037, %v1036
      %v1041 = vshrl.u32 %v1026, 16
      %v1043 = vshll.u32 %v1026, 16
      %v1045 = vrot.slane %v1043, 1
      %v1046 = vor.u32 %v1041, %v1045
      %v1048 = vshrl.u32 %v1032, 16
      %v1050 = vshll.u32 %v1032, 16
      %v1052 = vrot.slane %v1050, 1
      %v1053 = vor.u32 %v1048, %v1052
      %v1057 = vshrl.u32 %v1038, 16
      %v1059 = vshll.u32 %v1038, 16
      %v1061 = vrot.slane %v1059, 1
      %v1062 = vor.u32 %v1057, %v1061
      %1064 = vmatpush.bf16.msra.mxu0 %v449
      %1065 = vmatpush.bf16.msra.mxu0 %v448
      %1066 = vmatpush.bf16.msra.mxu0 %v447
      %1067 = vmatpush.bf16.msra.mxu0 %v446
      %1068 = vmatpush.bf16.msra.mxu0 %v445
      %1069 = vmatpush.bf16.msra.mxu0 %v444
      %1070 = vmatpush.bf16.msra.mxu0 %v443
      %1071 = vmatpush.bf16.msra.mxu0 %v442
      %1072 = vmatmul.bf16.gmra.mxu0 %v1026
      %v1073 = vpop.f32.mrf.mxu0
      %v1074 = vadd.f32 0.0, %v1073
      %v1075 = vpop.f32.mrf.mxu0
      %v1076 = vadd.f32 0.0, %v1075
      %1077 = vdwg.mxu0
      %1078 = vmatpush.bf16.msra.mxu0 %v457
      %1079 = vmatpush.bf16.msra.mxu0 %v456
      %1080 = vmatpush.bf16.msra.mxu0 %v455
      %1081 = vmatpush.bf16.msra.mxu0 %v454
      %1082 = vmatpush.bf16.msra.mxu0 %v453
      %1083 = vmatpush.bf16.msra.mxu0 %v452
      %1084 = vmatpush.bf16.msra.mxu0 %v451
      %1085 = vmatpush.bf16.msra.mxu0 %v450
      %1086 = vmatmul.bf16.gmra.mxu0 %v1032
      %v1087 = vpop.f32.mrf.mxu0
      %v1088 = vadd.f32 %v1074, %v1087
      %v1089 = vpop.f32.mrf.mxu0
      %v1090 = vadd.f32 %v1076, %v1089
      %1091 = vdwg.mxu0
      %1092 = vmatpush.bf16.msra.mxu0 %v465
      %1093 = vmatpush.bf16.msra.mxu0 %v464
      %1094 = vmatpush.bf16.msra.mxu0 %v463
      %1095 = vmatpush.bf16.msra.mxu0 %v462
      %1096 = vmatpush.bf16.msra.mxu0 %v461
      %1097 = vmatpush.bf16.msra.mxu0 %v460
      %1098 = vmatpush.bf16.msra.mxu0 %v459
      %1099 = vmatpush.bf16.msra.mxu0 %v458
      %1100 = vmatmul.bf16.gmra.mxu0 %v1046
      %v1101 = vpop.f32.mrf.mxu0
      %v1102 = vadd.f32 %v1088, %v1101
      %v1103 = vpop.f32.mrf.mxu0
      %v1104 = vadd.f32 %v1090, %v1103
      %1105 = vdwg.mxu0
      %1106 = vmatpush.bf16.msra.mxu0 %v473
      %1107 = vmatpush.bf16.msra.mxu0 %v472
      %1108 = vmatpush.bf16.msra.mxu0 %v471
      %1109 = vmatpush.bf16.msra.mxu0 %v470
      %1110 = vmatpush.bf16.msra.mxu0 %v469
      %1111 = vmatpush.bf16.msra.mxu0 %v468
      %1112 = vmatpush.bf16.msra.mxu0 %v467
      %1113 = vmatpush.bf16.msra.mxu0 %v466
      %1114 = vmatmul.bf16.gmra.mxu0 %v1053
      %v1115 = vpop.f32.mrf.mxu0
      %v1116 = vadd.f32 %v1102, %v1115
      %v1117 = vpop.f32.mrf.mxu0
      %v1118 = vadd.f32 %v1104, %v1117
      %1119 = vdwg.mxu0
      %v1120 = vmul.f32 %v1116, %v563
      %v1121 = vmul.f32 %v1118, %v563
      %v1122 = vadd.f32 %v1120, %v568
      %v1123 = vadd.f32 %v1121, %v568
      %1124 = vmatpush.bf16.msra.mxu0 %v449
      %1125 = vmatpush.bf16.msra.mxu0 %v448
      %1126 = vmatpush.bf16.msra.mxu0 %v447
      %1127 = vmatpush.bf16.msra.mxu0 %v446
      %1128 = vmatpush.bf16.msra.mxu0 %v445
      %1129 = vmatpush.bf16.msra.mxu0 %v444
      %1130 = vmatpush.bf16.msra.mxu0 %v443
      %1131 = vmatpush.bf16.msra.mxu0 %v442
      %1132 = vmatmul.bf16.gmra.mxu0 %v1032
      %v1133 = vpop.f32.mrf.mxu0
      %v1134 = vadd.f32 0.0, %v1133
      %v1135 = vpop.f32.mrf.mxu0
      %v1136 = vadd.f32 0.0, %v1135
      %1137 = vdwg.mxu0
      %1138 = vmatpush.bf16.msra.mxu0 %v457
      %1139 = vmatpush.bf16.msra.mxu0 %v456
      %1140 = vmatpush.bf16.msra.mxu0 %v455
      %1141 = vmatpush.bf16.msra.mxu0 %v454
      %1142 = vmatpush.bf16.msra.mxu0 %v453
      %1143 = vmatpush.bf16.msra.mxu0 %v452
      %1144 = vmatpush.bf16.msra.mxu0 %v451
      %1145 = vmatpush.bf16.msra.mxu0 %v450
      %1146 = vmatmul.bf16.gmra.mxu0 %v1038
      %v1147 = vpop.f32.mrf.mxu0
      %v1148 = vadd.f32 %v1134, %v1147
      %v1149 = vpop.f32.mrf.mxu0
      %v1150 = vadd.f32 %v1136, %v1149
      %1151 = vdwg.mxu0
      %1152 = vmatpush.bf16.msra.mxu0 %v465
      %1153 = vmatpush.bf16.msra.mxu0 %v464
      %1154 = vmatpush.bf16.msra.mxu0 %v463
      %1155 = vmatpush.bf16.msra.mxu0 %v462
      %1156 = vmatpush.bf16.msra.mxu0 %v461
      %1157 = vmatpush.bf16.msra.mxu0 %v460
      %1158 = vmatpush.bf16.msra.mxu0 %v459
      %1159 = vmatpush.bf16.msra.mxu0 %v458
      %1160 = vmatmul.bf16.gmra.mxu0 %v1053
      %v1161 = vpop.f32.mrf.mxu0
      %v1162 = vadd.f32 %v1148, %v1161
      %v1163 = vpop.f32.mrf.mxu0
      %v1164 = vadd.f32 %v1150, %v1163
      %1165 = vdwg.mxu0
      %1166 = vmatpush.bf16.msra.mxu0 %v473
      %1167 = vmatpush.bf16.msra.mxu0 %v472
      %1168 = vmatpush.bf16.msra.mxu0 %v471
      %1169 = vmatpush.bf16.msra.mxu0 %v470
      %1170 = vmatpush.bf16.msra.mxu0 %v469
      %1171 = vmatpush.bf16.msra.mxu0 %v468
      %1172 = vmatpush.bf16.msra.mxu0 %v467
      %1173 = vmatpush.bf16.msra.mxu0 %v466
      %1174 = vmatmul.bf16.gmra.mxu0 %v1062
      %v1175 = vpop.f32.mrf.mxu0
      %v1176 = vadd.f32 %v1162, %v1175
      %v1177 = vpop.f32.mrf.mxu0
      %v1178 = vadd.f32 %v1164, %v1177
      %1179 = vdwg.mxu0
      %v1180 = vmul.f32 %v1176, %v563
      %v1181 = vmul.f32 %v1178, %v563
      %v1182 = vadd.f32 %v1180, %v568
      %v1183 = vadd.f32 %v1181, %v568
      %v1184 = vmax.f32 %v1122, %v1182
      %v1185 = vmax.f32 %v1123, %v1183
      %1186 = vst [vmem:[#allocation2] sm:$0xff] %v1184
      %1187 = vst [vmem:[#allocation2 + $0x8] sm:$0x3f] %v1185
      %v1188 = vld [vmem:[#allocation2] ss:$2 sm:$0x7f]
      %v1189 = vld [vmem:[%s637] ss:$2 sm:$0x7f]
      %v1190 = vmax.f32 %v1188, %v1189
      %v1191 = vmax.f32 %v1190, 0.0
      %v1192 = vpack.c.bf16 %v1191, %v1191
      %s1193 = scalar_lea.vmem %s197, 12
      %v1194 = vld [vmem:[%s1193] sm:$0xf]
      %v1195 = vsel %vm644, %v1192, %v1194
      %1196 = vst [vmem:[%s1193] sm:$0xf] %v1195
      %v1197 = vld [vmem:[%s1019] sm:$0xf]
      %v1198 = vld [vmem:[%s1019 + $0x4] sm:$0xf]
      %s1199 = scalar_lea.vmem %s192, 72
      %v1200 = vld [vmem:[%s1199] sm:$0xf]
      %v1201 = vld [vmem:[%s1199 + $0x4] sm:$0xf]
      %s1202 = scalar_lea.vmem %s192, 80
      %v1203 = vld [vmem:[%s1202] sm:$0xf]
      %v1204 = vld [vmem:[%s1202 + $0x4] sm:$0xf]
      %v1207 = vunpack.c.l.b16 %v1197
      %v1208 = vunpack.c.l.b16 %v1198
      %v1209 = vpack.c.b16 %v1208, %v1207
      %v1213 = vunpack.c.l.b16 %v1200
      %v1214 = vunpack.c.l.b16 %v1201
      %v1215 = vpack.c.b16 %v1214, %v1213
      %v1219 = vunpack.c.l.b16 %v1203
      %v1220 = vunpack.c.l.b16 %v1204
      %v1221 = vpack.c.b16 %v1220, %v1219
      %v1224 = vshrl.u32 %v1209, 16
      %v1226 = vshll.u32 %v1209, 16
      %v1228 = vrot.slane %v1226, 1
      %v1229 = vor.u32 %v1224, %v1228
      %v1231 = vshrl.u32 %v1215, 16
      %v1233 = vshll.u32 %v1215, 16
      %v1235 = vrot.slane %v1233, 1
      %v1236 = vor.u32 %v1231, %v1235
      %v1240 = vshrl.u32 %v1221, 16
      %v1242 = vshll.u32 %v1221, 16
      %v1244 = vrot.slane %v1242, 1
      %v1245 = vor.u32 %v1240, %v1244
      %1247 = vmatpush.bf16.msra.mxu0 %v449
      %1248 = vmatpush.bf16.msra.mxu0 %v448
      %1249 = vmatpush.bf16.msra.mxu0 %v447
      %1250 = vmatpush.bf16.msra.mxu0 %v446
      %1251 = vmatpush.bf16.msra.mxu0 %v445
      %1252 = vmatpush.bf16.msra.mxu0 %v444
      %1253 = vmatpush.bf16.msra.mxu0 %v443
      %1254 = vmatpush.bf16.msra.mxu0 %v442
      %1255 = vmatmul.bf16.gmra.mxu0 %v1209
      %v1256 = vpop.f32.mrf.mxu0
      %v1257 = vadd.f32 0.0, %v1256
      %v1258 = vpop.f32.mrf.mxu0
      %v1259 = vadd.f32 0.0, %v1258
      %1260 = vdwg.mxu0
      %1261 = vmatpush.bf16.msra.mxu0 %v457
      %1262 = vmatpush.bf16.msra.mxu0 %v456
      %1263 = vmatpush.bf16.msra.mxu0 %v455
      %1264 = vmatpush.bf16.msra.mxu0 %v454
      %1265 = vmatpush.bf16.msra.mxu0 %v453
      %1266 = vmatpush.bf16.msra.mxu0 %v452
      %1267 = vmatpush.bf16.msra.mxu0 %v451
      %1268 = vmatpush.bf16.msra.mxu0 %v450
      %1269 = vmatmul.bf16.gmra.mxu0 %v1215
      %v1270 = vpop.f32.mrf.mxu0
      %v1271 = vadd.f32 %v1257, %v1270
      %v1272 = vpop.f32.mrf.mxu0
      %v1273 = vadd.f32 %v1259, %v1272
      %1274 = vdwg.mxu0
      %1275 = vmatpush.bf16.msra.mxu0 %v465
      %1276 = vmatpush.bf16.msra.mxu0 %v464
      %1277 = vmatpush.bf16.msra.mxu0 %v463
      %1278 = vmatpush.bf16.msra.mxu0 %v462
      %1279 = vmatpush.bf16.msra.mxu0 %v461
      %1280 = vmatpush.bf16.msra.mxu0 %v460
      %1281 = vmatpush.bf16.msra.mxu0 %v459
      %1282 = vmatpush.bf16.msra.mxu0 %v458
      %1283 = vmatmul.bf16.gmra.mxu0 %v1229
      %v1284 = vpop.f32.mrf.mxu0
      %v1285 = vadd.f32 %v1271, %v1284
      %v1286 = vpop.f32.mrf.mxu0
      %v1287 = vadd.f32 %v1273, %v1286
      %1288 = vdwg.mxu0
      %1289 = vmatpush.bf16.msra.mxu0 %v473
      %1290 = vmatpush.bf16.msra.mxu0 %v472
      %1291 = vmatpush.bf16.msra.mxu0 %v471
      %1292 = vmatpush.bf16.msra.mxu0 %v470
      %1293 = vmatpush.bf16.msra.mxu0 %v469
      %1294 = vmatpush.bf16.msra.mxu0 %v468
      %1295 = vmatpush.bf16.msra.mxu0 %v467
      %1296 = vmatpush.bf16.msra.mxu0 %v466
      %1297 = vmatmul.bf16.gmra.mxu0 %v1236
      %v1298 = vpop.f32.mrf.mxu0
      %v1299 = vadd.f32 %v1285, %v1298
      %v1300 = vpop.f32.mrf.mxu0
      %v1301 = vadd.f32 %v1287, %v1300
      %1302 = vdwg.mxu0
      %v1303 = vmul.f32 %v1299, %v563
      %v1304 = vmul.f32 %v1301, %v563
      %v1305 = vadd.f32 %v1303, %v568
      %v1306 = vadd.f32 %v1304, %v568
      %1307 = vmatpush.bf16.msra.mxu0 %v449
      %1308 = vmatpush.bf16.msra.mxu0 %v448
      %1309 = vmatpush.bf16.msra.mxu0 %v447
      %1310 = vmatpush.bf16.msra.mxu0 %v446
      %1311 = vmatpush.bf16.msra.mxu0 %v445
      %1312 = vmatpush.bf16.msra.mxu0 %v444
      %1313 = vmatpush.bf16.msra.mxu0 %v443
      %1314 = vmatpush.bf16.msra.mxu0 %v442
      %1315 = vmatmul.bf16.gmra.mxu0 %v1215
      %v1316 = vpop.f32.mrf.mxu0
      %v1317 = vadd.f32 0.0, %v1316
      %v1318 = vpop.f32.mrf.mxu0
      %v1319 = vadd.f32 0.0, %v1318
      %1320 = vdwg.mxu0
      %1321 = vmatpush.bf16.msra.mxu0 %v457
      %1322 = vmatpush.bf16.msra.mxu0 %v456
      %1323 = vmatpush.bf16.msra.mxu0 %v455
      %1324 = vmatpush.bf16.msra.mxu0 %v454
      %1325 = vmatpush.bf16.msra.mxu0 %v453
      %1326 = vmatpush.bf16.msra.mxu0 %v452
      %1327 = vmatpush.bf16.msra.mxu0 %v451
      %1328 = vmatpush.bf16.msra.mxu0 %v450
      %1329 = vmatmul.bf16.gmra.mxu0 %v1221
      %v1330 = vpop.f32.mrf.mxu0
      %v1331 = vadd.f32 %v1317, %v1330
      %v1332 = vpop.f32.mrf.mxu0
      %v1333 = vadd.f32 %v1319, %v1332
      %1334 = vdwg.mxu0
      %1335 = vmatpush.bf16.msra.mxu0 %v465
      %1336 = vmatpush.bf16.msra.mxu0 %v464
      %1337 = vmatpush.bf16.msra.mxu0 %v463
      %1338 = vmatpush.bf16.msra.mxu0 %v462
      %1339 = vmatpush.bf16.msra.mxu0 %v461
      %1340 = vmatpush.bf16.msra.mxu0 %v460
      %1341 = vmatpush.bf16.msra.mxu0 %v459
      %1342 = vmatpush.bf16.msra.mxu0 %v458
      %1343 = vmatmul.bf16.gmra.mxu0 %v1236
      %v1344 = vpop.f32.mrf.mxu0
      %v1345 = vadd.f32 %v1331, %v1344
      %v1346 = vpop.f32.mrf.mxu0
      %v1347 = vadd.f32 %v1333, %v1346
      %1348 = vdwg.mxu0
      %1349 = vmatpush.bf16.msra.mxu0 %v473
      %1350 = vmatpush.bf16.msra.mxu0 %v472
      %1351 = vmatpush.bf16.msra.mxu0 %v471
      %1352 = vmatpush.bf16.msra.mxu0 %v470
      %1353 = vmatpush.bf16.msra.mxu0 %v469
      %1354 = vmatpush.bf16.msra.mxu0 %v468
      %1355 = vmatpush.bf16.msra.mxu0 %v467
      %1356 = vmatpush.bf16.msra.mxu0 %v466
      %1357 = vmatmul.bf16.gmra.mxu0 %v1245
      %v1358 = vpop.f32.mrf.mxu0
      %v1359 = vadd.f32 %v1345, %v1358
      %v1360 = vpop.f32.mrf.mxu0
      %v1361 = vadd.f32 %v1347, %v1360
      %1362 = vdwg.mxu0
      %v1363 = vmul.f32 %v1359, %v563
      %v1364 = vmul.f32 %v1361, %v563
      %v1365 = vadd.f32 %v1363, %v568
      %v1366 = vadd.f32 %v1364, %v568
      %v1367 = vmax.f32 %v1305, %v1365
      %v1368 = vmax.f32 %v1306, %v1366
      %1369 = vst [vmem:[#allocation2] sm:$0xff] %v1367
      %1370 = vst [vmem:[#allocation2 + $0x8] sm:$0x3f] %v1368
      %v1371 = vld [vmem:[#allocation2] ss:$2 sm:$0x7f]
      %v1372 = vld [vmem:[%s637] ss:$2 sm:$0x7f]
      %v1373 = vmax.f32 %v1371, %v1372
      %v1374 = vmax.f32 %v1373, 0.0
      %v1375 = vpack.c.bf16 %v1374, %v1374
      %s1376 = scalar_lea.vmem %s197, 16
      %v1377 = vld [vmem:[%s1376] sm:$0xf]
      %v1378 = vsel %vm644, %v1375, %v1377
      %1379 = vst [vmem:[%s1376] sm:$0xf] %v1378
      %v1380 = vld [vmem:[%s1202] sm:$0xf]
      %v1381 = vld [vmem:[%s1202 + $0x4] sm:$0xf]
      %s1382 = scalar_lea.vmem %s192, 88
      %v1383 = vld [vmem:[%s1382] sm:$0xf]
      %v1384 = vld [vmem:[%s1382 + $0x4] sm:$0xf]
      %s1385 = scalar_lea.vmem %s192, 96
      %v1386 = vld [vmem:[%s1385] sm:$0xf]
      %v1387 = vld [vmem:[%s1385 + $0x4] sm:$0xf]
      %v1390 = vunpack.c.l.b16 %v1380
      %v1391 = vunpack.c.l.b16 %v1381
      %v1392 = vpack.c.b16 %v1391, %v1390
      %v1396 = vunpack.c.l.b16 %v1383
      %v1397 = vunpack.c.l.b16 %v1384
      %v1398 = vpack.c.b16 %v1397, %v1396
      %v1402 = vunpack.c.l.b16 %v1386
      %v1403 = vunpack.c.l.b16 %v1387
      %v1404 = vpack.c.b16 %v1403, %v1402
      %v1407 = vshrl.u32 %v1392, 16
      %v1409 = vshll.u32 %v1392, 16
      %v1411 = vrot.slane %v1409, 1
      %v1412 = vor.u32 %v1407, %v1411
      %v1414 = vshrl.u32 %v1398, 16
      %v1416 = vshll.u32 %v1398, 16
      %v1418 = vrot.slane %v1416, 1
      %v1419 = vor.u32 %v1414, %v1418
      %v1423 = vshrl.u32 %v1404, 16
      %v1425 = vshll.u32 %v1404, 16
      %v1427 = vrot.slane %v1425, 1
      %v1428 = vor.u32 %v1423, %v1427
      %1430 = vmatpush.bf16.msra.mxu0 %v449
      %1431 = vmatpush.bf16.msra.mxu0 %v448
      %1432 = vmatpush.bf16.msra.mxu0 %v447
      %1433 = vmatpush.bf16.msra.mxu0 %v446
      %1434 = vmatpush.bf16.msra.mxu0 %v445
      %1435 = vmatpush.bf16.msra.mxu0 %v444
      %1436 = vmatpush.bf16.msra.mxu0 %v443
      %1437 = vmatpush.bf16.msra.mxu0 %v442
      %1438 = vmatmul.bf16.gmra.mxu0 %v1392
      %v1439 = vpop.f32.mrf.mxu0
      %v1440 = vadd.f32 0.0, %v1439
      %v1441 = vpop.f32.mrf.mxu0
      %v1442 = vadd.f32 0.0, %v1441
      %1443 = vdwg.mxu0
      %1444 = vmatpush.bf16.msra.mxu0 %v457
      %1445 = vmatpush.bf16.msra.mxu0 %v456
      %1446 = vmatpush.bf16.msra.mxu0 %v455
      %1447 = vmatpush.bf16.msra.mxu0 %v454
      %1448 = vmatpush.bf16.msra.mxu0 %v453
      %1449 = vmatpush.bf16.msra.mxu0 %v452
      %1450 = vmatpush.bf16.msra.mxu0 %v451
      %1451 = vmatpush.bf16.msra.mxu0 %v450
      %1452 = vmatmul.bf16.gmra.mxu0 %v1398
      %v1453 = vpop.f32.mrf.mxu0
      %v1454 = vadd.f32 %v1440, %v1453
      %v1455 = vpop.f32.mrf.mxu0
      %v1456 = vadd.f32 %v1442, %v1455
      %1457 = vdwg.mxu0
      %1458 = vmatpush.bf16.msra.mxu0 %v465
      %1459 = vmatpush.bf16.msra.mxu0 %v464
      %1460 = vmatpush.bf16.msra.mxu0 %v463
      %1461 = vmatpush.bf16.msra.mxu0 %v462
      %1462 = vmatpush.bf16.msra.mxu0 %v461
      %1463 = vmatpush.bf16.msra.mxu0 %v460
      %1464 = vmatpush.bf16.msra.mxu0 %v459
      %1465 = vmatpush.bf16.msra.mxu0 %v458
      %1466 = vmatmul.bf16.gmra.mxu0 %v1412
      %v1467 = vpop.f32.mrf.mxu0
      %v1468 = vadd.f32 %v1454, %v1467
      %v1469 = vpop.f32.mrf.mxu0
      %v1470 = vadd.f32 %v1456, %v1469
      %1471 = vdwg.mxu0
      %1472 = vmatpush.bf16.msra.mxu0 %v473
      %1473 = vmatpush.bf16.msra.mxu0 %v472
      %1474 = vmatpush.bf16.msra.mxu0 %v471
      %1475 = vmatpush.bf16.msra.mxu0 %v470
      %1476 = vmatpush.bf16.msra.mxu0 %v469
      %1477 = vmatpush.bf16.msra.mxu0 %v468
      %1478 = vmatpush.bf16.msra.mxu0 %v467
      %1479 = vmatpush.bf16.msra.mxu0 %v466
      %1480 = vmatmul.bf16.gmra.mxu0 %v1419
      %v1481 = vpop.f32.mrf.mxu0
      %v1482 = vadd.f32 %v1468, %v1481
      %v1483 = vpop.f32.mrf.mxu0
      %v1484 = vadd.f32 %v1470, %v1483
      %1485 = vdwg.mxu0
      %v1486 = vmul.f32 %v1482, %v563
      %v1487 = vmul.f32 %v1484, %v563
      %v1488 = vadd.f32 %v1486, %v568
      %v1489 = vadd.f32 %v1487, %v568
      %1490 = vmatpush.bf16.msra.mxu0 %v449
      %1491 = vmatpush.bf16.msra.mxu0 %v448
      %1492 = vmatpush.bf16.msra.mxu0 %v447
      %1493 = vmatpush.bf16.msra.mxu0 %v446
      %1494 = vmatpush.bf16.msra.mxu0 %v445
      %1495 = vmatpush.bf16.msra.mxu0 %v444
      %1496 = vmatpush.bf16.msra.mxu0 %v443
      %1497 = vmatpush.bf16.msra.mxu0 %v442
      %1498 = vmatmul.bf16.gmra.mxu0 %v1398
      %v1499 = vpop.f32.mrf.mxu0
      %v1500 = vadd.f32 0.0, %v1499
      %v1501 = vpop.f32.mrf.mxu0
      %v1502 = vadd.f32 0.0, %v1501
      %1503 = vdwg.mxu0
      %1504 = vmatpush.bf16.msra.mxu0 %v457
      %1505 = vmatpush.bf16.msra.mxu0 %v456
      %1506 = vmatpush.bf16.msra.mxu0 %v455
      %1507 = vmatpush.bf16.msra.mxu0 %v454
      %1508 = vmatpush.bf16.msra.mxu0 %v453
      %1509 = vmatpush.bf16.msra.mxu0 %v452
      %1510 = vmatpush.bf16.msra.mxu0 %v451
      %1511 = vmatpush.bf16.msra.mxu0 %v450
      %1512 = vmatmul.bf16.gmra.mxu0 %v1404
      %v1513 = vpop.f32.mrf.mxu0
      %v1514 = vadd.f32 %v1500, %v1513
      %v1515 = vpop.f32.mrf.mxu0
      %v1516 = vadd.f32 %v1502, %v1515
      %1517 = vdwg.mxu0
      %1518 = vmatpush.bf16.msra.mxu0 %v465
      %1519 = vmatpush.bf16.msra.mxu0 %v464
      %1520 = vmatpush.bf16.msra.mxu0 %v463
      %1521 = vmatpush.bf16.msra.mxu0 %v462
      %1522 = vmatpush.bf16.msra.mxu0 %v461
      %1523 = vmatpush.bf16.msra.mxu0 %v460
      %1524 = vmatpush.bf16.msra.mxu0 %v459
      %1525 = vmatpush.bf16.msra.mxu0 %v458
      %1526 = vmatmul.bf16.gmra.mxu0 %v1419
      %v1527 = vpop.f32.mrf.mxu0
      %v1528 = vadd.f32 %v1514, %v1527
      %v1529 = vpop.f32.mrf.mxu0
      %v1530 = vadd.f32 %v1516, %v1529
      %1531 = vdwg.mxu0
      %1532 = vmatpush.bf16.msra.mxu0 %v473
      %1533 = vmatpush.bf16.msra.mxu0 %v472
      %1534 = vmatpush.bf16.msra.mxu0 %v471
      %1535 = vmatpush.bf16.msra.mxu0 %v470
      %1536 = vmatpush.bf16.msra.mxu0 %v469
      %1537 = vmatpush.bf16.msra.mxu0 %v468
      %1538 = vmatpush.bf16.msra.mxu0 %v467
      %1539 = vmatpush.bf16.msra.mxu0 %v466
      %1540 = vmatmul.bf16.gmra.mxu0 %v1428
      %v1541 = vpop.f32.mrf.mxu0
      %v1542 = vadd.f32 %v1528, %v1541
      %v1543 = vpop.f32.mrf.mxu0
      %v1544 = vadd.f32 %v1530, %v1543
      %1545 = vdwg.mxu0
      %v1546 = vmul.f32 %v1542, %v563
      %v1547 = vmul.f32 %v1544, %v563
      %v1548 = vadd.f32 %v1546, %v568
      %v1549 = vadd.f32 %v1547, %v568
      %v1550 = vmax.f32 %v1488, %v1548
      %v1551 = vmax.f32 %v1489, %v1549
      %1552 = vst [vmem:[#allocation2] sm:$0xff] %v1550
      %1553 = vst [vmem:[#allocation2 + $0x8] sm:$0x3f] %v1551
      %v1554 = vld [vmem:[#allocation2] ss:$2 sm:$0x7f]
      %v1555 = vld [vmem:[%s637] ss:$2 sm:$0x7f]
      %v1556 = vmax.f32 %v1554, %v1555
      %v1557 = vmax.f32 %v1556, 0.0
      %v1558 = vpack.c.bf16 %v1557, %v1557
      %s1559 = scalar_lea.vmem %s197, 20
      %v1560 = vld [vmem:[%s1559] sm:$0xf]
      %v1561 = vsel %vm644, %v1558, %v1560
      %1562 = vst [vmem:[%s1559] sm:$0xf] %v1561
      %v1563 = vld [vmem:[%s1385] sm:$0xf]
      %v1564 = vld [vmem:[%s1385 + $0x4] sm:$0xf]
      %s1565 = scalar_lea.vmem %s192, 104
      %v1566 = vld [vmem:[%s1565] sm:$0xf]
      %v1567 = vld [vmem:[%s1565 + $0x4] sm:$0xf]
      %s1568 = scalar_lea.vmem %s192, 112
      %v1569 = vld [vmem:[%s1568] sm:$0xf]
      %v1570 = vld [vmem:[%s1568 + $0x4] sm:$0xf]
      %v1573 = vunpack.c.l.b16 %v1563
      %v1574 = vunpack.c.l.b16 %v1564
      %v1575 = vpack.c.b16 %v1574, %v1573
      %v1579 = vunpack.c.l.b16 %v1566
      %v1580 = vunpack.c.l.b16 %v1567
      %v1581 = vpack.c.b16 %v1580, %v1579
      %v1585 = vunpack.c.l.b16 %v1569
      %v1586 = vunpack.c.l.b16 %v1570
      %v1587 = vpack.c.b16 %v1586, %v1585
      %v1590 = vshrl.u32 %v1575, 16
      %v1592 = vshll.u32 %v1575, 16
      %v1594 = vrot.slane %v1592, 1
      %v1595 = vor.u32 %v1590, %v1594
      %v1597 = vshrl.u32 %v1581, 16
      %v1599 = vshll.u32 %v1581, 16
      %v1601 = vrot.slane %v1599, 1
      %v1602 = vor.u32 %v1597, %v1601
      %v1606 = vshrl.u32 %v1587, 16
      %v1608 = vshll.u32 %v1587, 16
      %v1610 = vrot.slane %v1608, 1
      %v1611 = vor.u32 %v1606, %v1610
      %1613 = vmatpush.bf16.msra.mxu0 %v449
      %1614 = vmatpush.bf16.msra.mxu0 %v448
      %1615 = vmatpush.bf16.msra.mxu0 %v447
      %1616 = vmatpush.bf16.msra.mxu0 %v446
      %1617 = vmatpush.bf16.msra.mxu0 %v445
      %1618 = vmatpush.bf16.msra.mxu0 %v444
      %1619 = vmatpush.bf16.msra.mxu0 %v443
      %1620 = vmatpush.bf16.msra.mxu0 %v442
      %1621 = vmatmul.bf16.gmra.mxu0 %v1575
      %v1622 = vpop.f32.mrf.mxu0
      %v1623 = vadd.f32 0.0, %v1622
      %v1624 = vpop.f32.mrf.mxu0
      %v1625 = vadd.f32 0.0, %v1624
      %1626 = vdwg.mxu0
      %1627 = vmatpush.bf16.msra.mxu0 %v457
      %1628 = vmatpush.bf16.msra.mxu0 %v456
      %1629 = vmatpush.bf16.msra.mxu0 %v455
      %1630 = vmatpush.bf16.msra.mxu0 %v454
      %1631 = vmatpush.bf16.msra.mxu0 %v453
      %1632 = vmatpush.bf16.msra.mxu0 %v452
      %1633 = vmatpush.bf16.msra.mxu0 %v451
      %1634 = vmatpush.bf16.msra.mxu0 %v450
      %1635 = vmatmul.bf16.gmra.mxu0 %v1581
      %v1636 = vpop.f32.mrf.mxu0
      %v1637 = vadd.f32 %v1623, %v1636
      %v1638 = vpop.f32.mrf.mxu0
      %v1639 = vadd.f32 %v1625, %v1638
      %1640 = vdwg.mxu0
      %1641 = vmatpush.bf16.msra.mxu0 %v465
      %1642 = vmatpush.bf16.msra.mxu0 %v464
      %1643 = vmatpush.bf16.msra.mxu0 %v463
      %1644 = vmatpush.bf16.msra.mxu0 %v462
      %1645 = vmatpush.bf16.msra.mxu0 %v461
      %1646 = vmatpush.bf16.msra.mxu0 %v460
      %1647 = vmatpush.bf16.msra.mxu0 %v459
      %1648 = vmatpush.bf16.msra.mxu0 %v458
      %1649 = vmatmul.bf16.gmra.mxu0 %v1595
      %v1650 = vpop.f32.mrf.mxu0
      %v1651 = vadd.f32 %v1637, %v1650
      %v1652 = vpop.f32.mrf.mxu0
      %v1653 = vadd.f32 %v1639, %v1652
      %1654 = vdwg.mxu0
      %1655 = vmatpush.bf16.msra.mxu0 %v473
      %1656 = vmatpush.bf16.msra.mxu0 %v472
      %1657 = vmatpush.bf16.msra.mxu0 %v471
      %1658 = vmatpush.bf16.msra.mxu0 %v470
      %1659 = vmatpush.bf16.msra.mxu0 %v469
      %1660 = vmatpush.bf16.msra.mxu0 %v468
      %1661 = vmatpush.bf16.msra.mxu0 %v467
      %1662 = vmatpush.bf16.msra.mxu0 %v466
      %1663 = vmatmul.bf16.gmra.mxu0 %v1602
      %v1664 = vpop.f32.mrf.mxu0
      %v1665 = vadd.f32 %v1651, %v1664
      %v1666 = vpop.f32.mrf.mxu0
      %v1667 = vadd.f32 %v1653, %v1666
      %1668 = vdwg.mxu0
      %v1669 = vmul.f32 %v1665, %v563
      %v1670 = vmul.f32 %v1667, %v563
      %v1671 = vadd.f32 %v1669, %v568
      %v1672 = vadd.f32 %v1670, %v568
      %1673 = vmatpush.bf16.msra.mxu0 %v449
      %1674 = vmatpush.bf16.msra.mxu0 %v448
      %1675 = vmatpush.bf16.msra.mxu0 %v447
      %1676 = vmatpush.bf16.msra.mxu0 %v446
      %1677 = vmatpush.bf16.msra.mxu0 %v445
      %1678 = vmatpush.bf16.msra.mxu0 %v444
      %1679 = vmatpush.bf16.msra.mxu0 %v443
      %1680 = vmatpush.bf16.msra.mxu0 %v442
      %1681 = vmatmul.bf16.gmra.mxu0 %v1581
      %v1682 = vpop.f32.mrf.mxu0
      %v1683 = vadd.f32 0.0, %v1682
      %v1684 = vpop.f32.mrf.mxu0
      %v1685 = vadd.f32 0.0, %v1684
      %1686 = vdwg.mxu0
      %1687 = vmatpush.bf16.msra.mxu0 %v457
      %1688 = vmatpush.bf16.msra.mxu0 %v456
      %1689 = vmatpush.bf16.msra.mxu0 %v455
      %1690 = vmatpush.bf16.msra.mxu0 %v454
      %1691 = vmatpush.bf16.msra.mxu0 %v453
      %1692 = vmatpush.bf16.msra.mxu0 %v452
      %1693 = vmatpush.bf16.msra.mxu0 %v451
      %1694 = vmatpush.bf16.msra.mxu0 %v450
      %1695 = vmatmul.bf16.gmra.mxu0 %v1587
      %v1696 = vpop.f32.mrf.mxu0
      %v1697 = vadd.f32 %v1683, %v1696
      %v1698 = vpop.f32.mrf.mxu0
      %v1699 = vadd.f32 %v1685, %v1698
      %1700 = vdwg.mxu0
      %1701 = vmatpush.bf16.msra.mxu0 %v465
      %1702 = vmatpush.bf16.msra.mxu0 %v464
      %1703 = vmatpush.bf16.msra.mxu0 %v463
      %1704 = vmatpush.bf16.msra.mxu0 %v462
      %1705 = vmatpush.bf16.msra.mxu0 %v461
      %1706 = vmatpush.bf16.msra.mxu0 %v460
      %1707 = vmatpush.bf16.msra.mxu0 %v459
      %1708 = vmatpush.bf16.msra.mxu0 %v458
      %1709 = vmatmul.bf16.gmra.mxu0 %v1602
      %v1710 = vpop.f32.mrf.mxu0
      %v1711 = vadd.f32 %v1697, %v1710
      %v1712 = vpop.f32.mrf.mxu0
      %v1713 = vadd.f32 %v1699, %v1712
      %1714 = vdwg.mxu0
      %1715 = vmatpush.bf16.msra.mxu0 %v473
      %1716 = vmatpush.bf16.msra.mxu0 %v472
      %1717 = vmatpush.bf16.msra.mxu0 %v471
      %1718 = vmatpush.bf16.msra.mxu0 %v470
      %1719 = vmatpush.bf16.msra.mxu0 %v469
      %1720 = vmatpush.bf16.msra.mxu0 %v468
      %1721 = vmatpush.bf16.msra.mxu0 %v467
      %1722 = vmatpush.bf16.msra.mxu0 %v466
      %1723 = vmatmul.bf16.gmra.mxu0 %v1611
      %v1724 = vpop.f32.mrf.mxu0
      %v1725 = vadd.f32 %v1711, %v1724
      %v1726 = vpop.f32.mrf.mxu0
      %v1727 = vadd.f32 %v1713, %v1726
      %1728 = vdwg.mxu0
      %v1729 = vmul.f32 %v1725, %v563
      %v1730 = vmul.f32 %v1727, %v563
      %v1731 = vadd.f32 %v1729, %v568
      %v1732 = vadd.f32 %v1730, %v568
      %v1733 = vmax.f32 %v1671, %v1731
      %v1734 = vmax.f32 %v1672, %v1732
      %1735 = vst [vmem:[#allocation2] sm:$0xff] %v1733
      %1736 = vst [vmem:[#allocation2 + $0x8] sm:$0x3f] %v1734
      %v1737 = vld [vmem:[#allocation2] ss:$2 sm:$0x7f]
      %v1738 = vld [vmem:[%s637] ss:$2 sm:$0x7f]
      %v1739 = vmax.f32 %v1737, %v1738
      %v1740 = vmax.f32 %v1739, 0.0
      %v1741 = vpack.c.bf16 %v1740, %v1740
      %s1742 = scalar_lea.vmem %s197, 24
      %v1743 = vld [vmem:[%s1742] sm:$0xf]
      %v1744 = vsel %vm644, %v1741, %v1743
      %1745 = vst [vmem:[%s1742] sm:$0xf] %v1744
      %p1746 = scmp.lt.s32.totalorder %s15, 1
      %s1747 = scalar_select %p1746, %s15, 1
      %s1748 = smul.addr %s1747, 7
      %s1749 = smul.addr %s1748, 4
      %s1750 = scalar_lea.vmem %s4, %s1749
      // Predicated region
      $region37: #{cnn_forward.9} parent=35 // pred_check
        %p1751 = pneg %p122
      $region38: #{cnn_forward.9} parent=35 // pred_check_branch
        %1753 = sbr.rel (%p1751) target = $region40
      $region39: #{cnn_forward.9} parent=35 // pred_region
        _
      $region40: #{cnn_forward.9} parent=35 // pred_fallthru
        _
    $region36: #{cnn_forward.9} parent=5 // pred_fallthru
      _
    %p1754 = scmp.le.s32.totalorder 2, %s10
    // Predicated region
    $region41: #{cnn_forward.9} parent=5 // pred_check
      %p1755 = pneg %p1754
    $region42: #{cnn_forward.9} parent=5 // pred_check_branch
      %1757 = sbr.rel (%p1755) target = $region44
    $region43: #{cnn_forward.9} parent=5 // pred_region
      %s1758 = ssub.s32 %s10, 2
      // Predicated region
      $region45: #{cnn_forward.9} parent=43 // pred_check
        %p1759 = pneg %p128
      $region46: #{cnn_forward.9} parent=43 // pred_check_branch
        %1761 = sbr.rel (%p1759) target = $region48
      $region47: #{cnn_forward.9} parent=43 // pred_region
        %p1762 = scmp.lt.s32.totalorder %s16, 1
        %s1763 = scalar_select %p1762, %s16, 1
        %s1764 = smul.addr %s1763, 7
        %s1765 = smul.addr %s1764, 4
        %s1766 = scalar_lea.vmem %s4, %s1765
      $region48: #{cnn_forward.9} parent=43 // pred_fallthru
        _
    $region44: #{cnn_forward.9} parent=5 // pred_fallthru
      _
  $region6: #{cnn_forward.9} parent=0 // loop_footer
    %s14 = sadd.s32 1, %s10
  $region7: #{cnn_forward.9} parent=0 // loop_footer_branch
    %9 = sbr.rel target = $region3
  $region8: #{cnn_forward.9} parent=0 // loop_exit
    _

// kernel: cnn_forward.11
$region0: #{cnn_forward.11}
  #allocation0 [shape = 'u32[]', space=smem, size = 0x4, offset = 0x4, fixed_abs, tag = 'smem constant byte address 0x4 - core index']
  #allocation1 [shape = 'u32[72,128]{1,0:T(1,128)}', space=vmem, size = 0x9000, scoped, tag = 'internal scratch']
  %s0 = inlined_call_operand.vmem [shape: bf16[2,1152], index: 0, kind: input, shape index: {}]
  %s1 = inlined_call_operand.vmem [shape: bf16[1152,512], index: 1, kind: input, shape index: {}]
  %s2 = inlined_call_operand.vmem [shape: f32[1,512], index: 2, kind: input, shape index: {}]
  %s3 = inlined_call_operand.vmem [shape: bf16[512,256], index: 3, kind: input, shape index: {}]
  %s4 = inlined_call_operand.vmem [shape: f32[1,256], index: 4, kind: input, shape index: {}]
  %s5 = inlined_call_operand.vmem [shape: f32[1,256], index: 5, kind: input, shape index: {}]
  %s6 = inlined_call_operand.vmem [shape: bf16[256,3], index: 6, kind: input, shape index: {}]
  %s7 = inlined_call_operand.vmem [shape: f32[1,3], index: 7, kind: input, shape index: {}]
  %s8 = inlined_call_operand.hbm [shape: f32[2,3], index: 8, kind: output, shape index: {}]
  %s9 = sld [smem:[#allocation0]]
  $region42: #{cnn_forward.11} parent=0
    _
  %s11 = ssub.s32 1, %s9
  %s12 = scalar_select 0, %s11, %s9
  $region1: #{cnn_forward.11} parent=0
    #allocation2 [shape = 'u8[1024]{0}', space=vmem, size = 0x400, scoped, tag = 'output window, operand 0, single buffered']
    #allocation3 [shape = 's32[1]{0}', space=sflag, size = 0x4, scoped, tag = 'scoped memory for cnn_forward.11']
    %13 = vsyncpa [#allocation3], 0
    // Predicated region
    $region2: #{cnn_forward.11} parent=1 // pred_check
      _
    $region3: #{cnn_forward.11} parent=1 // pred_check_branch
      %15 = sbr.rel (0) target = $region5
    $region4: #{cnn_forward.11} parent=1 // pred_region
      _
    $region5: #{cnn_forward.11} parent=1 // pred_fallthru
      _
    // Predicated region
    $region6: #{cnn_forward.11} parent=1 // pred_check
      _
    $region7: #{cnn_forward.11} parent=1 // pred_check_branch
      %17 = sbr.rel (0) target = $region9
    $region8: #{cnn_forward.11} parent=1 // pred_region
      _
    $region9: #{cnn_forward.11} parent=1 // pred_fallthru
      _
    // Predicated region
    $region10: #{cnn_forward.11} parent=1 // pred_check
      _
    $region11: #{cnn_forward.11} parent=1 // pred_check_branch
      %19 = sbr.rel (0) target = $region13
    $region12: #{cnn_forward.11} parent=1 // pred_region
      _
    $region13: #{cnn_forward.11} parent=1 // pred_fallthru
      _
    // Predicated region
    $region14: #{cnn_forward.11} parent=1 // pred_check
      _
    $region15: #{cnn_forward.11} parent=1 // pred_check_branch
      %21 = sbr.rel (0) target = $region17
    $region16: #{cnn_forward.11} parent=1 // pred_region
      _
    $region17: #{cnn_forward.11} parent=1 // pred_fallthru
      _
    // Predicated region
    $region18: #{cnn_forward.11} parent=1 // pred_check
      _
    $region19: #{cnn_forward.11} parent=1 // pred_check_branch
      %23 = sbr.rel (0) target = $region21
    $region20: #{cnn_forward.11} parent=1 // pred_region
      _
    $region21: #{cnn_forward.11} parent=1 // pred_fallthru
      _
    // Predicated region
    $region22: #{cnn_forward.11} parent=1 // pred_check
      _
    $region23: #{cnn_forward.11} parent=1 // pred_check_branch
      %25 = sbr.rel (0) target = $region25
    $region24: #{cnn_forward.11} parent=1 // pred_region
      _
    $region25: #{cnn_forward.11} parent=1 // pred_fallthru
      _
    // Predicated region
    $region26: #{cnn_forward.11} parent=1 // pred_check
      _
    $region27: #{cnn_forward.11} parent=1 // pred_check_branch
      %27 = sbr.rel (0) target = $region29
    $region28: #{cnn_forward.11} parent=1 // pred_region
      _
    $region29: #{cnn_forward.11} parent=1 // pred_fallthru
      _
    // Predicated region
    $region30: #{cnn_forward.11} parent=1 // pred_check
      _
    $region31: #{cnn_forward.11} parent=1 // pred_check_branch
      %29 = sbr.rel (0) target = $region33
    $region32: #{cnn_forward.11} parent=1 // pred_region
      _
    $region33: #{cnn_forward.11} parent=1 // pred_fallthru
      _
    %v30 = vld [vmem:[%s0] sm:$0xff]
    %v31 = vld [vmem:[%s0 + $0x8] sm:$0x1]
    %v32 = vld [vmem:[%s1] sm:$0xff]
    %v33 = vld [vmem:[%s1 + $0x8] sm:$0xff]
    %v34 = vld [vmem:[%s1 + $0x10] sm:$0xff]
    %v35 = vld [vmem:[%s1 + $0x18] sm:$0xff]
    %v36 = vld [vmem:[%s1 + $0x20] sm:$0xff]
    %v37 = vld [vmem:[%s1 + $0x28] sm:$0xff]
    %v38 = vld [vmem:[%s1 + $0x30] sm:$0xff]
    %v39 = vld [vmem:[%s1 + $0x38] sm:$0xff]
    %v40 = vld [vmem:[%s1 + $0x40] sm:$0xff]
    %v41 = vld [vmem:[%s1 + $0x48] sm:$0xff]
    %v42 = vld [vmem:[%s1 + $0x50] sm:$0xff]
    %v43 = vld [vmem:[%s1 + $0x58] sm:$0xff]
    %v44 = vld [vmem:[%s1 + $0x60] sm:$0xff]
    %v45 = vld [vmem:[%s1 + $0x68] sm:$0xff]
    %v46 = vld [vmem:[%s1 + $0x70] sm:$0xff]
    %v47 = vld [vmem:[%s1 + $0x78] sm:$0xff]
    %v48 = vld [vmem:[%s1 + $0x80] sm:$0xff]
    %v49 = vld [vmem:[%s1 + $0x88] sm:$0xff]
    %v50 = vld [vmem:[%s1 + $0x90] sm:$0xff]
    %v51 = vld [vmem:[%s1 + $0x98] sm:$0xff]
    %v52 = vld [vmem:[%s1 + $0xa0] sm:$0xff]
    %v53 = vld [vmem:[%s1 + $0xa8] sm:$0xff]
    %v54 = vld [vmem:[%s1 + $0xb0] sm:$0xff]
    %v55 = vld [vmem:[%s1 + $0xb8] sm:$0xff]
    %v56 = vld [vmem:[%s1 + $0xc0] sm:$0xff]
    %v57 = vld [vmem:[%s1 + $0xc8] sm:$0xff]
    %v58 = vld [vmem:[%s1 + $0xd0] sm:$0xff]
    %v59 = vld [vmem:[%s1 + $0xd8] sm:$0xff]
    %v60 = vld [vmem:[%s1 + $0xe0] sm:$0xff]
    %v61 = vld [vmem:[%s1 + $0xe8] sm:$0xff]
    %v62 = vld [vmem:[%s1 + $0xf0] sm:$0xff]
    %v63 = vld [vmem:[%s1 + $0xf8] sm:$0xff]
    %v64 = vld [vmem:[%s1 + $0x100] sm:$0xff]
    %v65 = vld [vmem:[%s1 + $0x108] sm:$0xff]
    %v66 = vld [vmem:[%s1 + $0x110] sm:$0xff]
    %v67 = vld [vmem:[%s1 + $0x118] sm:$0xff]
    %v68 = vld [vmem:[%s1 + $0x120] sm:$0xff]
    %v69 = vld [vmem:[%s1 + $0x128] sm:$0xff]
    %v70 = vld [vmem:[%s1 + $0x130] sm:$0xff]
    %v71 = vld [vmem:[%s1 + $0x138] sm:$0xff]
    %v72 = vld [vmem:[%s1 + $0x140] sm:$0xff]
    %v73 = vld [vmem:[%s1 + $0x148] sm:$0xff]
    %v74 = vld [vmem:[%s1 + $0x150] sm:$0xff]
    %v75 = vld [vmem:[%s1 + $0x158] sm:$0xff]
    %v76 = vld [vmem:[%s1 + $0x160] sm:$0xff]
    %v77 = vld [vmem:[%s1 + $0x168] sm:$0xff]
    %v78 = vld [vmem:[%s1 + $0x170] sm:$0xff]
    %v79 = vld [vmem:[%s1 + $0x178] sm:$0xff]
    %v80 = vld [vmem:[%s1 + $0x180] sm:$0xff]
    %v81 = vld [vmem:[%s1 + $0x188] sm:$0xff]
    %v82 = vld [vmem:[%s1 + $0x190] sm:$0xff]
    %v83 = vld [vmem:[%s1 + $0x198] sm:$0xff]
    %v84 = vld [vmem:[%s1 + $0x1a0] sm:$0xff]
    %v85 = vld [vmem:[%s1 + $0x1a8] sm:$0xff]
    %v86 = vld [vmem:[%s1 + $0x1b0] sm:$0xff]
    %v87 = vld [vmem:[%s1 + $0x1b8] sm:$0xff]
    %v88 = vld [vmem:[%s1 + $0x1c0] sm:$0xff]
    %v89 = vld [vmem:[%s1 + $0x1c8] sm:$0xff]
    %v90 = vld [vmem:[%s1 + $0x1d0] sm:$0xff]
    %v91 = vld [vmem:[%s1 + $0x1d8] sm:$0xff]
    %v92 = vld [vmem:[%s1 + $0x1e0] sm:$0xff]
    %v93 = vld [vmem:[%s1 + $0x1e8] sm:$0xff]
    %v94 = vld [vmem:[%s1 + $0x1f0] sm:$0xff]
    %v95 = vld [vmem:[%s1 + $0x1f8] sm:$0xff]
    %v96 = vld [vmem:[%s1 + $0x200] sm:$0xff]
    %v97 = vld [vmem:[%s1 + $0x208] sm:$0xff]
    %v98 = vld [vmem:[%s1 + $0x210] sm:$0xff]
    %v99 = vld [vmem:[%s1 + $0x218] sm:$0xff]
    %v100 = vld [vmem:[%s1 + $0x220] sm:$0xff]
    %v101 = vld [vmem:[%s1 + $0x228] sm:$0xff]
    %v102 = vld [vmem:[%s1 + $0x230] sm:$0xff]
    %v103 = vld [vmem:[%s1 + $0x238] sm:$0xff]
    %v104 = vld [vmem:[%s1 + $0x240] sm:$0xff]
    %v105 = vld [vmem:[%s1 + $0x248] sm:$0xff]
    %v106 = vld [vmem:[%s1 + $0x250] sm:$0xff]
    %v107 = vld [vmem:[%s1 + $0x258] sm:$0xff]
    %v108 = vld [vmem:[%s1 + $0x260] sm:$0xff]
    %v109 = vld [vmem:[%s1 + $0x268] sm:$0xff]
    %v110 = vld [vmem:[%s1 + $0x270] sm:$0xff]
    %v111 = vld [vmem:[%s1 + $0x278] sm:$0xff]
    %v112 = vld [vmem:[%s1 + $0x280] sm:$0xff]
    %v113 = vld [vmem:[%s1 + $0x288] sm:$0xff]
    %v114 = vld [vmem:[%s1 + $0x290] sm:$0xff]
    %v115 = vld [vmem:[%s1 + $0x298] sm:$0xff]
    %v116 = vld [vmem:[%s1 + $0x2a0] sm:$0xff]
    %v117 = vld [vmem:[%s1 + $0x2a8] sm:$0xff]
    %v118 = vld [vmem:[%s1 + $0x2b0] sm:$0xff]
    %v119 = vld [vmem:[%s1 + $0x2b8] sm:$0xff]
    %v120 = vld [vmem:[%s1 + $0x2c0] sm:$0xff]
    %v121 = vld [vmem:[%s1 + $0x2c8] sm:$0xff]
    %v122 = vld [vmem:[%s1 + $0x2d0] sm:$0xff]
    %v123 = vld [vmem:[%s1 + $0x2d8] sm:$0xff]
    %v124 = vld [vmem:[%s1 + $0x2e0] sm:$0xff]
    %v125 = vld [vmem:[%s1 + $0x2e8] sm:$0xff]
    %v126 = vld [vmem:[%s1 + $0x2f0] sm:$0xff]
    %v127 = vld [vmem:[%s1 + $0x2f8] sm:$0xff]
    %v128 = vld [vmem:[%s1 + $0x300] sm:$0xff]
    %v129 = vld [vmem:[%s1 + $0x308] sm:$0xff]
    %v130 = vld [vmem:[%s1 + $0x310] sm:$0xff]
    %v131 = vld [vmem:[%s1 + $0x318] sm:$0xff]
    %v132 = vld [vmem:[%s1 + $0x320] sm:$0xff]
    %v133 = vld [vmem:[%s1 + $0x328] sm:$0xff]
    %v134 = vld [vmem:[%s1 + $0x330] sm:$0xff]
    %v135 = vld [vmem:[%s1 + $0x338] sm:$0xff]
    %v136 = vld [vmem:[%s1 + $0x340] sm:$0xff]
    %v137 = vld [vmem:[%s1 + $0x348] sm:$0xff]
    %v138 = vld [vmem:[%s1 + $0x350] sm:$0xff]
    %v139 = vld [vmem:[%s1 + $0x358] sm:$0xff]
    %v140 = vld [vmem:[%s1 + $0x360] sm:$0xff]
    %v141 = vld [vmem:[%s1 + $0x368] sm:$0xff]
    %v142 = vld [vmem:[%s1 + $0x370] sm:$0xff]
    %v143 = vld [vmem:[%s1 + $0x378] sm:$0xff]
    %v144 = vld [vmem:[%s1 + $0x380] sm:$0xff]
    %v145 = vld [vmem:[%s1 + $0x388] sm:$0xff]
    %v146 = vld [vmem:[%s1 + $0x390] sm:$0xff]
    %v147 = vld [vmem:[%s1 + $0x398] sm:$0xff]
    %v148 = vld [vmem:[%s1 + $0x3a0] sm:$0xff]
    %v149 = vld [vmem:[%s1 + $0x3a8] sm:$0xff]
    %v150 = vld [vmem:[%s1 + $0x3b0] sm:$0xff]
    %v151 = vld [vmem:[%s1 + $0x3b8] sm:$0xff]
    %v152 = vld [vmem:[%s1 + $0x3c0] sm:$0xff]
    %v153 = vld [vmem:[%s1 + $0x3c8] sm:$0xff]
    %v154 = vld [vmem:[%s1 + $0x3d0] sm:$0xff]
    %v155 = vld [vmem:[%s1 + $0x3d8] sm:$0xff]
    %v156 = vld [vmem:[%s1 + $0x3e0] sm:$0xff]
    %v157 = vld [vmem:[%s1 + $0x3e8] sm:$0xff]
    %v158 = vld [vmem:[%s1 + $0x3f0] sm:$0xff]
    %v159 = vld [vmem:[%s1 + $0x3f8] sm:$0xff]
    %v160 = vld [vmem:[%s1 + $0x400] sm:$0xff]
    %v161 = vld [vmem:[%s1 + $0x408] sm:$0xff]
    %v162 = vld [vmem:[%s1 + $0x410] sm:$0xff]
    %v163 = vld [vmem:[%s1 + $0x418] sm:$0xff]
    %v164 = vld [vmem:[%s1 + $0x420] sm:$0xff]
    %v165 = vld [vmem:[%s1 + $0x428] sm:$0xff]
    %v166 = vld [vmem:[%s1 + $0x430] sm:$0xff]
    %v167 = vld [vmem:[%s1 + $0x438] sm:$0xff]
    %v168 = vld [vmem:[%s1 + $0x440] sm:$0xff]
    %v169 = vld [vmem:[%s1 + $0x448] sm:$0xff]
    %v170 = vld [vmem:[%s1 + $0x450] sm:$0xff]
    %v171 = vld [vmem:[%s1 + $0x458] sm:$0xff]
    %v172 = vld [vmem:[%s1 + $0x460] sm:$0xff]
    %v173 = vld [vmem:[%s1 + $0x468] sm:$0xff]
    %v174 = vld [vmem:[%s1 + $0x470] sm:$0xff]
    %v175 = vld [vmem:[%s1 + $0x478] sm:$0xff]
    %v176 = vld [vmem:[%s1 + $0x480] sm:$0xff]
    %v177 = vld [vmem:[%s1 + $0x488] sm:$0xff]
    %v178 = vld [vmem:[%s1 + $0x490] sm:$0xff]
    %v179 = vld [vmem:[%s1 + $0x498] sm:$0xff]
    %v180 = vld [vmem:[%s1 + $0x4a0] sm:$0xff]
    %v181 = vld [vmem:[%s1 + $0x4a8] sm:$0xff]
    %v182 = vld [vmem:[%s1 + $0x4b0] sm:$0xff]
    %v183 = vld [vmem:[%s1 + $0x4b8] sm:$0xff]
    %v184 = vld [vmem:[%s1 + $0x4c0] sm:$0xff]
    %v185 = vld [vmem:[%s1 + $0x4c8] sm:$0xff]
    %v186 = vld [vmem:[%s1 + $0x4d0] sm:$0xff]
    %v187 = vld [vmem:[%s1 + $0x4d8] sm:$0xff]
    %v188 = vld [vmem:[%s1 + $0x4e0] sm:$0xff]
    %v189 = vld [vmem:[%s1 + $0x4e8] sm:$0xff]
    %v190 = vld [vmem:[%s1 + $0x4f0] sm:$0xff]
    %v191 = vld [vmem:[%s1 + $0x4f8] sm:$0xff]
    %v192 = vld [vmem:[%s1 + $0x500] sm:$0xff]
    %v193 = vld [vmem:[%s1 + $0x508] sm:$0xff]
    %v194 = vld [vmem:[%s1 + $0x510] sm:$0xff]
    %v195 = vld [vmem:[%s1 + $0x518] sm:$0xff]
    %v196 = vld [vmem:[%s1 + $0x520] sm:$0xff]
    %v197 = vld [vmem:[%s1 + $0x528] sm:$0xff]
    %v198 = vld [vmem:[%s1 + $0x530] sm:$0xff]
    %v199 = vld [vmem:[%s1 + $0x538] sm:$0xff]
    %v200 = vld [vmem:[%s1 + $0x540] sm:$0xff]
    %v201 = vld [vmem:[%s1 + $0x548] sm:$0xff]
    %v202 = vld [vmem:[%s1 + $0x550] sm:$0xff]
    %v203 = vld [vmem:[%s1 + $0x558] sm:$0xff]
    %v204 = vld [vmem:[%s1 + $0x560] sm:$0xff]
    %v205 = vld [vmem:[%s1 + $0x568] sm:$0xff]
    %v206 = vld [vmem:[%s1 + $0x570] sm:$0xff]
    %v207 = vld [vmem:[%s1 + $0x578] sm:$0xff]
    %v208 = vld [vmem:[%s1 + $0x580] sm:$0xff]
    %v209 = vld [vmem:[%s1 + $0x588] sm:$0xff]
    %v210 = vld [vmem:[%s1 + $0x590] sm:$0xff]
    %v211 = vld [vmem:[%s1 + $0x598] sm:$0xff]
    %v212 = vld [vmem:[%s1 + $0x5a0] sm:$0xff]
    %v213 = vld [vmem:[%s1 + $0x5a8] sm:$0xff]
    %v214 = vld [vmem:[%s1 + $0x5b0] sm:$0xff]
    %v215 = vld [vmem:[%s1 + $0x5b8] sm:$0xff]
    %v216 = vld [vmem:[%s1 + $0x5c0] sm:$0xff]
    %v217 = vld [vmem:[%s1 + $0x5c8] sm:$0xff]
    %v218 = vld [vmem:[%s1 + $0x5d0] sm:$0xff]
    %v219 = vld [vmem:[%s1 + $0x5d8] sm:$0xff]
    %v220 = vld [vmem:[%s1 + $0x5e0] sm:$0xff]
    %v221 = vld [vmem:[%s1 + $0x5e8] sm:$0xff]
    %v222 = vld [vmem:[%s1 + $0x5f0] sm:$0xff]
    %v223 = vld [vmem:[%s1 + $0x5f8] sm:$0xff]
    %v224 = vld [vmem:[%s1 + $0x600] sm:$0xff]
    %v225 = vld [vmem:[%s1 + $0x608] sm:$0xff]
    %v226 = vld [vmem:[%s1 + $0x610] sm:$0xff]
    %v227 = vld [vmem:[%s1 + $0x618] sm:$0xff]
    %v228 = vld [vmem:[%s1 + $0x620] sm:$0xff]
    %v229 = vld [vmem:[%s1 + $0x628] sm:$0xff]
    %v230 = vld [vmem:[%s1 + $0x630] sm:$0xff]
    %v231 = vld [vmem:[%s1 + $0x638] sm:$0xff]
    %v232 = vld [vmem:[%s1 + $0x640] sm:$0xff]
    %v233 = vld [vmem:[%s1 + $0x648] sm:$0xff]
    %v234 = vld [vmem:[%s1 + $0x650] sm:$0xff]
    %v235 = vld [vmem:[%s1 + $0x658] sm:$0xff]
    %v236 = vld [vmem:[%s1 + $0x660] sm:$0xff]
    %v237 = vld [vmem:[%s1 + $0x668] sm:$0xff]
    %v238 = vld [vmem:[%s1 + $0x670] sm:$0xff]
    %v239 = vld [vmem:[%s1 + $0x678] sm:$0xff]
    %v240 = vld [vmem:[%s1 + $0x680] sm:$0xff]
    %v241 = vld [vmem:[%s1 + $0x688] sm:$0xff]
    %v242 = vld [vmem:[%s1 + $0x690] sm:$0xff]
    %v243 = vld [vmem:[%s1 + $0x698] sm:$0xff]
    %v244 = vld [vmem:[%s1 + $0x6a0] sm:$0xff]
    %v245 = vld [vmem:[%s1 + $0x6a8] sm:$0xff]
    %v246 = vld [vmem:[%s1 + $0x6b0] sm:$0xff]
    %v247 = vld [vmem:[%s1 + $0x6b8] sm:$0xff]
    %v248 = vld [vmem:[%s1 + $0x6c0] sm:$0xff]
    %v249 = vld [vmem:[%s1 + $0x6c8] sm:$0xff]
    %v250 = vld [vmem:[%s1 + $0x6d0] sm:$0xff]
    %v251 = vld [vmem:[%s1 + $0x6d8] sm:$0xff]
    %v252 = vld [vmem:[%s1 + $0x6e0] sm:$0xff]
    %v253 = vld [vmem:[%s1 + $0x6e8] sm:$0xff]
    %v254 = vld [vmem:[%s1 + $0x6f0] sm:$0xff]
    %v255 = vld [vmem:[%s1 + $0x6f8] sm:$0xff]
    %v256 = vld [vmem:[%s1 + $0x700] sm:$0xff]
    %v257 = vld [vmem:[%s1 + $0x708] sm:$0xff]
    %v258 = vld [vmem:[%s1 + $0x710] sm:$0xff]
    %v259 = vld [vmem:[%s1 + $0x718] sm:$0xff]
    %v260 = vld [vmem:[%s1 + $0x720] sm:$0xff]
    %v261 = vld [vmem:[%s1 + $0x728] sm:$0xff]
    %v262 = vld [vmem:[%s1 + $0x730] sm:$0xff]
    %v263 = vld [vmem:[%s1 + $0x738] sm:$0xff]
    %v264 = vld [vmem:[%s1 + $0x740] sm:$0xff]
    %v265 = vld [vmem:[%s1 + $0x748] sm:$0xff]
    %v266 = vld [vmem:[%s1 + $0x750] sm:$0xff]
    %v267 = vld [vmem:[%s1 + $0x758] sm:$0xff]
    %v268 = vld [vmem:[%s1 + $0x760] sm:$0xff]
    %v269 = vld [vmem:[%s1 + $0x768] sm:$0xff]
    %v270 = vld [vmem:[%s1 + $0x770] sm:$0xff]
    %v271 = vld [vmem:[%s1 + $0x778] sm:$0xff]
    %v272 = vld [vmem:[%s1 + $0x780] sm:$0xff]
    %v273 = vld [vmem:[%s1 + $0x788] sm:$0xff]
    %v274 = vld [vmem:[%s1 + $0x790] sm:$0xff]
    %v275 = vld [vmem:[%s1 + $0x798] sm:$0xff]
    %v276 = vld [vmem:[%s1 + $0x7a0] sm:$0xff]
    %v277 = vld [vmem:[%s1 + $0x7a8] sm:$0xff]
    %v278 = vld [vmem:[%s1 + $0x7b0] sm:$0xff]
    %v279 = vld [vmem:[%s1 + $0x7b8] sm:$0xff]
    %v280 = vld [vmem:[%s1 + $0x7c0] sm:$0xff]
    %v281 = vld [vmem:[%s1 + $0x7c8] sm:$0xff]
    %v282 = vld [vmem:[%s1 + $0x7d0] sm:$0xff]
    %v283 = vld [vmem:[%s1 + $0x7d8] sm:$0xff]
    %v284 = vld [vmem:[%s1 + $0x7e0] sm:$0xff]
    %v285 = vld [vmem:[%s1 + $0x7e8] sm:$0xff]
    %v286 = vld [vmem:[%s1 + $0x7f0] sm:$0xff]
    %v287 = vld [vmem:[%s1 + $0x7f8] sm:$0xff]
    %v288 = vld [vmem:[%s1 + $0x800] sm:$0xff]
    %v289 = vld [vmem:[%s1 + $0x808] sm:$0xff]
    %v290 = vld [vmem:[%s1 + $0x810] sm:$0xff]
    %v291 = vld [vmem:[%s1 + $0x818] sm:$0xff]
    %v292 = vld [vmem:[%s1 + $0x820] sm:$0xff]
    %v293 = vld [vmem:[%s1 + $0x828] sm:$0xff]
    %v294 = vld [vmem:[%s1 + $0x830] sm:$0xff]
    %v295 = vld [vmem:[%s1 + $0x838] sm:$0xff]
    %v296 = vld [vmem:[%s1 + $0x840] sm:$0xff]
    %v297 = vld [vmem:[%s1 + $0x848] sm:$0xff]
    %v298 = vld [vmem:[%s1 + $0x850] sm:$0xff]
    %v299 = vld [vmem:[%s1 + $0x858] sm:$0xff]
    %v300 = vld [vmem:[%s1 + $0x860] sm:$0xff]
    %v301 = vld [vmem:[%s1 + $0x868] sm:$0xff]
    %v302 = vld [vmem:[%s1 + $0x870] sm:$0xff]
    %v303 = vld [vmem:[%s1 + $0x878] sm:$0xff]
    %v304 = vld [vmem:[%s1 + $0x880] sm:$0xff]
    %v305 = vld [vmem:[%s1 + $0x888] sm:$0xff]
    %v306 = vld [vmem:[%s1 + $0x890] sm:$0xff]
    %v307 = vld [vmem:[%s1 + $0x898] sm:$0xff]
    %v308 = vld [vmem:[%s1 + $0x8a0] sm:$0xff]
    %v309 = vld [vmem:[%s1 + $0x8a8] sm:$0xff]
    %v310 = vld [vmem:[%s1 + $0x8b0] sm:$0xff]
    %v311 = vld [vmem:[%s1 + $0x8b8] sm:$0xff]
    %v312 = vld [vmem:[%s1 + $0x8c0] sm:$0xff]
    %v313 = vld [vmem:[%s1 + $0x8c8] sm:$0xff]
    %v314 = vld [vmem:[%s1 + $0x8d0] sm:$0xff]
    %v315 = vld [vmem:[%s1 + $0x8d8] sm:$0xff]
    %v316 = vld [vmem:[%s1 + $0x8e0] sm:$0xff]
    %v317 = vld [vmem:[%s1 + $0x8e8] sm:$0xff]
    %v318 = vld [vmem:[%s1 + $0x8f0] sm:$0xff]
    %v319 = vld [vmem:[%s1 + $0x8f8] sm:$0xff]
    %v320 = vld [vmem:[%s2] sm:$0xf]
    %v322 = vperm.slane %v320, 0
    %v323 = vperm.slane %v320, 1
    %v324 = vperm.slane %v320, 2
    %v325 = vperm.slane %v320, 3
    %331 = vst [vmem:[#allocation1] ss:$9 sm:$0xff] %v30
    %v332 = vld [vmem:[#allocation1] sm:$0xff]
    %v333 = vld [vmem:[#allocation1 + $0x9] sm:$0xff]
    %v334 = vld [vmem:[#allocation1 + $0x12] sm:$0xff]
    %v335 = vld [vmem:[#allocation1 + $0x1b] sm:$0xff]
    %v336 = vld [vmem:[#allocation1 + $0x24] sm:$0xff]
    %v337 = vld [vmem:[#allocation1 + $0x2d] sm:$0xff]
    %v338 = vld [vmem:[#allocation1 + $0x36] sm:$0xff]
    %v339 = vld [vmem:[#allocation1 + $0x3f] sm:$0xff]
    %341 = vst [vmem:[#allocation1] ss:$9 sm:$0xff] %v31
    %v342 = vld [vmem:[#allocation1] sm:$0xff]
    %v640 = vunpack.c.l.b16 %v32
    %v641 = vunpack.c.h.b16 %v32
    %v642 = vunpack.c.l.b16 %v33
    %v643 = vunpack.c.h.b16 %v33
    %v644 = vunpack.c.l.b16 %v34
    %v645 = vunpack.c.h.b16 %v34
    %v646 = vunpack.c.l.b16 %v35
    %v647 = vunpack.c.h.b16 %v35
    %v648 = vunpack.c.l.b16 %v36
    %v649 = vunpack.c.h.b16 %v36
    %v650 = vunpack.c.l.b16 %v37
    %v651 = vunpack.c.h.b16 %v37
    %v652 = vunpack.c.l.b16 %v38
    %v653 = vunpack.c.h.b16 %v38
    %v654 = vunpack.c.l.b16 %v39
    %v655 = vunpack.c.h.b16 %v39
    %v656 = vunpack.c.l.b16 %v40
    %v657 = vunpack.c.h.b16 %v40
    %v658 = vunpack.c.l.b16 %v41
    %v659 = vunpack.c.h.b16 %v41
    %v660 = vunpack.c.l.b16 %v42
    %v661 = vunpack.c.h.b16 %v42
    %v662 = vunpack.c.l.b16 %v43
    %v663 = vunpack.c.h.b16 %v43
    %v664 = vunpack.c.l.b16 %v44
    %v665 = vunpack.c.h.b16 %v44
    %v666 = vunpack.c.l.b16 %v45
    %v667 = vunpack.c.h.b16 %v45
    %v668 = vunpack.c.l.b16 %v46
    %v669 = vunpack.c.h.b16 %v46
    %v670 = vunpack.c.l.b16 %v47
    %v671 = vunpack.c.h.b16 %v47
    %v672 = vunpack.c.l.b16 %v48
    %v673 = vunpack.c.h.b16 %v48
    %v674 = vunpack.c.l.b16 %v49
    %v675 = vunpack.c.h.b16 %v49
    %v676 = vunpack.c.l.b16 %v50
    %v677 = vunpack.c.h.b16 %v50
    %v678 = vunpack.c.l.b16 %v51
    %v679 = vunpack.c.h.b16 %v51
    %v680 = vunpack.c.l.b16 %v52
    %v681 = vunpack.c.h.b16 %v52
    %v682 = vunpack.c.l.b16 %v53
    %v683 = vunpack.c.h.b16 %v53
    %v684 = vunpack.c.l.b16 %v54
    %v685 = vunpack.c.h.b16 %v54
    %v686 = vunpack.c.l.b16 %v55
    %v687 = vunpack.c.h.b16 %v55
    %v688 = vunpack.c.l.b16 %v56
    %v689 = vunpack.c.h.b16 %v56
    %v690 = vunpack.c.l.b16 %v57
    %v691 = vunpack.c.h.b16 %v57
    %v692 = vunpack.c.l.b16 %v58
    %v693 = vunpack.c.h.b16 %v58
    %v694 = vunpack.c.l.b16 %v59
    %v695 = vunpack.c.h.b16 %v59
    %v696 = vunpack.c.l.b16 %v60
    %v697 = vunpack.c.h.b16 %v60
    %v698 = vunpack.c.l.b16 %v61
    %v699 = vunpack.c.h.b16 %v61
    %v700 = vunpack.c.l.b16 %v62
    %v701 = vunpack.c.h.b16 %v62
    %v702 = vunpack.c.l.b16 %v63
    %v703 = vunpack.c.h.b16 %v63
    %v704 = vunpack.c.l.b16 %v64
    %v705 = vunpack.c.h.b16 %v64
    %v706 = vunpack.c.l.b16 %v65
    %v707 = vunpack.c.h.b16 %v65
    %v708 = vunpack.c.l.b16 %v66
    %v709 = vunpack.c.h.b16 %v66
    %v710 = vunpack.c.l.b16 %v67
    %v711 = vunpack.c.h.b16 %v67
    %v712 = vunpack.c.l.b16 %v68
    %v713 = vunpack.c.h.b16 %v68
    %v714 = vunpack.c.l.b16 %v69
    %v715 = vunpack.c.h.b16 %v69
    %v716 = vunpack.c.l.b16 %v70
    %v717 = vunpack.c.h.b16 %v70
    %v718 = vunpack.c.l.b16 %v71
    %v719 = vunpack.c.h.b16 %v71
    %v720 = vunpack.c.l.b16 %v72
    %v721 = vunpack.c.h.b16 %v72
    %v722 = vunpack.c.l.b16 %v73
    %v723 = vunpack.c.h.b16 %v73
    %v724 = vunpack.c.l.b16 %v74
    %v725 = vunpack.c.h.b16 %v74
    %v726 = vunpack.c.l.b16 %v75
    %v727 = vunpack.c.h.b16 %v75
    %v728 = vunpack.c.l.b16 %v76
    %v729 = vunpack.c.h.b16 %v76
    %v730 = vunpack.c.l.b16 %v77
    %v731 = vunpack.c.h.b16 %v77
    %v732 = vunpack.c.l.b16 %v78
    %v733 = vunpack.c.h.b16 %v78
    %v734 = vunpack.c.l.b16 %v79
    %v735 = vunpack.c.h.b16 %v79
    %v736 = vunpack.c.l.b16 %v80
    %v737 = vunpack.c.h.b16 %v80
    %v738 = vunpack.c.l.b16 %v81
    %v739 = vunpack.c.h.b16 %v81
    %v740 = vunpack.c.l.b16 %v82
    %v741 = vunpack.c.h.b16 %v82
    %v742 = vunpack.c.l.b16 %v83
    %v743 = vunpack.c.h.b16 %v83
    %v744 = vunpack.c.l.b16 %v84
    %v745 = vunpack.c.h.b16 %v84
    %v746 = vunpack.c.l.b16 %v85
    %v747 = vunpack.c.h.b16 %v85
    %v748 = vunpack.c.l.b16 %v86
    %v749 = vunpack.c.h.b16 %v86
    %v750 = vunpack.c.l.b16 %v87
    %v751 = vunpack.c.h.b16 %v87
    %v752 = vunpack.c.l.b16 %v88
    %v753 = vunpack.c.h.b16 %v88
    %v754 = vunpack.c.l.b16 %v89
    %v755 = vunpack.c.h.b16 %v89
    %v756 = vunpack.c.l.b16 %v90
    %v757 = vunpack.c.h.b16 %v90
    %v758 = vunpack.c.l.b16 %v91
    %v759 = vunpack.c.h.b16 %v91
    %v760 = vunpack.c.l.b16 %v92
    %v761 = vunpack.c.h.b16 %v92
    %v762 = vunpack.c.l.b16 %v93
    %v763 = vunpack.c.h.b16 %v93
    %v764 = vunpack.c.l.b16 %v94
    %v765 = vunpack.c.h.b16 %v94
    %v766 = vunpack.c.l.b16 %v95
    %v767 = vunpack.c.h.b16 %v95
    %v768 = vunpack.c.l.b16 %v96
    %v769 = vunpack.c.h.b16 %v96
    %v770 = vunpack.c.l.b16 %v97
    %v771 = vunpack.c.h.b16 %v97
    %v772 = vunpack.c.l.b16 %v98
    %v773 = vunpack.c.h.b16 %v98
    %v774 = vunpack.c.l.b16 %v99
    %v775 = vunpack.c.h.b16 %v99
    %v776 = vunpack.c.l.b16 %v100
    %v777 = vunpack.c.h.b16 %v100
    %v778 = vunpack.c.l.b16 %v101
    %v779 = vunpack.c.h.b16 %v101
    %v780 = vunpack.c.l.b16 %v102
    %v781 = vunpack.c.h.b16 %v102
    %v782 = vunpack.c.l.b16 %v103
    %v783 = vunpack.c.h.b16 %v103
    %v784 = vunpack.c.l.b16 %v104
    %v785 = vunpack.c.h.b16 %v104
    %v786 = vunpack.c.l.b16 %v105
    %v787 = vunpack.c.h.b16 %v105
    %v788 = vunpack.c.l.b16 %v106
    %v789 = vunpack.c.h.b16 %v106
    %v790 = vunpack.c.l.b16 %v107
    %v791 = vunpack.c.h.b16 %v107
    %v792 = vunpack.c.l.b16 %v108
    %v793 = vunpack.c.h.b16 %v108
    %v794 = vunpack.c.l.b16 %v109
    %v795 = vunpack.c.h.b16 %v109
    %v796 = vunpack.c.l.b16 %v110
    %v797 = vunpack.c.h.b16 %v110
    %v798 = vunpack.c.l.b16 %v111
    %v799 = vunpack.c.h.b16 %v111
    %v800 = vunpack.c.l.b16 %v112
    %v801 = vunpack.c.h.b16 %v112
    %v802 = vunpack.c.l.b16 %v113
    %v803 = vunpack.c.h.b16 %v113
    %v804 = vunpack.c.l.b16 %v114
    %v805 = vunpack.c.h.b16 %v114
    %v806 = vunpack.c.l.b16 %v115
    %v807 = vunpack.c.h.b16 %v115
    %v808 = vunpack.c.l.b16 %v116
    %v809 = vunpack.c.h.b16 %v116
    %v810 = vunpack.c.l.b16 %v117
    %v811 = vunpack.c.h.b16 %v117
    %v812 = vunpack.c.l.b16 %v118
    %v813 = vunpack.c.h.b16 %v118
    %v814 = vunpack.c.l.b16 %v119
    %v815 = vunpack.c.h.b16 %v119
    %v816 = vunpack.c.l.b16 %v120
    %v817 = vunpack.c.h.b16 %v120
    %v818 = vunpack.c.l.b16 %v121
    %v819 = vunpack.c.h.b16 %v121
    %v820 = vunpack.c.l.b16 %v122
    %v821 = vunpack.c.h.b16 %v122
    %v822 = vunpack.c.l.b16 %v123
    %v823 = vunpack.c.h.b16 %v123
    %v824 = vunpack.c.l.b16 %v124
    %v825 = vunpack.c.h.b16 %v124
    %v826 = vunpack.c.l.b16 %v125
    %v827 = vunpack.c.h.b16 %v125
    %v828 = vunpack.c.l.b16 %v126
    %v829 = vunpack.c.h.b16 %v126
    %v830 = vunpack.c.l.b16 %v127
    %v831 = vunpack.c.h.b16 %v127
    %v832 = vunpack.c.l.b16 %v128
    %v833 = vunpack.c.h.b16 %v128
    %v834 = vunpack.c.l.b16 %v129
    %v835 = vunpack.c.h.b16 %v129
    %v836 = vunpack.c.l.b16 %v130
    %v837 = vunpack.c.h.b16 %v130
    %v838 = vunpack.c.l.b16 %v131
    %v839 = vunpack.c.h.b16 %v131
    %v840 = vunpack.c.l.b16 %v132
    %v841 = vunpack.c.h.b16 %v132
    %v842 = vunpack.c.l.b16 %v133
    %v843 = vunpack.c.h.b16 %v133
    %v844 = vunpack.c.l.b16 %v134
    %v845 = vunpack.c.h.b16 %v134
    %v846 = vunpack.c.l.b16 %v135
    %v847 = vunpack.c.h.b16 %v135
    %v848 = vunpack.c.l.b16 %v136
    %v849 = vunpack.c.h.b16 %v136
    %v850 = vunpack.c.l.b16 %v137
    %v851 = vunpack.c.h.b16 %v137
    %v852 = vunpack.c.l.b16 %v138
    %v853 = vunpack.c.h.b16 %v138
    %v854 = vunpack.c.l.b16 %v139
    %v855 = vunpack.c.h.b16 %v139
    %v856 = vunpack.c.l.b16 %v140
    %v857 = vunpack.c.h.b16 %v140
    %v858 = vunpack.c.l.b16 %v141
    %v859 = vunpack.c.h.b16 %v141
    %v860 = vunpack.c.l.b16 %v142
    %v861 = vunpack.c.h.b16 %v142
    %v862 = vunpack.c.l.b16 %v143
    %v863 = vunpack.c.h.b16 %v143
    %v864 = vunpack.c.l.b16 %v144
    %v865 = vunpack.c.h.b16 %v144
    %v866 = vunpack.c.l.b16 %v145
    %v867 = vunpack.c.h.b16 %v145
    %v868 = vunpack.c.l.b16 %v146
    %v869 = vunpack.c.h.b16 %v146
    %v870 = vunpack.c.l.b16 %v147
    %v871 = vunpack.c.h.b16 %v147
    %v872 = vunpack.c.l.b16 %v148
    %v873 = vunpack.c.h.b16 %v148
    %v874 = vunpack.c.l.b16 %v149
    %v875 = vunpack.c.h.b16 %v149
    %v876 = vunpack.c.l.b16 %v150
    %v877 = vunpack.c.h.b16 %v150
    %v878 = vunpack.c.l.b16 %v151
    %v879 = vunpack.c.h.b16 %v151
    %v880 = vunpack.c.l.b16 %v152
    %v881 = vunpack.c.h.b16 %v152
    %v882 = vunpack.c.l.b16 %v153
    %v883 = vunpack.c.h.b16 %v153
    %v884 = vunpack.c.l.b16 %v154
    %v885 = vunpack.c.h.b16 %v154
    %v886 = vunpack.c.l.b16 %v155
    %v887 = vunpack.c.h.b16 %v155
    %v888 = vunpack.c.l.b16 %v156
    %v889 = vunpack.c.h.b16 %v156
    %v890 = vunpack.c.l.b16 %v157
    %v891 = vunpack.c.h.b16 %v157
    %v892 = vunpack.c.l.b16 %v158
    %v893 = vunpack.c.h.b16 %v158
    %v894 = vunpack.c.l.b16 %v159
    %v895 = vunpack.c.h.b16 %v159
    %v896 = vunpack.c.l.b16 %v160
    %v897 = vunpack.c.h.b16 %v160
    %v898 = vunpack.c.l.b16 %v161
    %v899 = vunpack.c.h.b16 %v161
    %v900 = vunpack.c.l.b16 %v162
    %v901 = vunpack.c.h.b16 %v162
    %v902 = vunpack.c.l.b16 %v163
    %v903 = vunpack.c.h.b16 %v163
    %v904 = vunpack.c.l.b16 %v164
    %v905 = vunpack.c.h.b16 %v164
    %v906 = vunpack.c.l.b16 %v165
    %v907 = vunpack.c.h.b16 %v165
    %v908 = vunpack.c.l.b16 %v166
    %v909 = vunpack.c.h.b16 %v166
    %v910 = vunpack.c.l.b16 %v167
    %v911 = vunpack.c.h.b16 %v167
    %v912 = vunpack.c.l.b16 %v168
    %v913 = vunpack.c.h.b16 %v168
    %v914 = vunpack.c.l.b16 %v169
    %v915 = vunpack.c.h.b16 %v169
    %v916 = vunpack.c.l.b16 %v170
    %v917 = vunpack.c.h.b16 %v170
    %v918 = vunpack.c.l.b16 %v171
    %v919 = vunpack.c.h.b16 %v171
    %v920 = vunpack.c.l.b16 %v172
    %v921 = vunpack.c.h.b16 %v172
    %v922 = vunpack.c.l.b16 %v173
    %v923 = vunpack.c.h.b16 %v173
    %v924 = vunpack.c.l.b16 %v174
    %v925 = vunpack.c.h.b16 %v174
    %v926 = vunpack.c.l.b16 %v175
    %v927 = vunpack.c.h.b16 %v175
    %v928 = vunpack.c.l.b16 %v176
    %v929 = vunpack.c.h.b16 %v176
    %v930 = vunpack.c.l.b16 %v177
    %v931 = vunpack.c.h.b16 %v177
    %v932 = vunpack.c.l.b16 %v178
    %v933 = vunpack.c.h.b16 %v178
    %v934 = vunpack.c.l.b16 %v179
    %v935 = vunpack.c.h.b16 %v179
    %v936 = vunpack.c.l.b16 %v180
    %v937 = vunpack.c.h.b16 %v180
    %v938 = vunpack.c.l.b16 %v181
    %v939 = vunpack.c.h.b16 %v181
    %v940 = vunpack.c.l.b16 %v182
    %v941 = vunpack.c.h.b16 %v182
    %v942 = vunpack.c.l.b16 %v183
    %v943 = vunpack.c.h.b16 %v183
    %v944 = vunpack.c.l.b16 %v184
    %v945 = vunpack.c.h.b16 %v184
    %v946 = vunpack.c.l.b16 %v185
    %v947 = vunpack.c.h.b16 %v185
    %v948 = vunpack.c.l.b16 %v186
    %v949 = vunpack.c.h.b16 %v186
    %v950 = vunpack.c.l.b16 %v187
    %v951 = vunpack.c.h.b16 %v187
    %v952 = vunpack.c.l.b16 %v188
    %v953 = vunpack.c.h.b16 %v188
    %v954 = vunpack.c.l.b16 %v189
    %v955 = vunpack.c.h.b16 %v189
    %v956 = vunpack.c.l.b16 %v190
    %v957 = vunpack.c.h.b16 %v190
    %v958 = vunpack.c.l.b16 %v191
    %v959 = vunpack.c.h.b16 %v191
    %v960 = vunpack.c.l.b16 %v192
    %v961 = vunpack.c.h.b16 %v192
    %v962 = vunpack.c.l.b16 %v193
    %v963 = vunpack.c.h.b16 %v193
    %v964 = vunpack.c.l.b16 %v194
    %v965 = vunpack.c.h.b16 %v194
    %v966 = vunpack.c.l.b16 %v195
    %v967 = vunpack.c.h.b16 %v195
    %v968 = vunpack.c.l.b16 %v196
    %v969 = vunpack.c.h.b16 %v196
    %v970 = vunpack.c.l.b16 %v197
    %v971 = vunpack.c.h.b16 %v197
    %v972 = vunpack.c.l.b16 %v198
    %v973 = vunpack.c.h.b16 %v198
    %v974 = vunpack.c.l.b16 %v199
    %v975 = vunpack.c.h.b16 %v199
    %v976 = vunpack.c.l.b16 %v200
    %v977 = vunpack.c.h.b16 %v200
    %v978 = vunpack.c.l.b16 %v201
    %v979 = vunpack.c.h.b16 %v201
    %v980 = vunpack.c.l.b16 %v202
    %v981 = vunpack.c.h.b16 %v202
    %v982 = vunpack.c.l.b16 %v203
    %v983 = vunpack.c.h.b16 %v203
    %v984 = vunpack.c.l.b16 %v204
    %v985 = vunpack.c.h.b16 %v204
    %v986 = vunpack.c.l.b16 %v205
    %v987 = vunpack.c.h.b16 %v205
    %v988 = vunpack.c.l.b16 %v206
    %v989 = vunpack.c.h.b16 %v206
    %v990 = vunpack.c.l.b16 %v207
    %v991 = vunpack.c.h.b16 %v207
    %v992 = vunpack.c.l.b16 %v208
    %v993 = vunpack.c.h.b16 %v208
    %v994 = vunpack.c.l.b16 %v209
    %v995 = vunpack.c.h.b16 %v209
    %v996 = vunpack.c.l.b16 %v210
    %v997 = vunpack.c.h.b16 %v210
    %v998 = vunpack.c.l.b16 %v211
    %v999 = vunpack.c.h.b16 %v211
    %v1000 = vunpack.c.l.b16 %v212
    %v1001 = vunpack.c.h.b16 %v212
    %v1002 = vunpack.c.l.b16 %v213
    %v1003 = vunpack.c.h.b16 %v213
    %v1004 = vunpack.c.l.b16 %v214
    %v1005 = vunpack.c.h.b16 %v214
    %v1006 = vunpack.c.l.b16 %v215
    %v1007 = vunpack.c.h.b16 %v215
    %v1008 = vunpack.c.l.b16 %v216
    %v1009 = vunpack.c.h.b16 %v216
    %v1010 = vunpack.c.l.b16 %v217
    %v1011 = vunpack.c.h.b16 %v217
    %v1012 = vunpack.c.l.b16 %v218
    %v1013 = vunpack.c.h.b16 %v218
    %v1014 = vunpack.c.l.b16 %v219
    %v1015 = vunpack.c.h.b16 %v219
    %v1016 = vunpack.c.l.b16 %v220
    %v1017 = vunpack.c.h.b16 %v220
    %v1018 = vunpack.c.l.b16 %v221
    %v1019 = vunpack.c.h.b16 %v221
    %v1020 = vunpack.c.l.b16 %v222
    %v1021 = vunpack.c.h.b16 %v222
    %v1022 = vunpack.c.l.b16 %v223
    %v1023 = vunpack.c.h.b16 %v223
    %v1024 = vunpack.c.l.b16 %v224
    %v1025 = vunpack.c.h.b16 %v224
    %v1026 = vunpack.c.l.b16 %v225
    %v1027 = vunpack.c.h.b16 %v225
    %v1028 = vunpack.c.l.b16 %v226
    %v1029 = vunpack.c.h.b16 %v226
    %v1030 = vunpack.c.l.b16 %v227
    %v1031 = vunpack.c.h.b16 %v227
    %v1032 = vunpack.c.l.b16 %v228
    %v1033 = vunpack.c.h.b16 %v228
    %v1034 = vunpack.c.l.b16 %v229
    %v1035 = vunpack.c.h.b16 %v229
    %v1036 = vunpack.c.l.b16 %v230
    %v1037 = vunpack.c.h.b16 %v230
    %v1038 = vunpack.c.l.b16 %v231
    %v1039 = vunpack.c.h.b16 %v231
    %v1040 = vunpack.c.l.b16 %v232
    %v1041 = vunpack.c.h.b16 %v232
    %v1042 = vunpack.c.l.b16 %v233
    %v1043 = vunpack.c.h.b16 %v233
    %v1044 = vunpack.c.l.b16 %v234
    %v1045 = vunpack.c.h.b16 %v234
    %v1046 = vunpack.c.l.b16 %v235
    %v1047 = vunpack.c.h.b16 %v235
    %v1048 = vunpack.c.l.b16 %v236
    %v1049 = vunpack.c.h.b16 %v236
    %v1050 = vunpack.c.l.b16 %v237
    %v1051 = vunpack.c.h.b16 %v237
    %v1052 = vunpack.c.l.b16 %v238
    %v1053 = vunpack.c.h.b16 %v238
    %v1054 = vunpack.c.l.b16 %v239
    %v1055 = vunpack.c.h.b16 %v239
    %v1056 = vunpack.c.l.b16 %v240
    %v1057 = vunpack.c.h.b16 %v240
    %v1058 = vunpack.c.l.b16 %v241
    %v1059 = vunpack.c.h.b16 %v241
    %v1060 = vunpack.c.l.b16 %v242
    %v1061 = vunpack.c.h.b16 %v242
    %v1062 = vunpack.c.l.b16 %v243
    %v1063 = vunpack.c.h.b16 %v243
    %v1064 = vunpack.c.l.b16 %v244
    %v1065 = vunpack.c.h.b16 %v244
    %v1066 = vunpack.c.l.b16 %v245
    %v1067 = vunpack.c.h.b16 %v245
    %v1068 = vunpack.c.l.b16 %v246
    %v1069 = vunpack.c.h.b16 %v246
    %v1070 = vunpack.c.l.b16 %v247
    %v1071 = vunpack.c.h.b16 %v247
    %v1072 = vunpack.c.l.b16 %v248
    %v1073 = vunpack.c.h.b16 %v248
    %v1074 = vunpack.c.l.b16 %v249
    %v1075 = vunpack.c.h.b16 %v249
    %v1076 = vunpack.c.l.b16 %v250
    %v1077 = vunpack.c.h.b16 %v250
    %v1078 = vunpack.c.l.b16 %v251
    %v1079 = vunpack.c.h.b16 %v251
    %v1080 = vunpack.c.l.b16 %v252
    %v1081 = vunpack.c.h.b16 %v252
    %v1082 = vunpack.c.l.b16 %v253
    %v1083 = vunpack.c.h.b16 %v253
    %v1084 = vunpack.c.l.b16 %v254
    %v1085 = vunpack.c.h.b16 %v254
    %v1086 = vunpack.c.l.b16 %v255
    %v1087 = vunpack.c.h.b16 %v255
    %v1088 = vunpack.c.l.b16 %v256
    %v1089 = vunpack.c.h.b16 %v256
    %v1090 = vunpack.c.l.b16 %v257
    %v1091 = vunpack.c.h.b16 %v257
    %v1092 = vunpack.c.l.b16 %v258
    %v1093 = vunpack.c.h.b16 %v258
    %v1094 = vunpack.c.l.b16 %v259
    %v1095 = vunpack.c.h.b16 %v259
    %v1096 = vunpack.c.l.b16 %v260
    %v1097 = vunpack.c.h.b16 %v260
    %v1098 = vunpack.c.l.b16 %v261
    %v1099 = vunpack.c.h.b16 %v261
    %v1100 = vunpack.c.l.b16 %v262
    %v1101 = vunpack.c.h.b16 %v262
    %v1102 = vunpack.c.l.b16 %v263
    %v1103 = vunpack.c.h.b16 %v263
    %v1104 = vunpack.c.l.b16 %v264
    %v1105 = vunpack.c.h.b16 %v264
    %v1106 = vunpack.c.l.b16 %v265
    %v1107 = vunpack.c.h.b16 %v265
    %v1108 = vunpack.c.l.b16 %v266
    %v1109 = vunpack.c.h.b16 %v266
    %v1110 = vunpack.c.l.b16 %v267
    %v1111 = vunpack.c.h.b16 %v267
    %v1112 = vunpack.c.l.b16 %v268
    %v1113 = vunpack.c.h.b16 %v268
    %v1114 = vunpack.c.l.b16 %v269
    %v1115 = vunpack.c.h.b16 %v269
    %v1116 = vunpack.c.l.b16 %v270
    %v1117 = vunpack.c.h.b16 %v270
    %v1118 = vunpack.c.l.b16 %v271
    %v1119 = vunpack.c.h.b16 %v271
    %v1120 = vunpack.c.l.b16 %v272
    %v1121 = vunpack.c.h.b16 %v272
    %v1122 = vunpack.c.l.b16 %v273
    %v1123 = vunpack.c.h.b16 %v273
    %v1124 = vunpack.c.l.b16 %v274
    %v1125 = vunpack.c.h.b16 %v274
    %v1126 = vunpack.c.l.b16 %v275
    %v1127 = vunpack.c.h.b16 %v275
    %v1128 = vunpack.c.l.b16 %v276
    %v1129 = vunpack.c.h.b16 %v276
    %v1130 = vunpack.c.l.b16 %v277
    %v1131 = vunpack.c.h.b16 %v277
    %v1132 = vunpack.c.l.b16 %v278
    %v1133 = vunpack.c.h.b16 %v278
    %v1134 = vunpack.c.l.b16 %v279
    %v1135 = vunpack.c.h.b16 %v279
    %v1136 = vunpack.c.l.b16 %v280
    %v1137 = vunpack.c.h.b16 %v280
    %v1138 = vunpack.c.l.b16 %v281
    %v1139 = vunpack.c.h.b16 %v281
    %v1140 = vunpack.c.l.b16 %v282
    %v1141 = vunpack.c.h.b16 %v282
    %v1142 = vunpack.c.l.b16 %v283
    %v1143 = vunpack.c.h.b16 %v283
    %v1144 = vunpack.c.l.b16 %v284
    %v1145 = vunpack.c.h.b16 %v284
    %v1146 = vunpack.c.l.b16 %v285
    %v1147 = vunpack.c.h.b16 %v285
    %v1148 = vunpack.c.l.b16 %v286
    %v1149 = vunpack.c.h.b16 %v286
    %v1150 = vunpack.c.l.b16 %v287
    %v1151 = vunpack.c.h.b16 %v287
    %v1152 = vunpack.c.l.b16 %v288
    %v1153 = vunpack.c.h.b16 %v288
    %v1154 = vunpack.c.l.b16 %v289
    %v1155 = vunpack.c.h.b16 %v289
    %v1156 = vunpack.c.l.b16 %v290
    %v1157 = vunpack.c.h.b16 %v290
    %v1158 = vunpack.c.l.b16 %v291
    %v1159 = vunpack.c.h.b16 %v291
    %v1160 = vunpack.c.l.b16 %v292
    %v1161 = vunpack.c.h.b16 %v292
    %v1162 = vunpack.c.l.b16 %v293
    %v1163 = vunpack.c.h.b16 %v293
    %v1164 = vunpack.c.l.b16 %v294
    %v1165 = vunpack.c.h.b16 %v294
    %v1166 = vunpack.c.l.b16 %v295
    %v1167 = vunpack.c.h.b16 %v295
    %v1168 = vunpack.c.l.b16 %v296
    %v1169 = vunpack.c.h.b16 %v296
    %v1170 = vunpack.c.l.b16 %v297
    %v1171 = vunpack.c.h.b16 %v297
    %v1172 = vunpack.c.l.b16 %v298
    %v1173 = vunpack.c.h.b16 %v298
    %v1174 = vunpack.c.l.b16 %v299
    %v1175 = vunpack.c.h.b16 %v299
    %v1176 = vunpack.c.l.b16 %v300
    %v1177 = vunpack.c.h.b16 %v300
    %v1178 = vunpack.c.l.b16 %v301
    %v1179 = vunpack.c.h.b16 %v301
    %v1180 = vunpack.c.l.b16 %v302
    %v1181 = vunpack.c.h.b16 %v302
    %v1182 = vunpack.c.l.b16 %v303
    %v1183 = vunpack.c.h.b16 %v303
    %v1184 = vunpack.c.l.b16 %v304
    %v1185 = vunpack.c.h.b16 %v304
    %v1186 = vunpack.c.l.b16 %v305
    %v1187 = vunpack.c.h.b16 %v305
    %v1188 = vunpack.c.l.b16 %v306
    %v1189 = vunpack.c.h.b16 %v306
    %v1190 = vunpack.c.l.b16 %v307
    %v1191 = vunpack.c.h.b16 %v307
    %v1192 = vunpack.c.l.b16 %v308
    %v1193 = vunpack.c.h.b16 %v308
    %v1194 = vunpack.c.l.b16 %v309
    %v1195 = vunpack.c.h.b16 %v309
    %v1196 = vunpack.c.l.b16 %v310
    %v1197 = vunpack.c.h.b16 %v310
    %v1198 = vunpack.c.l.b16 %v311
    %v1199 = vunpack.c.h.b16 %v311
    %v1200 = vunpack.c.l.b16 %v312
    %v1201 = vunpack.c.h.b16 %v312
    %v1202 = vunpack.c.l.b16 %v313
    %v1203 = vunpack.c.h.b16 %v313
    %v1204 = vunpack.c.l.b16 %v314
    %v1205 = vunpack.c.h.b16 %v314
    %v1206 = vunpack.c.l.b16 %v315
    %v1207 = vunpack.c.h.b16 %v315
    %v1208 = vunpack.c.l.b16 %v316
    %v1209 = vunpack.c.h.b16 %v316
    %v1210 = vunpack.c.l.b16 %v317
    %v1211 = vunpack.c.h.b16 %v317
    %v1212 = vunpack.c.l.b16 %v318
    %v1213 = vunpack.c.h.b16 %v318
    %v1214 = vunpack.c.l.b16 %v319
    %v1215 = vunpack.c.h.b16 %v319
    %v1216 = vpack.c.b16 %v644, %v640
    %v1217 = vpack.c.b16 %v645, %v641
    %v1218 = vpack.c.b16 %v646, %v642
    %v1219 = vpack.c.b16 %v647, %v643
    %v1220 = vpack.c.b16 %v652, %v648
    %v1221 = vpack.c.b16 %v653, %v649
    %v1222 = vpack.c.b16 %v654, %v650
    %v1223 = vpack.c.b16 %v655, %v651
    %v1224 = vpack.c.b16 %v660, %v656
    %v1225 = vpack.c.b16 %v661, %v657
    %v1226 = vpack.c.b16 %v662, %v658
    %v1227 = vpack.c.b16 %v663, %v659
    %v1228 = vpack.c.b16 %v668, %v664
    %v1229 = vpack.c.b16 %v669, %v665
    %v1230 = vpack.c.b16 %v670, %v666
    %v1231 = vpack.c.b16 %v671, %v667
    %v1232 = vpack.c.b16 %v676, %v672
    %v1233 = vpack.c.b16 %v677, %v673
    %v1234 = vpack.c.b16 %v678, %v674
    %v1235 = vpack.c.b16 %v679, %v675
    %v1236 = vpack.c.b16 %v684, %v680
    %v1237 = vpack.c.b16 %v685, %v681
    %v1238 = vpack.c.b16 %v686, %v682
    %v1239 = vpack.c.b16 %v687, %v683
    %v1240 = vpack.c.b16 %v692, %v688
    %v1241 = vpack.c.b16 %v693, %v689
    %v1242 = vpack.c.b16 %v694, %v690
    %v1243 = vpack.c.b16 %v695, %v691
    %v1244 = vpack.c.b16 %v700, %v696
    %v1245 = vpack.c.b16 %v701, %v697
    %v1246 = vpack.c.b16 %v702, %v698
    %v1247 = vpack.c.b16 %v703, %v699
    %v1248 = vpack.c.b16 %v708, %v704
    %v1249 = vpack.c.b16 %v709, %v705
    %v1250 = vpack.c.b16 %v710, %v706
    %v1251 = vpack.c.b16 %v711, %v707
    %v1252 = vpack.c.b16 %v716, %v712
    %v1253 = vpack.c.b16 %v717, %v713
    %v1254 = vpack.c.b16 %v718, %v714
    %v1255 = vpack.c.b16 %v719, %v715
    %v1256 = vpack.c.b16 %v724, %v720
    %v1257 = vpack.c.b16 %v725, %v721
    %v1258 = vpack.c.b16 %v726, %v722
    %v1259 = vpack.c.b16 %v727, %v723
    %v1260 = vpack.c.b16 %v732, %v728
    %v1261 = vpack.c.b16 %v733, %v729
    %v1262 = vpack.c.b16 %v734, %v730
    %v1263 = vpack.c.b16 %v735, %v731
    %v1264 = vpack.c.b16 %v740, %v736
    %v1265 = vpack.c.b16 %v741, %v737
    %v1266 = vpack.c.b16 %v742, %v738
    %v1267 = vpack.c.b16 %v743, %v739
    %v1268 = vpack.c.b16 %v748, %v744
    %v1269 = vpack.c.b16 %v749, %v745
    %v1270 = vpack.c.b16 %v750, %v746
    %v1271 = vpack.c.b16 %v751, %v747
    %v1272 = vpack.c.b16 %v756, %v752
    %v1273 = vpack.c.b16 %v757, %v753
    %v1274 = vpack.c.b16 %v758, %v754
    %v1275 = vpack.c.b16 %v759, %v755
    %v1276 = vpack.c.b16 %v764, %v760
    %v1277 = vpack.c.b16 %v765, %v761
    %v1278 = vpack.c.b16 %v766, %v762
    %v1279 = vpack.c.b16 %v767, %v763
    %v1280 = vpack.c.b16 %v772, %v768
    %v1281 = vpack.c.b16 %v773, %v769
    %v1282 = vpack.c.b16 %v774, %v770
    %v1283 = vpack.c.b16 %v775, %v771
    %v1284 = vpack.c.b16 %v780, %v776
    %v1285 = vpack.c.b16 %v781, %v777
    %v1286 = vpack.c.b16 %v782, %v778
    %v1287 = vpack.c.b16 %v783, %v779
    %v1288 = vpack.c.b16 %v788, %v784
    %v1289 = vpack.c.b16 %v789, %v785
    %v1290 = vpack.c.b16 %v790, %v786
    %v1291 = vpack.c.b16 %v791, %v787
    %v1292 = vpack.c.b16 %v796, %v792
    %v1293 = vpack.c.b16 %v797, %v793
    %v1294 = vpack.c.b16 %v798, %v794
    %v1295 = vpack.c.b16 %v799, %v795
    %v1296 = vpack.c.b16 %v804, %v800
    %v1297 = vpack.c.b16 %v805, %v801
    %v1298 = vpack.c.b16 %v806, %v802
    %v1299 = vpack.c.b16 %v807, %v803
    %v1300 = vpack.c.b16 %v812, %v808
    %v1301 = vpack.c.b16 %v813, %v809
    %v1302 = vpack.c.b16 %v814, %v810
    %v1303 = vpack.c.b16 %v815, %v811
    %v1304 = vpack.c.b16 %v820, %v816
    %v1305 = vpack.c.b16 %v821, %v817
    %v1306 = vpack.c.b16 %v822, %v818
    %v1307 = vpack.c.b16 %v823, %v819
    %v1308 = vpack.c.b16 %v828, %v824
    %v1309 = vpack.c.b16 %v829, %v825
    %v1310 = vpack.c.b16 %v830, %v826
    %v1311 = vpack.c.b16 %v831, %v827
    %v1312 = vpack.c.b16 %v836, %v832
    %v1313 = vpack.c.b16 %v837, %v833
    %v1314 = vpack.c.b16 %v838, %v834
    %v1315 = vpack.c.b16 %v839, %v835
    %v1316 = vpack.c.b16 %v844, %v840
    %v1317 = vpack.c.b16 %v845, %v841
    %v1318 = vpack.c.b16 %v846, %v842
    %v1319 = vpack.c.b16 %v847, %v843
    %v1320 = vpack.c.b16 %v852, %v848
    %v1321 = vpack.c.b16 %v853, %v849
    %v1322 = vpack.c.b16 %v854, %v850
    %v1323 = vpack.c.b16 %v855, %v851
    %v1324 = vpack.c.b16 %v860, %v856
    %v1325 = vpack.c.b16 %v861, %v857
    %v1326 = vpack.c.b16 %v862, %v858
    %v1327 = vpack.c.b16 %v863, %v859
    %v1328 = vpack.c.b16 %v868, %v864
    %v1329 = vpack.c.b16 %v869, %v865
    %v1330 = vpack.c.b16 %v870, %v866
    %v1331 = vpack.c.b16 %v871, %v867
    %v1332 = vpack.c.b16 %v876, %v872
    %v1333 = vpack.c.b16 %v877, %v873
    %v1334 = vpack.c.b16 %v878, %v874
    %v1335 = vpack.c.b16 %v879, %v875
    %v1336 = vpack.c.b16 %v884, %v880
    %v1337 = vpack.c.b16 %v885, %v881
    %v1338 = vpack.c.b16 %v886, %v882
    %v1339 = vpack.c.b16 %v887, %v883
    %v1340 = vpack.c.b16 %v892, %v888
    %v1341 = vpack.c.b16 %v893, %v889
    %v1342 = vpack.c.b16 %v894, %v890
    %v1343 = vpack.c.b16 %v895, %v891
    %v1344 = vpack.c.b16 %v900, %v896
    %v1345 = vpack.c.b16 %v901, %v897
    %v1346 = vpack.c.b16 %v902, %v898
    %v1347 = vpack.c.b16 %v903, %v899
    %v1348 = vpack.c.b16 %v908, %v904
    %v1349 = vpack.c.b16 %v909, %v905
    %v1350 = vpack.c.b16 %v910, %v906
    %v1351 = vpack.c.b16 %v911, %v907
    %v1352 = vpack.c.b16 %v916, %v912
    %v1353 = vpack.c.b16 %v917, %v913
    %v1354 = vpack.c.b16 %v918, %v914
    %v1355 = vpack.c.b16 %v919, %v915
    %v1356 = vpack.c.b16 %v924, %v920
    %v1357 = vpack.c.b16 %v925, %v921
    %v1358 = vpack.c.b16 %v926, %v922
    %v1359 = vpack.c.b16 %v927, %v923
    %v1360 = vpack.c.b16 %v932, %v928
    %v1361 = vpack.c.b16 %v933, %v929
    %v1362 = vpack.c.b16 %v934, %v930
    %v1363 = vpack.c.b16 %v935, %v931
    %v1364 = vpack.c.b16 %v940, %v936
    %v1365 = vpack.c.b16 %v941, %v937
    %v1366 = vpack.c.b16 %v942, %v938
    %v1367 = vpack.c.b16 %v943, %v939
    %v1368 = vpack.c.b16 %v948, %v944
    %v1369 = vpack.c.b16 %v949, %v945
    %v1370 = vpack.c.b16 %v950, %v946
    %v1371 = vpack.c.b16 %v951, %v947
    %v1372 = vpack.c.b16 %v956, %v952
    %v1373 = vpack.c.b16 %v957, %v953
    %v1374 = vpack.c.b16 %v958, %v954
    %v1375 = vpack.c.b16 %v959, %v955
    %v1376 = vpack.c.b16 %v964, %v960
    %v1377 = vpack.c.b16 %v965, %v961
    %v1378 = vpack.c.b16 %v966, %v962
    %v1379 = vpack.c.b16 %v967, %v963
    %v1380 = vpack.c.b16 %v972, %v968
    %v1381 = vpack.c.b16 %v973, %v969
    %v1382 = vpack.c.b16 %v974, %v970
    %v1383 = vpack.c.b16 %v975, %v971
    %v1384 = vpack.c.b16 %v980, %v976
    %v1385 = vpack.c.b16 %v981, %v977
    %v1386 = vpack.c.b16 %v982, %v978
    %v1387 = vpack.c.b16 %v983, %v979
    %v1388 = vpack.c.b16 %v988, %v984
    %v1389 = vpack.c.b16 %v989, %v985
    %v1390 = vpack.c.b16 %v990, %v986
    %v1391 = vpack.c.b16 %v991, %v987
    %v1392 = vpack.c.b16 %v996, %v992
    %v1393 = vpack.c.b16 %v997, %v993
    %v1394 = vpack.c.b16 %v998, %v994
    %v1395 = vpack.c.b16 %v999, %v995
    %v1396 = vpack.c.b16 %v1004, %v1000
    %v1397 = vpack.c.b16 %v1005, %v1001
    %v1398 = vpack.c.b16 %v1006, %v1002
    %v1399 = vpack.c.b16 %v1007, %v1003
    %v1400 = vpack.c.b16 %v1012, %v1008
    %v1401 = vpack.c.b16 %v1013, %v1009
    %v1402 = vpack.c.b16 %v1014, %v1010
    %v1403 = vpack.c.b16 %v1015, %v1011
    %v1404 = vpack.c.b16 %v1020, %v1016
    %v1405 = vpack.c.b16 %v1021, %v1017
    %v1406 = vpack.c.b16 %v1022, %v1018
    %v1407 = vpack.c.b16 %v1023, %v1019
    %v1408 = vpack.c.b16 %v1028, %v1024
    %v1409 = vpack.c.b16 %v1029, %v1025
    %v1410 = vpack.c.b16 %v1030, %v1026
    %v1411 = vpack.c.b16 %v1031, %v1027
    %v1412 = vpack.c.b16 %v1036, %v1032
    %v1413 = vpack.c.b16 %v1037, %v1033
    %v1414 = vpack.c.b16 %v1038, %v1034
    %v1415 = vpack.c.b16 %v1039, %v1035
    %v1416 = vpack.c.b16 %v1044, %v1040
    %v1417 = vpack.c.b16 %v1045, %v1041
    %v1418 = vpack.c.b16 %v1046, %v1042
    %v1419 = vpack.c.b16 %v1047, %v1043
    %v1420 = vpack.c.b16 %v1052, %v1048
    %v1421 = vpack.c.b16 %v1053, %v1049
    %v1422 = vpack.c.b16 %v1054, %v1050
    %v1423 = vpack.c.b16 %v1055, %v1051
    %v1424 = vpack.c.b16 %v1060, %v1056
    %v1425 = vpack.c.b16 %v1061, %v1057
    %v1426 = vpack.c.b16 %v1062, %v1058
    %v1427 = vpack.c.b16 %v1063, %v1059
    %v1428 = vpack.c.b16 %v1068, %v1064
    %v1429 = vpack.c.b16 %v1069, %v1065
    %v1430 = vpack.c.b16 %v1070, %v1066
    %v1431 = vpack.c.b16 %v1071, %v1067
    %v1432 = vpack.c.b16 %v1076, %v1072
    %v1433 = vpack.c.b16 %v1077, %v1073
    %v1434 = vpack.c.b16 %v1078, %v1074
    %v1435 = vpack.c.b16 %v1079, %v1075
    %v1436 = vpack.c.b16 %v1084, %v1080
    %v1437 = vpack.c.b16 %v1085, %v1081
    %v1438 = vpack.c.b16 %v1086, %v1082
    %v1439 = vpack.c.b16 %v1087, %v1083
    %v1440 = vpack.c.b16 %v1092, %v1088
    %v1441 = vpack.c.b16 %v1093, %v1089
    %v1442 = vpack.c.b16 %v1094, %v1090
    %v1443 = vpack.c.b16 %v1095, %v1091
    %v1444 = vpack.c.b16 %v1100, %v1096
    %v1445 = vpack.c.b16 %v1101, %v1097
    %v1446 = vpack.c.b16 %v1102, %v1098
    %v1447 = vpack.c.b16 %v1103, %v1099
    %v1448 = vpack.c.b16 %v1108, %v1104
    %v1449 = vpack.c.b16 %v1109, %v1105
    %v1450 = vpack.c.b16 %v1110, %v1106
    %v1451 = vpack.c.b16 %v1111, %v1107
    %v1452 = vpack.c.b16 %v1116, %v1112
    %v1453 = vpack.c.b16 %v1117, %v1113
    %v1454 = vpack.c.b16 %v1118, %v1114
    %v1455 = vpack.c.b16 %v1119, %v1115
    %v1456 = vpack.c.b16 %v1124, %v1120
    %v1457 = vpack.c.b16 %v1125, %v1121
    %v1458 = vpack.c.b16 %v1126, %v1122
    %v1459 = vpack.c.b16 %v1127, %v1123
    %v1460 = vpack.c.b16 %v1132, %v1128
    %v1461 = vpack.c.b16 %v1133, %v1129
    %v1462 = vpack.c.b16 %v1134, %v1130
    %v1463 = vpack.c.b16 %v1135, %v1131
    %v1464 = vpack.c.b16 %v1140, %v1136
    %v1465 = vpack.c.b16 %v1141, %v1137
    %v1466 = vpack.c.b16 %v1142, %v1138
    %v1467 = vpack.c.b16 %v1143, %v1139
    %v1468 = vpack.c.b16 %v1148, %v1144
    %v1469 = vpack.c.b16 %v1149, %v1145
    %v1470 = vpack.c.b16 %v1150, %v1146
    %v1471 = vpack.c.b16 %v1151, %v1147
    %v1472 = vpack.c.b16 %v1156, %v1152
    %v1473 = vpack.c.b16 %v1157, %v1153
    %v1474 = vpack.c.b16 %v1158, %v1154
    %v1475 = vpack.c.b16 %v1159, %v1155
    %v1476 = vpack.c.b16 %v1164, %v1160
    %v1477 = vpack.c.b16 %v1165, %v1161
    %v1478 = vpack.c.b16 %v1166, %v1162
    %v1479 = vpack.c.b16 %v1167, %v1163
    %v1480 = vpack.c.b16 %v1172, %v1168
    %v1481 = vpack.c.b16 %v1173, %v1169
    %v1482 = vpack.c.b16 %v1174, %v1170
    %v1483 = vpack.c.b16 %v1175, %v1171
    %v1484 = vpack.c.b16 %v1180, %v1176
    %v1485 = vpack.c.b16 %v1181, %v1177
    %v1486 = vpack.c.b16 %v1182, %v1178
    %v1487 = vpack.c.b16 %v1183, %v1179
    %v1488 = vpack.c.b16 %v1188, %v1184
    %v1489 = vpack.c.b16 %v1189, %v1185
    %v1490 = vpack.c.b16 %v1190, %v1186
    %v1491 = vpack.c.b16 %v1191, %v1187
    %v1492 = vpack.c.b16 %v1196, %v1192
    %v1493 = vpack.c.b16 %v1197, %v1193
    %v1494 = vpack.c.b16 %v1198, %v1194
    %v1495 = vpack.c.b16 %v1199, %v1195
    %v1496 = vpack.c.b16 %v1204, %v1200
    %v1497 = vpack.c.b16 %v1205, %v1201
    %v1498 = vpack.c.b16 %v1206, %v1202
    %v1499 = vpack.c.b16 %v1207, %v1203
    %v1500 = vpack.c.b16 %v1212, %v1208
    %v1501 = vpack.c.b16 %v1213, %v1209
    %v1502 = vpack.c.b16 %v1214, %v1210
    %v1503 = vpack.c.b16 %v1215, %v1211
    %1792 = vmatpush.bf16.msra.mxu0 %v1244
    %1793 = vmatpush.bf16.msra.mxu0 %v1240
    %1794 = vmatpush.bf16.msra.mxu0 %v1236
    %1795 = vmatpush.bf16.msra.mxu0 %v1232
    %1796 = vmatpush.bf16.msra.mxu0 %v1228
    %1797 = vmatpush.bf16.msra.mxu0 %v1224
    %1798 = vmatpush.bf16.msra.mxu0 %v1220
    %1799 = vmatpush.bf16.msra.mxu0 %v1216
    %1800 = vmatmul.bf16.gmra.mxu0 %v332
    %v1801 = vpop.f32.mrf.mxu0
    %v1802 = vadd.f32 %v322, %v1801
    %v1803 = vpop.f32.mrf.mxu0
    %1804 = vdwg.mxu0
    %1805 = vmatpush.bf16.msra.mxu0 %v1276
    %1806 = vmatpush.bf16.msra.mxu0 %v1272
    %1807 = vmatpush.bf16.msra.mxu0 %v1268
    %1808 = vmatpush.bf16.msra.mxu0 %v1264
    %1809 = vmatpush.bf16.msra.mxu0 %v1260
    %1810 = vmatpush.bf16.msra.mxu0 %v1256
    %1811 = vmatpush.bf16.msra.mxu0 %v1252
    %1812 = vmatpush.bf16.msra.mxu0 %v1248
    %1813 = vmatmul.bf16.gmra.mxu0 %v333
    %v1814 = vpop.f32.mrf.mxu0
    %v1815 = vadd.f32 %v1802, %v1814
    %v1816 = vpop.f32.mrf.mxu0
    %1817 = vdwg.mxu0
    %1818 = vmatpush.bf16.msra.mxu0 %v1308
    %1819 = vmatpush.bf16.msra.mxu0 %v1304
    %1820 = vmatpush.bf16.msra.mxu0 %v1300
    %1821 = vmatpush.bf16.msra.mxu0 %v1296
    %1822 = vmatpush.bf16.msra.mxu0 %v1292
    %1823 = vmatpush.bf16.msra.mxu0 %v1288
    %1824 = vmatpush.bf16.msra.mxu0 %v1284
    %1825 = vmatpush.bf16.msra.mxu0 %v1280
    %1826 = vmatmul.bf16.gmra.mxu0 %v334
    %v1827 = vpop.f32.mrf.mxu0
    %v1828 = vadd.f32 %v1815, %v1827
    %v1829 = vpop.f32.mrf.mxu0
    %1830 = vdwg.mxu0
    %1831 = vmatpush.bf16.msra.mxu0 %v1340
    %1832 = vmatpush.bf16.msra.mxu0 %v1336
    %1833 = vmatpush.bf16.msra.mxu0 %v1332
    %1834 = vmatpush.bf16.msra.mxu0 %v1328
    %1835 = vmatpush.bf16.msra.mxu0 %v1324
    %1836 = vmatpush.bf16.msra.mxu0 %v1320
    %1837 = vmatpush.bf16.msra.mxu0 %v1316
    %1838 = vmatpush.bf16.msra.mxu0 %v1312
    %1839 = vmatmul.bf16.gmra.mxu0 %v335
    %v1840 = vpop.f32.mrf.mxu0
    %v1841 = vadd.f32 %v1828, %v1840
    %v1842 = vpop.f32.mrf.mxu0
    %1843 = vdwg.mxu0
    %1844 = vmatpush.bf16.msra.mxu0 %v1372
    %1845 = vmatpush.bf16.msra.mxu0 %v1368
    %1846 = vmatpush.bf16.msra.mxu0 %v1364
    %1847 = vmatpush.bf16.msra.mxu0 %v1360
    %1848 = vmatpush.bf16.msra.mxu0 %v1356
    %1849 = vmatpush.bf16.msra.mxu0 %v1352
    %1850 = vmatpush.bf16.msra.mxu0 %v1348
    %1851 = vmatpush.bf16.msra.mxu0 %v1344
    %1852 = vmatmul.bf16.gmra.mxu0 %v336
    %v1853 = vpop.f32.mrf.mxu0
    %v1854 = vadd.f32 %v1841, %v1853
    %v1855 = vpop.f32.mrf.mxu0
    %1856 = vdwg.mxu0
    %1857 = vmatpush.bf16.msra.mxu0 %v1404
    %1858 = vmatpush.bf16.msra.mxu0 %v1400
    %1859 = vmatpush.bf16.msra.mxu0 %v1396
    %1860 = vmatpush.bf16.msra.mxu0 %v1392
    %1861 = vmatpush.bf16.msra.mxu0 %v1388
    %1862 = vmatpush.bf16.msra.mxu0 %v1384
    %1863 = vmatpush.bf16.msra.mxu0 %v1380
    %1864 = vmatpush.bf16.msra.mxu0 %v1376
    %1865 = vmatmul.bf16.gmra.mxu0 %v337
    %v1866 = vpop.f32.mrf.mxu0
    %v1867 = vadd.f32 %v1854, %v1866
    %v1868 = vpop.f32.mrf.mxu0
    %1869 = vdwg.mxu0
    %1870 = vmatpush.bf16.msra.mxu0 %v1436
    %1871 = vmatpush.bf16.msra.mxu0 %v1432
    %1872 = vmatpush.bf16.msra.mxu0 %v1428
    %1873 = vmatpush.bf16.msra.mxu0 %v1424
    %1874 = vmatpush.bf16.msra.mxu0 %v1420
    %1875 = vmatpush.bf16.msra.mxu0 %v1416
    %1876 = vmatpush.bf16.msra.mxu0 %v1412
    %1877 = vmatpush.bf16.msra.mxu0 %v1408
    %1878 = vmatmul.bf16.gmra.mxu0 %v338
    %v1879 = vpop.f32.mrf.mxu0
    %v1880 = vadd.f32 %v1867, %v1879
    %v1881 = vpop.f32.mrf.mxu0
    %1882 = vdwg.mxu0
    %1883 = vmatpush.bf16.msra.mxu0 %v1468
    %1884 = vmatpush.bf16.msra.mxu0 %v1464
    %1885 = vmatpush.bf16.msra.mxu0 %v1460
    %1886 = vmatpush.bf16.msra.mxu0 %v1456
    %1887 = vmatpush.bf16.msra.mxu0 %v1452
    %1888 = vmatpush.bf16.msra.mxu0 %v1448
    %1889 = vmatpush.bf16.msra.mxu0 %v1444
    %1890 = vmatpush.bf16.msra.mxu0 %v1440
    %1891 = vmatmul.bf16.gmra.mxu0 %v339
    %v1892 = vpop.f32.mrf.mxu0
    %v1893 = vadd.f32 %v1880, %v1892
    %v1894 = vpop.f32.mrf.mxu0
    %1895 = vdwg.mxu0
    %1896 = vmatpush.bf16.msra.mxu0 %v1500
    %1897 = vmatpush.bf16.msra.mxu0 %v1496
    %1898 = vmatpush.bf16.msra.mxu0 %v1492
    %1899 = vmatpush.bf16.msra.mxu0 %v1488
    %1900 = vmatpush.bf16.msra.mxu0 %v1484
    %1901 = vmatpush.bf16.msra.mxu0 %v1480
    %1902 = vmatpush.bf16.msra.mxu0 %v1476
    %1903 = vmatpush.bf16.msra.mxu0 %v1472
    %1904 = vmatmul.bf16.gmra.mxu0 %v342
    %v1905 = vpop.f32.mrf.mxu0
    %v1906 = vadd.f32 %v1893, %v1905
    %v1907 = vpop.f32.mrf.mxu0
    %1908 = vdwg.mxu0
    %1909 = vmatpush.bf16.msra.mxu0 %v1245
    %1910 = vmatpush.bf16.msra.mxu0 %v1241
    %1911 = vmatpush.bf16.msra.mxu0 %v1237
    %1912 = vmatpush.bf16.msra.mxu0 %v1233
    %1913 = vmatpush.bf16.msra.mxu0 %v1229
    %1914 = vmatpush.bf16.msra.mxu0 %v1225
    %1915 = vmatpush.bf16.msra.mxu0 %v1221
    %1916 = vmatpush.bf16.msra.mxu0 %v1217
    %1917 = vmatmul.bf16.gmra.mxu0 %v332
    %v1918 = vpop.f32.mrf.mxu0
    %v1919 = vadd.f32 %v323, %v1918
    %v1920 = vpop.f32.mrf.mxu0
    %1921 = vdwg.mxu0
    %1922 = vmatpush.bf16.msra.mxu0 %v1277
    %1923 = vmatpush.bf16.msra.mxu0 %v1273
    %1924 = vmatpush.bf16.msra.mxu0 %v1269
    %1925 = vmatpush.bf16.msra.mxu0 %v1265
    %1926 = vmatpush.bf16.msra.mxu0 %v1261
    %1927 = vmatpush.bf16.msra.mxu0 %v1257
    %1928 = vmatpush.bf16.msra.mxu0 %v1253
    %1929 = vmatpush.bf16.msra.mxu0 %v1249
    %1930 = vmatmul.bf16.gmra.mxu0 %v333
    %v1931 = vpop.f32.mrf.mxu0
    %v1932 = vadd.f32 %v1919, %v1931
    %v1933 = vpop.f32.mrf.mxu0
    %1934 = vdwg.mxu0
    %1935 = vmatpush.bf16.msra.mxu0 %v1309
    %1936 = vmatpush.bf16.msra.mxu0 %v1305
    %1937 = vmatpush.bf16.msra.mxu0 %v1301
    %1938 = vmatpush.bf16.msra.mxu0 %v1297
    %1939 = vmatpush.bf16.msra.mxu0 %v1293
    %1940 = vmatpush.bf16.msra.mxu0 %v1289
    %1941 = vmatpush.bf16.msra.mxu0 %v1285
    %1942 = vmatpush.bf16.msra.mxu0 %v1281
    %1943 = vmatmul.bf16.gmra.mxu0 %v334
    %v1944 = vpop.f32.mrf.mxu0
    %v1945 = vadd.f32 %v1932, %v1944
    %v1946 = vpop.f32.mrf.mxu0
    %1947 = vdwg.mxu0
    %1948 = vmatpush.bf16.msra.mxu0 %v1341
    %1949 = vmatpush.bf16.msra.mxu0 %v1337
    %1950 = vmatpush.bf16.msra.mxu0 %v1333
    %1951 = vmatpush.bf16.msra.mxu0 %v1329
    %1952 = vmatpush.bf16.msra.mxu0 %v1325
    %1953 = vmatpush.bf16.msra.mxu0 %v1321
    %1954 = vmatpush.bf16.msra.mxu0 %v1317
    %1955 = vmatpush.bf16.msra.mxu0 %v1313
    %1956 = vmatmul.bf16.gmra.mxu0 %v335
    %v1957 = vpop.f32.mrf.mxu0
    %v1958 = vadd.f32 %v1945, %v1957
    %v1959 = vpop.f32.mrf.mxu0
    %1960 = vdwg.mxu0
    %1961 = vmatpush.bf16.msra.mxu0 %v1373
    %1962 = vmatpush.bf16.msra.mxu0 %v1369
    %1963 = vmatpush.bf16.msra.mxu0 %v1365
    %1964 = vmatpush.bf16.msra.mxu0 %v1361
    %1965 = vmatpush.bf16.msra.mxu0 %v1357
    %1966 = vmatpush.bf16.msra.mxu0 %v1353
    %1967 = vmatpush.bf16.msra.mxu0 %v1349
    %1968 = vmatpush.bf16.msra.mxu0 %v1345
    %1969 = vmatmul.bf16.gmra.mxu0 %v336
    %v1970 = vpop.f32.mrf.mxu0
    %v1971 = vadd.f32 %v1958, %v1970
    %v1972 = vpop.f32.mrf.mxu0
    %1973 = vdwg.mxu0
    %1974 = vmatpush.bf16.msra.mxu0 %v1405
    %1975 = vmatpush.bf16.msra.mxu0 %v1401
    %1976 = vmatpush.bf16.msra.mxu0 %v1397
    %1977 = vmatpush.bf16.msra.mxu0 %v1393
    %1978 = vmatpush.bf16.msra.mxu0 %v1389
    %1979 = vmatpush.bf16.msra.mxu0 %v1385
    %1980 = vmatpush.bf16.msra.mxu0 %v1381
    %1981 = vmatpush.bf16.msra.mxu0 %v1377
    %1982 = vmatmul.bf16.gmra.mxu0 %v337
    %v1983 = vpop.f32.mrf.mxu0
    %v1984 = vadd.f32 %v1971, %v1983
    %v1985 = vpop.f32.mrf.mxu0
    %1986 = vdwg.mxu0
    %1987 = vmatpush.bf16.msra.mxu0 %v1437
    %1988 = vmatpush.bf16.msra.mxu0 %v1433
    %1989 = vmatpush.bf16.msra.mxu0 %v1429
    %1990 = vmatpush.bf16.msra.mxu0 %v1425
    %1991 = vmatpush.bf16.msra.mxu0 %v1421
    %1992 = vmatpush.bf16.msra.mxu0 %v1417
    %1993 = vmatpush.bf16.msra.mxu0 %v1413
    %1994 = vmatpush.bf16.msra.mxu0 %v1409
    %1995 = vmatmul.bf16.gmra.mxu0 %v338
    %v1996 = vpop.f32.mrf.mxu0
    %v1997 = vadd.f32 %v1984, %v1996
    %v1998 = vpop.f32.mrf.mxu0
    %1999 = vdwg.mxu0
    %2000 = vmatpush.bf16.msra.mxu0 %v1469
    %2001 = vmatpush.bf16.msra.mxu0 %v1465
    %2002 = vmatpush.bf16.msra.mxu0 %v1461
    %2003 = vmatpush.bf16.msra.mxu0 %v1457
    %2004 = vmatpush.bf16.msra.mxu0 %v1453
    %2005 = vmatpush.bf16.msra.mxu0 %v1449
    %2006 = vmatpush.bf16.msra.mxu0 %v1445
    %2007 = vmatpush.bf16.msra.mxu0 %v1441
    %2008 = vmatmul.bf16.gmra.mxu0 %v339
    %v2009 = vpop.f32.mrf.mxu0
    %v2010 = vadd.f32 %v1997, %v2009
    %v2011 = vpop.f32.mrf.mxu0
    %2012 = vdwg.mxu0
    %2013 = vmatpush.bf16.msra.mxu0 %v1501
    %2014 = vmatpush.bf16.msra.mxu0 %v1497
    %2015 = vmatpush.bf16.msra.mxu0 %v1493
    %2016 = vmatpush.bf16.msra.mxu0 %v1489
    %2017 = vmatpush.bf16.msra.mxu0 %v1485
    %2018 = vmatpush.bf16.msra.mxu0 %v1481
    %2019 = vmatpush.bf16.msra.mxu0 %v1477
    %2020 = vmatpush.bf16.msra.mxu0 %v1473
    %2021 = vmatmul.bf16.gmra.mxu0 %v342
    %v2022 = vpop.f32.mrf.mxu0
    %v2023 = vadd.f32 %v2010, %v2022
    %v2024 = vpop.f32.mrf.mxu0
    %2025 = vdwg.mxu0
    %2026 = vmatpush.bf16.msra.mxu0 %v1246
    %2027 = vmatpush.bf16.msra.mxu0 %v1242
    %2028 = vmatpush.bf16.msra.mxu0 %v1238
    %2029 = vmatpush.bf16.msra.mxu0 %v1234
    %2030 = vmatpush.bf16.msra.mxu0 %v1230
    %2031 = vmatpush.bf16.msra.mxu0 %v1226
    %2032 = vmatpush.bf16.msra.mxu0 %v1222
    %2033 = vmatpush.bf16.msra.mxu0 %v1218
    %2034 = vmatmul.bf16.gmra.mxu0 %v332
    %v2035 = vpop.f32.mrf.mxu0
    %v2036 = vadd.f32 %v324, %v2035
    %v2037 = vpop.f32.mrf.mxu0
    %2038 = vdwg.mxu0
    %2039 = vmatpush.bf16.msra.mxu0 %v1278
    %2040 = vmatpush.bf16.msra.mxu0 %v1274
    %2041 = vmatpush.bf16.msra.mxu0 %v1270
    %2042 = vmatpush.bf16.msra.mxu0 %v1266
    %2043 = vmatpush.bf16.msra.mxu0 %v1262
    %2044 = vmatpush.bf16.msra.mxu0 %v1258
    %2045 = vmatpush.bf16.msra.mxu0 %v1254
    %2046 = vmatpush.bf16.msra.mxu0 %v1250
    %2047 = vmatmul.bf16.gmra.mxu0 %v333
    %v2048 = vpop.f32.mrf.mxu0
    %v2049 = vadd.f32 %v2036, %v2048
    %v2050 = vpop.f32.mrf.mxu0
    %2051 = vdwg.mxu0
    %2052 = vmatpush.bf16.msra.mxu0 %v1310
    %2053 = vmatpush.bf16.msra.mxu0 %v1306
    %2054 = vmatpush.bf16.msra.mxu0 %v1302
    %2055 = vmatpush.bf16.msra.mxu0 %v1298
    %2056 = vmatpush.bf16.msra.mxu0 %v1294
    %2057 = vmatpush.bf16.msra.mxu0 %v1290
    %2058 = vmatpush.bf16.msra.mxu0 %v1286
    %2059 = vmatpush.bf16.msra.mxu0 %v1282
    %2060 = vmatmul.bf16.gmra.mxu0 %v334
    %v2061 = vpop.f32.mrf.mxu0
    %v2062 = vadd.f32 %v2049, %v2061
    %v2063 = vpop.f32.mrf.mxu0
    %2064 = vdwg.mxu0
    %2065 = vmatpush.bf16.msra.mxu0 %v1342
    %2066 = vmatpush.bf16.msra.mxu0 %v1338
    %2067 = vmatpush.bf16.msra.mxu0 %v1334
    %2068 = vmatpush.bf16.msra.mxu0 %v1330
    %2069 = vmatpush.bf16.msra.mxu0 %v1326
    %2070 = vmatpush.bf16.msra.mxu0 %v1322
    %2071 = vmatpush.bf16.msra.mxu0 %v1318
    %2072 = vmatpush.bf16.msra.mxu0 %v1314
    %2073 = vmatmul.bf16.gmra.mxu0 %v335
    %v2074 = vpop.f32.mrf.mxu0
    %v2075 = vadd.f32 %v2062, %v2074
    %v2076 = vpop.f32.mrf.mxu0
    %2077 = vdwg.mxu0
    %2078 = vmatpush.bf16.msra.mxu0 %v1374
    %2079 = vmatpush.bf16.msra.mxu0 %v1370
    %2080 = vmatpush.bf16.msra.mxu0 %v1366
    %2081 = vmatpush.bf16.msra.mxu0 %v1362
    %2082 = vmatpush.bf16.msra.mxu0 %v1358
    %2083 = vmatpush.bf16.msra.mxu0 %v1354
    %2084 = vmatpush.bf16.msra.mxu0 %v1350
    %2085 = vmatpush.bf16.msra.mxu0 %v1346
    %2086 = vmatmul.bf16.gmra.mxu0 %v336
    %v2087 = vpop.f32.mrf.mxu0
    %v2088 = vadd.f32 %v2075, %v2087
    %v2089 = vpop.f32.mrf.mxu0
    %2090 = vdwg.mxu0
    %2091 = vmatpush.bf16.msra.mxu0 %v1406
    %2092 = vmatpush.bf16.msra.mxu0 %v1402
    %2093 = vmatpush.bf16.msra.mxu0 %v1398
    %2094 = vmatpush.bf16.msra.mxu0 %v1394
    %2095 = vmatpush.bf16.msra.mxu0 %v1390
    %2096 = vmatpush.bf16.msra.mxu0 %v1386
    %2097 = vmatpush.bf16.msra.mxu0 %v1382
    %2098 = vmatpush.bf16.msra.mxu0 %v1378
    %2099 = vmatmul.bf16.gmra.mxu0 %v337
    %v2100 = vpop.f32.mrf.mxu0
    %v2101 = vadd.f32 %v2088, %v2100
    %v2102 = vpop.f32.mrf.mxu0
    %2103 = vdwg.mxu0
    %2104 = vmatpush.bf16.msra.mxu0 %v1438
    %2105 = vmatpush.bf16.msra.mxu0 %v1434
    %2106 = vmatpush.bf16.msra.mxu0 %v1430
    %2107 = vmatpush.bf16.msra.mxu0 %v1426
    %2108 = vmatpush.bf16.msra.mxu0 %v1422
    %2109 = vmatpush.bf16.msra.mxu0 %v1418
    %2110 = vmatpush.bf16.msra.mxu0 %v1414
    %2111 = vmatpush.bf16.msra.mxu0 %v1410
    %2112 = vmatmul.bf16.gmra.mxu0 %v338
    %v2113 = vpop.f32.mrf.mxu0
    %v2114 = vadd.f32 %v2101, %v2113
    %v2115 = vpop.f32.mrf.mxu0
    %2116 = vdwg.mxu0
    %2117 = vmatpush.bf16.msra.mxu0 %v1470
    %2118 = vmatpush.bf16.msra.mxu0 %v1466
    %2119 = vmatpush.bf16.msra.mxu0 %v1462
    %2120 = vmatpush.bf16.msra.mxu0 %v1458
    %2121 = vmatpush.bf16.msra.mxu0 %v1454
    %2122 = vmatpush.bf16.msra.mxu0 %v1450
    %2123 = vmatpush.bf16.msra.mxu0 %v1446
    %2124 = vmatpush.bf16.msra.mxu0 %v1442
    %2125 = vmatmul.bf16.gmra.mxu0 %v339
    %v2126 = vpop.f32.mrf.mxu0
    %v2127 = vadd.f32 %v2114, %v2126
    %v2128 = vpop.f32.mrf.mxu0
    %2129 = vdwg.mxu0
    %2130 = vmatpush.bf16.msra.mxu0 %v1502
    %2131 = vmatpush.bf16.msra.mxu0 %v1498
    %2132 = vmatpush.bf16.msra.mxu0 %v1494
    %2133 = vmatpush.bf16.msra.mxu0 %v1490
    %2134 = vmatpush.bf16.msra.mxu0 %v1486
    %2135 = vmatpush.bf16.msra.mxu0 %v1482
    %2136 = vmatpush.bf16.msra.mxu0 %v1478
    %2137 = vmatpush.bf16.msra.mxu0 %v1474
    %2138 = vmatmul.bf16.gmra.mxu0 %v342
    %v2139 = vpop.f32.mrf.mxu0
    %v2140 = vadd.f32 %v2127, %v2139
    %v2141 = vpop.f32.mrf.mxu0
    %2142 = vdwg.mxu0
    %2143 = vmatpush.bf16.msra.mxu0 %v1247
    %2144 = vmatpush.bf16.msra.mxu0 %v1243
    %2145 = vmatpush.bf16.msra.mxu0 %v1239
    %2146 = vmatpush.bf16.msra.mxu0 %v1235
    %2147 = vmatpush.bf16.msra.mxu0 %v1231
    %2148 = vmatpush.bf16.msra.mxu0 %v1227
    %2149 = vmatpush.bf16.msra.mxu0 %v1223
    %2150 = vmatpush.bf16.msra.mxu0 %v1219
    %2151 = vmatmul.bf16.gmra.mxu0 %v332
    %v2152 = vpop.f32.mrf.mxu0
    %v2153 = vadd.f32 %v325, %v2152
    %v2154 = vpop.f32.mrf.mxu0
    %2155 = vdwg.mxu0
    %2156 = vmatpush.bf16.msra.mxu0 %v1279
    %2157 = vmatpush.bf16.msra.mxu0 %v1275
    %2158 = vmatpush.bf16.msra.mxu0 %v1271
    %2159 = vmatpush.bf16.msra.mxu0 %v1267
    %2160 = vmatpush.bf16.msra.mxu0 %v1263
    %2161 = vmatpush.bf16.msra.mxu0 %v1259
    %2162 = vmatpush.bf16.msra.mxu0 %v1255
    %2163 = vmatpush.bf16.msra.mxu0 %v1251
    %2164 = vmatmul.bf16.gmra.mxu0 %v333
    %v2165 = vpop.f32.mrf.mxu0
    %v2166 = vadd.f32 %v2153, %v2165
    %v2167 = vpop.f32.mrf.mxu0
    %2168 = vdwg.mxu0
    %2169 = vmatpush.bf16.msra.mxu0 %v1311
    %2170 = vmatpush.bf16.msra.mxu0 %v1307
    %2171 = vmatpush.bf16.msra.mxu0 %v1303
    %2172 = vmatpush.bf16.msra.mxu0 %v1299
    %2173 = vmatpush.bf16.msra.mxu0 %v1295
    %2174 = vmatpush.bf16.msra.mxu0 %v1291
    %2175 = vmatpush.bf16.msra.mxu0 %v1287
    %2176 = vmatpush.bf16.msra.mxu0 %v1283
    %2177 = vmatmul.bf16.gmra.mxu0 %v334
    %v2178 = vpop.f32.mrf.mxu0
    %v2179 = vadd.f32 %v2166, %v2178
    %v2180 = vpop.f32.mrf.mxu0
    %2181 = vdwg.mxu0
    %2182 = vmatpush.bf16.msra.mxu0 %v1343
    %2183 = vmatpush.bf16.msra.mxu0 %v1339
    %2184 = vmatpush.bf16.msra.mxu0 %v1335
    %2185 = vmatpush.bf16.msra.mxu0 %v1331
    %2186 = vmatpush.bf16.msra.mxu0 %v1327
    %2187 = vmatpush.bf16.msra.mxu0 %v1323
    %2188 = vmatpush.bf16.msra.mxu0 %v1319
    %2189 = vmatpush.bf16.msra.mxu0 %v1315
    %2190 = vmatmul.bf16.gmra.mxu0 %v335
    %v2191 = vpop.f32.mrf.mxu0
    %v2192 = vadd.f32 %v2179, %v2191
    %v2193 = vpop.f32.mrf.mxu0
    %2194 = vdwg.mxu0
    %2195 = vmatpush.bf16.msra.mxu0 %v1375
    %2196 = vmatpush.bf16.msra.mxu0 %v1371
    %2197 = vmatpush.bf16.msra.mxu0 %v1367
    %2198 = vmatpush.bf16.msra.mxu0 %v1363
    %2199 = vmatpush.bf16.msra.mxu0 %v1359
    %2200 = vmatpush.bf16.msra.mxu0 %v1355
    %2201 = vmatpush.bf16.msra.mxu0 %v1351
    %2202 = vmatpush.bf16.msra.mxu0 %v1347
    %2203 = vmatmul.bf16.gmra.mxu0 %v336
    %v2204 = vpop.f32.mrf.mxu0
    %v2205 = vadd.f32 %v2192, %v2204
    %v2206 = vpop.f32.mrf.mxu0
    %2207 = vdwg.mxu0
    %2208 = vmatpush.bf16.msra.mxu0 %v1407
    %2209 = vmatpush.bf16.msra.mxu0 %v1403
    %2210 = vmatpush.bf16.msra.mxu0 %v1399
    %2211 = vmatpush.bf16.msra.mxu0 %v1395
    %2212 = vmatpush.bf16.msra.mxu0 %v1391
    %2213 = vmatpush.bf16.msra.mxu0 %v1387
    %2214 = vmatpush.bf16.msra.mxu0 %v1383
    %2215 = vmatpush.bf16.msra.mxu0 %v1379
    %2216 = vmatmul.bf16.gmra.mxu0 %v337
    %v2217 = vpop.f32.mrf.mxu0
    %v2218 = vadd.f32 %v2205, %v2217
    %v2219 = vpop.f32.mrf.mxu0
    %2220 = vdwg.mxu0
    %2221 = vmatpush.bf16.msra.mxu0 %v1439
    %2222 = vmatpush.bf16.msra.mxu0 %v1435
    %2223 = vmatpush.bf16.msra.mxu0 %v1431
    %2224 = vmatpush.bf16.msra.mxu0 %v1427
    %2225 = vmatpush.bf16.msra.mxu0 %v1423
    %2226 = vmatpush.bf16.msra.mxu0 %v1419
    %2227 = vmatpush.bf16.msra.mxu0 %v1415
    %2228 = vmatpush.bf16.msra.mxu0 %v1411
    %2229 = vmatmul.bf16.gmra.mxu0 %v338
    %v2230 = vpop.f32.mrf.mxu0
    %v2231 = vadd.f32 %v2218, %v2230
    %v2232 = vpop.f32.mrf.mxu0
    %2233 = vdwg.mxu0
    %2234 = vmatpush.bf16.msra.mxu0 %v1471
    %2235 = vmatpush.bf16.msra.mxu0 %v1467
    %2236 = vmatpush.bf16.msra.mxu0 %v1463
    %2237 = vmatpush.bf16.msra.mxu0 %v1459
    %2238 = vmatpush.bf16.msra.mxu0 %v1455
    %2239 = vmatpush.bf16.msra.mxu0 %v1451
    %2240 = vmatpush.bf16.msra.mxu0 %v1447
    %2241 = vmatpush.bf16.msra.mxu0 %v1443
    %2242 = vmatmul.bf16.gmra.mxu0 %v339
    %v2243 = vpop.f32.mrf.mxu0
    %v2244 = vadd.f32 %v2231, %v2243
    %v2245 = vpop.f32.mrf.mxu0
    %2246 = vdwg.mxu0
    %2247 = vmatpush.bf16.msra.mxu0 %v1503
    %2248 = vmatpush.bf16.msra.mxu0 %v1499
    %2249 = vmatpush.bf16.msra.mxu0 %v1495
    %2250 = vmatpush.bf16.msra.mxu0 %v1491
    %2251 = vmatpush.bf16.msra.mxu0 %v1487
    %2252 = vmatpush.bf16.msra.mxu0 %v1483
    %2253 = vmatpush.bf16.msra.mxu0 %v1479
    %2254 = vmatpush.bf16.msra.mxu0 %v1475
    %2255 = vmatmul.bf16.gmra.mxu0 %v342
    %v2256 = vpop.f32.mrf.mxu0
    %v2257 = vadd.f32 %v2244, %v2256
    %v2258 = vpop.f32.mrf.mxu0
    %2259 = vdwg.mxu0
    %v2260 = vpack.c.bf16 %v1906, %v1906
    %v2261 = vpack.c.bf16 %v2023, %v2023
    %v2262 = vpack.c.bf16 %v2140, %v2140
    %v2263 = vpack.c.bf16 %v2257, %v2257
    %v2264 = vld [vmem:[%s3] sm:$0xff]
    %v2265 = vld [vmem:[%s3 + $0x8] sm:$0xff]
    %v2266 = vld [vmem:[%s3 + $0x10] sm:$0xff]
    %v2267 = vld [vmem:[%s3 + $0x18] sm:$0xff]
    %v2268 = vld [vmem:[%s3 + $0x20] sm:$0xff]
    %v2269 = vld [vmem:[%s3 + $0x28] sm:$0xff]
    %v2270 = vld [vmem:[%s3 + $0x30] sm:$0xff]
    %v2271 = vld [vmem:[%s3 + $0x38] sm:$0xff]
    %v2272 = vld [vmem:[%s3 + $0x40] sm:$0xff]
    %v2273 = vld [vmem:[%s3 + $0x48] sm:$0xff]
    %v2274 = vld [vmem:[%s3 + $0x50] sm:$0xff]
    %v2275 = vld [vmem:[%s3 + $0x58] sm:$0xff]
    %v2276 = vld [vmem:[%s3 + $0x60] sm:$0xff]
    %v2277 = vld [vmem:[%s3 + $0x68] sm:$0xff]
    %v2278 = vld [vmem:[%s3 + $0x70] sm:$0xff]
    %v2279 = vld [vmem:[%s3 + $0x78] sm:$0xff]
    %v2280 = vld [vmem:[%s3 + $0x80] sm:$0xff]
    %v2281 = vld [vmem:[%s3 + $0x88] sm:$0xff]
    %v2282 = vld [vmem:[%s3 + $0x90] sm:$0xff]
    %v2283 = vld [vmem:[%s3 + $0x98] sm:$0xff]
    %v2284 = vld [vmem:[%s3 + $0xa0] sm:$0xff]
    %v2285 = vld [vmem:[%s3 + $0xa8] sm:$0xff]
    %v2286 = vld [vmem:[%s3 + $0xb0] sm:$0xff]
    %v2287 = vld [vmem:[%s3 + $0xb8] sm:$0xff]
    %v2288 = vld [vmem:[%s3 + $0xc0] sm:$0xff]
    %v2289 = vld [vmem:[%s3 + $0xc8] sm:$0xff]
    %v2290 = vld [vmem:[%s3 + $0xd0] sm:$0xff]
    %v2291 = vld [vmem:[%s3 + $0xd8] sm:$0xff]
    %v2292 = vld [vmem:[%s3 + $0xe0] sm:$0xff]
    %v2293 = vld [vmem:[%s3 + $0xe8] sm:$0xff]
    %v2294 = vld [vmem:[%s3 + $0xf0] sm:$0xff]
    %v2295 = vld [vmem:[%s3 + $0xf8] sm:$0xff]
    %v2296 = vld [vmem:[%s3 + $0x100] sm:$0xff]
    %v2297 = vld [vmem:[%s3 + $0x108] sm:$0xff]
    %v2298 = vld [vmem:[%s3 + $0x110] sm:$0xff]
    %v2299 = vld [vmem:[%s3 + $0x118] sm:$0xff]
    %v2300 = vld [vmem:[%s3 + $0x120] sm:$0xff]
    %v2301 = vld [vmem:[%s3 + $0x128] sm:$0xff]
    %v2302 = vld [vmem:[%s3 + $0x130] sm:$0xff]
    %v2303 = vld [vmem:[%s3 + $0x138] sm:$0xff]
    %v2304 = vld [vmem:[%s3 + $0x140] sm:$0xff]
    %v2305 = vld [vmem:[%s3 + $0x148] sm:$0xff]
    %v2306 = vld [vmem:[%s3 + $0x150] sm:$0xff]
    %v2307 = vld [vmem:[%s3 + $0x158] sm:$0xff]
    %v2308 = vld [vmem:[%s3 + $0x160] sm:$0xff]
    %v2309 = vld [vmem:[%s3 + $0x168] sm:$0xff]
    %v2310 = vld [vmem:[%s3 + $0x170] sm:$0xff]
    %v2311 = vld [vmem:[%s3 + $0x178] sm:$0xff]
    %v2312 = vld [vmem:[%s3 + $0x180] sm:$0xff]
    %v2313 = vld [vmem:[%s3 + $0x188] sm:$0xff]
    %v2314 = vld [vmem:[%s3 + $0x190] sm:$0xff]
    %v2315 = vld [vmem:[%s3 + $0x198] sm:$0xff]
    %v2316 = vld [vmem:[%s3 + $0x1a0] sm:$0xff]
    %v2317 = vld [vmem:[%s3 + $0x1a8] sm:$0xff]
    %v2318 = vld [vmem:[%s3 + $0x1b0] sm:$0xff]
    %v2319 = vld [vmem:[%s3 + $0x1b8] sm:$0xff]
    %v2320 = vld [vmem:[%s3 + $0x1c0] sm:$0xff]
    %v2321 = vld [vmem:[%s3 + $0x1c8] sm:$0xff]
    %v2322 = vld [vmem:[%s3 + $0x1d0] sm:$0xff]
    %v2323 = vld [vmem:[%s3 + $0x1d8] sm:$0xff]
    %v2324 = vld [vmem:[%s3 + $0x1e0] sm:$0xff]
    %v2325 = vld [vmem:[%s3 + $0x1e8] sm:$0xff]
    %v2326 = vld [vmem:[%s3 + $0x1f0] sm:$0xff]
    %v2327 = vld [vmem:[%s3 + $0x1f8] sm:$0xff]
    %v2392 = vunpack.c.l.b16 %v2264
    %v2393 = vunpack.c.h.b16 %v2264
    %v2394 = vunpack.c.l.b16 %v2265
    %v2395 = vunpack.c.h.b16 %v2265
    %v2396 = vunpack.c.l.b16 %v2266
    %v2397 = vunpack.c.h.b16 %v2266
    %v2398 = vunpack.c.l.b16 %v2267
    %v2399 = vunpack.c.h.b16 %v2267
    %v2400 = vunpack.c.l.b16 %v2268
    %v2401 = vunpack.c.h.b16 %v2268
    %v2402 = vunpack.c.l.b16 %v2269
    %v2403 = vunpack.c.h.b16 %v2269
    %v2404 = vunpack.c.l.b16 %v2270
    %v2405 = vunpack.c.h.b16 %v2270
    %v2406 = vunpack.c.l.b16 %v2271
    %v2407 = vunpack.c.h.b16 %v2271
    %v2408 = vunpack.c.l.b16 %v2272
    %v2409 = vunpack.c.h.b16 %v2272
    %v2410 = vunpack.c.l.b16 %v2273
    %v2411 = vunpack.c.h.b16 %v2273
    %v2412 = vunpack.c.l.b16 %v2274
    %v2413 = vunpack.c.h.b16 %v2274
    %v2414 = vunpack.c.l.b16 %v2275
    %v2415 = vunpack.c.h.b16 %v2275
    %v2416 = vunpack.c.l.b16 %v2276
    %v2417 = vunpack.c.h.b16 %v2276
    %v2418 = vunpack.c.l.b16 %v2277
    %v2419 = vunpack.c.h.b16 %v2277
    %v2420 = vunpack.c.l.b16 %v2278
    %v2421 = vunpack.c.h.b16 %v2278
    %v2422 = vunpack.c.l.b16 %v2279
    %v2423 = vunpack.c.h.b16 %v2279
    %v2424 = vunpack.c.l.b16 %v2280
    %v2425 = vunpack.c.h.b16 %v2280
    %v2426 = vunpack.c.l.b16 %v2281
    %v2427 = vunpack.c.h.b16 %v2281
    %v2428 = vunpack.c.l.b16 %v2282
    %v2429 = vunpack.c.h.b16 %v2282
    %v2430 = vunpack.c.l.b16 %v2283
    %v2431 = vunpack.c.h.b16 %v2283
    %v2432 = vunpack.c.l.b16 %v2284
    %v2433 = vunpack.c.h.b16 %v2284
    %v2434 = vunpack.c.l.b16 %v2285
    %v2435 = vunpack.c.h.b16 %v2285
    %v2436 = vunpack.c.l.b16 %v2286
    %v2437 = vunpack.c.h.b16 %v2286
    %v2438 = vunpack.c.l.b16 %v2287
    %v2439 = vunpack.c.h.b16 %v2287
    %v2440 = vunpack.c.l.b16 %v2288
    %v2441 = vunpack.c.h.b16 %v2288
    %v2442 = vunpack.c.l.b16 %v2289
    %v2443 = vunpack.c.h.b16 %v2289
    %v2444 = vunpack.c.l.b16 %v2290
    %v2445 = vunpack.c.h.b16 %v2290
    %v2446 = vunpack.c.l.b16 %v2291
    %v2447 = vunpack.c.h.b16 %v2291
    %v2448 = vunpack.c.l.b16 %v2292
    %v2449 = vunpack.c.h.b16 %v2292
    %v2450 = vunpack.c.l.b16 %v2293
    %v2451 = vunpack.c.h.b16 %v2293
    %v2452 = vunpack.c.l.b16 %v2294
    %v2453 = vunpack.c.h.b16 %v2294
    %v2454 = vunpack.c.l.b16 %v2295
    %v2455 = vunpack.c.h.b16 %v2295
    %v2456 = vunpack.c.l.b16 %v2296
    %v2457 = vunpack.c.h.b16 %v2296
    %v2458 = vunpack.c.l.b16 %v2297
    %v2459 = vunpack.c.h.b16 %v2297
    %v2460 = vunpack.c.l.b16 %v2298
    %v2461 = vunpack.c.h.b16 %v2298
    %v2462 = vunpack.c.l.b16 %v2299
    %v2463 = vunpack.c.h.b16 %v2299
    %v2464 = vunpack.c.l.b16 %v2300
    %v2465 = vunpack.c.h.b16 %v2300
    %v2466 = vunpack.c.l.b16 %v2301
    %v2467 = vunpack.c.h.b16 %v2301
    %v2468 = vunpack.c.l.b16 %v2302
    %v2469 = vunpack.c.h.b16 %v2302
    %v2470 = vunpack.c.l.b16 %v2303
    %v2471 = vunpack.c.h.b16 %v2303
    %v2472 = vunpack.c.l.b16 %v2304
    %v2473 = vunpack.c.h.b16 %v2304
    %v2474 = vunpack.c.l.b16 %v2305
    %v2475 = vunpack.c.h.b16 %v2305
    %v2476 = vunpack.c.l.b16 %v2306
    %v2477 = vunpack.c.h.b16 %v2306
    %v2478 = vunpack.c.l.b16 %v2307
    %v2479 = vunpack.c.h.b16 %v2307
    %v2480 = vunpack.c.l.b16 %v2308
    %v2481 = vunpack.c.h.b16 %v2308
    %v2482 = vunpack.c.l.b16 %v2309
    %v2483 = vunpack.c.h.b16 %v2309
    %v2484 = vunpack.c.l.b16 %v2310
    %v2485 = vunpack.c.h.b16 %v2310
    %v2486 = vunpack.c.l.b16 %v2311
    %v2487 = vunpack.c.h.b16 %v2311
    %v2488 = vunpack.c.l.b16 %v2312
    %v2489 = vunpack.c.h.b16 %v2312
    %v2490 = vunpack.c.l.b16 %v2313
    %v2491 = vunpack.c.h.b16 %v2313
    %v2492 = vunpack.c.l.b16 %v2314
    %v2493 = vunpack.c.h.b16 %v2314
    %v2494 = vunpack.c.l.b16 %v2315
    %v2495 = vunpack.c.h.b16 %v2315
    %v2496 = vunpack.c.l.b16 %v2316
    %v2497 = vunpack.c.h.b16 %v2316
    %v2498 = vunpack.c.l.b16 %v2317
    %v2499 = vunpack.c.h.b16 %v2317
    %v2500 = vunpack.c.l.b16 %v2318
    %v2501 = vunpack.c.h.b16 %v2318
    %v2502 = vunpack.c.l.b16 %v2319
    %v2503 = vunpack.c.h.b16 %v2319
    %v2504 = vunpack.c.l.b16 %v2320
    %v2505 = vunpack.c.h.b16 %v2320
    %v2506 = vunpack.c.l.b16 %v2321
    %v2507 = vunpack.c.h.b16 %v2321
    %v2508 = vunpack.c.l.b16 %v2322
    %v2509 = vunpack.c.h.b16 %v2322
    %v2510 = vunpack.c.l.b16 %v2323
    %v2511 = vunpack.c.h.b16 %v2323
    %v2512 = vunpack.c.l.b16 %v2324
    %v2513 = vunpack.c.h.b16 %v2324
    %v2514 = vunpack.c.l.b16 %v2325
    %v2515 = vunpack.c.h.b16 %v2325
    %v2516 = vunpack.c.l.b16 %v2326
    %v2517 = vunpack.c.h.b16 %v2326
    %v2518 = vunpack.c.l.b16 %v2327
    %v2519 = vunpack.c.h.b16 %v2327
    %v2520 = vpack.c.b16 %v2394, %v2392
    %v2521 = vpack.c.b16 %v2395, %v2393
    %v2522 = vpack.c.b16 %v2398, %v2396
    %v2523 = vpack.c.b16 %v2399, %v2397
    %v2524 = vpack.c.b16 %v2402, %v2400
    %v2525 = vpack.c.b16 %v2403, %v2401
    %v2526 = vpack.c.b16 %v2406, %v2404
    %v2527 = vpack.c.b16 %v2407, %v2405
    %v2528 = vpack.c.b16 %v2410, %v2408
    %v2529 = vpack.c.b16 %v2411, %v2409
    %v2530 = vpack.c.b16 %v2414, %v2412
    %v2531 = vpack.c.b16 %v2415, %v2413
    %v2532 = vpack.c.b16 %v2418, %v2416
    %v2533 = vpack.c.b16 %v2419, %v2417
    %v2534 = vpack.c.b16 %v2422, %v2420
    %v2535 = vpack.c.b16 %v2423, %v2421
    %v2536 = vpack.c.b16 %v2426, %v2424
    %v2537 = vpack.c.b16 %v2427, %v2425
    %v2538 = vpack.c.b16 %v2430, %v2428
    %v2539 = vpack.c.b16 %v2431, %v2429
    %v2540 = vpack.c.b16 %v2434, %v2432
    %v2541 = vpack.c.b16 %v2435, %v2433
    %v2542 = vpack.c.b16 %v2438, %v2436
    %v2543 = vpack.c.b16 %v2439, %v2437
    %v2544 = vpack.c.b16 %v2442, %v2440
    %v2545 = vpack.c.b16 %v2443, %v2441
    %v2546 = vpack.c.b16 %v2446, %v2444
    %v2547 = vpack.c.b16 %v2447, %v2445
    %v2548 = vpack.c.b16 %v2450, %v2448
    %v2549 = vpack.c.b16 %v2451, %v2449
    %v2550 = vpack.c.b16 %v2454, %v2452
    %v2551 = vpack.c.b16 %v2455, %v2453
    %v2552 = vpack.c.b16 %v2458, %v2456
    %v2553 = vpack.c.b16 %v2459, %v2457
    %v2554 = vpack.c.b16 %v2462, %v2460
    %v2555 = vpack.c.b16 %v2463, %v2461
    %v2556 = vpack.c.b16 %v2466, %v2464
    %v2557 = vpack.c.b16 %v2467, %v2465
    %v2558 = vpack.c.b16 %v2470, %v2468
    %v2559 = vpack.c.b16 %v2471, %v2469
    %v2560 = vpack.c.b16 %v2474, %v2472
    %v2561 = vpack.c.b16 %v2475, %v2473
    %v2562 = vpack.c.b16 %v2478, %v2476
    %v2563 = vpack.c.b16 %v2479, %v2477
    %v2564 = vpack.c.b16 %v2482, %v2480
    %v2565 = vpack.c.b16 %v2483, %v2481
    %v2566 = vpack.c.b16 %v2486, %v2484
    %v2567 = vpack.c.b16 %v2487, %v2485
    %v2568 = vpack.c.b16 %v2490, %v2488
    %v2569 = vpack.c.b16 %v2491, %v2489
    %v2570 = vpack.c.b16 %v2494, %v2492
    %v2571 = vpack.c.b16 %v2495, %v2493
    %v2572 = vpack.c.b16 %v2498, %v2496
    %v2573 = vpack.c.b16 %v2499, %v2497
    %v2574 = vpack.c.b16 %v2502, %v2500
    %v2575 = vpack.c.b16 %v2503, %v2501
    %v2576 = vpack.c.b16 %v2506, %v2504
    %v2577 = vpack.c.b16 %v2507, %v2505
    %v2578 = vpack.c.b16 %v2510, %v2508
    %v2579 = vpack.c.b16 %v2511, %v2509
    %v2580 = vpack.c.b16 %v2514, %v2512
    %v2581 = vpack.c.b16 %v2515, %v2513
    %v2582 = vpack.c.b16 %v2518, %v2516
    %v2583 = vpack.c.b16 %v2519, %v2517
    %2648 = vmatpush.bf16.msra.mxu0 %v2534
    %2649 = vmatpush.bf16.msra.mxu0 %v2532
    %2650 = vmatpush.bf16.msra.mxu0 %v2530
    %2651 = vmatpush.bf16.msra.mxu0 %v2528
    %2652 = vmatpush.bf16.msra.mxu0 %v2526
    %2653 = vmatpush.bf16.msra.mxu0 %v2524
    %2654 = vmatpush.bf16.msra.mxu0 %v2522
    %2655 = vmatpush.bf16.msra.mxu0 %v2520
    %2656 = vmatmul.bf16.gmra.mxu0 %v2260
    %v2657 = vpop.f32.mrf.mxu0
    %v2658 = vadd.f32 0.0, %v2657
    %v2659 = vpop.f32.mrf.mxu0
    %2660 = vdwg.mxu0
    %2661 = vmatpush.bf16.msra.mxu0 %v2550
    %2662 = vmatpush.bf16.msra.mxu0 %v2548
    %2663 = vmatpush.bf16.msra.mxu0 %v2546
    %2664 = vmatpush.bf16.msra.mxu0 %v2544
    %2665 = vmatpush.bf16.msra.mxu0 %v2542
    %2666 = vmatpush.bf16.msra.mxu0 %v2540
    %2667 = vmatpush.bf16.msra.mxu0 %v2538
    %2668 = vmatpush.bf16.msra.mxu0 %v2536
    %2669 = vmatmul.bf16.gmra.mxu0 %v2261
    %v2670 = vpop.f32.mrf.mxu0
    %v2671 = vadd.f32 %v2658, %v2670
    %v2672 = vpop.f32.mrf.mxu0
    %2673 = vdwg.mxu0
    %2674 = vmatpush.bf16.msra.mxu0 %v2566
    %2675 = vmatpush.bf16.msra.mxu0 %v2564
    %2676 = vmatpush.bf16.msra.mxu0 %v2562
    %2677 = vmatpush.bf16.msra.mxu0 %v2560
    %2678 = vmatpush.bf16.msra.mxu0 %v2558
    %2679 = vmatpush.bf16.msra.mxu0 %v2556
    %2680 = vmatpush.bf16.msra.mxu0 %v2554
    %2681 = vmatpush.bf16.msra.mxu0 %v2552
    %2682 = vmatmul.bf16.gmra.mxu0 %v2262
    %v2683 = vpop.f32.mrf.mxu0
    %v2684 = vadd.f32 %v2671, %v2683
    %v2685 = vpop.f32.mrf.mxu0
    %2686 = vdwg.mxu0
    %2687 = vmatpush.bf16.msra.mxu0 %v2582
    %2688 = vmatpush.bf16.msra.mxu0 %v2580
    %2689 = vmatpush.bf16.msra.mxu0 %v2578
    %2690 = vmatpush.bf16.msra.mxu0 %v2576
    %2691 = vmatpush.bf16.msra.mxu0 %v2574
    %2692 = vmatpush.bf16.msra.mxu0 %v2572
    %2693 = vmatpush.bf16.msra.mxu0 %v2570
    %2694 = vmatpush.bf16.msra.mxu0 %v2568
    %2695 = vmatmul.bf16.gmra.mxu0 %v2263
    %v2696 = vpop.f32.mrf.mxu0
    %v2697 = vadd.f32 %v2684, %v2696
    %v2698 = vpop.f32.mrf.mxu0
    %2699 = vdwg.mxu0
    %2700 = vmatpush.bf16.msra.mxu0 %v2535
    %2701 = vmatpush.bf16.msra.mxu0 %v2533
    %2702 = vmatpush.bf16.msra.mxu0 %v2531
    %2703 = vmatpush.bf16.msra.mxu0 %v2529
    %2704 = vmatpush.bf16.msra.mxu0 %v2527
    %2705 = vmatpush.bf16.msra.mxu0 %v2525
    %2706 = vmatpush.bf16.msra.mxu0 %v2523
    %2707 = vmatpush.bf16.msra.mxu0 %v2521
    %2708 = vmatmul.bf16.gmra.mxu0 %v2260
    %v2709 = vpop.f32.mrf.mxu0
    %v2710 = vadd.f32 0.0, %v2709
    %v2711 = vpop.f32.mrf.mxu0
    %2712 = vdwg.mxu0
    %2713 = vmatpush.bf16.msra.mxu0 %v2551
    %2714 = vmatpush.bf16.msra.mxu0 %v2549
    %2715 = vmatpush.bf16.msra.mxu0 %v2547
    %2716 = vmatpush.bf16.msra.mxu0 %v2545
    %2717 = vmatpush.bf16.msra.mxu0 %v2543
    %2718 = vmatpush.bf16.msra.mxu0 %v2541
    %2719 = vmatpush.bf16.msra.mxu0 %v2539
    %2720 = vmatpush.bf16.msra.mxu0 %v2537
    %2721 = vmatmul.bf16.gmra.mxu0 %v2261
    %v2722 = vpop.f32.mrf.mxu0
    %v2723 = vadd.f32 %v2710, %v2722
    %v2724 = vpop.f32.mrf.mxu0
    %2725 = vdwg.mxu0
    %2726 = vmatpush.bf16.msra.mxu0 %v2567
    %2727 = vmatpush.bf16.msra.mxu0 %v2565
    %2728 = vmatpush.bf16.msra.mxu0 %v2563
    %2729 = vmatpush.bf16.msra.mxu0 %v2561
    %2730 = vmatpush.bf16.msra.mxu0 %v2559
    %2731 = vmatpush.bf16.msra.mxu0 %v2557
    %2732 = vmatpush.bf16.msra.mxu0 %v2555
    %2733 = vmatpush.bf16.msra.mxu0 %v2553
    %2734 = vmatmul.bf16.gmra.mxu0 %v2262
    %v2735 = vpop.f32.mrf.mxu0
    %v2736 = vadd.f32 %v2723, %v2735
    %v2737 = vpop.f32.mrf.mxu0
    %2738 = vdwg.mxu0
    %2739 = vmatpush.bf16.msra.mxu0 %v2583
    %2740 = vmatpush.bf16.msra.mxu0 %v2581
    %2741 = vmatpush.bf16.msra.mxu0 %v2579
    %2742 = vmatpush.bf16.msra.mxu0 %v2577
    %2743 = vmatpush.bf16.msra.mxu0 %v2575
    %2744 = vmatpush.bf16.msra.mxu0 %v2573
    %2745 = vmatpush.bf16.msra.mxu0 %v2571
    %2746 = vmatpush.bf16.msra.mxu0 %v2569
    %2747 = vmatmul.bf16.gmra.mxu0 %v2263
    %v2748 = vpop.f32.mrf.mxu0
    %v2749 = vadd.f32 %v2736, %v2748
    %v2750 = vpop.f32.mrf.mxu0
    %2751 = vdwg.mxu0
    %v2752 = vld [vmem:[%s4] sm:$0x3]
    %v2754 = vperm.slane %v2752, 0
    %v2755 = vperm.slane %v2752, 1
    %v2758 = vmul.f32 %v2697, %v2754
    %v2759 = vmul.f32 %v2749, %v2755
    %v2760 = vld [vmem:[%s5] sm:$0x3]
    %v2762 = vperm.slane %v2760, 0
    %v2763 = vperm.slane %v2760, 1
    %v2766 = vadd.f32 %v2758, %v2762
    %v2767 = vadd.f32 %v2759, %v2763
    %v2768 = vmax.f32 %v2766, 0.0
    %v2769 = vmax.f32 %v2767, 0.0
    %v2770 = vpack.c.bf16 %v2768, %v2768
    %v2771 = vpack.c.bf16 %v2769, %v2769
    %v2772 = vld [vmem:[%s6] sm:$0xf]
    %v2773 = vld [vmem:[%s6 + $0x4] sm:$0xf]
    %v2774 = vld [vmem:[%s6 + $0x8] sm:$0xf]
    %v2775 = vld [vmem:[%s6 + $0xc] sm:$0xf]
    %v2776 = vld [vmem:[%s6 + $0x10] sm:$0xf]
    %v2777 = vld [vmem:[%s6 + $0x14] sm:$0xf]
    %v2778 = vld [vmem:[%s6 + $0x18] sm:$0xf]
    %v2779 = vld [vmem:[%s6 + $0x1c] sm:$0xf]
    %v2780 = vld [vmem:[%s6 + $0x20] sm:$0xf]
    %v2781 = vld [vmem:[%s6 + $0x24] sm:$0xf]
    %v2782 = vld [vmem:[%s6 + $0x28] sm:$0xf]
    %v2783 = vld [vmem:[%s6 + $0x2c] sm:$0xf]
    %v2784 = vld [vmem:[%s6 + $0x30] sm:$0xf]
    %v2785 = vld [vmem:[%s6 + $0x34] sm:$0xf]
    %v2786 = vld [vmem:[%s6 + $0x38] sm:$0xf]
    %v2787 = vld [vmem:[%s6 + $0x3c] sm:$0xf]
    %v2788 = vld [vmem:[%s6 + $0x40] sm:$0xf]
    %v2789 = vld [vmem:[%s6 + $0x44] sm:$0xf]
    %v2790 = vld [vmem:[%s6 + $0x48] sm:$0xf]
    %v2791 = vld [vmem:[%s6 + $0x4c] sm:$0xf]
    %v2792 = vld [vmem:[%s6 + $0x50] sm:$0xf]
    %v2793 = vld [vmem:[%s6 + $0x54] sm:$0xf]
    %v2794 = vld [vmem:[%s6 + $0x58] sm:$0xf]
    %v2795 = vld [vmem:[%s6 + $0x5c] sm:$0xf]
    %v2796 = vld [vmem:[%s6 + $0x60] sm:$0xf]
    %v2797 = vld [vmem:[%s6 + $0x64] sm:$0xf]
    %v2798 = vld [vmem:[%s6 + $0x68] sm:$0xf]
    %v2799 = vld [vmem:[%s6 + $0x6c] sm:$0xf]
    %v2800 = vld [vmem:[%s6 + $0x70] sm:$0xf]
    %v2801 = vld [vmem:[%s6 + $0x74] sm:$0xf]
    %v2802 = vld [vmem:[%s6 + $0x78] sm:$0xf]
    %v2803 = vld [vmem:[%s6 + $0x7c] sm:$0xf]
    %v2804 = vld [vmem:[%s7] sm:$0x1]
    %v2806 = vperm.slane %v2804, 0
    %v2840 = vunpack.c.l.b16 %v2772
    %v2841 = vunpack.c.l.b16 %v2773
    %v2842 = vunpack.c.l.b16 %v2774
    %v2843 = vunpack.c.l.b16 %v2775
    %v2844 = vunpack.c.l.b16 %v2776
    %v2845 = vunpack.c.l.b16 %v2777
    %v2846 = vunpack.c.l.b16 %v2778
    %v2847 = vunpack.c.l.b16 %v2779
    %v2848 = vunpack.c.l.b16 %v2780
    %v2849 = vunpack.c.l.b16 %v2781
    %v2850 = vunpack.c.l.b16 %v2782
    %v2851 = vunpack.c.l.b16 %v2783
    %v2852 = vunpack.c.l.b16 %v2784
    %v2853 = vunpack.c.l.b16 %v2785
    %v2854 = vunpack.c.l.b16 %v2786
    %v2855 = vunpack.c.l.b16 %v2787
    %v2856 = vunpack.c.l.b16 %v2788
    %v2857 = vunpack.c.l.b16 %v2789
    %v2858 = vunpack.c.l.b16 %v2790
    %v2859 = vunpack.c.l.b16 %v2791
    %v2860 = vunpack.c.l.b16 %v2792
    %v2861 = vunpack.c.l.b16 %v2793
    %v2862 = vunpack.c.l.b16 %v2794
    %v2863 = vunpack.c.l.b16 %v2795
    %v2864 = vunpack.c.l.b16 %v2796
    %v2865 = vunpack.c.l.b16 %v2797
    %v2866 = vunpack.c.l.b16 %v2798
    %v2867 = vunpack.c.l.b16 %v2799
    %v2868 = vunpack.c.l.b16 %v2800
    %v2869 = vunpack.c.l.b16 %v2801
    %v2870 = vunpack.c.l.b16 %v2802
    %v2871 = vunpack.c.l.b16 %v2803
    %v2872 = vpack.c.b16 %v2841, %v2840
    %v2873 = vpack.c.b16 %v2843, %v2842
    %v2874 = vpack.c.b16 %v2845, %v2844
    %v2875 = vpack.c.b16 %v2847, %v2846
    %v2876 = vpack.c.b16 %v2849, %v2848
    %v2877 = vpack.c.b16 %v2851, %v2850
    %v2878 = vpack.c.b16 %v2853, %v2852
    %v2879 = vpack.c.b16 %v2855, %v2854
    %v2880 = vpack.c.b16 %v2857, %v2856
    %v2881 = vpack.c.b16 %v2859, %v2858
    %v2882 = vpack.c.b16 %v2861, %v2860
    %v2883 = vpack.c.b16 %v2863, %v2862
    %v2884 = vpack.c.b16 %v2865, %v2864
    %v2885 = vpack.c.b16 %v2867, %v2866
    %v2886 = vpack.c.b16 %v2869, %v2868
    %v2887 = vpack.c.b16 %v2871, %v2870
    %2904 = vmatpush.bf16.msra.mxu0 %v2879
    %2905 = vmatpush.bf16.msra.mxu0 %v2878
    %2906 = vmatpush.bf16.msra.mxu0 %v2877
    %2907 = vmatpush.bf16.msra.mxu0 %v2876
    %2908 = vmatpush.bf16.msra.mxu0 %v2875
    %2909 = vmatpush.bf16.msra.mxu0 %v2874
    %2910 = vmatpush.bf16.msra.mxu0 %v2873
    %2911 = vmatpush.bf16.msra.mxu0 %v2872
    %2912 = vmatmul.bf16.gmra.mxu0 %v2770
    %v2913 = vpop.f32.mrf.mxu0
    %v2914 = vadd.f32 %v2806, %v2913
    %v2915 = vpop.f32.mrf.mxu0
    %2916 = vdwg.mxu0
    %2917 = vmatpush.bf16.msra.mxu0 %v2887
    %2918 = vmatpush.bf16.msra.mxu0 %v2886
    %2919 = vmatpush.bf16.msra.mxu0 %v2885
    %2920 = vmatpush.bf16.msra.mxu0 %v2884
    %2921 = vmatpush.bf16.msra.mxu0 %v2883
    %2922 = vmatpush.bf16.msra.mxu0 %v2882
    %2923 = vmatpush.bf16.msra.mxu0 %v2881
    %2924 = vmatpush.bf16.msra.mxu0 %v2880
    %2925 = vmatmul.bf16.gmra.mxu0 %v2771
    %v2926 = vpop.f32.mrf.mxu0
    %v2927 = vadd.f32 %v2914, %v2926
    %v2928 = vpop.f32.mrf.mxu0
    %2929 = vdwg.mxu0
    %vm2930 = vcmask 17408
    %v2931 = vsel %vm2930, %v2927, -inf
    %2932 = vmax.xlane.f32.xlu0 %v2931
    %v2933 = vpop.xlane.xlu0 %2932
    %v2934 = vsub.f32 %v2927, %v2933
    %v2935 = vmul.f32 %v2934, 1.442695
    %v2936 = vpow.pop %v2935
    %v2937 = vsel %vm2930, %v2936, 0.0
    %2938 = vadd.xlane.f32.xlu0 %v2937
    %v2939 = vpop.xlane.xlu0 %2938
    %v2940 = vlog2.pop %v2939
    %v2941 = vmul.f32 %v2940, 0.6931472
    %v2942 = vsub.f32 %v2934, %v2941
    %2943 = vst.msk [vmem:[#allocation2] sm:$0x3] %vm2930, %v2942
    // Predicated region
    $region34: #{cnn_forward.11} parent=1 // pred_check
      _
    $region35: #{cnn_forward.11} parent=1 // pred_check_branch
      %2945 = sbr.rel (0) target = $region37
    $region36: #{cnn_forward.11} parent=1 // pred_region
      %2947 = vsyncadd [#allocation3], 0
      %s2949 = sshll.u32 [#allocation2], 4
      %s2950 = int_to_ptr.vmem [resolvable:$true] %s2949
      %s2951 = sshll.u32 %s8, 4
      %s2952 = int_to_ptr.hbm [resolvable:$true] %s2951
      %2954 = dma.vmem_to_hbm [thread:$0]  %s2950, 32, %s2952, [#allocation3]
    $region37: #{cnn_forward.11} parent=1 // pred_fallthru
      _
    // Predicated region
    $region38: #{cnn_forward.11} parent=1 // pred_check
      _
    $region39: #{cnn_forward.11} parent=1 // pred_check_branch
      %2956 = sbr.rel (0) target = $region41
    $region40: #{cnn_forward.11} parent=1 // pred_region
      %2958 = dma.done [#allocation3], 32
    $region41: #{cnn_forward.11} parent=1 // pred_fallthru
      _
    %2959 = vsyncpa [#allocation3], 1

</llo_original>
